<compile_context>
chip_gen: v7x
topology: tpu7x:2x2x1
jax: 0.10.0
libtpu: 0.0.40
codegen_flags: <defaults>
</compile_context>

<pallas_src>
import functools
import inspect

import jax
import jax.numpy as jnp
from jax.experimental import pallas as pl
from jax.experimental.pallas import tpu as pltpu

K_PAD = 8  # fc1 contracting dim padded 3 -> 8 (sublane-aligned, works for VPU and MXU paths)


def _round_up(a, m):
    return (a + m - 1) // m * m


def _single_buffer_supported():
    if not hasattr(pl, "Buffered"):
        return False
    try:
        return "pipeline_mode" in inspect.signature(pl.BlockSpec).parameters
    except (TypeError, ValueError):
        return False


def _prefer_fc1_on_mxu():
    """fc1->MXU only pays where the VPU (not the MXU) saturates first (v6e/v7x)."""
    try:
        kind = jax.devices()[0].device_kind.lower()
    except Exception:
        return False
    return not any(tag in kind for tag in ("v2", "v3", "v4", "v5"))


def _sender1_kernel(x_ref, w1_ref, b1_ref, w2_ref, b2_ref, w3_ref, b3_ref,
                    o_ref, *, fc1_on_mxu):
    x = x_ref[...]                                      # (bb, 8) f32, cols 3..7 are zero

    # fc1: 3 -> H
    if fc1_on_mxu:
        # Large-batch path on MXU-rich chips: one tiny-K MXU matmul instead of
        # ~6*bb*H VPU element-ops, relieving the saturating VPU slot.
        h1 = jnp.dot(x, w1_ref[...].astype(jnp.float32),
                     preferred_element_type=jnp.float32) + b1_ref[...]
    else:
        # Tiny-batch / v5e path: three VPU broadcast-FMAs (MXU is either the binding
        # unit there, or the kernel is weight-DMA bound anyway).
        w1 = w1_ref[...].astype(jnp.float32)
        h1 = (x[:, 0:1] * w1[0:1, :]
              + x[:, 1:2] * w1[1:2, :]
              + x[:, 2:3] * w1[2:3, :]
              + b1_ref[...])
    h1 = jnp.maximum(h1, 0.01 * h1)                     # leaky_relu, 2 VPU ops/elem

    # fc2 on the MXU: bf16 inputs, f32 accumulation.
    h2 = jnp.dot(h1.astype(jnp.bfloat16), w2_ref[...],
                 preferred_element_type=jnp.float32) + b2_ref[...]
    h2 = jnp.maximum(h2, 0.01 * h2)

    # fc3; padded vocab lanes come out as exactly -1e30 (pre-baked into b3).
    logits = jnp.dot(h2.astype(jnp.bfloat16), w3_ref[...],
                     preferred_element_type=jnp.float32) + b3_ref[...]

    # Numerically stable log_softmax along the lane axis; the -1e30 padded lanes
    # contribute exp(.) == 0 to the sum and are sliced off by the wrapper.
    m = jnp.max(logits, axis=-1, keepdims=True)
    shifted = logits - m
    lse = jnp.log(jnp.sum(jnp.exp(shifted), axis=-1, keepdims=True))
    o_ref[...] = shifted - lse


def sender1_forward(x, packed, vocab_size, *, block_b=1024, fc1_on_mxu=None):
    """x: (B, 4) float32.  packed: padded/bf16 params from pack_params()."""
    w1, b1 = packed["w1"], packed["b1"]
    w2, b2 = packed["w2"], packed["b2"]
    w3, b3 = packed["w3"], packed["b3"]

    H = w2.shape[0]          # padded hidden (1024)
    Vp = w3.shape[1]         # padded vocab  (multiple of 128)

    # ids == 3 path: drop the color-id column, keep the LAB triple; pad K 3 -> 8.
    x_lab = x[:, 1:4].astype(jnp.float32)                            # (B, 3)
    B = x_lab.shape[0]
    x_lab = jnp.pad(x_lab, ((0, 0), (0, K_PAD - 3)))                 # (B, 8)

    # Pad batch to a sublane-aligned block; grid over batch blocks.
    bb = min(block_b, _round_up(B, 8))
    B_pad = _round_up(B, bb)
    if B_pad != B:
        x_lab = jnp.pad(x_lab, ((0, B_pad - B), (0, 0)))
    grid = (B_pad // bb,)

    if fc1_on_mxu is None:
        # Only once the VPU is the binding slot (large per-block batch, v6e/v7x).
        fc1_on_mxu = (bb >= 256) and _prefer_fc1_on_mxu()

    kernel = functools.partial(_sender1_kernel, fc1_on_mxu=fc1_on_mxu)

    cost = pl.CostEstimate(
        flops=2 * B_pad * (K_PAD * H + H * H + H * Vp),
        transcendentals=B_pad * Vp,
        bytes_accessed=(w1.size + w2.size + w3.size) * 2
        + (b1.size + b2.size + b3.size) * 4
        + x_lab.size * 4 + B_pad * Vp * 4,
    )
    out_shape = jax.ShapeDtypeStruct((B_pad, Vp), jnp.float32)

    def run(single_buffer_weights):
        if single_buffer_weights:
            def wspec(shape):
                # Pinned to block (0, 0) every grid step: single-buffer so the
                # revisited weight block doesn't burn 2x VMEM.
                return pl.BlockSpec(shape, lambda i: (0, 0),
                                    pipeline_mode=pl.Buffered(1))
        else:
            def wspec(shape):
                return pl.BlockSpec(shape, lambda i: (0, 0))

        return pl.pallas_call(
            kernel,
            out_shape=out_shape,
            grid=grid,
            in_specs=[
                pl.BlockSpec((bb, K_PAD), lambda i: (i, 0)),   # activations: per block
                wspec((K_PAD, H)),                             # weights: VMEM-resident
                wspec((1, H)),
                wspec((H, H)),
                wspec((1, H)),
                wspec((H, Vp)),
                wspec((1, Vp)),
            ],
            out_specs=pl.BlockSpec((bb, Vp), lambda i: (i, 0)),
            compiler_params=pltpu.CompilerParams(
                dimension_semantics=("parallel",),
                vmem_limit_bytes=48 * 1024 * 1024,
            ),
            cost_estimate=cost,
        )(x_lab, w1, b1, w2, b2, w3, b3)

    if _single_buffer_supported():
        try:
            out = run(True)
        except Exception:
            # Installed jax rejects Buffered(1) on the TPU pipeline: fall back to the
            # default double-buffered specs (correct, just ~2.3 MiB more VMEM).
            out = run(False)
    else:
        out = run(False)

    return out[:B, :vocab_size]


def init_params(key, vocab_size, hidden=1000):
    """f32, unpadded params mimicking nn.Linear default init U(+-1/sqrt(fan_in))."""
    def linear(k, fan_in, fan_out):
        kw, kb = jax.random.split(k)
        bound = 1.0 / jnp.sqrt(jnp.float32(fan_in))
        w = jax.random.uniform(kw, (fan_in, fan_out), jnp.float32, -bound, bound)
        b = jax.random.uniform(kb, (1, fan_out), jnp.float32, -bound, bound)
        return w, b

    k1, k2, k3 = jax.random.split(key, 3)
    w1, b1 = linear(k1, 3, hidden)
    w2, b2 = linear(k2, hidden, hidden)
    w3, b3 = linear(k3, hidden, vocab_size)
    return {"w1": w1, "b1": b1, "w2": w2, "b2": b2, "w3": w3, "b3": b3}


def pack_params(params):
    """Pad hidden->1024 / vocab->mult-of-128 / K->8, cast weights to bf16, and bake
    the padded-vocab -1e30 mask directly into b3."""
    w1, b1 = params["w1"], params["b1"]
    w2, b2 = params["w2"], params["b2"]
    w3, b3 = params["w3"], params["b3"]
    hidden = w2.shape[0]
    vocab = w3.shape[1]
    Hp = _round_up(hidden, 128)
    Vp = _round_up(vocab, 128)

    def pad(a, rows, cols, fill=0.0):
        return jnp.pad(a, ((0, rows - a.shape[0]), (0, cols - a.shape[1])),
                       constant_values=fill)

    return {
        "w1": pad(w1, K_PAD, Hp).astype(jnp.bfloat16),
        "b1": pad(b1, 1, Hp),
        "w2": pad(w2, Hp, Hp).astype(jnp.bfloat16),
        "b2": pad(b2, 1, Hp),
        "w3": pad(w3, Hp, Vp).astype(jnp.bfloat16),
        # Padded W3 columns are zero, so padded logits == padded b3: pre-bias the
        # padded vocab lanes to -1e30 so the kernel needs no iota/where mask.
        "b3": pad(b3, 1, Vp, fill=-1e30),
    }


def sender1_reference_bf16(x, packed, vocab_size):
    """Pure-JAX reference using the same padded/bf16 params (tight tolerance)."""
    xl = x[:, 1:4].astype(jnp.float32)
    w1 = packed["w1"][:3].astype(jnp.float32)
    h = xl @ w1 + packed["b1"]
    h = jnp.maximum(h, 0.01 * h)
    h = jnp.dot(h.astype(jnp.bfloat16), packed["w2"],
                preferred_element_type=jnp.float32) + packed["b2"]
    h = jnp.maximum(h, 0.01 * h)
    lg = jnp.dot(h.astype(jnp.bfloat16), packed["w3"],
                 preferred_element_type=jnp.float32) + packed["b3"]
    return jax.nn.log_softmax(lg[:, :vocab_size], axis=-1)


def sender1_reference_f32(x, params):
    """Pure-JAX f32 reference (loose tolerance vs bf16-weight kernel)."""
    xl = x[:, 1:]
    h = xl @ params["w1"] + params["b1"]
    h = jnp.where(h > 0, h, 0.01 * h)
    h = h @ params["w2"] + params["b2"]
    h = jnp.where(h > 0, h, 0.01 * h)
    lg = h @ params["w3"] + params["b3"]
    return jax.nn.log_softmax(lg, axis=-1)


if __name__ == "__main__":
    key = jax.random.PRNGKey(0)
    k_x, k_p = jax.random.split(key)

    vocab_size = 24
    batch = 2

    # x: column 0 = color id (ignored for ids=3), columns 1:4 = LAB coordinates
    x = jax.random.uniform(k_x, (batch, 4), jnp.float32, 0.0, 1.0)
    params = init_params(k_p, vocab_size)
    packed = pack_params(params)

    out = sender1_forward(x, packed, vocab_size)
    out = jax.block_until_ready(out)

    assert out.shape == (batch, vocab_size), out.shape

    # Tight check vs a reference that uses the identical bf16 weights/cast path.
    ref_bf16 = sender1_reference_bf16(x, packed, vocab_size)
    assert jnp.allclose(out, ref_bf16, atol=2e-3, rtol=2e-3), "mismatch vs bf16 reference"

    # Loose check vs the full-precision module semantics.
    ref_f32 = sender1_reference_f32(x, params)
    assert jnp.allclose(out, ref_f32, atol=5e-2, rtol=5e-2), "mismatch vs f32 reference"

    # log_softmax sanity: rows must exponentiate-sum to 1
    assert jnp.allclose(jnp.sum(jnp.exp(out), axis=-1), 1.0, atol=1e-3)

    print("KERNEL_OK")
</pallas_src>

<mosaic_0001>
module attributes {stable_mosaic.version = 11 : i64} {
  func.func @_sender1_kernel(%arg0: i32, %arg1: memref<8x8xf32, #tpu.memory_space<vmem>>, %arg2: memref<8x1024xbf16, #tpu.memory_space<vmem>>, %arg3: memref<1x1024xf32, #tpu.memory_space<vmem>>, %arg4: memref<1024x1024xbf16, #tpu.memory_space<vmem>>, %arg5: memref<1x1024xf32, #tpu.memory_space<vmem>>, %arg6: memref<1024x128xbf16, #tpu.memory_space<vmem>>, %arg7: memref<1x128xf32, #tpu.memory_space<vmem>>, %arg8: memref<8x128xf32, #tpu.memory_space<vmem>>) attributes {dimension_semantics = [#tpu.dimension_semantics<parallel>], iteration_bounds = array<i64: 1>, scalar_prefetch = 0 : i64, scratch_operands = 0 : i64, tpu.core_type = #tpu.core_type<tc>, window_params = [{transform_indices = @transform_0, window_bounds = array<i64: 8, 8>}, {pipeline_mode = #tpu.pipeline_mode<synchronous>, transform_indices = @transform_1, window_bounds = array<i64: 8, 1024>}, {pipeline_mode = #tpu.pipeline_mode<synchronous>, transform_indices = @transform_2, window_bounds = array<i64: 1, 1024>}, {pipeline_mode = #tpu.pipeline_mode<synchronous>, transform_indices = @transform_3, window_bounds = array<i64: 1024, 1024>}, {pipeline_mode = #tpu.pipeline_mode<synchronous>, transform_indices = @transform_4, window_bounds = array<i64: 1, 1024>}, {pipeline_mode = #tpu.pipeline_mode<synchronous>, transform_indices = @transform_5, window_bounds = array<i64: 1024, 128>}, {pipeline_mode = #tpu.pipeline_mode<synchronous>, transform_indices = @transform_6, window_bounds = array<i64: 1, 128>}, {transform_indices = @transform_7, window_bounds = array<i64: 8, 128>}]} {
    %c0 = arith.constant 0 : index
    %c0_0 = arith.constant 0 : index
    %0 = vector.load %arg1[%c0, %c0_0] : memref<8x8xf32, #tpu.memory_space<vmem>>, vector<8x8xf32>
    %c0_1 = arith.constant 0 : index
    %c0_2 = arith.constant 0 : index
    %1 = vector.load %arg2[%c0_1, %c0_2] : memref<8x1024xbf16, #tpu.memory_space<vmem>>, vector<8x1024xbf16>
    %2 = arith.extf %1 : vector<8x1024xbf16> to vector<8x1024xf32>
    %3 = vector.extract_strided_slice %0 {offsets = [0, 0], sizes = [8, 1], strides = [1, 1]} : vector<8x8xf32> to vector<8x1xf32>
    %4 = vector.extract_strided_slice %2 {offsets = [0, 0], sizes = [1, 1024], strides = [1, 1]} : vector<8x1024xf32> to vector<1x1024xf32>
    %5 = vector.broadcast %3 : vector<8x1xf32> to vector<8x1024xf32>
    %6 = vector.broadcast %4 : vector<1x1024xf32> to vector<8x1024xf32>
    %7 = arith.mulf %5, %6 : vector<8x1024xf32>
    %8 = vector.extract_strided_slice %0 {offsets = [0, 1], sizes = [8, 1], strides = [1, 1]} : vector<8x8xf32> to vector<8x1xf32>
    %9 = vector.extract_strided_slice %2 {offsets = [1, 0], sizes = [1, 1024], strides = [1, 1]} : vector<8x1024xf32> to vector<1x1024xf32>
    %10 = vector.broadcast %8 : vector<8x1xf32> to vector<8x1024xf32>
    %11 = vector.broadcast %9 : vector<1x1024xf32> to vector<8x1024xf32>
    %12 = arith.mulf %10, %11 : vector<8x1024xf32>
    %13 = arith.addf %7, %12 : vector<8x1024xf32>
    %14 = vector.extract_strided_slice %0 {offsets = [0, 2], sizes = [8, 1], strides = [1, 1]} : vector<8x8xf32> to vector<8x1xf32>
    %15 = vector.extract_strided_slice %2 {offsets = [2, 0], sizes = [1, 1024], strides = [1, 1]} : vector<8x1024xf32> to vector<1x1024xf32>
    %16 = vector.broadcast %14 : vector<8x1xf32> to vector<8x1024xf32>
    %17 = vector.broadcast %15 : vector<1x1024xf32> to vector<8x1024xf32>
    %18 = arith.mulf %16, %17 : vector<8x1024xf32>
    %19 = arith.addf %13, %18 : vector<8x1024xf32>
    %c0_3 = arith.constant 0 : index
    %c0_4 = arith.constant 0 : index
    %20 = vector.load %arg3[%c0_3, %c0_4] : memref<1x1024xf32, #tpu.memory_space<vmem>>, vector<1x1024xf32>
    %21 = vector.broadcast %20 : vector<1x1024xf32> to vector<8x1024xf32>
    %22 = arith.addf %19, %21 : vector<8x1024xf32>
    %cst = arith.constant 0.00999999977 : f32
    %23 = vector.broadcast %cst : f32 to vector<8x1024xf32>
    %24 = arith.mulf %23, %22 : vector<8x1024xf32>
    %25 = arith.maximumf %22, %24 : vector<8x1024xf32>
    %26 = arith.truncf %25 : vector<8x1024xf32> to vector<8x1024xbf16>
    %c0_5 = arith.constant 0 : index
    %c0_6 = arith.constant 0 : index
    %27 = vector.load %arg4[%c0_5, %c0_6] : memref<1024x1024xbf16, #tpu.memory_space<vmem>>, vector<1024x1024xbf16>
    %cst_7 = arith.constant dense<0.000000e+00> : vector<8x1024xf32>
    %28 = tpu.matmul %26, %27, %cst_7 {dimension_numbers = #tpu.dot_dimension_numbers<[1], [0], [0], [1], [0, 0, 1, 1], [], []>} : vector<8x1024xbf16>, vector<1024x1024xbf16>, vector<8x1024xf32> -> vector<8x1024xf32>
    %c0_8 = arith.constant 0 : index
    %c0_9 = arith.constant 0 : index
    %29 = vector.load %arg5[%c0_8, %c0_9] : memref<1x1024xf32, #tpu.memory_space<vmem>>, vector<1x1024xf32>
    %30 = vector.broadcast %29 : vector<1x1024xf32> to vector<8x1024xf32>
    %31 = arith.addf %28, %30 : vector<8x1024xf32>
    %cst_10 = arith.constant 0.00999999977 : f32
    %32 = vector.broadcast %cst_10 : f32 to vector<8x1024xf32>
    %33 = arith.mulf %32, %31 : vector<8x1024xf32>
    %34 = arith.maximumf %31, %33 : vector<8x1024xf32>
    %35 = arith.truncf %34 : vector<8x1024xf32> to vector<8x1024xbf16>
    %c0_11 = arith.constant 0 : index
    %c0_12 = arith.constant 0 : index
    %36 = vector.load %arg6[%c0_11, %c0_12] : memref<1024x128xbf16, #tpu.memory_space<vmem>>, vector<1024x128xbf16>
    %cst_13 = arith.constant dense<0.000000e+00> : vector<8x128xf32>
    %37 = tpu.matmul %35, %36, %cst_13 {dimension_numbers = #tpu.dot_dimension_numbers<[1], [0], [0], [1], [0, 0, 1, 1], [], []>} : vector<8x1024xbf16>, vector<1024x128xbf16>, vector<8x128xf32> -> vector<8x128xf32>
    %c0_14 = arith.constant 0 : index
    %c0_15 = arith.constant 0 : index
    %38 = vector.load %arg7[%c0_14, %c0_15] : memref<1x128xf32, #tpu.memory_space<vmem>>, vector<1x128xf32>
    %39 = vector.broadcast %38 : vector<1x128xf32> to vector<8x128xf32>
    %40 = arith.addf %37, %39 : vector<8x128xf32>
    %cst_16 = arith.constant dense<0xFF800000> : vector<8xf32>
    %41 = vector.multi_reduction <maximumf>, %40, %cst_16 [1] : vector<8x128xf32> to vector<8xf32>
    %42 = vector.shape_cast %41 : vector<8xf32> to vector<8x1xf32>
    %43 = vector.broadcast %42 : vector<8x1xf32> to vector<8x128xf32>
    %44 = arith.subf %40, %43 : vector<8x128xf32>
    %45 = math.exp %44 : vector<8x128xf32>
    %cst_17 = arith.constant dense<0.000000e+00> : vector<8xf32>
    %46 = vector.multi_reduction <add>, %45, %cst_17 [1] : vector<8x128xf32> to vector<8xf32>
    %47 = vector.shape_cast %46 : vector<8xf32> to vector<8x1xf32>
    %48 = math.log %47 : vector<8x1xf32>
    %49 = vector.broadcast %48 : vector<8x1xf32> to vector<8x128xf32>
    %50 = arith.subf %44, %49 : vector<8x128xf32>
    %c0_18 = arith.constant 0 : index
    %c0_19 = arith.constant 0 : index
    %51 = vector.load %arg8[%c0_18, %c0_19] : memref<8x128xf32, #tpu.memory_space<vmem>>, vector<8x128xf32>
    tpu.vector_store %arg8[%c0_18, %c0_19], %50 {strides = array<i32>} : memref<8x128xf32, #tpu.memory_space<vmem>>, vector<8x128xf32>,
    return
  }
  func.func @transform_0(%arg0: i32) -> (i32, i32) {
    %c0_i32 = arith.constant 0 : i32
    %c0_i32_0 = arith.constant 0 : i32
    return %arg0, %c0_i32 : i32, i32
  }
  func.func @transform_1(%arg0: i32) -> (i32, i32) {
    %c0_i32 = arith.constant 0 : i32
    %c0_i32_0 = arith.constant 0 : i32
    %c0_i32_1 = arith.constant 0 : i32
    return %c0_i32, %c0_i32_0 : i32, i32
  }
  func.func @transform_2(%arg0: i32) -> (i32, i32) {
    %c0_i32 = arith.constant 0 : i32
    %c0_i32_0 = arith.constant 0 : i32
    %c0_i32_1 = arith.constant 0 : i32
    return %c0_i32, %c0_i32_0 : i32, i32
  }
  func.func @transform_3(%arg0: i32) -> (i32, i32) {
    %c0_i32 = arith.constant 0 : i32
    %c0_i32_0 = arith.constant 0 : i32
    %c0_i32_1 = arith.constant 0 : i32
    return %c0_i32, %c0_i32_0 : i32, i32
  }
  func.func @transform_4(%arg0: i32) -> (i32, i32) {
    %c0_i32 = arith.constant 0 : i32
    %c0_i32_0 = arith.constant 0 : i32
    %c0_i32_1 = arith.constant 0 : i32
    return %c0_i32, %c0_i32_0 : i32, i32
  }
  func.func @transform_5(%arg0: i32) -> (i32, i32) {
    %c0_i32 = arith.constant 0 : i32
    %c0_i32_0 = arith.constant 0 : i32
    %c0_i32_1 = arith.constant 0 : i32
    return %c0_i32, %c0_i32_0 : i32, i32
  }
  func.func @transform_6(%arg0: i32) -> (i32, i32) {
    %c0_i32 = arith.constant 0 : i32
    %c0_i32_0 = arith.constant 0 : i32
    %c0_i32_1 = arith.constant 0 : i32
    return %c0_i32, %c0_i32_0 : i32, i32
  }
  func.func @transform_7(%arg0: i32) -> (i32, i32) {
    %c0_i32 = arith.constant 0 : i32
    %c0_i32_0 = arith.constant 0 : i32
    return %arg0, %c0_i32 : i32, i32
  }
}

module attributes {stable_mosaic.version = 11 : i64} {
  func.func @_sender1_kernel(%arg0: i32, %arg1: memref<8x8xf32, #tpu.memory_space<vmem>>, %arg2: memref<8x1024xbf16, #tpu.memory_space<vmem>>, %arg3: memref<1x1024xf32, #tpu.memory_space<vmem>>, %arg4: memref<1024x1024xbf16, #tpu.memory_space<vmem>>, %arg5: memref<1x1024xf32, #tpu.memory_space<vmem>>, %arg6: memref<1024x128xbf16, #tpu.memory_space<vmem>>, %arg7: memref<1x128xf32, #tpu.memory_space<vmem>>, %arg8: memref<8x128xf32, #tpu.memory_space<vmem>>) attributes {dimension_semantics = [#tpu.dimension_semantics<parallel>], iteration_bounds = array<i64: 1>, scalar_prefetch = 0 : i64, scratch_operands = 0 : i64, tpu.core_type = #tpu.core_type<tc>, window_params = [{transform_indices = @transform_0, window_bounds = array<i64: 8, 8>}, {pipeline_mode = #tpu.pipeline_mode<synchronous>, transform_indices = @transform_1, window_bounds = array<i64: 8, 1024>}, {pipeline_mode = #tpu.pipeline_mode<synchronous>, transform_indices = @transform_2, window_bounds = array<i64: 1, 1024>}, {pipeline_mode = #tpu.pipeline_mode<synchronous>, transform_indices = @transform_3, window_bounds = array<i64: 1024, 1024>}, {pipeline_mode = #tpu.pipeline_mode<synchronous>, transform_indices = @transform_4, window_bounds = array<i64: 1, 1024>}, {pipeline_mode = #tpu.pipeline_mode<synchronous>, transform_indices = @transform_5, window_bounds = array<i64: 1024, 128>}, {pipeline_mode = #tpu.pipeline_mode<synchronous>, transform_indices = @transform_6, window_bounds = array<i64: 1, 128>}, {transform_indices = @transform_7, window_bounds = array<i64: 8, 128>}]} {
    %c0 = arith.constant 0 : index
    %c0_0 = arith.constant 0 : index
    %0 = vector.load %arg1[%c0, %c0_0] : memref<8x8xf32, #tpu.memory_space<vmem>>, vector<8x8xf32>
    %c0_1 = arith.constant 0 : index
    %c0_2 = arith.constant 0 : index
    %1 = vector.load %arg2[%c0_1, %c0_2] : memref<8x1024xbf16, #tpu.memory_space<vmem>>, vector<8x1024xbf16>
    %2 = arith.extf %1 : vector<8x1024xbf16> to vector<8x1024xf32>
    %3 = vector.extract_strided_slice %0 {offsets = [0, 0], sizes = [8, 1], strides = [1, 1]} : vector<8x8xf32> to vector<8x1xf32>
    %4 = vector.extract_strided_slice %2 {offsets = [0, 0], sizes = [1, 1024], strides = [1, 1]} : vector<8x1024xf32> to vector<1x1024xf32>
    %5 = vector.broadcast %3 : vector<8x1xf32> to vector<8x1024xf32>
    %6 = vector.broadcast %4 : vector<1x1024xf32> to vector<8x1024xf32>
    %7 = arith.mulf %5, %6 : vector<8x1024xf32>
    %8 = vector.extract_strided_slice %0 {offsets = [0, 1], sizes = [8, 1], strides = [1, 1]} : vector<8x8xf32> to vector<8x1xf32>
    %9 = vector.extract_strided_slice %2 {offsets = [1, 0], sizes = [1, 1024], strides = [1, 1]} : vector<8x1024xf32> to vector<1x1024xf32>
    %10 = vector.broadcast %8 : vector<8x1xf32> to vector<8x1024xf32>
    %11 = vector.broadcast %9 : vector<1x1024xf32> to vector<8x1024xf32>
    %12 = arith.mulf %10, %11 : vector<8x1024xf32>
    %13 = arith.addf %7, %12 : vector<8x1024xf32>
    %14 = vector.extract_strided_slice %0 {offsets = [0, 2], sizes = [8, 1], strides = [1, 1]} : vector<8x8xf32> to vector<8x1xf32>
    %15 = vector.extract_strided_slice %2 {offsets = [2, 0], sizes = [1, 1024], strides = [1, 1]} : vector<8x1024xf32> to vector<1x1024xf32>
    %16 = vector.broadcast %14 : vector<8x1xf32> to vector<8x1024xf32>
    %17 = vector.broadcast %15 : vector<1x1024xf32> to vector<8x1024xf32>
    %18 = arith.mulf %16, %17 : vector<8x1024xf32>
    %19 = arith.addf %13, %18 : vector<8x1024xf32>
    %c0_3 = arith.constant 0 : index
    %c0_4 = arith.constant 0 : index
    %20 = vector.load %arg3[%c0_3, %c0_4] : memref<1x1024xf32, #tpu.memory_space<vmem>>, vector<1x1024xf32>
    %21 = vector.broadcast %20 : vector<1x1024xf32> to vector<8x1024xf32>
    %22 = arith.addf %19, %21 : vector<8x1024xf32>
    %cst = arith.constant 0.00999999977 : f32
    %23 = vector.broadcast %cst : f32 to vector<8x1024xf32>
    %24 = arith.mulf %23, %22 : vector<8x1024xf32>
    %25 = arith.maximumf %22, %24 : vector<8x1024xf32>
    %26 = arith.truncf %25 : vector<8x1024xf32> to vector<8x1024xbf16>
    %c0_5 = arith.constant 0 : index
    %c0_6 = arith.constant 0 : index
    %27 = vector.load %arg4[%c0_5, %c0_6] : memref<1024x1024xbf16, #tpu.memory_space<vmem>>, vector<1024x1024xbf16>
    %cst_7 = arith.constant dense<0.000000e+00> : vector<8x1024xf32>
    %28 = tpu.matmul %26, %27, %cst_7 {dimension_numbers = #tpu.dot_dimension_numbers<[1], [0], [0], [1], [0, 0, 1, 1], [], []>} : vector<8x1024xbf16>, vector<1024x1024xbf16>, vector<8x1024xf32> -> vector<8x1024xf32>
    %c0_8 = arith.constant 0 : index
    %c0_9 = arith.constant 0 : index
    %29 = vector.load %arg5[%c0_8, %c0_9] : memref<1x1024xf32, #tpu.memory_space<vmem>>, vector<1x1024xf32>
    %30 = vector.broadcast %29 : vector<1x1024xf32> to vector<8x1024xf32>
    %31 = arith.addf %28, %30 : vector<8x1024xf32>
    %cst_10 = arith.constant 0.00999999977 : f32
    %32 = vector.broadcast %cst_10 : f32 to vector<8x1024xf32>
    %33 = arith.mulf %32, %31 : vector<8x1024xf32>
    %34 = arith.maximumf %31, %33 : vector<8x1024xf32>
    %35 = arith.truncf %34 : vector<8x1024xf32> to vector<8x1024xbf16>
    %c0_11 = arith.constant 0 : index
    %c0_12 = arith.constant 0 : index
    %36 = vector.load %arg6[%c0_11, %c0_12] : memref<1024x128xbf16, #tpu.memory_space<vmem>>, vector<1024x128xbf16>
    %cst_13 = arith.constant dense<0.000000e+00> : vector<8x128xf32>
    %37 = tpu.matmul %35, %36, %cst_13 {dimension_numbers = #tpu.dot_dimension_numbers<[1], [0], [0], [1], [0, 0, 1, 1], [], []>} : vector<8x1024xbf16>, vector<1024x128xbf16>, vector<8x128xf32> -> vector<8x128xf32>
    %c0_14 = arith.constant 0 : index
    %c0_15 = arith.constant 0 : index
    %38 = vector.load %arg7[%c0_14, %c0_15] : memref<1x128xf32, #tpu.memory_space<vmem>>, vector<1x128xf32>
    %39 = vector.broadcast %38 : vector<1x128xf32> to vector<8x128xf32>
    %40 = arith.addf %37, %39 : vector<8x128xf32>
    %cst_16 = arith.constant dense<0xFF800000> : vector<8xf32>
    %41 = vector.multi_reduction <maximumf>, %40, %cst_16 [1] : vector<8x128xf32> to vector<8xf32>
    %42 = vector.shape_cast %41 : vector<8xf32> to vector<8x1xf32>
    %43 = vector.broadcast %42 : vector<8x1xf32> to vector<8x128xf32>
    %44 = arith.subf %40, %43 : vector<8x128xf32>
    %45 = math.exp %44 : vector<8x128xf32>
    %cst_17 = arith.constant dense<0.000000e+00> : vector<8xf32>
    %46 = vector.multi_reduction <add>, %45, %cst_17 [1] : vector<8x128xf32> to vector<8xf32>
    %47 = vector.shape_cast %46 : vector<8xf32> to vector<8x1xf32>
    %48 = math.log %47 : vector<8x1xf32>
    %49 = vector.broadcast %48 : vector<8x1xf32> to vector<8x128xf32>
    %50 = arith.subf %44, %49 : vector<8x128xf32>
    %c0_18 = arith.constant 0 : index
    %c0_19 = arith.constant 0 : index
    %51 = vector.load %arg8[%c0_18, %c0_19] : memref<8x128xf32, #tpu.memory_space<vmem>>, vector<8x128xf32>
    tpu.vector_store %arg8[%c0_18, %c0_19], %50 {strides = array<i32>} : memref<8x128xf32, #tpu.memory_space<vmem>>, vector<8x128xf32>,
    return
  }
  func.func @transform_0(%arg0: i32) -> (i32, i32) {
    %c0_i32 = arith.constant 0 : i32
    %c0_i32_0 = arith.constant 0 : i32
    return %arg0, %c0_i32 : i32, i32
  }
  func.func @transform_1(%arg0: i32) -> (i32, i32) {
    %c0_i32 = arith.constant 0 : i32
    %c0_i32_0 = arith.constant 0 : i32
    %c0_i32_1 = arith.constant 0 : i32
    return %c0_i32, %c0_i32_0 : i32, i32
  }
  func.func @transform_2(%arg0: i32) -> (i32, i32) {
    %c0_i32 = arith.constant 0 : i32
    %c0_i32_0 = arith.constant 0 : i32
    %c0_i32_1 = arith.constant 0 : i32
    return %c0_i32, %c0_i32_0 : i32, i32
  }
  func.func @transform_3(%arg0: i32) -> (i32, i32) {
    %c0_i32 = arith.constant 0 : i32
    %c0_i32_0 = arith.constant 0 : i32
    %c0_i32_1 = arith.constant 0 : i32
    return %c0_i32, %c0_i32_0 : i32, i32
  }
  func.func @transform_4(%arg0: i32) -> (i32, i32) {
    %c0_i32 = arith.constant 0 : i32
    %c0_i32_0 = arith.constant 0 : i32
    %c0_i32_1 = arith.constant 0 : i32
    return %c0_i32, %c0_i32_0 : i32, i32
  }
  func.func @transform_5(%arg0: i32) -> (i32, i32) {
    %c0_i32 = arith.constant 0 : i32
    %c0_i32_0 = arith.constant 0 : i32
    %c0_i32_1 = arith.constant 0 : i32
    return %c0_i32, %c0_i32_0 : i32, i32
  }
  func.func @transform_6(%arg0: i32) -> (i32, i32) {
    %c0_i32 = arith.constant 0 : i32
    %c0_i32_0 = arith.constant 0 : i32
    %c0_i32_1 = arith.constant 0 : i32
    return %c0_i32, %c0_i32_0 : i32, i32
  }
  func.func @transform_7(%arg0: i32) -> (i32, i32) {
    %c0_i32 = arith.constant 0 : i32
    %c0_i32_0 = arith.constant 0 : i32
    return %arg0, %c0_i32 : i32, i32
  }
}

</mosaic_0001>

<llo_original>
// kernel: tpu_custom_call.1
$region0: #{tpu_custom_call.1}
  #allocation0 [shape = 'u32[]', space=smem, size = 0x4, offset = 0x4, fixed_abs, tag = 'smem constant byte address 0x4 - core index']
  #allocation1 [shape = 'u32[144,128]{1,0:T(1,128)}', space=vmem, size = 0x12000, scoped, tag = 'internal scratch']
  %s0 = inlined_call_operand.hbm [shape: f32[8,8], index: 0, kind: input, shape index: {}]
  %s1 = inlined_call_operand.hbm [shape: bf16[8,1024], index: 1, kind: input, shape index: {}]
  %s2 = inlined_call_operand.hbm [shape: f32[1,1024], index: 2, kind: input, shape index: {}]
  %s3 = inlined_call_operand.hbm [shape: bf16[1024,1024], index: 3, kind: input, shape index: {}]
  %s4 = inlined_call_operand.hbm [shape: f32[1,1024], index: 4, kind: input, shape index: {}]
  %s5 = inlined_call_operand.hbm [shape: bf16[1024,128], index: 5, kind: input, shape index: {}]
  %s6 = inlined_call_operand.hbm [shape: f32[1,128], index: 6, kind: input, shape index: {}]
  %s7 = inlined_call_operand.hbm [shape: f32[8,128], index: 7, kind: output, shape index: {}]
  %s8 = sld [smem:[#allocation0]]
  $region66: #{tpu_custom_call.1} parent=0
    _
  %s10 = ssub.s32 1, %s8
  %s11 = scalar_select 0, %s10, %s8
  $region1: #{tpu_custom_call.1} parent=0
    #allocation2 [shape = 'u8[4096]{0}', space=vmem, size = 0x1000, scoped, tag = 'input window, operand 0, single buffered']
    #allocation3 [shape = 's32[1]{0}', space=sflag, size = 0x4, scoped, tag = 'scoped memory for tpu_custom_call.1']
    #allocation4 [shape = 's32[1]{0}', space=sflag, size = 0x4, scoped, tag = 'scoped memory for tpu_custom_call.1']
    #allocation5 [shape = 'u8[16384]{0}', space=vmem, size = 0x4000, scoped, tag = 'input window, operand 1, single buffered']
    #allocation6 [shape = 's32[1]{0}', space=sflag, size = 0x4, scoped, tag = 'scoped memory for tpu_custom_call.1']
    #allocation7 [shape = 'u8[4096]{0}', space=vmem, size = 0x1000, scoped, tag = 'input window, operand 2, single buffered']
    #allocation8 [shape = 'u8[2097152]{0}', space=vmem, size = 0x200000, scoped, tag = 'input window, operand 3, single buffered']
    #allocation9 [shape = 's32[1]{0}', space=sflag, size = 0x4, scoped, tag = 'scoped memory for tpu_custom_call.1']
    #allocation10 [shape = 'u8[4096]{0}', space=vmem, size = 0x1000, scoped, tag = 'input window, operand 4, single buffered']
    #allocation11 [shape = 'u8[262144]{0}', space=vmem, size = 0x40000, scoped, tag = 'input window, operand 5, single buffered']
    #allocation12 [shape = 's32[1]{0}', space=sflag, size = 0x4, scoped, tag = 'scoped memory for tpu_custom_call.1']
    #allocation13 [shape = 'u8[512]{0}', space=vmem, size = 0x400, scoped, tag = 'input window, operand 6, single buffered']
    #allocation14 [shape = 'u8[4096]{0}', space=vmem, size = 0x1000, scoped, tag = 'output window, operand 0, single buffered']
    %12 = vsyncpa [#allocation3], 0
    %13 = vsyncpa [#allocation6], 0
    %14 = vsyncpa [#allocation9], 0
    %15 = vsyncpa [#allocation12], 0
    %16 = vsyncpa [#allocation4], 0
    // Predicated region
    $region2: #{tpu_custom_call.1} parent=1 // pred_check
      _
    $region3: #{tpu_custom_call.1} parent=1 // pred_check_branch
      %18 = sbr.rel (0) target = $region5
    $region4: #{tpu_custom_call.1} parent=1 // pred_region
      %s20 = ssub.s32 128, 128
      %21 = vsyncadd [#allocation3], %s20
      %s23 = sshll.u32 [#allocation2], 4
      %s24 = int_to_ptr.vmem [resolvable:$true] %s23
      %26 = dma.hbm_to_vmem [thread:$0]  %s0, 128, %s24, [#allocation3]
    $region5: #{tpu_custom_call.1} parent=1 // pred_fallthru
      _
    // Predicated region
    $region6: #{tpu_custom_call.1} parent=1 // pred_check
      _
    $region7: #{tpu_custom_call.1} parent=1 // pred_check_branch
      %28 = sbr.rel (0) target = $region9
    $region8: #{tpu_custom_call.1} parent=1 // pred_region
      %s30 = ssub.s32 512, 512
      %31 = vsyncadd [#allocation6], %s30
      %s33 = sshll.u32 [#allocation5], 4
      %s34 = int_to_ptr.vmem [resolvable:$true] %s33
      %36 = dma.hbm_to_vmem [thread:$0]  %s1, 512, %s34, [#allocation6]
    $region9: #{tpu_custom_call.1} parent=1 // pred_fallthru
      _
    // Predicated region
    $region10: #{tpu_custom_call.1} parent=1 // pred_check
      _
    $region11: #{tpu_custom_call.1} parent=1 // pred_check_branch
      %38 = sbr.rel (0) target = $region13
    $region12: #{tpu_custom_call.1} parent=1 // pred_region
      %s40 = ssub.s32 128, 128
      %41 = vsyncadd [#allocation6], %s40
      %s43 = sshll.u32 [#allocation7], 4
      %s44 = int_to_ptr.vmem [resolvable:$true] %s43
      %46 = dma.hbm_to_vmem [thread:$0]  %s2, 128, %s44, [#allocation6]
    $region13: #{tpu_custom_call.1} parent=1 // pred_fallthru
      _
    // Predicated region
    $region14: #{tpu_custom_call.1} parent=1 // pred_check
      _
    $region15: #{tpu_custom_call.1} parent=1 // pred_check_branch
      %48 = sbr.rel (0) target = $region17
    $region16: #{tpu_custom_call.1} parent=1 // pred_region
      %s50 = ssub.s32 65536, 65536
      %51 = vsyncadd [#allocation9], %s50
      %s52 = sshll.u32 [#allocation8], 4
      %s53 = int_to_ptr.vmem [resolvable:$true] %s52
      %58 = dma.hbm_to_vmem [thread:$0]  %s3, 65536, %s53, [#allocation9], 512, 512, 32
    $region17: #{tpu_custom_call.1} parent=1 // pred_fallthru
      _
    // Predicated region
    $region18: #{tpu_custom_call.1} parent=1 // pred_check
      _
    $region19: #{tpu_custom_call.1} parent=1 // pred_check_branch
      %60 = sbr.rel (0) target = $region21
    $region20: #{tpu_custom_call.1} parent=1 // pred_region
      %s62 = ssub.s32 128, 128
      %63 = vsyncadd [#allocation9], %s62
      %s65 = sshll.u32 [#allocation10], 4
      %s66 = int_to_ptr.vmem [resolvable:$true] %s65
      %68 = dma.hbm_to_vmem [thread:$0]  %s4, 128, %s66, [#allocation9]
    $region21: #{tpu_custom_call.1} parent=1 // pred_fallthru
      _
    // Predicated region
    $region22: #{tpu_custom_call.1} parent=1 // pred_check
      _
    $region23: #{tpu_custom_call.1} parent=1 // pred_check_branch
      %70 = sbr.rel (0) target = $region25
    $region24: #{tpu_custom_call.1} parent=1 // pred_region
      %s72 = ssub.s32 8192, 8192
      %73 = vsyncadd [#allocation12], %s72
      %s74 = sshll.u32 [#allocation11], 4
      %s75 = int_to_ptr.vmem [resolvable:$true] %s74
      %80 = dma.hbm_to_vmem [thread:$0]  %s5, 8192, %s75, [#allocation12], 64, 64, 4
    $region25: #{tpu_custom_call.1} parent=1 // pred_fallthru
      _
    // Predicated region
    $region26: #{tpu_custom_call.1} parent=1 // pred_check
      _
    $region27: #{tpu_custom_call.1} parent=1 // pred_check_branch
      %82 = sbr.rel (0) target = $region29
    $region28: #{tpu_custom_call.1} parent=1 // pred_region
      %s84 = ssub.s32 16, 16
      %85 = vsyncadd [#allocation12], %s84
      %s87 = sshll.u32 [#allocation13], 4
      %s88 = int_to_ptr.vmem [resolvable:$true] %s87
      %90 = dma.hbm_to_vmem [thread:$0]  %s6, 16, %s88, [#allocation12]
    $region29: #{tpu_custom_call.1} parent=1 // pred_fallthru
      _
    // Predicated region
    $region30: #{tpu_custom_call.1} parent=1 // pred_check
      _
    $region31: #{tpu_custom_call.1} parent=1 // pred_check_branch
      %92 = sbr.rel (0) target = $region33
    $region32: #{tpu_custom_call.1} parent=1 // pred_region
      %93 = dma.done [#allocation3], 128
    $region33: #{tpu_custom_call.1} parent=1 // pred_fallthru
      _
    // Predicated region
    $region34: #{tpu_custom_call.1} parent=1 // pred_check
      _
    $region35: #{tpu_custom_call.1} parent=1 // pred_check_branch
      %95 = sbr.rel (0) target = $region37
    $region36: #{tpu_custom_call.1} parent=1 // pred_region
      %96 = dma.done [#allocation6], 512
    $region37: #{tpu_custom_call.1} parent=1 // pred_fallthru
      _
    // Predicated region
    $region38: #{tpu_custom_call.1} parent=1 // pred_check
      _
    $region39: #{tpu_custom_call.1} parent=1 // pred_check_branch
      %98 = sbr.rel (0) target = $region41
    $region40: #{tpu_custom_call.1} parent=1 // pred_region
      %99 = dma.done [#allocation6], 128
    $region41: #{tpu_custom_call.1} parent=1 // pred_fallthru
      _
    // Predicated region
    $region42: #{tpu_custom_call.1} parent=1 // pred_check
      _
    $region43: #{tpu_custom_call.1} parent=1 // pred_check_branch
      %101 = sbr.rel (0) target = $region45
    $region44: #{tpu_custom_call.1} parent=1 // pred_region
      %102 = dma.done [#allocation9], 65536
    $region45: #{tpu_custom_call.1} parent=1 // pred_fallthru
      _
    // Predicated region
    $region46: #{tpu_custom_call.1} parent=1 // pred_check
      _
    $region47: #{tpu_custom_call.1} parent=1 // pred_check_branch
      %104 = sbr.rel (0) target = $region49
    $region48: #{tpu_custom_call.1} parent=1 // pred_region
      %105 = dma.done [#allocation9], 128
    $region49: #{tpu_custom_call.1} parent=1 // pred_fallthru
      _
    // Predicated region
    $region50: #{tpu_custom_call.1} parent=1 // pred_check
      _
    $region51: #{tpu_custom_call.1} parent=1 // pred_check_branch
      %107 = sbr.rel (0) target = $region53
    $region52: #{tpu_custom_call.1} parent=1 // pred_region
      %108 = dma.done [#allocation12], 8192
    $region53: #{tpu_custom_call.1} parent=1 // pred_fallthru
      _
    // Predicated region
    $region54: #{tpu_custom_call.1} parent=1 // pred_check
      _
    $region55: #{tpu_custom_call.1} parent=1 // pred_check_branch
      %110 = sbr.rel (0) target = $region57
    $region56: #{tpu_custom_call.1} parent=1 // pred_region
      %111 = dma.done [#allocation12], 16
    $region57: #{tpu_custom_call.1} parent=1 // pred_fallthru
      _
    %v113 = vld [vmem:[#allocation2] sm:$0xff]
    %v114 = vld [vmem:[#allocation5] sm:$0xff]
    %v115 = vld [vmem:[#allocation5 + $0x8] sm:$0xff]
    %v116 = vld [vmem:[#allocation5 + $0x10] sm:$0xff]
    %v117 = vld [vmem:[#allocation5 + $0x18] sm:$0xff]
    %v118 = vunpack.c.l.bf16 %v114
    %v119 = vunpack.c.h.bf16 %v114
    %v120 = vunpack.c.l.bf16 %v115
    %v121 = vunpack.c.h.bf16 %v115
    %v122 = vunpack.c.l.bf16 %v116
    %v123 = vunpack.c.h.bf16 %v116
    %v124 = vunpack.c.l.bf16 %v117
    %v125 = vunpack.c.h.bf16 %v117
    %127 = vset.pattern.permute.xlu0 0
    %128 = vperm.xlu0 %127, %v113
    %v129 = vpop.permute.xlu0 %128
    %v131 = vlaneseq
    %v132 = vshrl.u32 %v131, 7
    %v133 = vsub.s32 0, %v132
    %v134 = vrot.slane %v118, %v133
    %v135 = vlaneseq
    %v136 = vshrl.u32 %v135, 7
    %v137 = vsub.s32 0, %v136
    %v138 = vrot.slane %v119, %v137
    %v139 = vlaneseq
    %v140 = vshrl.u32 %v139, 7
    %v141 = vsub.s32 0, %v140
    %v142 = vrot.slane %v120, %v141
    %v143 = vlaneseq
    %v144 = vshrl.u32 %v143, 7
    %v145 = vsub.s32 0, %v144
    %v146 = vrot.slane %v121, %v145
    %v147 = vlaneseq
    %v148 = vshrl.u32 %v147, 7
    %v149 = vsub.s32 0, %v148
    %v150 = vrot.slane %v122, %v149
    %v151 = vlaneseq
    %v152 = vshrl.u32 %v151, 7
    %v153 = vsub.s32 0, %v152
    %v154 = vrot.slane %v123, %v153
    %v155 = vlaneseq
    %v156 = vshrl.u32 %v155, 7
    %v157 = vsub.s32 0, %v156
    %v158 = vrot.slane %v124, %v157
    %v159 = vlaneseq
    %v160 = vshrl.u32 %v159, 7
    %v161 = vsub.s32 0, %v160
    %v162 = vrot.slane %v125, %v161
    %v163 = vmul.f32 %v129, %v134
    %v164 = vmul.f32 %v129, %v138
    %v165 = vmul.f32 %v129, %v142
    %v166 = vmul.f32 %v129, %v146
    %v167 = vmul.f32 %v129, %v150
    %v168 = vmul.f32 %v129, %v154
    %v169 = vmul.f32 %v129, %v158
    %v170 = vmul.f32 %v129, %v162
    %171 = vset.pattern.permute.xlu0 1
    %172 = vperm.xlu0 %171, %v113
    %v173 = vpop.permute.xlu0 %172
    %v175 = vlaneseq
    %v176 = vshrl.u32 %v175, 7
    %v177 = vsub.s32 1, %v176
    %v178 = vrot.slane %v118, %v177
    %v179 = vlaneseq
    %v180 = vshrl.u32 %v179, 7
    %v181 = vsub.s32 1, %v180
    %v182 = vrot.slane %v119, %v181
    %v183 = vlaneseq
    %v184 = vshrl.u32 %v183, 7
    %v185 = vsub.s32 1, %v184
    %v186 = vrot.slane %v120, %v185
    %v187 = vlaneseq
    %v188 = vshrl.u32 %v187, 7
    %v189 = vsub.s32 1, %v188
    %v190 = vrot.slane %v121, %v189
    %v191 = vlaneseq
    %v192 = vshrl.u32 %v191, 7
    %v193 = vsub.s32 1, %v192
    %v194 = vrot.slane %v122, %v193
    %v195 = vlaneseq
    %v196 = vshrl.u32 %v195, 7
    %v197 = vsub.s32 1, %v196
    %v198 = vrot.slane %v123, %v197
    %v199 = vlaneseq
    %v200 = vshrl.u32 %v199, 7
    %v201 = vsub.s32 1, %v200
    %v202 = vrot.slane %v124, %v201
    %v203 = vlaneseq
    %v204 = vshrl.u32 %v203, 7
    %v205 = vsub.s32 1, %v204
    %v206 = vrot.slane %v125, %v205
    %v207 = vmul.f32 %v173, %v178
    %v208 = vmul.f32 %v173, %v182
    %v209 = vmul.f32 %v173, %v186
    %v210 = vmul.f32 %v173, %v190
    %v211 = vmul.f32 %v173, %v194
    %v212 = vmul.f32 %v173, %v198
    %v213 = vmul.f32 %v173, %v202
    %v214 = vmul.f32 %v173, %v206
    %v215 = vadd.f32 %v163, %v207
    %v216 = vadd.f32 %v164, %v208
    %v217 = vadd.f32 %v165, %v209
    %v218 = vadd.f32 %v166, %v210
    %v219 = vadd.f32 %v167, %v211
    %v220 = vadd.f32 %v168, %v212
    %v221 = vadd.f32 %v169, %v213
    %v222 = vadd.f32 %v170, %v214
    %223 = vset.pattern.permute.xlu0 2
    %224 = vperm.xlu0 %223, %v113
    %v225 = vpop.permute.xlu0 %224
    %v227 = vlaneseq
    %v228 = vshrl.u32 %v227, 7
    %v229 = vsub.s32 2, %v228
    %v230 = vrot.slane %v118, %v229
    %v231 = vlaneseq
    %v232 = vshrl.u32 %v231, 7
    %v233 = vsub.s32 2, %v232
    %v234 = vrot.slane %v119, %v233
    %v235 = vlaneseq
    %v236 = vshrl.u32 %v235, 7
    %v237 = vsub.s32 2, %v236
    %v238 = vrot.slane %v120, %v237
    %v239 = vlaneseq
    %v240 = vshrl.u32 %v239, 7
    %v241 = vsub.s32 2, %v240
    %v242 = vrot.slane %v121, %v241
    %v243 = vlaneseq
    %v244 = vshrl.u32 %v243, 7
    %v245 = vsub.s32 2, %v244
    %v246 = vrot.slane %v122, %v245
    %v247 = vlaneseq
    %v248 = vshrl.u32 %v247, 7
    %v249 = vsub.s32 2, %v248
    %v250 = vrot.slane %v123, %v249
    %v251 = vlaneseq
    %v252 = vshrl.u32 %v251, 7
    %v253 = vsub.s32 2, %v252
    %v254 = vrot.slane %v124, %v253
    %v255 = vlaneseq
    %v256 = vshrl.u32 %v255, 7
    %v257 = vsub.s32 2, %v256
    %v258 = vrot.slane %v125, %v257
    %v259 = vmul.f32 %v225, %v230
    %v260 = vmul.f32 %v225, %v234
    %v261 = vmul.f32 %v225, %v238
    %v262 = vmul.f32 %v225, %v242
    %v263 = vmul.f32 %v225, %v246
    %v264 = vmul.f32 %v225, %v250
    %v265 = vmul.f32 %v225, %v254
    %v266 = vmul.f32 %v225, %v258
    %v267 = vadd.f32 %v215, %v259
    %v268 = vadd.f32 %v216, %v260
    %v269 = vadd.f32 %v217, %v261
    %v270 = vadd.f32 %v218, %v262
    %v271 = vadd.f32 %v219, %v263
    %v272 = vadd.f32 %v220, %v264
    %v273 = vadd.f32 %v221, %v265
    %v274 = vadd.f32 %v222, %v266
    %v275 = vld [vmem:[#allocation7] sm:$0xff]
    %v277 = vlaneseq
    %v278 = vshrl.u32 %v277, 7
    %v279 = vsub.s32 0, %v278
    %v280 = vrot.slane %v275, %v279
    %v281 = vlaneseq
    %v282 = vshrl.u32 %v281, 7
    %v283 = vsub.s32 1, %v282
    %v284 = vrot.slane %v275, %v283
    %v285 = vlaneseq
    %v286 = vshrl.u32 %v285, 7
    %v287 = vsub.s32 2, %v286
    %v288 = vrot.slane %v275, %v287
    %v289 = vlaneseq
    %v290 = vshrl.u32 %v289, 7
    %v291 = vsub.s32 3, %v290
    %v292 = vrot.slane %v275, %v291
    %v293 = vlaneseq
    %v294 = vshrl.u32 %v293, 7
    %v295 = vsub.s32 4, %v294
    %v296 = vrot.slane %v275, %v295
    %v297 = vlaneseq
    %v298 = vshrl.u32 %v297, 7
    %v299 = vsub.s32 5, %v298
    %v300 = vrot.slane %v275, %v299
    %v301 = vlaneseq
    %v302 = vshrl.u32 %v301, 7
    %v303 = vsub.s32 6, %v302
    %v304 = vrot.slane %v275, %v303
    %v305 = vlaneseq
    %v306 = vshrl.u32 %v305, 7
    %v307 = vsub.s32 7, %v306
    %v308 = vrot.slane %v275, %v307
    %v317 = vadd.f32 %v267, %v280
    %v318 = vadd.f32 %v268, %v284
    %v319 = vadd.f32 %v269, %v288
    %v320 = vadd.f32 %v270, %v292
    %v321 = vadd.f32 %v271, %v296
    %v322 = vadd.f32 %v272, %v300
    %v323 = vadd.f32 %v273, %v304
    %v324 = vadd.f32 %v274, %v308
    %v325 = vmul.f32 %v317, 0.01
    %v326 = vmul.f32 %v318, 0.01
    %v327 = vmul.f32 %v319, 0.01
    %v328 = vmul.f32 %v320, 0.01
    %v329 = vmul.f32 %v321, 0.01
    %v330 = vmul.f32 %v322, 0.01
    %v331 = vmul.f32 %v323, 0.01
    %v332 = vmul.f32 %v324, 0.01
    %v333 = vmax.f32 %v317, %v325
    %v334 = vmax.f32 %v318, %v326
    %v335 = vmax.f32 %v319, %v327
    %v336 = vmax.f32 %v320, %v328
    %v337 = vmax.f32 %v321, %v329
    %v338 = vmax.f32 %v322, %v330
    %v339 = vmax.f32 %v323, %v331
    %v340 = vmax.f32 %v324, %v332
    %v341 = vpack.c.bf16 %v333, %v333
    %v342 = vpack.c.bf16 %v334, %v334
    %v343 = vpack.c.bf16 %v335, %v335
    %v344 = vpack.c.bf16 %v336, %v336
    %v345 = vpack.c.bf16 %v337, %v337
    %v346 = vpack.c.bf16 %v338, %v338
    %v347 = vpack.c.bf16 %v339, %v339
    %v348 = vpack.c.bf16 %v340, %v340
    %v349 = vld [vmem:[#allocation8] sm:$0xff]
    %v350 = vld [vmem:[#allocation8 + $0x8] sm:$0xff]
    %v351 = vld [vmem:[#allocation8 + $0x10] sm:$0xff]
    %v352 = vld [vmem:[#allocation8 + $0x18] sm:$0xff]
    %v353 = vld [vmem:[#allocation8 + $0x20] sm:$0xff]
    %v354 = vld [vmem:[#allocation8 + $0x28] sm:$0xff]
    %v355 = vld [vmem:[#allocation8 + $0x30] sm:$0xff]
    %v356 = vld [vmem:[#allocation8 + $0x38] sm:$0xff]
    %v357 = vld [vmem:[#allocation8 + $0x40] sm:$0xff]
    %v358 = vld [vmem:[#allocation8 + $0x48] sm:$0xff]
    %v359 = vld [vmem:[#allocation8 + $0x50] sm:$0xff]
    %v360 = vld [vmem:[#allocation8 + $0x58] sm:$0xff]
    %v361 = vld [vmem:[#allocation8 + $0x60] sm:$0xff]
    %v362 = vld [vmem:[#allocation8 + $0x68] sm:$0xff]
    %v363 = vld [vmem:[#allocation8 + $0x70] sm:$0xff]
    %v364 = vld [vmem:[#allocation8 + $0x78] sm:$0xff]
    %v365 = vld [vmem:[#allocation8 + $0x80] sm:$0xff]
    %v366 = vld [vmem:[#allocation8 + $0x88] sm:$0xff]
    %v367 = vld [vmem:[#allocation8 + $0x90] sm:$0xff]
    %v368 = vld [vmem:[#allocation8 + $0x98] sm:$0xff]
    %v369 = vld [vmem:[#allocation8 + $0xa0] sm:$0xff]
    %v370 = vld [vmem:[#allocation8 + $0xa8] sm:$0xff]
    %v371 = vld [vmem:[#allocation8 + $0xb0] sm:$0xff]
    %v372 = vld [vmem:[#allocation8 + $0xb8] sm:$0xff]
    %v373 = vld [vmem:[#allocation8 + $0xc0] sm:$0xff]
    %v374 = vld [vmem:[#allocation8 + $0xc8] sm:$0xff]
    %v375 = vld [vmem:[#allocation8 + $0xd0] sm:$0xff]
    %v376 = vld [vmem:[#allocation8 + $0xd8] sm:$0xff]
    %v377 = vld [vmem:[#allocation8 + $0xe0] sm:$0xff]
    %v378 = vld [vmem:[#allocation8 + $0xe8] sm:$0xff]
    %v379 = vld [vmem:[#allocation8 + $0xf0] sm:$0xff]
    %v380 = vld [vmem:[#allocation8 + $0xf8] sm:$0xff]
    %v381 = vld [vmem:[#allocation8 + $0x100] sm:$0xff]
    %v382 = vld [vmem:[#allocation8 + $0x108] sm:$0xff]
    %v383 = vld [vmem:[#allocation8 + $0x110] sm:$0xff]
    %v384 = vld [vmem:[#allocation8 + $0x118] sm:$0xff]
    %v385 = vld [vmem:[#allocation8 + $0x120] sm:$0xff]
    %v386 = vld [vmem:[#allocation8 + $0x128] sm:$0xff]
    %v387 = vld [vmem:[#allocation8 + $0x130] sm:$0xff]
    %v388 = vld [vmem:[#allocation8 + $0x138] sm:$0xff]
    %v389 = vld [vmem:[#allocation8 + $0x140] sm:$0xff]
    %v390 = vld [vmem:[#allocation8 + $0x148] sm:$0xff]
    %v391 = vld [vmem:[#allocation8 + $0x150] sm:$0xff]
    %v392 = vld [vmem:[#allocation8 + $0x158] sm:$0xff]
    %v393 = vld [vmem:[#allocation8 + $0x160] sm:$0xff]
    %v394 = vld [vmem:[#allocation8 + $0x168] sm:$0xff]
    %v395 = vld [vmem:[#allocation8 + $0x170] sm:$0xff]
    %v396 = vld [vmem:[#allocation8 + $0x178] sm:$0xff]
    %v397 = vld [vmem:[#allocation8 + $0x180] sm:$0xff]
    %v398 = vld [vmem:[#allocation8 + $0x188] sm:$0xff]
    %v399 = vld [vmem:[#allocation8 + $0x190] sm:$0xff]
    %v400 = vld [vmem:[#allocation8 + $0x198] sm:$0xff]
    %v401 = vld [vmem:[#allocation8 + $0x1a0] sm:$0xff]
    %v402 = vld [vmem:[#allocation8 + $0x1a8] sm:$0xff]
    %v403 = vld [vmem:[#allocation8 + $0x1b0] sm:$0xff]
    %v404 = vld [vmem:[#allocation8 + $0x1b8] sm:$0xff]
    %v405 = vld [vmem:[#allocation8 + $0x1c0] sm:$0xff]
    %v406 = vld [vmem:[#allocation8 + $0x1c8] sm:$0xff]
    %v407 = vld [vmem:[#allocation8 + $0x1d0] sm:$0xff]
    %v408 = vld [vmem:[#allocation8 + $0x1d8] sm:$0xff]
    %v409 = vld [vmem:[#allocation8 + $0x1e0] sm:$0xff]
    %v410 = vld [vmem:[#allocation8 + $0x1e8] sm:$0xff]
    %v411 = vld [vmem:[#allocation8 + $0x1f0] sm:$0xff]
    %v412 = vld [vmem:[#allocation8 + $0x1f8] sm:$0xff]
    %v413 = vld [vmem:[#allocation8 + $0x200] sm:$0xff]
    %v414 = vld [vmem:[#allocation8 + $0x208] sm:$0xff]
    %v415 = vld [vmem:[#allocation8 + $0x210] sm:$0xff]
    %v416 = vld [vmem:[#allocation8 + $0x218] sm:$0xff]
    %v417 = vld [vmem:[#allocation8 + $0x220] sm:$0xff]
    %v418 = vld [vmem:[#allocation8 + $0x228] sm:$0xff]
    %v419 = vld [vmem:[#allocation8 + $0x230] sm:$0xff]
    %v420 = vld [vmem:[#allocation8 + $0x238] sm:$0xff]
    %v421 = vld [vmem:[#allocation8 + $0x240] sm:$0xff]
    %v422 = vld [vmem:[#allocation8 + $0x248] sm:$0xff]
    %v423 = vld [vmem:[#allocation8 + $0x250] sm:$0xff]
    %v424 = vld [vmem:[#allocation8 + $0x258] sm:$0xff]
    %v425 = vld [vmem:[#allocation8 + $0x260] sm:$0xff]
    %v426 = vld [vmem:[#allocation8 + $0x268] sm:$0xff]
    %v427 = vld [vmem:[#allocation8 + $0x270] sm:$0xff]
    %v428 = vld [vmem:[#allocation8 + $0x278] sm:$0xff]
    %v429 = vld [vmem:[#allocation8 + $0x280] sm:$0xff]
    %v430 = vld [vmem:[#allocation8 + $0x288] sm:$0xff]
    %v431 = vld [vmem:[#allocation8 + $0x290] sm:$0xff]
    %v432 = vld [vmem:[#allocation8 + $0x298] sm:$0xff]
    %v433 = vld [vmem:[#allocation8 + $0x2a0] sm:$0xff]
    %v434 = vld [vmem:[#allocation8 + $0x2a8] sm:$0xff]
    %v435 = vld [vmem:[#allocation8 + $0x2b0] sm:$0xff]
    %v436 = vld [vmem:[#allocation8 + $0x2b8] sm:$0xff]
    %v437 = vld [vmem:[#allocation8 + $0x2c0] sm:$0xff]
    %v438 = vld [vmem:[#allocation8 + $0x2c8] sm:$0xff]
    %v439 = vld [vmem:[#allocation8 + $0x2d0] sm:$0xff]
    %v440 = vld [vmem:[#allocation8 + $0x2d8] sm:$0xff]
    %v441 = vld [vmem:[#allocation8 + $0x2e0] sm:$0xff]
    %v442 = vld [vmem:[#allocation8 + $0x2e8] sm:$0xff]
    %v443 = vld [vmem:[#allocation8 + $0x2f0] sm:$0xff]
    %v444 = vld [vmem:[#allocation8 + $0x2f8] sm:$0xff]
    %v445 = vld [vmem:[#allocation8 + $0x300] sm:$0xff]
    %v446 = vld [vmem:[#allocation8 + $0x308] sm:$0xff]
    %v447 = vld [vmem:[#allocation8 + $0x310] sm:$0xff]
    %v448 = vld [vmem:[#allocation8 + $0x318] sm:$0xff]
    %v449 = vld [vmem:[#allocation8 + $0x320] sm:$0xff]
    %v450 = vld [vmem:[#allocation8 + $0x328] sm:$0xff]
    %v451 = vld [vmem:[#allocation8 + $0x330] sm:$0xff]
    %v452 = vld [vmem:[#allocation8 + $0x338] sm:$0xff]
    %v453 = vld [vmem:[#allocation8 + $0x340] sm:$0xff]
    %v454 = vld [vmem:[#allocation8 + $0x348] sm:$0xff]
    %v455 = vld [vmem:[#allocation8 + $0x350] sm:$0xff]
    %v456 = vld [vmem:[#allocation8 + $0x358] sm:$0xff]
    %v457 = vld [vmem:[#allocation8 + $0x360] sm:$0xff]
    %v458 = vld [vmem:[#allocation8 + $0x368] sm:$0xff]
    %v459 = vld [vmem:[#allocation8 + $0x370] sm:$0xff]
    %v460 = vld [vmem:[#allocation8 + $0x378] sm:$0xff]
    %v461 = vld [vmem:[#allocation8 + $0x380] sm:$0xff]
    %v462 = vld [vmem:[#allocation8 + $0x388] sm:$0xff]
    %v463 = vld [vmem:[#allocation8 + $0x390] sm:$0xff]
    %v464 = vld [vmem:[#allocation8 + $0x398] sm:$0xff]
    %v465 = vld [vmem:[#allocation8 + $0x3a0] sm:$0xff]
    %v466 = vld [vmem:[#allocation8 + $0x3a8] sm:$0xff]
    %v467 = vld [vmem:[#allocation8 + $0x3b0] sm:$0xff]
    %v468 = vld [vmem:[#allocation8 + $0x3b8] sm:$0xff]
    %v469 = vld [vmem:[#allocation8 + $0x3c0] sm:$0xff]
    %v470 = vld [vmem:[#allocation8 + $0x3c8] sm:$0xff]
    %v471 = vld [vmem:[#allocation8 + $0x3d0] sm:$0xff]
    %v472 = vld [vmem:[#allocation8 + $0x3d8] sm:$0xff]
    %v473 = vld [vmem:[#allocation8 + $0x3e0] sm:$0xff]
    %v474 = vld [vmem:[#allocation8 + $0x3e8] sm:$0xff]
    %v475 = vld [vmem:[#allocation8 + $0x3f0] sm:$0xff]
    %v476 = vld [vmem:[#allocation8 + $0x3f8] sm:$0xff]
    %v477 = vld [vmem:[#allocation8 + $0x400] sm:$0xff]
    %v478 = vld [vmem:[#allocation8 + $0x408] sm:$0xff]
    %v479 = vld [vmem:[#allocation8 + $0x410] sm:$0xff]
    %v480 = vld [vmem:[#allocation8 + $0x418] sm:$0xff]
    %v481 = vld [vmem:[#allocation8 + $0x420] sm:$0xff]
    %v482 = vld [vmem:[#allocation8 + $0x428] sm:$0xff]
    %v483 = vld [vmem:[#allocation8 + $0x430] sm:$0xff]
    %v484 = vld [vmem:[#allocation8 + $0x438] sm:$0xff]
    %v485 = vld [vmem:[#allocation8 + $0x440] sm:$0xff]
    %v486 = vld [vmem:[#allocation8 + $0x448] sm:$0xff]
    %v487 = vld [vmem:[#allocation8 + $0x450] sm:$0xff]
    %v488 = vld [vmem:[#allocation8 + $0x458] sm:$0xff]
    %v489 = vld [vmem:[#allocation8 + $0x460] sm:$0xff]
    %v490 = vld [vmem:[#allocation8 + $0x468] sm:$0xff]
    %v491 = vld [vmem:[#allocation8 + $0x470] sm:$0xff]
    %v492 = vld [vmem:[#allocation8 + $0x478] sm:$0xff]
    %v493 = vld [vmem:[#allocation8 + $0x480] sm:$0xff]
    %v494 = vld [vmem:[#allocation8 + $0x488] sm:$0xff]
    %v495 = vld [vmem:[#allocation8 + $0x490] sm:$0xff]
    %v496 = vld [vmem:[#allocation8 + $0x498] sm:$0xff]
    %v497 = vld [vmem:[#allocation8 + $0x4a0] sm:$0xff]
    %v498 = vld [vmem:[#allocation8 + $0x4a8] sm:$0xff]
    %v499 = vld [vmem:[#allocation8 + $0x4b0] sm:$0xff]
    %v500 = vld [vmem:[#allocation8 + $0x4b8] sm:$0xff]
    %v501 = vld [vmem:[#allocation8 + $0x4c0] sm:$0xff]
    %v502 = vld [vmem:[#allocation8 + $0x4c8] sm:$0xff]
    %v503 = vld [vmem:[#allocation8 + $0x4d0] sm:$0xff]
    %v504 = vld [vmem:[#allocation8 + $0x4d8] sm:$0xff]
    %v505 = vld [vmem:[#allocation8 + $0x4e0] sm:$0xff]
    %v506 = vld [vmem:[#allocation8 + $0x4e8] sm:$0xff]
    %v507 = vld [vmem:[#allocation8 + $0x4f0] sm:$0xff]
    %v508 = vld [vmem:[#allocation8 + $0x4f8] sm:$0xff]
    %v509 = vld [vmem:[#allocation8 + $0x500] sm:$0xff]
    %v510 = vld [vmem:[#allocation8 + $0x508] sm:$0xff]
    %v511 = vld [vmem:[#allocation8 + $0x510] sm:$0xff]
    %v512 = vld [vmem:[#allocation8 + $0x518] sm:$0xff]
    %v513 = vld [vmem:[#allocation8 + $0x520] sm:$0xff]
    %v514 = vld [vmem:[#allocation8 + $0x528] sm:$0xff]
    %v515 = vld [vmem:[#allocation8 + $0x530] sm:$0xff]
    %v516 = vld [vmem:[#allocation8 + $0x538] sm:$0xff]
    %v517 = vld [vmem:[#allocation8 + $0x540] sm:$0xff]
    %v518 = vld [vmem:[#allocation8 + $0x548] sm:$0xff]
    %v519 = vld [vmem:[#allocation8 + $0x550] sm:$0xff]
    %v520 = vld [vmem:[#allocation8 + $0x558] sm:$0xff]
    %v521 = vld [vmem:[#allocation8 + $0x560] sm:$0xff]
    %v522 = vld [vmem:[#allocation8 + $0x568] sm:$0xff]
    %v523 = vld [vmem:[#allocation8 + $0x570] sm:$0xff]
    %v524 = vld [vmem:[#allocation8 + $0x578] sm:$0xff]
    %v525 = vld [vmem:[#allocation8 + $0x580] sm:$0xff]
    %v526 = vld [vmem:[#allocation8 + $0x588] sm:$0xff]
    %v527 = vld [vmem:[#allocation8 + $0x590] sm:$0xff]
    %v528 = vld [vmem:[#allocation8 + $0x598] sm:$0xff]
    %v529 = vld [vmem:[#allocation8 + $0x5a0] sm:$0xff]
    %v530 = vld [vmem:[#allocation8 + $0x5a8] sm:$0xff]
    %v531 = vld [vmem:[#allocation8 + $0x5b0] sm:$0xff]
    %v532 = vld [vmem:[#allocation8 + $0x5b8] sm:$0xff]
    %v533 = vld [vmem:[#allocation8 + $0x5c0] sm:$0xff]
    %v534 = vld [vmem:[#allocation8 + $0x5c8] sm:$0xff]
    %v535 = vld [vmem:[#allocation8 + $0x5d0] sm:$0xff]
    %v536 = vld [vmem:[#allocation8 + $0x5d8] sm:$0xff]
    %v537 = vld [vmem:[#allocation8 + $0x5e0] sm:$0xff]
    %v538 = vld [vmem:[#allocation8 + $0x5e8] sm:$0xff]
    %v539 = vld [vmem:[#allocation8 + $0x5f0] sm:$0xff]
    %v540 = vld [vmem:[#allocation8 + $0x5f8] sm:$0xff]
    %v541 = vld [vmem:[#allocation8 + $0x600] sm:$0xff]
    %v542 = vld [vmem:[#allocation8 + $0x608] sm:$0xff]
    %v543 = vld [vmem:[#allocation8 + $0x610] sm:$0xff]
    %v544 = vld [vmem:[#allocation8 + $0x618] sm:$0xff]
    %v545 = vld [vmem:[#allocation8 + $0x620] sm:$0xff]
    %v546 = vld [vmem:[#allocation8 + $0x628] sm:$0xff]
    %v547 = vld [vmem:[#allocation8 + $0x630] sm:$0xff]
    %v548 = vld [vmem:[#allocation8 + $0x638] sm:$0xff]
    %v549 = vld [vmem:[#allocation8 + $0x640] sm:$0xff]
    %v550 = vld [vmem:[#allocation8 + $0x648] sm:$0xff]
    %v551 = vld [vmem:[#allocation8 + $0x650] sm:$0xff]
    %v552 = vld [vmem:[#allocation8 + $0x658] sm:$0xff]
    %v553 = vld [vmem:[#allocation8 + $0x660] sm:$0xff]
    %v554 = vld [vmem:[#allocation8 + $0x668] sm:$0xff]
    %v555 = vld [vmem:[#allocation8 + $0x670] sm:$0xff]
    %v556 = vld [vmem:[#allocation8 + $0x678] sm:$0xff]
    %v557 = vld [vmem:[#allocation8 + $0x680] sm:$0xff]
    %v558 = vld [vmem:[#allocation8 + $0x688] sm:$0xff]
    %v559 = vld [vmem:[#allocation8 + $0x690] sm:$0xff]
    %v560 = vld [vmem:[#allocation8 + $0x698] sm:$0xff]
    %v561 = vld [vmem:[#allocation8 + $0x6a0] sm:$0xff]
    %v562 = vld [vmem:[#allocation8 + $0x6a8] sm:$0xff]
    %v563 = vld [vmem:[#allocation8 + $0x6b0] sm:$0xff]
    %v564 = vld [vmem:[#allocation8 + $0x6b8] sm:$0xff]
    %v565 = vld [vmem:[#allocation8 + $0x6c0] sm:$0xff]
    %v566 = vld [vmem:[#allocation8 + $0x6c8] sm:$0xff]
    %v567 = vld [vmem:[#allocation8 + $0x6d0] sm:$0xff]
    %v568 = vld [vmem:[#allocation8 + $0x6d8] sm:$0xff]
    %v569 = vld [vmem:[#allocation8 + $0x6e0] sm:$0xff]
    %v570 = vld [vmem:[#allocation8 + $0x6e8] sm:$0xff]
    %v571 = vld [vmem:[#allocation8 + $0x6f0] sm:$0xff]
    %v572 = vld [vmem:[#allocation8 + $0x6f8] sm:$0xff]
    %v573 = vld [vmem:[#allocation8 + $0x700] sm:$0xff]
    %v574 = vld [vmem:[#allocation8 + $0x708] sm:$0xff]
    %v575 = vld [vmem:[#allocation8 + $0x710] sm:$0xff]
    %v576 = vld [vmem:[#allocation8 + $0x718] sm:$0xff]
    %v577 = vld [vmem:[#allocation8 + $0x720] sm:$0xff]
    %v578 = vld [vmem:[#allocation8 + $0x728] sm:$0xff]
    %v579 = vld [vmem:[#allocation8 + $0x730] sm:$0xff]
    %v580 = vld [vmem:[#allocation8 + $0x738] sm:$0xff]
    %v581 = vld [vmem:[#allocation8 + $0x740] sm:$0xff]
    %v582 = vld [vmem:[#allocation8 + $0x748] sm:$0xff]
    %v583 = vld [vmem:[#allocation8 + $0x750] sm:$0xff]
    %v584 = vld [vmem:[#allocation8 + $0x758] sm:$0xff]
    %v585 = vld [vmem:[#allocation8 + $0x760] sm:$0xff]
    %v586 = vld [vmem:[#allocation8 + $0x768] sm:$0xff]
    %v587 = vld [vmem:[#allocation8 + $0x770] sm:$0xff]
    %v588 = vld [vmem:[#allocation8 + $0x778] sm:$0xff]
    %v589 = vld [vmem:[#allocation8 + $0x780] sm:$0xff]
    %v590 = vld [vmem:[#allocation8 + $0x788] sm:$0xff]
    %v591 = vld [vmem:[#allocation8 + $0x790] sm:$0xff]
    %v592 = vld [vmem:[#allocation8 + $0x798] sm:$0xff]
    %v593 = vld [vmem:[#allocation8 + $0x7a0] sm:$0xff]
    %v594 = vld [vmem:[#allocation8 + $0x7a8] sm:$0xff]
    %v595 = vld [vmem:[#allocation8 + $0x7b0] sm:$0xff]
    %v596 = vld [vmem:[#allocation8 + $0x7b8] sm:$0xff]
    %v597 = vld [vmem:[#allocation8 + $0x7c0] sm:$0xff]
    %v598 = vld [vmem:[#allocation8 + $0x7c8] sm:$0xff]
    %v599 = vld [vmem:[#allocation8 + $0x7d0] sm:$0xff]
    %v600 = vld [vmem:[#allocation8 + $0x7d8] sm:$0xff]
    %v601 = vld [vmem:[#allocation8 + $0x7e0] sm:$0xff]
    %v602 = vld [vmem:[#allocation8 + $0x7e8] sm:$0xff]
    %v603 = vld [vmem:[#allocation8 + $0x7f0] sm:$0xff]
    %v604 = vld [vmem:[#allocation8 + $0x7f8] sm:$0xff]
    %v605 = vld [vmem:[#allocation8 + $0x800] sm:$0xff]
    %v606 = vld [vmem:[#allocation8 + $0x808] sm:$0xff]
    %v607 = vld [vmem:[#allocation8 + $0x810] sm:$0xff]
    %v608 = vld [vmem:[#allocation8 + $0x818] sm:$0xff]
    %v609 = vld [vmem:[#allocation8 + $0x820] sm:$0xff]
    %v610 = vld [vmem:[#allocation8 + $0x828] sm:$0xff]
    %v611 = vld [vmem:[#allocation8 + $0x830] sm:$0xff]
    %v612 = vld [vmem:[#allocation8 + $0x838] sm:$0xff]
    %v613 = vld [vmem:[#allocation8 + $0x840] sm:$0xff]
    %v614 = vld [vmem:[#allocation8 + $0x848] sm:$0xff]
    %v615 = vld [vmem:[#allocation8 + $0x850] sm:$0xff]
    %v616 = vld [vmem:[#allocation8 + $0x858] sm:$0xff]
    %v617 = vld [vmem:[#allocation8 + $0x860] sm:$0xff]
    %v618 = vld [vmem:[#allocation8 + $0x868] sm:$0xff]
    %v619 = vld [vmem:[#allocation8 + $0x870] sm:$0xff]
    %v620 = vld [vmem:[#allocation8 + $0x878] sm:$0xff]
    %v621 = vld [vmem:[#allocation8 + $0x880] sm:$0xff]
    %v622 = vld [vmem:[#allocation8 + $0x888] sm:$0xff]
    %v623 = vld [vmem:[#allocation8 + $0x890] sm:$0xff]
    %v624 = vld [vmem:[#allocation8 + $0x898] sm:$0xff]
    %v625 = vld [vmem:[#allocation8 + $0x8a0] sm:$0xff]
    %v626 = vld [vmem:[#allocation8 + $0x8a8] sm:$0xff]
    %v627 = vld [vmem:[#allocation8 + $0x8b0] sm:$0xff]
    %v628 = vld [vmem:[#allocation8 + $0x8b8] sm:$0xff]
    %v629 = vld [vmem:[#allocation8 + $0x8c0] sm:$0xff]
    %v630 = vld [vmem:[#allocation8 + $0x8c8] sm:$0xff]
    %v631 = vld [vmem:[#allocation8 + $0x8d0] sm:$0xff]
    %v632 = vld [vmem:[#allocation8 + $0x8d8] sm:$0xff]
    %v633 = vld [vmem:[#allocation8 + $0x8e0] sm:$0xff]
    %v634 = vld [vmem:[#allocation8 + $0x8e8] sm:$0xff]
    %v635 = vld [vmem:[#allocation8 + $0x8f0] sm:$0xff]
    %v636 = vld [vmem:[#allocation8 + $0x8f8] sm:$0xff]
    %v637 = vld [vmem:[#allocation8 + $0x900] sm:$0xff]
    %v638 = vld [vmem:[#allocation8 + $0x908] sm:$0xff]
    %v639 = vld [vmem:[#allocation8 + $0x910] sm:$0xff]
    %v640 = vld [vmem:[#allocation8 + $0x918] sm:$0xff]
    %v641 = vld [vmem:[#allocation8 + $0x920] sm:$0xff]
    %v642 = vld [vmem:[#allocation8 + $0x928] sm:$0xff]
    %v643 = vld [vmem:[#allocation8 + $0x930] sm:$0xff]
    %v644 = vld [vmem:[#allocation8 + $0x938] sm:$0xff]
    %v645 = vld [vmem:[#allocation8 + $0x940] sm:$0xff]
    %v646 = vld [vmem:[#allocation8 + $0x948] sm:$0xff]
    %v647 = vld [vmem:[#allocation8 + $0x950] sm:$0xff]
    %v648 = vld [vmem:[#allocation8 + $0x958] sm:$0xff]
    %v649 = vld [vmem:[#allocation8 + $0x960] sm:$0xff]
    %v650 = vld [vmem:[#allocation8 + $0x968] sm:$0xff]
    %v651 = vld [vmem:[#allocation8 + $0x970] sm:$0xff]
    %v652 = vld [vmem:[#allocation8 + $0x978] sm:$0xff]
    %v653 = vld [vmem:[#allocation8 + $0x980] sm:$0xff]
    %v654 = vld [vmem:[#allocation8 + $0x988] sm:$0xff]
    %v655 = vld [vmem:[#allocation8 + $0x990] sm:$0xff]
    %v656 = vld [vmem:[#allocation8 + $0x998] sm:$0xff]
    %v657 = vld [vmem:[#allocation8 + $0x9a0] sm:$0xff]
    %v658 = vld [vmem:[#allocation8 + $0x9a8] sm:$0xff]
    %v659 = vld [vmem:[#allocation8 + $0x9b0] sm:$0xff]
    %v660 = vld [vmem:[#allocation8 + $0x9b8] sm:$0xff]
    %v661 = vld [vmem:[#allocation8 + $0x9c0] sm:$0xff]
    %v662 = vld [vmem:[#allocation8 + $0x9c8] sm:$0xff]
    %v663 = vld [vmem:[#allocation8 + $0x9d0] sm:$0xff]
    %v664 = vld [vmem:[#allocation8 + $0x9d8] sm:$0xff]
    %v665 = vld [vmem:[#allocation8 + $0x9e0] sm:$0xff]
    %v666 = vld [vmem:[#allocation8 + $0x9e8] sm:$0xff]
    %v667 = vld [vmem:[#allocation8 + $0x9f0] sm:$0xff]
    %v668 = vld [vmem:[#allocation8 + $0x9f8] sm:$0xff]
    %v669 = vld [vmem:[#allocation8 + $0xa00] sm:$0xff]
    %v670 = vld [vmem:[#allocation8 + $0xa08] sm:$0xff]
    %v671 = vld [vmem:[#allocation8 + $0xa10] sm:$0xff]
    %v672 = vld [vmem:[#allocation8 + $0xa18] sm:$0xff]
    %v673 = vld [vmem:[#allocation8 + $0xa20] sm:$0xff]
    %v674 = vld [vmem:[#allocation8 + $0xa28] sm:$0xff]
    %v675 = vld [vmem:[#allocation8 + $0xa30] sm:$0xff]
    %v676 = vld [vmem:[#allocation8 + $0xa38] sm:$0xff]
    %v677 = vld [vmem:[#allocation8 + $0xa40] sm:$0xff]
    %v678 = vld [vmem:[#allocation8 + $0xa48] sm:$0xff]
    %v679 = vld [vmem:[#allocation8 + $0xa50] sm:$0xff]
    %v680 = vld [vmem:[#allocation8 + $0xa58] sm:$0xff]
    %v681 = vld [vmem:[#allocation8 + $0xa60] sm:$0xff]
    %v682 = vld [vmem:[#allocation8 + $0xa68] sm:$0xff]
    %v683 = vld [vmem:[#allocation8 + $0xa70] sm:$0xff]
    %v684 = vld [vmem:[#allocation8 + $0xa78] sm:$0xff]
    %v685 = vld [vmem:[#allocation8 + $0xa80] sm:$0xff]
    %v686 = vld [vmem:[#allocation8 + $0xa88] sm:$0xff]
    %v687 = vld [vmem:[#allocation8 + $0xa90] sm:$0xff]
    %v688 = vld [vmem:[#allocation8 + $0xa98] sm:$0xff]
    %v689 = vld [vmem:[#allocation8 + $0xaa0] sm:$0xff]
    %v690 = vld [vmem:[#allocation8 + $0xaa8] sm:$0xff]
    %v691 = vld [vmem:[#allocation8 + $0xab0] sm:$0xff]
    %v692 = vld [vmem:[#allocation8 + $0xab8] sm:$0xff]
    %v693 = vld [vmem:[#allocation8 + $0xac0] sm:$0xff]
    %v694 = vld [vmem:[#allocation8 + $0xac8] sm:$0xff]
    %v695 = vld [vmem:[#allocation8 + $0xad0] sm:$0xff]
    %v696 = vld [vmem:[#allocation8 + $0xad8] sm:$0xff]
    %v697 = vld [vmem:[#allocation8 + $0xae0] sm:$0xff]
    %v698 = vld [vmem:[#allocation8 + $0xae8] sm:$0xff]
    %v699 = vld [vmem:[#allocation8 + $0xaf0] sm:$0xff]
    %v700 = vld [vmem:[#allocation8 + $0xaf8] sm:$0xff]
    %v701 = vld [vmem:[#allocation8 + $0xb00] sm:$0xff]
    %v702 = vld [vmem:[#allocation8 + $0xb08] sm:$0xff]
    %v703 = vld [vmem:[#allocation8 + $0xb10] sm:$0xff]
    %v704 = vld [vmem:[#allocation8 + $0xb18] sm:$0xff]
    %v705 = vld [vmem:[#allocation8 + $0xb20] sm:$0xff]
    %v706 = vld [vmem:[#allocation8 + $0xb28] sm:$0xff]
    %v707 = vld [vmem:[#allocation8 + $0xb30] sm:$0xff]
    %v708 = vld [vmem:[#allocation8 + $0xb38] sm:$0xff]
    %v709 = vld [vmem:[#allocation8 + $0xb40] sm:$0xff]
    %v710 = vld [vmem:[#allocation8 + $0xb48] sm:$0xff]
    %v711 = vld [vmem:[#allocation8 + $0xb50] sm:$0xff]
    %v712 = vld [vmem:[#allocation8 + $0xb58] sm:$0xff]
    %v713 = vld [vmem:[#allocation8 + $0xb60] sm:$0xff]
    %v714 = vld [vmem:[#allocation8 + $0xb68] sm:$0xff]
    %v715 = vld [vmem:[#allocation8 + $0xb70] sm:$0xff]
    %v716 = vld [vmem:[#allocation8 + $0xb78] sm:$0xff]
    %v717 = vld [vmem:[#allocation8 + $0xb80] sm:$0xff]
    %v718 = vld [vmem:[#allocation8 + $0xb88] sm:$0xff]
    %v719 = vld [vmem:[#allocation8 + $0xb90] sm:$0xff]
    %v720 = vld [vmem:[#allocation8 + $0xb98] sm:$0xff]
    %v721 = vld [vmem:[#allocation8 + $0xba0] sm:$0xff]
    %v722 = vld [vmem:[#allocation8 + $0xba8] sm:$0xff]
    %v723 = vld [vmem:[#allocation8 + $0xbb0] sm:$0xff]
    %v724 = vld [vmem:[#allocation8 + $0xbb8] sm:$0xff]
    %v725 = vld [vmem:[#allocation8 + $0xbc0] sm:$0xff]
    %v726 = vld [vmem:[#allocation8 + $0xbc8] sm:$0xff]
    %v727 = vld [vmem:[#allocation8 + $0xbd0] sm:$0xff]
    %v728 = vld [vmem:[#allocation8 + $0xbd8] sm:$0xff]
    %v729 = vld [vmem:[#allocation8 + $0xbe0] sm:$0xff]
    %v730 = vld [vmem:[#allocation8 + $0xbe8] sm:$0xff]
    %v731 = vld [vmem:[#allocation8 + $0xbf0] sm:$0xff]
    %v732 = vld [vmem:[#allocation8 + $0xbf8] sm:$0xff]
    %v733 = vld [vmem:[#allocation8 + $0xc00] sm:$0xff]
    %v734 = vld [vmem:[#allocation8 + $0xc08] sm:$0xff]
    %v735 = vld [vmem:[#allocation8 + $0xc10] sm:$0xff]
    %v736 = vld [vmem:[#allocation8 + $0xc18] sm:$0xff]
    %v737 = vld [vmem:[#allocation8 + $0xc20] sm:$0xff]
    %v738 = vld [vmem:[#allocation8 + $0xc28] sm:$0xff]
    %v739 = vld [vmem:[#allocation8 + $0xc30] sm:$0xff]
    %v740 = vld [vmem:[#allocation8 + $0xc38] sm:$0xff]
    %v741 = vld [vmem:[#allocation8 + $0xc40] sm:$0xff]
    %v742 = vld [vmem:[#allocation8 + $0xc48] sm:$0xff]
    %v743 = vld [vmem:[#allocation8 + $0xc50] sm:$0xff]
    %v744 = vld [vmem:[#allocation8 + $0xc58] sm:$0xff]
    %v745 = vld [vmem:[#allocation8 + $0xc60] sm:$0xff]
    %v746 = vld [vmem:[#allocation8 + $0xc68] sm:$0xff]
    %v747 = vld [vmem:[#allocation8 + $0xc70] sm:$0xff]
    %v748 = vld [vmem:[#allocation8 + $0xc78] sm:$0xff]
    %v749 = vld [vmem:[#allocation8 + $0xc80] sm:$0xff]
    %v750 = vld [vmem:[#allocation8 + $0xc88] sm:$0xff]
    %v751 = vld [vmem:[#allocation8 + $0xc90] sm:$0xff]
    %v752 = vld [vmem:[#allocation8 + $0xc98] sm:$0xff]
    %v753 = vld [vmem:[#allocation8 + $0xca0] sm:$0xff]
    %v754 = vld [vmem:[#allocation8 + $0xca8] sm:$0xff]
    %v755 = vld [vmem:[#allocation8 + $0xcb0] sm:$0xff]
    %v756 = vld [vmem:[#allocation8 + $0xcb8] sm:$0xff]
    %v757 = vld [vmem:[#allocation8 + $0xcc0] sm:$0xff]
    %v758 = vld [vmem:[#allocation8 + $0xcc8] sm:$0xff]
    %v759 = vld [vmem:[#allocation8 + $0xcd0] sm:$0xff]
    %v760 = vld [vmem:[#allocation8 + $0xcd8] sm:$0xff]
    %v761 = vld [vmem:[#allocation8 + $0xce0] sm:$0xff]
    %v762 = vld [vmem:[#allocation8 + $0xce8] sm:$0xff]
    %v763 = vld [vmem:[#allocation8 + $0xcf0] sm:$0xff]
    %v764 = vld [vmem:[#allocation8 + $0xcf8] sm:$0xff]
    %v765 = vld [vmem:[#allocation8 + $0xd00] sm:$0xff]
    %v766 = vld [vmem:[#allocation8 + $0xd08] sm:$0xff]
    %v767 = vld [vmem:[#allocation8 + $0xd10] sm:$0xff]
    %v768 = vld [vmem:[#allocation8 + $0xd18] sm:$0xff]
    %v769 = vld [vmem:[#allocation8 + $0xd20] sm:$0xff]
    %v770 = vld [vmem:[#allocation8 + $0xd28] sm:$0xff]
    %v771 = vld [vmem:[#allocation8 + $0xd30] sm:$0xff]
    %v772 = vld [vmem:[#allocation8 + $0xd38] sm:$0xff]
    %v773 = vld [vmem:[#allocation8 + $0xd40] sm:$0xff]
    %v774 = vld [vmem:[#allocation8 + $0xd48] sm:$0xff]
    %v775 = vld [vmem:[#allocation8 + $0xd50] sm:$0xff]
    %v776 = vld [vmem:[#allocation8 + $0xd58] sm:$0xff]
    %v777 = vld [vmem:[#allocation8 + $0xd60] sm:$0xff]
    %v778 = vld [vmem:[#allocation8 + $0xd68] sm:$0xff]
    %v779 = vld [vmem:[#allocation8 + $0xd70] sm:$0xff]
    %v780 = vld [vmem:[#allocation8 + $0xd78] sm:$0xff]
    %v781 = vld [vmem:[#allocation8 + $0xd80] sm:$0xff]
    %v782 = vld [vmem:[#allocation8 + $0xd88] sm:$0xff]
    %v783 = vld [vmem:[#allocation8 + $0xd90] sm:$0xff]
    %v784 = vld [vmem:[#allocation8 + $0xd98] sm:$0xff]
    %v785 = vld [vmem:[#allocation8 + $0xda0] sm:$0xff]
    %v786 = vld [vmem:[#allocation8 + $0xda8] sm:$0xff]
    %v787 = vld [vmem:[#allocation8 + $0xdb0] sm:$0xff]
    %v788 = vld [vmem:[#allocation8 + $0xdb8] sm:$0xff]
    %v789 = vld [vmem:[#allocation8 + $0xdc0] sm:$0xff]
    %v790 = vld [vmem:[#allocation8 + $0xdc8] sm:$0xff]
    %v791 = vld [vmem:[#allocation8 + $0xdd0] sm:$0xff]
    %v792 = vld [vmem:[#allocation8 + $0xdd8] sm:$0xff]
    %v793 = vld [vmem:[#allocation8 + $0xde0] sm:$0xff]
    %v794 = vld [vmem:[#allocation8 + $0xde8] sm:$0xff]
    %v795 = vld [vmem:[#allocation8 + $0xdf0] sm:$0xff]
    %v796 = vld [vmem:[#allocation8 + $0xdf8] sm:$0xff]
    %v797 = vld [vmem:[#allocation8 + $0xe00] sm:$0xff]
    %v798 = vld [vmem:[#allocation8 + $0xe08] sm:$0xff]
    %v799 = vld [vmem:[#allocation8 + $0xe10] sm:$0xff]
    %v800 = vld [vmem:[#allocation8 + $0xe18] sm:$0xff]
    %v801 = vld [vmem:[#allocation8 + $0xe20] sm:$0xff]
    %v802 = vld [vmem:[#allocation8 + $0xe28] sm:$0xff]
    %v803 = vld [vmem:[#allocation8 + $0xe30] sm:$0xff]
    %v804 = vld [vmem:[#allocation8 + $0xe38] sm:$0xff]
    %v805 = vld [vmem:[#allocation8 + $0xe40] sm:$0xff]
    %v806 = vld [vmem:[#allocation8 + $0xe48] sm:$0xff]
    %v807 = vld [vmem:[#allocation8 + $0xe50] sm:$0xff]
    %v808 = vld [vmem:[#allocation8 + $0xe58] sm:$0xff]
    %v809 = vld [vmem:[#allocation8 + $0xe60] sm:$0xff]
    %v810 = vld [vmem:[#allocation8 + $0xe68] sm:$0xff]
    %v811 = vld [vmem:[#allocation8 + $0xe70] sm:$0xff]
    %v812 = vld [vmem:[#allocation8 + $0xe78] sm:$0xff]
    %v813 = vld [vmem:[#allocation8 + $0xe80] sm:$0xff]
    %v814 = vld [vmem:[#allocation8 + $0xe88] sm:$0xff]
    %v815 = vld [vmem:[#allocation8 + $0xe90] sm:$0xff]
    %v816 = vld [vmem:[#allocation8 + $0xe98] sm:$0xff]
    %v817 = vld [vmem:[#allocation8 + $0xea0] sm:$0xff]
    %v818 = vld [vmem:[#allocation8 + $0xea8] sm:$0xff]
    %v819 = vld [vmem:[#allocation8 + $0xeb0] sm:$0xff]
    %v820 = vld [vmem:[#allocation8 + $0xeb8] sm:$0xff]
    %v821 = vld [vmem:[#allocation8 + $0xec0] sm:$0xff]
    %v822 = vld [vmem:[#allocation8 + $0xec8] sm:$0xff]
    %v823 = vld [vmem:[#allocation8 + $0xed0] sm:$0xff]
    %v824 = vld [vmem:[#allocation8 + $0xed8] sm:$0xff]
    %v825 = vld [vmem:[#allocation8 + $0xee0] sm:$0xff]
    %v826 = vld [vmem:[#allocation8 + $0xee8] sm:$0xff]
    %v827 = vld [vmem:[#allocation8 + $0xef0] sm:$0xff]
    %v828 = vld [vmem:[#allocation8 + $0xef8] sm:$0xff]
    %v829 = vld [vmem:[#allocation8 + $0xf00] sm:$0xff]
    %v830 = vld [vmem:[#allocation8 + $0xf08] sm:$0xff]
    %v831 = vld [vmem:[#allocation8 + $0xf10] sm:$0xff]
    %v832 = vld [vmem:[#allocation8 + $0xf18] sm:$0xff]
    %v833 = vld [vmem:[#allocation8 + $0xf20] sm:$0xff]
    %v834 = vld [vmem:[#allocation8 + $0xf28] sm:$0xff]
    %v835 = vld [vmem:[#allocation8 + $0xf30] sm:$0xff]
    %v836 = vld [vmem:[#allocation8 + $0xf38] sm:$0xff]
    %v837 = vld [vmem:[#allocation8 + $0xf40] sm:$0xff]
    %v838 = vld [vmem:[#allocation8 + $0xf48] sm:$0xff]
    %v839 = vld [vmem:[#allocation8 + $0xf50] sm:$0xff]
    %v840 = vld [vmem:[#allocation8 + $0xf58] sm:$0xff]
    %v841 = vld [vmem:[#allocation8 + $0xf60] sm:$0xff]
    %v842 = vld [vmem:[#allocation8 + $0xf68] sm:$0xff]
    %v843 = vld [vmem:[#allocation8 + $0xf70] sm:$0xff]
    %v844 = vld [vmem:[#allocation8 + $0xf78] sm:$0xff]
    %v845 = vld [vmem:[#allocation8 + $0xf80] sm:$0xff]
    %v846 = vld [vmem:[#allocation8 + $0xf88] sm:$0xff]
    %v847 = vld [vmem:[#allocation8 + $0xf90] sm:$0xff]
    %v848 = vld [vmem:[#allocation8 + $0xf98] sm:$0xff]
    %v849 = vld [vmem:[#allocation8 + $0xfa0] sm:$0xff]
    %v850 = vld [vmem:[#allocation8 + $0xfa8] sm:$0xff]
    %v851 = vld [vmem:[#allocation8 + $0xfb0] sm:$0xff]
    %v852 = vld [vmem:[#allocation8 + $0xfb8] sm:$0xff]
    %v853 = vld [vmem:[#allocation8 + $0xfc0] sm:$0xff]
    %v854 = vld [vmem:[#allocation8 + $0xfc8] sm:$0xff]
    %v855 = vld [vmem:[#allocation8 + $0xfd0] sm:$0xff]
    %v856 = vld [vmem:[#allocation8 + $0xfd8] sm:$0xff]
    %v857 = vld [vmem:[#allocation8 + $0xfe0] sm:$0xff]
    %v858 = vld [vmem:[#allocation8 + $0xfe8] sm:$0xff]
    %v859 = vld [vmem:[#allocation8 + $0xff0] sm:$0xff]
    %v860 = vld [vmem:[#allocation8 + $0xff8] sm:$0xff]
    %v861 = vld [vmem:[#allocation10] sm:$0xff]
    %v863 = vlaneseq
    %v864 = vshrl.u32 %v863, 7
    %v865 = vsub.s32 0, %v864
    %v866 = vrot.slane %v861, %v865
    %v867 = vlaneseq
    %v868 = vshrl.u32 %v867, 7
    %v869 = vsub.s32 1, %v868
    %v870 = vrot.slane %v861, %v869
    %v871 = vlaneseq
    %v872 = vshrl.u32 %v871, 7
    %v873 = vsub.s32 2, %v872
    %v874 = vrot.slane %v861, %v873
    %v875 = vlaneseq
    %v876 = vshrl.u32 %v875, 7
    %v877 = vsub.s32 3, %v876
    %v878 = vrot.slane %v861, %v877
    %v879 = vlaneseq
    %v880 = vshrl.u32 %v879, 7
    %v881 = vsub.s32 4, %v880
    %v882 = vrot.slane %v861, %v881
    %v883 = vlaneseq
    %v884 = vshrl.u32 %v883, 7
    %v885 = vsub.s32 5, %v884
    %v886 = vrot.slane %v861, %v885
    %v887 = vlaneseq
    %v888 = vshrl.u32 %v887, 7
    %v889 = vsub.s32 6, %v888
    %v890 = vrot.slane %v861, %v889
    %v891 = vlaneseq
    %v892 = vshrl.u32 %v891, 7
    %v893 = vsub.s32 7, %v892
    %v894 = vrot.slane %v861, %v893
    %v1415 = vunpack.c.l.b16 %v349
    %v1416 = vunpack.c.h.b16 %v349
    %v1417 = vunpack.c.l.b16 %v350
    %v1418 = vunpack.c.h.b16 %v350
    %v1419 = vunpack.c.l.b16 %v351
    %v1420 = vunpack.c.h.b16 %v351
    %v1421 = vunpack.c.l.b16 %v352
    %v1422 = vunpack.c.h.b16 %v352
    %v1423 = vunpack.c.l.b16 %v353
    %v1424 = vunpack.c.h.b16 %v353
    %v1425 = vunpack.c.l.b16 %v354
    %v1426 = vunpack.c.h.b16 %v354
    %v1427 = vunpack.c.l.b16 %v355
    %v1428 = vunpack.c.h.b16 %v355
    %v1429 = vunpack.c.l.b16 %v356
    %v1430 = vunpack.c.h.b16 %v356
    %v1431 = vunpack.c.l.b16 %v357
    %v1432 = vunpack.c.h.b16 %v357
    %v1433 = vunpack.c.l.b16 %v358
    %v1434 = vunpack.c.h.b16 %v358
    %v1435 = vunpack.c.l.b16 %v359
    %v1436 = vunpack.c.h.b16 %v359
    %v1437 = vunpack.c.l.b16 %v360
    %v1438 = vunpack.c.h.b16 %v360
    %v1439 = vunpack.c.l.b16 %v361
    %v1440 = vunpack.c.h.b16 %v361
    %v1441 = vunpack.c.l.b16 %v362
    %v1442 = vunpack.c.h.b16 %v362
    %v1443 = vunpack.c.l.b16 %v363
    %v1444 = vunpack.c.h.b16 %v363
    %v1445 = vunpack.c.l.b16 %v364
    %v1446 = vunpack.c.h.b16 %v364
    %v1447 = vunpack.c.l.b16 %v365
    %v1448 = vunpack.c.h.b16 %v365
    %v1449 = vunpack.c.l.b16 %v366
    %v1450 = vunpack.c.h.b16 %v366
    %v1451 = vunpack.c.l.b16 %v367
    %v1452 = vunpack.c.h.b16 %v367
    %v1453 = vunpack.c.l.b16 %v368
    %v1454 = vunpack.c.h.b16 %v368
    %v1455 = vunpack.c.l.b16 %v369
    %v1456 = vunpack.c.h.b16 %v369
    %v1457 = vunpack.c.l.b16 %v370
    %v1458 = vunpack.c.h.b16 %v370
    %v1459 = vunpack.c.l.b16 %v371
    %v1460 = vunpack.c.h.b16 %v371
    %v1461 = vunpack.c.l.b16 %v372
    %v1462 = vunpack.c.h.b16 %v372
    %v1463 = vunpack.c.l.b16 %v373
    %v1464 = vunpack.c.h.b16 %v373
    %v1465 = vunpack.c.l.b16 %v374
    %v1466 = vunpack.c.h.b16 %v374
    %v1467 = vunpack.c.l.b16 %v375
    %v1468 = vunpack.c.h.b16 %v375
    %v1469 = vunpack.c.l.b16 %v376
    %v1470 = vunpack.c.h.b16 %v376
    %v1471 = vunpack.c.l.b16 %v377
    %v1472 = vunpack.c.h.b16 %v377
    %v1473 = vunpack.c.l.b16 %v378
    %v1474 = vunpack.c.h.b16 %v378
    %v1475 = vunpack.c.l.b16 %v379
    %v1476 = vunpack.c.h.b16 %v379
    %v1477 = vunpack.c.l.b16 %v380
    %v1478 = vunpack.c.h.b16 %v380
    %v1479 = vunpack.c.l.b16 %v381
    %v1480 = vunpack.c.h.b16 %v381
    %v1481 = vunpack.c.l.b16 %v382
    %v1482 = vunpack.c.h.b16 %v382
    %v1483 = vunpack.c.l.b16 %v383
    %v1484 = vunpack.c.h.b16 %v383
    %v1485 = vunpack.c.l.b16 %v384
    %v1486 = vunpack.c.h.b16 %v384
    %v1487 = vunpack.c.l.b16 %v385
    %v1488 = vunpack.c.h.b16 %v385
    %v1489 = vunpack.c.l.b16 %v386
    %v1490 = vunpack.c.h.b16 %v386
    %v1491 = vunpack.c.l.b16 %v387
    %v1492 = vunpack.c.h.b16 %v387
    %v1493 = vunpack.c.l.b16 %v388
    %v1494 = vunpack.c.h.b16 %v388
    %v1495 = vunpack.c.l.b16 %v389
    %v1496 = vunpack.c.h.b16 %v389
    %v1497 = vunpack.c.l.b16 %v390
    %v1498 = vunpack.c.h.b16 %v390
    %v1499 = vunpack.c.l.b16 %v391
    %v1500 = vunpack.c.h.b16 %v391
    %v1501 = vunpack.c.l.b16 %v392
    %v1502 = vunpack.c.h.b16 %v392
    %v1503 = vunpack.c.l.b16 %v393
    %v1504 = vunpack.c.h.b16 %v393
    %v1505 = vunpack.c.l.b16 %v394
    %v1506 = vunpack.c.h.b16 %v394
    %v1507 = vunpack.c.l.b16 %v395
    %v1508 = vunpack.c.h.b16 %v395
    %v1509 = vunpack.c.l.b16 %v396
    %v1510 = vunpack.c.h.b16 %v396
    %v1511 = vunpack.c.l.b16 %v397
    %v1512 = vunpack.c.h.b16 %v397
    %v1513 = vunpack.c.l.b16 %v398
    %v1514 = vunpack.c.h.b16 %v398
    %v1515 = vunpack.c.l.b16 %v399
    %v1516 = vunpack.c.h.b16 %v399
    %v1517 = vunpack.c.l.b16 %v400
    %v1518 = vunpack.c.h.b16 %v400
    %v1519 = vunpack.c.l.b16 %v401
    %v1520 = vunpack.c.h.b16 %v401
    %v1521 = vunpack.c.l.b16 %v402
    %v1522 = vunpack.c.h.b16 %v402
    %v1523 = vunpack.c.l.b16 %v403
    %v1524 = vunpack.c.h.b16 %v403
    %v1525 = vunpack.c.l.b16 %v404
    %v1526 = vunpack.c.h.b16 %v404
    %v1527 = vunpack.c.l.b16 %v405
    %v1528 = vunpack.c.h.b16 %v405
    %v1529 = vunpack.c.l.b16 %v406
    %v1530 = vunpack.c.h.b16 %v406
    %v1531 = vunpack.c.l.b16 %v407
    %v1532 = vunpack.c.h.b16 %v407
    %v1533 = vunpack.c.l.b16 %v408
    %v1534 = vunpack.c.h.b16 %v408
    %v1535 = vunpack.c.l.b16 %v409
    %v1536 = vunpack.c.h.b16 %v409
    %v1537 = vunpack.c.l.b16 %v410
    %v1538 = vunpack.c.h.b16 %v410
    %v1539 = vunpack.c.l.b16 %v411
    %v1540 = vunpack.c.h.b16 %v411
    %v1541 = vunpack.c.l.b16 %v412
    %v1542 = vunpack.c.h.b16 %v412
    %v1543 = vunpack.c.l.b16 %v413
    %v1544 = vunpack.c.h.b16 %v413
    %v1545 = vunpack.c.l.b16 %v414
    %v1546 = vunpack.c.h.b16 %v414
    %v1547 = vunpack.c.l.b16 %v415
    %v1548 = vunpack.c.h.b16 %v415
    %v1549 = vunpack.c.l.b16 %v416
    %v1550 = vunpack.c.h.b16 %v416
    %v1551 = vunpack.c.l.b16 %v417
    %v1552 = vunpack.c.h.b16 %v417
    %v1553 = vunpack.c.l.b16 %v418
    %v1554 = vunpack.c.h.b16 %v418
    %v1555 = vunpack.c.l.b16 %v419
    %v1556 = vunpack.c.h.b16 %v419
    %v1557 = vunpack.c.l.b16 %v420
    %v1558 = vunpack.c.h.b16 %v420
    %v1559 = vunpack.c.l.b16 %v421
    %v1560 = vunpack.c.h.b16 %v421
    %v1561 = vunpack.c.l.b16 %v422
    %v1562 = vunpack.c.h.b16 %v422
    %v1563 = vunpack.c.l.b16 %v423
    %v1564 = vunpack.c.h.b16 %v423
    %v1565 = vunpack.c.l.b16 %v424
    %v1566 = vunpack.c.h.b16 %v424
    %v1567 = vunpack.c.l.b16 %v425
    %v1568 = vunpack.c.h.b16 %v425
    %v1569 = vunpack.c.l.b16 %v426
    %v1570 = vunpack.c.h.b16 %v426
    %v1571 = vunpack.c.l.b16 %v427
    %v1572 = vunpack.c.h.b16 %v427
    %v1573 = vunpack.c.l.b16 %v428
    %v1574 = vunpack.c.h.b16 %v428
    %v1575 = vunpack.c.l.b16 %v429
    %v1576 = vunpack.c.h.b16 %v429
    %v1577 = vunpack.c.l.b16 %v430
    %v1578 = vunpack.c.h.b16 %v430
    %v1579 = vunpack.c.l.b16 %v431
    %v1580 = vunpack.c.h.b16 %v431
    %v1581 = vunpack.c.l.b16 %v432
    %v1582 = vunpack.c.h.b16 %v432
    %v1583 = vunpack.c.l.b16 %v433
    %v1584 = vunpack.c.h.b16 %v433
    %v1585 = vunpack.c.l.b16 %v434
    %v1586 = vunpack.c.h.b16 %v434
    %v1587 = vunpack.c.l.b16 %v435
    %v1588 = vunpack.c.h.b16 %v435
    %v1589 = vunpack.c.l.b16 %v436
    %v1590 = vunpack.c.h.b16 %v436
    %v1591 = vunpack.c.l.b16 %v437
    %v1592 = vunpack.c.h.b16 %v437
    %v1593 = vunpack.c.l.b16 %v438
    %v1594 = vunpack.c.h.b16 %v438
    %v1595 = vunpack.c.l.b16 %v439
    %v1596 = vunpack.c.h.b16 %v439
    %v1597 = vunpack.c.l.b16 %v440
    %v1598 = vunpack.c.h.b16 %v440
    %v1599 = vunpack.c.l.b16 %v441
    %v1600 = vunpack.c.h.b16 %v441
    %v1601 = vunpack.c.l.b16 %v442
    %v1602 = vunpack.c.h.b16 %v442
    %v1603 = vunpack.c.l.b16 %v443
    %v1604 = vunpack.c.h.b16 %v443
    %v1605 = vunpack.c.l.b16 %v444
    %v1606 = vunpack.c.h.b16 %v444
    %v1607 = vunpack.c.l.b16 %v445
    %v1608 = vunpack.c.h.b16 %v445
    %v1609 = vunpack.c.l.b16 %v446
    %v1610 = vunpack.c.h.b16 %v446
    %v1611 = vunpack.c.l.b16 %v447
    %v1612 = vunpack.c.h.b16 %v447
    %v1613 = vunpack.c.l.b16 %v448
    %v1614 = vunpack.c.h.b16 %v448
    %v1615 = vunpack.c.l.b16 %v449
    %v1616 = vunpack.c.h.b16 %v449
    %v1617 = vunpack.c.l.b16 %v450
    %v1618 = vunpack.c.h.b16 %v450
    %v1619 = vunpack.c.l.b16 %v451
    %v1620 = vunpack.c.h.b16 %v451
    %v1621 = vunpack.c.l.b16 %v452
    %v1622 = vunpack.c.h.b16 %v452
    %v1623 = vunpack.c.l.b16 %v453
    %v1624 = vunpack.c.h.b16 %v453
    %v1625 = vunpack.c.l.b16 %v454
    %v1626 = vunpack.c.h.b16 %v454
    %v1627 = vunpack.c.l.b16 %v455
    %v1628 = vunpack.c.h.b16 %v455
    %v1629 = vunpack.c.l.b16 %v456
    %v1630 = vunpack.c.h.b16 %v456
    %v1631 = vunpack.c.l.b16 %v457
    %v1632 = vunpack.c.h.b16 %v457
    %v1633 = vunpack.c.l.b16 %v458
    %v1634 = vunpack.c.h.b16 %v458
    %v1635 = vunpack.c.l.b16 %v459
    %v1636 = vunpack.c.h.b16 %v459
    %v1637 = vunpack.c.l.b16 %v460
    %v1638 = vunpack.c.h.b16 %v460
    %v1639 = vunpack.c.l.b16 %v461
    %v1640 = vunpack.c.h.b16 %v461
    %v1641 = vunpack.c.l.b16 %v462
    %v1642 = vunpack.c.h.b16 %v462
    %v1643 = vunpack.c.l.b16 %v463
    %v1644 = vunpack.c.h.b16 %v463
    %v1645 = vunpack.c.l.b16 %v464
    %v1646 = vunpack.c.h.b16 %v464
    %v1647 = vunpack.c.l.b16 %v465
    %v1648 = vunpack.c.h.b16 %v465
    %v1649 = vunpack.c.l.b16 %v466
    %v1650 = vunpack.c.h.b16 %v466
    %v1651 = vunpack.c.l.b16 %v467
    %v1652 = vunpack.c.h.b16 %v467
    %v1653 = vunpack.c.l.b16 %v468
    %v1654 = vunpack.c.h.b16 %v468
    %v1655 = vunpack.c.l.b16 %v469
    %v1656 = vunpack.c.h.b16 %v469
    %v1657 = vunpack.c.l.b16 %v470
    %v1658 = vunpack.c.h.b16 %v470
    %v1659 = vunpack.c.l.b16 %v471
    %v1660 = vunpack.c.h.b16 %v471
    %v1661 = vunpack.c.l.b16 %v472
    %v1662 = vunpack.c.h.b16 %v472
    %v1663 = vunpack.c.l.b16 %v473
    %v1664 = vunpack.c.h.b16 %v473
    %v1665 = vunpack.c.l.b16 %v474
    %v1666 = vunpack.c.h.b16 %v474
    %v1667 = vunpack.c.l.b16 %v475
    %v1668 = vunpack.c.h.b16 %v475
    %v1669 = vunpack.c.l.b16 %v476
    %v1670 = vunpack.c.h.b16 %v476
    %v1671 = vunpack.c.l.b16 %v477
    %v1672 = vunpack.c.h.b16 %v477
    %v1673 = vunpack.c.l.b16 %v478
    %v1674 = vunpack.c.h.b16 %v478
    %v1675 = vunpack.c.l.b16 %v479
    %v1676 = vunpack.c.h.b16 %v479
    %v1677 = vunpack.c.l.b16 %v480
    %v1678 = vunpack.c.h.b16 %v480
    %v1679 = vunpack.c.l.b16 %v481
    %v1680 = vunpack.c.h.b16 %v481
    %v1681 = vunpack.c.l.b16 %v482
    %v1682 = vunpack.c.h.b16 %v482
    %v1683 = vunpack.c.l.b16 %v483
    %v1684 = vunpack.c.h.b16 %v483
    %v1685 = vunpack.c.l.b16 %v484
    %v1686 = vunpack.c.h.b16 %v484
    %v1687 = vunpack.c.l.b16 %v485
    %v1688 = vunpack.c.h.b16 %v485
    %v1689 = vunpack.c.l.b16 %v486
    %v1690 = vunpack.c.h.b16 %v486
    %v1691 = vunpack.c.l.b16 %v487
    %v1692 = vunpack.c.h.b16 %v487
    %v1693 = vunpack.c.l.b16 %v488
    %v1694 = vunpack.c.h.b16 %v488
    %v1695 = vunpack.c.l.b16 %v489
    %v1696 = vunpack.c.h.b16 %v489
    %v1697 = vunpack.c.l.b16 %v490
    %v1698 = vunpack.c.h.b16 %v490
    %v1699 = vunpack.c.l.b16 %v491
    %v1700 = vunpack.c.h.b16 %v491
    %v1701 = vunpack.c.l.b16 %v492
    %v1702 = vunpack.c.h.b16 %v492
    %v1703 = vunpack.c.l.b16 %v493
    %v1704 = vunpack.c.h.b16 %v493
    %v1705 = vunpack.c.l.b16 %v494
    %v1706 = vunpack.c.h.b16 %v494
    %v1707 = vunpack.c.l.b16 %v495
    %v1708 = vunpack.c.h.b16 %v495
    %v1709 = vunpack.c.l.b16 %v496
    %v1710 = vunpack.c.h.b16 %v496
    %v1711 = vunpack.c.l.b16 %v497
    %v1712 = vunpack.c.h.b16 %v497
    %v1713 = vunpack.c.l.b16 %v498
    %v1714 = vunpack.c.h.b16 %v498
    %v1715 = vunpack.c.l.b16 %v499
    %v1716 = vunpack.c.h.b16 %v499
    %v1717 = vunpack.c.l.b16 %v500
    %v1718 = vunpack.c.h.b16 %v500
    %v1719 = vunpack.c.l.b16 %v501
    %v1720 = vunpack.c.h.b16 %v501
    %v1721 = vunpack.c.l.b16 %v502
    %v1722 = vunpack.c.h.b16 %v502
    %v1723 = vunpack.c.l.b16 %v503
    %v1724 = vunpack.c.h.b16 %v503
    %v1725 = vunpack.c.l.b16 %v504
    %v1726 = vunpack.c.h.b16 %v504
    %v1727 = vunpack.c.l.b16 %v505
    %v1728 = vunpack.c.h.b16 %v505
    %v1729 = vunpack.c.l.b16 %v506
    %v1730 = vunpack.c.h.b16 %v506
    %v1731 = vunpack.c.l.b16 %v507
    %v1732 = vunpack.c.h.b16 %v507
    %v1733 = vunpack.c.l.b16 %v508
    %v1734 = vunpack.c.h.b16 %v508
    %v1735 = vunpack.c.l.b16 %v509
    %v1736 = vunpack.c.h.b16 %v509
    %v1737 = vunpack.c.l.b16 %v510
    %v1738 = vunpack.c.h.b16 %v510
    %v1739 = vunpack.c.l.b16 %v511
    %v1740 = vunpack.c.h.b16 %v511
    %v1741 = vunpack.c.l.b16 %v512
    %v1742 = vunpack.c.h.b16 %v512
    %v1743 = vunpack.c.l.b16 %v513
    %v1744 = vunpack.c.h.b16 %v513
    %v1745 = vunpack.c.l.b16 %v514
    %v1746 = vunpack.c.h.b16 %v514
    %v1747 = vunpack.c.l.b16 %v515
    %v1748 = vunpack.c.h.b16 %v515
    %v1749 = vunpack.c.l.b16 %v516
    %v1750 = vunpack.c.h.b16 %v516
    %v1751 = vunpack.c.l.b16 %v517
    %v1752 = vunpack.c.h.b16 %v517
    %v1753 = vunpack.c.l.b16 %v518
    %v1754 = vunpack.c.h.b16 %v518
    %v1755 = vunpack.c.l.b16 %v519
    %v1756 = vunpack.c.h.b16 %v519
    %v1757 = vunpack.c.l.b16 %v520
    %v1758 = vunpack.c.h.b16 %v520
    %v1759 = vunpack.c.l.b16 %v521
    %v1760 = vunpack.c.h.b16 %v521
    %v1761 = vunpack.c.l.b16 %v522
    %v1762 = vunpack.c.h.b16 %v522
    %v1763 = vunpack.c.l.b16 %v523
    %v1764 = vunpack.c.h.b16 %v523
    %v1765 = vunpack.c.l.b16 %v524
    %v1766 = vunpack.c.h.b16 %v524
    %v1767 = vunpack.c.l.b16 %v525
    %v1768 = vunpack.c.h.b16 %v525
    %v1769 = vunpack.c.l.b16 %v526
    %v1770 = vunpack.c.h.b16 %v526
    %v1771 = vunpack.c.l.b16 %v527
    %v1772 = vunpack.c.h.b16 %v527
    %v1773 = vunpack.c.l.b16 %v528
    %v1774 = vunpack.c.h.b16 %v528
    %v1775 = vunpack.c.l.b16 %v529
    %v1776 = vunpack.c.h.b16 %v529
    %v1777 = vunpack.c.l.b16 %v530
    %v1778 = vunpack.c.h.b16 %v530
    %v1779 = vunpack.c.l.b16 %v531
    %v1780 = vunpack.c.h.b16 %v531
    %v1781 = vunpack.c.l.b16 %v532
    %v1782 = vunpack.c.h.b16 %v532
    %v1783 = vunpack.c.l.b16 %v533
    %v1784 = vunpack.c.h.b16 %v533
    %v1785 = vunpack.c.l.b16 %v534
    %v1786 = vunpack.c.h.b16 %v534
    %v1787 = vunpack.c.l.b16 %v535
    %v1788 = vunpack.c.h.b16 %v535
    %v1789 = vunpack.c.l.b16 %v536
    %v1790 = vunpack.c.h.b16 %v536
    %v1791 = vunpack.c.l.b16 %v537
    %v1792 = vunpack.c.h.b16 %v537
    %v1793 = vunpack.c.l.b16 %v538
    %v1794 = vunpack.c.h.b16 %v538
    %v1795 = vunpack.c.l.b16 %v539
    %v1796 = vunpack.c.h.b16 %v539
    %v1797 = vunpack.c.l.b16 %v540
    %v1798 = vunpack.c.h.b16 %v540
    %v1799 = vunpack.c.l.b16 %v541
    %v1800 = vunpack.c.h.b16 %v541
    %v1801 = vunpack.c.l.b16 %v542
    %v1802 = vunpack.c.h.b16 %v542
    %v1803 = vunpack.c.l.b16 %v543
    %v1804 = vunpack.c.h.b16 %v543
    %v1805 = vunpack.c.l.b16 %v544
    %v1806 = vunpack.c.h.b16 %v544
    %v1807 = vunpack.c.l.b16 %v545
    %v1808 = vunpack.c.h.b16 %v545
    %v1809 = vunpack.c.l.b16 %v546
    %v1810 = vunpack.c.h.b16 %v546
    %v1811 = vunpack.c.l.b16 %v547
    %v1812 = vunpack.c.h.b16 %v547
    %v1813 = vunpack.c.l.b16 %v548
    %v1814 = vunpack.c.h.b16 %v548
    %v1815 = vunpack.c.l.b16 %v549
    %v1816 = vunpack.c.h.b16 %v549
    %v1817 = vunpack.c.l.b16 %v550
    %v1818 = vunpack.c.h.b16 %v550
    %v1819 = vunpack.c.l.b16 %v551
    %v1820 = vunpack.c.h.b16 %v551
    %v1821 = vunpack.c.l.b16 %v552
    %v1822 = vunpack.c.h.b16 %v552
    %v1823 = vunpack.c.l.b16 %v553
    %v1824 = vunpack.c.h.b16 %v553
    %v1825 = vunpack.c.l.b16 %v554
    %v1826 = vunpack.c.h.b16 %v554
    %v1827 = vunpack.c.l.b16 %v555
    %v1828 = vunpack.c.h.b16 %v555
    %v1829 = vunpack.c.l.b16 %v556
    %v1830 = vunpack.c.h.b16 %v556
    %v1831 = vunpack.c.l.b16 %v557
    %v1832 = vunpack.c.h.b16 %v557
    %v1833 = vunpack.c.l.b16 %v558
    %v1834 = vunpack.c.h.b16 %v558
    %v1835 = vunpack.c.l.b16 %v559
    %v1836 = vunpack.c.h.b16 %v559
    %v1837 = vunpack.c.l.b16 %v560
    %v1838 = vunpack.c.h.b16 %v560
    %v1839 = vunpack.c.l.b16 %v561
    %v1840 = vunpack.c.h.b16 %v561
    %v1841 = vunpack.c.l.b16 %v562
    %v1842 = vunpack.c.h.b16 %v562
    %v1843 = vunpack.c.l.b16 %v563
    %v1844 = vunpack.c.h.b16 %v563
    %v1845 = vunpack.c.l.b16 %v564
    %v1846 = vunpack.c.h.b16 %v564
    %v1847 = vunpack.c.l.b16 %v565
    %v1848 = vunpack.c.h.b16 %v565
    %v1849 = vunpack.c.l.b16 %v566
    %v1850 = vunpack.c.h.b16 %v566
    %v1851 = vunpack.c.l.b16 %v567
    %v1852 = vunpack.c.h.b16 %v567
    %v1853 = vunpack.c.l.b16 %v568
    %v1854 = vunpack.c.h.b16 %v568
    %v1855 = vunpack.c.l.b16 %v569
    %v1856 = vunpack.c.h.b16 %v569
    %v1857 = vunpack.c.l.b16 %v570
    %v1858 = vunpack.c.h.b16 %v570
    %v1859 = vunpack.c.l.b16 %v571
    %v1860 = vunpack.c.h.b16 %v571
    %v1861 = vunpack.c.l.b16 %v572
    %v1862 = vunpack.c.h.b16 %v572
    %v1863 = vunpack.c.l.b16 %v573
    %v1864 = vunpack.c.h.b16 %v573
    %v1865 = vunpack.c.l.b16 %v574
    %v1866 = vunpack.c.h.b16 %v574
    %v1867 = vunpack.c.l.b16 %v575
    %v1868 = vunpack.c.h.b16 %v575
    %v1869 = vunpack.c.l.b16 %v576
    %v1870 = vunpack.c.h.b16 %v576
    %v1871 = vunpack.c.l.b16 %v577
    %v1872 = vunpack.c.h.b16 %v577
    %v1873 = vunpack.c.l.b16 %v578
    %v1874 = vunpack.c.h.b16 %v578
    %v1875 = vunpack.c.l.b16 %v579
    %v1876 = vunpack.c.h.b16 %v579
    %v1877 = vunpack.c.l.b16 %v580
    %v1878 = vunpack.c.h.b16 %v580
    %v1879 = vunpack.c.l.b16 %v581
    %v1880 = vunpack.c.h.b16 %v581
    %v1881 = vunpack.c.l.b16 %v582
    %v1882 = vunpack.c.h.b16 %v582
    %v1883 = vunpack.c.l.b16 %v583
    %v1884 = vunpack.c.h.b16 %v583
    %v1885 = vunpack.c.l.b16 %v584
    %v1886 = vunpack.c.h.b16 %v584
    %v1887 = vunpack.c.l.b16 %v585
    %v1888 = vunpack.c.h.b16 %v585
    %v1889 = vunpack.c.l.b16 %v586
    %v1890 = vunpack.c.h.b16 %v586
    %v1891 = vunpack.c.l.b16 %v587
    %v1892 = vunpack.c.h.b16 %v587
    %v1893 = vunpack.c.l.b16 %v588
    %v1894 = vunpack.c.h.b16 %v588
    %v1895 = vunpack.c.l.b16 %v589
    %v1896 = vunpack.c.h.b16 %v589
    %v1897 = vunpack.c.l.b16 %v590
    %v1898 = vunpack.c.h.b16 %v590
    %v1899 = vunpack.c.l.b16 %v591
    %v1900 = vunpack.c.h.b16 %v591
    %v1901 = vunpack.c.l.b16 %v592
    %v1902 = vunpack.c.h.b16 %v592
    %v1903 = vunpack.c.l.b16 %v593
    %v1904 = vunpack.c.h.b16 %v593
    %v1905 = vunpack.c.l.b16 %v594
    %v1906 = vunpack.c.h.b16 %v594
    %v1907 = vunpack.c.l.b16 %v595
    %v1908 = vunpack.c.h.b16 %v595
    %v1909 = vunpack.c.l.b16 %v596
    %v1910 = vunpack.c.h.b16 %v596
    %v1911 = vunpack.c.l.b16 %v597
    %v1912 = vunpack.c.h.b16 %v597
    %v1913 = vunpack.c.l.b16 %v598
    %v1914 = vunpack.c.h.b16 %v598
    %v1915 = vunpack.c.l.b16 %v599
    %v1916 = vunpack.c.h.b16 %v599
    %v1917 = vunpack.c.l.b16 %v600
    %v1918 = vunpack.c.h.b16 %v600
    %v1919 = vunpack.c.l.b16 %v601
    %v1920 = vunpack.c.h.b16 %v601
    %v1921 = vunpack.c.l.b16 %v602
    %v1922 = vunpack.c.h.b16 %v602
    %v1923 = vunpack.c.l.b16 %v603
    %v1924 = vunpack.c.h.b16 %v603
    %v1925 = vunpack.c.l.b16 %v604
    %v1926 = vunpack.c.h.b16 %v604
    %v1927 = vunpack.c.l.b16 %v605
    %v1928 = vunpack.c.h.b16 %v605
    %v1929 = vunpack.c.l.b16 %v606
    %v1930 = vunpack.c.h.b16 %v606
    %v1931 = vunpack.c.l.b16 %v607
    %v1932 = vunpack.c.h.b16 %v607
    %v1933 = vunpack.c.l.b16 %v608
    %v1934 = vunpack.c.h.b16 %v608
    %v1935 = vunpack.c.l.b16 %v609
    %v1936 = vunpack.c.h.b16 %v609
    %v1937 = vunpack.c.l.b16 %v610
    %v1938 = vunpack.c.h.b16 %v610
    %v1939 = vunpack.c.l.b16 %v611
    %v1940 = vunpack.c.h.b16 %v611
    %v1941 = vunpack.c.l.b16 %v612
    %v1942 = vunpack.c.h.b16 %v612
    %v1943 = vunpack.c.l.b16 %v613
    %v1944 = vunpack.c.h.b16 %v613
    %v1945 = vunpack.c.l.b16 %v614
    %v1946 = vunpack.c.h.b16 %v614
    %v1947 = vunpack.c.l.b16 %v615
    %v1948 = vunpack.c.h.b16 %v615
    %v1949 = vunpack.c.l.b16 %v616
    %v1950 = vunpack.c.h.b16 %v616
    %v1951 = vunpack.c.l.b16 %v617
    %v1952 = vunpack.c.h.b16 %v617
    %v1953 = vunpack.c.l.b16 %v618
    %v1954 = vunpack.c.h.b16 %v618
    %v1955 = vunpack.c.l.b16 %v619
    %v1956 = vunpack.c.h.b16 %v619
    %v1957 = vunpack.c.l.b16 %v620
    %v1958 = vunpack.c.h.b16 %v620
    %v1959 = vunpack.c.l.b16 %v621
    %v1960 = vunpack.c.h.b16 %v621
    %v1961 = vunpack.c.l.b16 %v622
    %v1962 = vunpack.c.h.b16 %v622
    %v1963 = vunpack.c.l.b16 %v623
    %v1964 = vunpack.c.h.b16 %v623
    %v1965 = vunpack.c.l.b16 %v624
    %v1966 = vunpack.c.h.b16 %v624
    %v1967 = vunpack.c.l.b16 %v625
    %v1968 = vunpack.c.h.b16 %v625
    %v1969 = vunpack.c.l.b16 %v626
    %v1970 = vunpack.c.h.b16 %v626
    %v1971 = vunpack.c.l.b16 %v627
    %v1972 = vunpack.c.h.b16 %v627
    %v1973 = vunpack.c.l.b16 %v628
    %v1974 = vunpack.c.h.b16 %v628
    %v1975 = vunpack.c.l.b16 %v629
    %v1976 = vunpack.c.h.b16 %v629
    %v1977 = vunpack.c.l.b16 %v630
    %v1978 = vunpack.c.h.b16 %v630
    %v1979 = vunpack.c.l.b16 %v631
    %v1980 = vunpack.c.h.b16 %v631
    %v1981 = vunpack.c.l.b16 %v632
    %v1982 = vunpack.c.h.b16 %v632
    %v1983 = vunpack.c.l.b16 %v633
    %v1984 = vunpack.c.h.b16 %v633
    %v1985 = vunpack.c.l.b16 %v634
    %v1986 = vunpack.c.h.b16 %v634
    %v1987 = vunpack.c.l.b16 %v635
    %v1988 = vunpack.c.h.b16 %v635
    %v1989 = vunpack.c.l.b16 %v636
    %v1990 = vunpack.c.h.b16 %v636
    %v1991 = vunpack.c.l.b16 %v637
    %v1992 = vunpack.c.h.b16 %v637
    %v1993 = vunpack.c.l.b16 %v638
    %v1994 = vunpack.c.h.b16 %v638
    %v1995 = vunpack.c.l.b16 %v639
    %v1996 = vunpack.c.h.b16 %v639
    %v1997 = vunpack.c.l.b16 %v640
    %v1998 = vunpack.c.h.b16 %v640
    %v1999 = vunpack.c.l.b16 %v641
    %v2000 = vunpack.c.h.b16 %v641
    %v2001 = vunpack.c.l.b16 %v642
    %v2002 = vunpack.c.h.b16 %v642
    %v2003 = vunpack.c.l.b16 %v643
    %v2004 = vunpack.c.h.b16 %v643
    %v2005 = vunpack.c.l.b16 %v644
    %v2006 = vunpack.c.h.b16 %v644
    %v2007 = vunpack.c.l.b16 %v645
    %v2008 = vunpack.c.h.b16 %v645
    %v2009 = vunpack.c.l.b16 %v646
    %v2010 = vunpack.c.h.b16 %v646
    %v2011 = vunpack.c.l.b16 %v647
    %v2012 = vunpack.c.h.b16 %v647
    %v2013 = vunpack.c.l.b16 %v648
    %v2014 = vunpack.c.h.b16 %v648
    %v2015 = vunpack.c.l.b16 %v649
    %v2016 = vunpack.c.h.b16 %v649
    %v2017 = vunpack.c.l.b16 %v650
    %v2018 = vunpack.c.h.b16 %v650
    %v2019 = vunpack.c.l.b16 %v651
    %v2020 = vunpack.c.h.b16 %v651
    %v2021 = vunpack.c.l.b16 %v652
    %v2022 = vunpack.c.h.b16 %v652
    %v2023 = vunpack.c.l.b16 %v653
    %v2024 = vunpack.c.h.b16 %v653
    %v2025 = vunpack.c.l.b16 %v654
    %v2026 = vunpack.c.h.b16 %v654
    %v2027 = vunpack.c.l.b16 %v655
    %v2028 = vunpack.c.h.b16 %v655
    %v2029 = vunpack.c.l.b16 %v656
    %v2030 = vunpack.c.h.b16 %v656
    %v2031 = vunpack.c.l.b16 %v657
    %v2032 = vunpack.c.h.b16 %v657
    %v2033 = vunpack.c.l.b16 %v658
    %v2034 = vunpack.c.h.b16 %v658
    %v2035 = vunpack.c.l.b16 %v659
    %v2036 = vunpack.c.h.b16 %v659
    %v2037 = vunpack.c.l.b16 %v660
    %v2038 = vunpack.c.h.b16 %v660
    %v2039 = vunpack.c.l.b16 %v661
    %v2040 = vunpack.c.h.b16 %v661
    %v2041 = vunpack.c.l.b16 %v662
    %v2042 = vunpack.c.h.b16 %v662
    %v2043 = vunpack.c.l.b16 %v663
    %v2044 = vunpack.c.h.b16 %v663
    %v2045 = vunpack.c.l.b16 %v664
    %v2046 = vunpack.c.h.b16 %v664
    %v2047 = vunpack.c.l.b16 %v665
    %v2048 = vunpack.c.h.b16 %v665
    %v2049 = vunpack.c.l.b16 %v666
    %v2050 = vunpack.c.h.b16 %v666
    %v2051 = vunpack.c.l.b16 %v667
    %v2052 = vunpack.c.h.b16 %v667
    %v2053 = vunpack.c.l.b16 %v668
    %v2054 = vunpack.c.h.b16 %v668
    %v2055 = vunpack.c.l.b16 %v669
    %v2056 = vunpack.c.h.b16 %v669
    %v2057 = vunpack.c.l.b16 %v670
    %v2058 = vunpack.c.h.b16 %v670
    %v2059 = vunpack.c.l.b16 %v671
    %v2060 = vunpack.c.h.b16 %v671
    %v2061 = vunpack.c.l.b16 %v672
    %v2062 = vunpack.c.h.b16 %v672
    %v2063 = vunpack.c.l.b16 %v673
    %v2064 = vunpack.c.h.b16 %v673
    %v2065 = vunpack.c.l.b16 %v674
    %v2066 = vunpack.c.h.b16 %v674
    %v2067 = vunpack.c.l.b16 %v675
    %v2068 = vunpack.c.h.b16 %v675
    %v2069 = vunpack.c.l.b16 %v676
    %v2070 = vunpack.c.h.b16 %v676
    %v2071 = vunpack.c.l.b16 %v677
    %v2072 = vunpack.c.h.b16 %v677
    %v2073 = vunpack.c.l.b16 %v678
    %v2074 = vunpack.c.h.b16 %v678
    %v2075 = vunpack.c.l.b16 %v679
    %v2076 = vunpack.c.h.b16 %v679
    %v2077 = vunpack.c.l.b16 %v680
    %v2078 = vunpack.c.h.b16 %v680
    %v2079 = vunpack.c.l.b16 %v681
    %v2080 = vunpack.c.h.b16 %v681
    %v2081 = vunpack.c.l.b16 %v682
    %v2082 = vunpack.c.h.b16 %v682
    %v2083 = vunpack.c.l.b16 %v683
    %v2084 = vunpack.c.h.b16 %v683
    %v2085 = vunpack.c.l.b16 %v684
    %v2086 = vunpack.c.h.b16 %v684
    %v2087 = vunpack.c.l.b16 %v685
    %v2088 = vunpack.c.h.b16 %v685
    %v2089 = vunpack.c.l.b16 %v686
    %v2090 = vunpack.c.h.b16 %v686
    %v2091 = vunpack.c.l.b16 %v687
    %v2092 = vunpack.c.h.b16 %v687
    %v2093 = vunpack.c.l.b16 %v688
    %v2094 = vunpack.c.h.b16 %v688
    %v2095 = vunpack.c.l.b16 %v689
    %v2096 = vunpack.c.h.b16 %v689
    %v2097 = vunpack.c.l.b16 %v690
    %v2098 = vunpack.c.h.b16 %v690
    %v2099 = vunpack.c.l.b16 %v691
    %v2100 = vunpack.c.h.b16 %v691
    %v2101 = vunpack.c.l.b16 %v692
    %v2102 = vunpack.c.h.b16 %v692
    %v2103 = vunpack.c.l.b16 %v693
    %v2104 = vunpack.c.h.b16 %v693
    %v2105 = vunpack.c.l.b16 %v694
    %v2106 = vunpack.c.h.b16 %v694
    %v2107 = vunpack.c.l.b16 %v695
    %v2108 = vunpack.c.h.b16 %v695
    %v2109 = vunpack.c.l.b16 %v696
    %v2110 = vunpack.c.h.b16 %v696
    %v2111 = vunpack.c.l.b16 %v697
    %v2112 = vunpack.c.h.b16 %v697
    %v2113 = vunpack.c.l.b16 %v698
    %v2114 = vunpack.c.h.b16 %v698
    %v2115 = vunpack.c.l.b16 %v699
    %v2116 = vunpack.c.h.b16 %v699
    %v2117 = vunpack.c.l.b16 %v700
    %v2118 = vunpack.c.h.b16 %v700
    %v2119 = vunpack.c.l.b16 %v701
    %v2120 = vunpack.c.h.b16 %v701
    %v2121 = vunpack.c.l.b16 %v702
    %v2122 = vunpack.c.h.b16 %v702
    %v2123 = vunpack.c.l.b16 %v703
    %v2124 = vunpack.c.h.b16 %v703
    %v2125 = vunpack.c.l.b16 %v704
    %v2126 = vunpack.c.h.b16 %v704
    %v2127 = vunpack.c.l.b16 %v705
    %v2128 = vunpack.c.h.b16 %v705
    %v2129 = vunpack.c.l.b16 %v706
    %v2130 = vunpack.c.h.b16 %v706
    %v2131 = vunpack.c.l.b16 %v707
    %v2132 = vunpack.c.h.b16 %v707
    %v2133 = vunpack.c.l.b16 %v708
    %v2134 = vunpack.c.h.b16 %v708
    %v2135 = vunpack.c.l.b16 %v709
    %v2136 = vunpack.c.h.b16 %v709
    %v2137 = vunpack.c.l.b16 %v710
    %v2138 = vunpack.c.h.b16 %v710
    %v2139 = vunpack.c.l.b16 %v711
    %v2140 = vunpack.c.h.b16 %v711
    %v2141 = vunpack.c.l.b16 %v712
    %v2142 = vunpack.c.h.b16 %v712
    %v2143 = vunpack.c.l.b16 %v713
    %v2144 = vunpack.c.h.b16 %v713
    %v2145 = vunpack.c.l.b16 %v714
    %v2146 = vunpack.c.h.b16 %v714
    %v2147 = vunpack.c.l.b16 %v715
    %v2148 = vunpack.c.h.b16 %v715
    %v2149 = vunpack.c.l.b16 %v716
    %v2150 = vunpack.c.h.b16 %v716
    %v2151 = vunpack.c.l.b16 %v717
    %v2152 = vunpack.c.h.b16 %v717
    %v2153 = vunpack.c.l.b16 %v718
    %v2154 = vunpack.c.h.b16 %v718
    %v2155 = vunpack.c.l.b16 %v719
    %v2156 = vunpack.c.h.b16 %v719
    %v2157 = vunpack.c.l.b16 %v720
    %v2158 = vunpack.c.h.b16 %v720
    %v2159 = vunpack.c.l.b16 %v721
    %v2160 = vunpack.c.h.b16 %v721
    %v2161 = vunpack.c.l.b16 %v722
    %v2162 = vunpack.c.h.b16 %v722
    %v2163 = vunpack.c.l.b16 %v723
    %v2164 = vunpack.c.h.b16 %v723
    %v2165 = vunpack.c.l.b16 %v724
    %v2166 = vunpack.c.h.b16 %v724
    %v2167 = vunpack.c.l.b16 %v725
    %v2168 = vunpack.c.h.b16 %v725
    %v2169 = vunpack.c.l.b16 %v726
    %v2170 = vunpack.c.h.b16 %v726
    %v2171 = vunpack.c.l.b16 %v727
    %v2172 = vunpack.c.h.b16 %v727
    %v2173 = vunpack.c.l.b16 %v728
    %v2174 = vunpack.c.h.b16 %v728
    %v2175 = vunpack.c.l.b16 %v729
    %v2176 = vunpack.c.h.b16 %v729
    %v2177 = vunpack.c.l.b16 %v730
    %v2178 = vunpack.c.h.b16 %v730
    %v2179 = vunpack.c.l.b16 %v731
    %v2180 = vunpack.c.h.b16 %v731
    %v2181 = vunpack.c.l.b16 %v732
    %v2182 = vunpack.c.h.b16 %v732
    %v2183 = vunpack.c.l.b16 %v733
    %v2184 = vunpack.c.h.b16 %v733
    %v2185 = vunpack.c.l.b16 %v734
    %v2186 = vunpack.c.h.b16 %v734
    %v2187 = vunpack.c.l.b16 %v735
    %v2188 = vunpack.c.h.b16 %v735
    %v2189 = vunpack.c.l.b16 %v736
    %v2190 = vunpack.c.h.b16 %v736
    %v2191 = vunpack.c.l.b16 %v737
    %v2192 = vunpack.c.h.b16 %v737
    %v2193 = vunpack.c.l.b16 %v738
    %v2194 = vunpack.c.h.b16 %v738
    %v2195 = vunpack.c.l.b16 %v739
    %v2196 = vunpack.c.h.b16 %v739
    %v2197 = vunpack.c.l.b16 %v740
    %v2198 = vunpack.c.h.b16 %v740
    %v2199 = vunpack.c.l.b16 %v741
    %v2200 = vunpack.c.h.b16 %v741
    %v2201 = vunpack.c.l.b16 %v742
    %v2202 = vunpack.c.h.b16 %v742
    %v2203 = vunpack.c.l.b16 %v743
    %v2204 = vunpack.c.h.b16 %v743
    %v2205 = vunpack.c.l.b16 %v744
    %v2206 = vunpack.c.h.b16 %v744
    %v2207 = vunpack.c.l.b16 %v745
    %v2208 = vunpack.c.h.b16 %v745
    %v2209 = vunpack.c.l.b16 %v746
    %v2210 = vunpack.c.h.b16 %v746
    %v2211 = vunpack.c.l.b16 %v747
    %v2212 = vunpack.c.h.b16 %v747
    %v2213 = vunpack.c.l.b16 %v748
    %v2214 = vunpack.c.h.b16 %v748
    %v2215 = vunpack.c.l.b16 %v749
    %v2216 = vunpack.c.h.b16 %v749
    %v2217 = vunpack.c.l.b16 %v750
    %v2218 = vunpack.c.h.b16 %v750
    %v2219 = vunpack.c.l.b16 %v751
    %v2220 = vunpack.c.h.b16 %v751
    %v2221 = vunpack.c.l.b16 %v752
    %v2222 = vunpack.c.h.b16 %v752
    %v2223 = vunpack.c.l.b16 %v753
    %v2224 = vunpack.c.h.b16 %v753
    %v2225 = vunpack.c.l.b16 %v754
    %v2226 = vunpack.c.h.b16 %v754
    %v2227 = vunpack.c.l.b16 %v755
    %v2228 = vunpack.c.h.b16 %v755
    %v2229 = vunpack.c.l.b16 %v756
    %v2230 = vunpack.c.h.b16 %v756
    %v2231 = vunpack.c.l.b16 %v757
    %v2232 = vunpack.c.h.b16 %v757
    %v2233 = vunpack.c.l.b16 %v758
    %v2234 = vunpack.c.h.b16 %v758
    %v2235 = vunpack.c.l.b16 %v759
    %v2236 = vunpack.c.h.b16 %v759
    %v2237 = vunpack.c.l.b16 %v760
    %v2238 = vunpack.c.h.b16 %v760
    %v2239 = vunpack.c.l.b16 %v761
    %v2240 = vunpack.c.h.b16 %v761
    %v2241 = vunpack.c.l.b16 %v762
    %v2242 = vunpack.c.h.b16 %v762
    %v2243 = vunpack.c.l.b16 %v763
    %v2244 = vunpack.c.h.b16 %v763
    %v2245 = vunpack.c.l.b16 %v764
    %v2246 = vunpack.c.h.b16 %v764
    %v2247 = vunpack.c.l.b16 %v765
    %v2248 = vunpack.c.h.b16 %v765
    %v2249 = vunpack.c.l.b16 %v766
    %v2250 = vunpack.c.h.b16 %v766
    %v2251 = vunpack.c.l.b16 %v767
    %v2252 = vunpack.c.h.b16 %v767
    %v2253 = vunpack.c.l.b16 %v768
    %v2254 = vunpack.c.h.b16 %v768
    %v2255 = vunpack.c.l.b16 %v769
    %v2256 = vunpack.c.h.b16 %v769
    %v2257 = vunpack.c.l.b16 %v770
    %v2258 = vunpack.c.h.b16 %v770
    %v2259 = vunpack.c.l.b16 %v771
    %v2260 = vunpack.c.h.b16 %v771
    %v2261 = vunpack.c.l.b16 %v772
    %v2262 = vunpack.c.h.b16 %v772
    %v2263 = vunpack.c.l.b16 %v773
    %v2264 = vunpack.c.h.b16 %v773
    %v2265 = vunpack.c.l.b16 %v774
    %v2266 = vunpack.c.h.b16 %v774
    %v2267 = vunpack.c.l.b16 %v775
    %v2268 = vunpack.c.h.b16 %v775
    %v2269 = vunpack.c.l.b16 %v776
    %v2270 = vunpack.c.h.b16 %v776
    %v2271 = vunpack.c.l.b16 %v777
    %v2272 = vunpack.c.h.b16 %v777
    %v2273 = vunpack.c.l.b16 %v778
    %v2274 = vunpack.c.h.b16 %v778
    %v2275 = vunpack.c.l.b16 %v779
    %v2276 = vunpack.c.h.b16 %v779
    %v2277 = vunpack.c.l.b16 %v780
    %v2278 = vunpack.c.h.b16 %v780
    %v2279 = vunpack.c.l.b16 %v781
    %v2280 = vunpack.c.h.b16 %v781
    %v2281 = vunpack.c.l.b16 %v782
    %v2282 = vunpack.c.h.b16 %v782
    %v2283 = vunpack.c.l.b16 %v783
    %v2284 = vunpack.c.h.b16 %v783
    %v2285 = vunpack.c.l.b16 %v784
    %v2286 = vunpack.c.h.b16 %v784
    %v2287 = vunpack.c.l.b16 %v785
    %v2288 = vunpack.c.h.b16 %v785
    %v2289 = vunpack.c.l.b16 %v786
    %v2290 = vunpack.c.h.b16 %v786
    %v2291 = vunpack.c.l.b16 %v787
    %v2292 = vunpack.c.h.b16 %v787
    %v2293 = vunpack.c.l.b16 %v788
    %v2294 = vunpack.c.h.b16 %v788
    %v2295 = vunpack.c.l.b16 %v789
    %v2296 = vunpack.c.h.b16 %v789
    %v2297 = vunpack.c.l.b16 %v790
    %v2298 = vunpack.c.h.b16 %v790
    %v2299 = vunpack.c.l.b16 %v791
    %v2300 = vunpack.c.h.b16 %v791
    %v2301 = vunpack.c.l.b16 %v792
    %v2302 = vunpack.c.h.b16 %v792
    %v2303 = vunpack.c.l.b16 %v793
    %v2304 = vunpack.c.h.b16 %v793
    %v2305 = vunpack.c.l.b16 %v794
    %v2306 = vunpack.c.h.b16 %v794
    %v2307 = vunpack.c.l.b16 %v795
    %v2308 = vunpack.c.h.b16 %v795
    %v2309 = vunpack.c.l.b16 %v796
    %v2310 = vunpack.c.h.b16 %v796
    %v2311 = vunpack.c.l.b16 %v797
    %v2312 = vunpack.c.h.b16 %v797
    %v2313 = vunpack.c.l.b16 %v798
    %v2314 = vunpack.c.h.b16 %v798
    %v2315 = vunpack.c.l.b16 %v799
    %v2316 = vunpack.c.h.b16 %v799
    %v2317 = vunpack.c.l.b16 %v800
    %v2318 = vunpack.c.h.b16 %v800
    %v2319 = vunpack.c.l.b16 %v801
    %v2320 = vunpack.c.h.b16 %v801
    %v2321 = vunpack.c.l.b16 %v802
    %v2322 = vunpack.c.h.b16 %v802
    %v2323 = vunpack.c.l.b16 %v803
    %v2324 = vunpack.c.h.b16 %v803
    %v2325 = vunpack.c.l.b16 %v804
    %v2326 = vunpack.c.h.b16 %v804
    %v2327 = vunpack.c.l.b16 %v805
    %v2328 = vunpack.c.h.b16 %v805
    %v2329 = vunpack.c.l.b16 %v806
    %v2330 = vunpack.c.h.b16 %v806
    %v2331 = vunpack.c.l.b16 %v807
    %v2332 = vunpack.c.h.b16 %v807
    %v2333 = vunpack.c.l.b16 %v808
    %v2334 = vunpack.c.h.b16 %v808
    %v2335 = vunpack.c.l.b16 %v809
    %v2336 = vunpack.c.h.b16 %v809
    %v2337 = vunpack.c.l.b16 %v810
    %v2338 = vunpack.c.h.b16 %v810
    %v2339 = vunpack.c.l.b16 %v811
    %v2340 = vunpack.c.h.b16 %v811
    %v2341 = vunpack.c.l.b16 %v812
    %v2342 = vunpack.c.h.b16 %v812
    %v2343 = vunpack.c.l.b16 %v813
    %v2344 = vunpack.c.h.b16 %v813
    %v2345 = vunpack.c.l.b16 %v814
    %v2346 = vunpack.c.h.b16 %v814
    %v2347 = vunpack.c.l.b16 %v815
    %v2348 = vunpack.c.h.b16 %v815
    %v2349 = vunpack.c.l.b16 %v816
    %v2350 = vunpack.c.h.b16 %v816
    %v2351 = vunpack.c.l.b16 %v817
    %v2352 = vunpack.c.h.b16 %v817
    %v2353 = vunpack.c.l.b16 %v818
    %v2354 = vunpack.c.h.b16 %v818
    %v2355 = vunpack.c.l.b16 %v819
    %v2356 = vunpack.c.h.b16 %v819
    %v2357 = vunpack.c.l.b16 %v820
    %v2358 = vunpack.c.h.b16 %v820
    %v2359 = vunpack.c.l.b16 %v821
    %v2360 = vunpack.c.h.b16 %v821
    %v2361 = vunpack.c.l.b16 %v822
    %v2362 = vunpack.c.h.b16 %v822
    %v2363 = vunpack.c.l.b16 %v823
    %v2364 = vunpack.c.h.b16 %v823
    %v2365 = vunpack.c.l.b16 %v824
    %v2366 = vunpack.c.h.b16 %v824
    %v2367 = vunpack.c.l.b16 %v825
    %v2368 = vunpack.c.h.b16 %v825
    %v2369 = vunpack.c.l.b16 %v826
    %v2370 = vunpack.c.h.b16 %v826
    %v2371 = vunpack.c.l.b16 %v827
    %v2372 = vunpack.c.h.b16 %v827
    %v2373 = vunpack.c.l.b16 %v828
    %v2374 = vunpack.c.h.b16 %v828
    %v2375 = vunpack.c.l.b16 %v829
    %v2376 = vunpack.c.h.b16 %v829
    %v2377 = vunpack.c.l.b16 %v830
    %v2378 = vunpack.c.h.b16 %v830
    %v2379 = vunpack.c.l.b16 %v831
    %v2380 = vunpack.c.h.b16 %v831
    %v2381 = vunpack.c.l.b16 %v832
    %v2382 = vunpack.c.h.b16 %v832
    %v2383 = vunpack.c.l.b16 %v833
    %v2384 = vunpack.c.h.b16 %v833
    %v2385 = vunpack.c.l.b16 %v834
    %v2386 = vunpack.c.h.b16 %v834
    %v2387 = vunpack.c.l.b16 %v835
    %v2388 = vunpack.c.h.b16 %v835
    %v2389 = vunpack.c.l.b16 %v836
    %v2390 = vunpack.c.h.b16 %v836
    %v2391 = vunpack.c.l.b16 %v837
    %v2392 = vunpack.c.h.b16 %v837
    %v2393 = vunpack.c.l.b16 %v838
    %v2394 = vunpack.c.h.b16 %v838
    %v2395 = vunpack.c.l.b16 %v839
    %v2396 = vunpack.c.h.b16 %v839
    %v2397 = vunpack.c.l.b16 %v840
    %v2398 = vunpack.c.h.b16 %v840
    %v2399 = vunpack.c.l.b16 %v841
    %v2400 = vunpack.c.h.b16 %v841
    %v2401 = vunpack.c.l.b16 %v842
    %v2402 = vunpack.c.h.b16 %v842
    %v2403 = vunpack.c.l.b16 %v843
    %v2404 = vunpack.c.h.b16 %v843
    %v2405 = vunpack.c.l.b16 %v844
    %v2406 = vunpack.c.h.b16 %v844
    %v2407 = vunpack.c.l.b16 %v845
    %v2408 = vunpack.c.h.b16 %v845
    %v2409 = vunpack.c.l.b16 %v846
    %v2410 = vunpack.c.h.b16 %v846
    %v2411 = vunpack.c.l.b16 %v847
    %v2412 = vunpack.c.h.b16 %v847
    %v2413 = vunpack.c.l.b16 %v848
    %v2414 = vunpack.c.h.b16 %v848
    %v2415 = vunpack.c.l.b16 %v849
    %v2416 = vunpack.c.h.b16 %v849
    %v2417 = vunpack.c.l.b16 %v850
    %v2418 = vunpack.c.h.b16 %v850
    %v2419 = vunpack.c.l.b16 %v851
    %v2420 = vunpack.c.h.b16 %v851
    %v2421 = vunpack.c.l.b16 %v852
    %v2422 = vunpack.c.h.b16 %v852
    %v2423 = vunpack.c.l.b16 %v853
    %v2424 = vunpack.c.h.b16 %v853
    %v2425 = vunpack.c.l.b16 %v854
    %v2426 = vunpack.c.h.b16 %v854
    %v2427 = vunpack.c.l.b16 %v855
    %v2428 = vunpack.c.h.b16 %v855
    %v2429 = vunpack.c.l.b16 %v856
    %v2430 = vunpack.c.h.b16 %v856
    %v2431 = vunpack.c.l.b16 %v857
    %v2432 = vunpack.c.h.b16 %v857
    %v2433 = vunpack.c.l.b16 %v858
    %v2434 = vunpack.c.h.b16 %v858
    %v2435 = vunpack.c.l.b16 %v859
    %v2436 = vunpack.c.h.b16 %v859
    %v2437 = vunpack.c.l.b16 %v860
    %v2438 = vunpack.c.h.b16 %v860
    %v2439 = vpack.c.b16 %v1423, %v1415
    %v2440 = vpack.c.b16 %v1424, %v1416
    %v2441 = vpack.c.b16 %v1425, %v1417
    %v2442 = vpack.c.b16 %v1426, %v1418
    %v2443 = vpack.c.b16 %v1427, %v1419
    %v2444 = vpack.c.b16 %v1428, %v1420
    %v2445 = vpack.c.b16 %v1429, %v1421
    %v2446 = vpack.c.b16 %v1430, %v1422
    %v2447 = vpack.c.b16 %v1439, %v1431
    %v2448 = vpack.c.b16 %v1440, %v1432
    %v2449 = vpack.c.b16 %v1441, %v1433
    %v2450 = vpack.c.b16 %v1442, %v1434
    %v2451 = vpack.c.b16 %v1443, %v1435
    %v2452 = vpack.c.b16 %v1444, %v1436
    %v2453 = vpack.c.b16 %v1445, %v1437
    %v2454 = vpack.c.b16 %v1446, %v1438
    %v2455 = vpack.c.b16 %v1455, %v1447
    %v2456 = vpack.c.b16 %v1456, %v1448
    %v2457 = vpack.c.b16 %v1457, %v1449
    %v2458 = vpack.c.b16 %v1458, %v1450
    %v2459 = vpack.c.b16 %v1459, %v1451
    %v2460 = vpack.c.b16 %v1460, %v1452
    %v2461 = vpack.c.b16 %v1461, %v1453
    %v2462 = vpack.c.b16 %v1462, %v1454
    %v2463 = vpack.c.b16 %v1471, %v1463
    %v2464 = vpack.c.b16 %v1472, %v1464
    %v2465 = vpack.c.b16 %v1473, %v1465
    %v2466 = vpack.c.b16 %v1474, %v1466
    %v2467 = vpack.c.b16 %v1475, %v1467
    %v2468 = vpack.c.b16 %v1476, %v1468
    %v2469 = vpack.c.b16 %v1477, %v1469
    %v2470 = vpack.c.b16 %v1478, %v1470
    %v2471 = vpack.c.b16 %v1487, %v1479
    %v2472 = vpack.c.b16 %v1488, %v1480
    %v2473 = vpack.c.b16 %v1489, %v1481
    %v2474 = vpack.c.b16 %v1490, %v1482
    %v2475 = vpack.c.b16 %v1491, %v1483
    %v2476 = vpack.c.b16 %v1492, %v1484
    %v2477 = vpack.c.b16 %v1493, %v1485
    %v2478 = vpack.c.b16 %v1494, %v1486
    %v2479 = vpack.c.b16 %v1503, %v1495
    %v2480 = vpack.c.b16 %v1504, %v1496
    %v2481 = vpack.c.b16 %v1505, %v1497
    %v2482 = vpack.c.b16 %v1506, %v1498
    %v2483 = vpack.c.b16 %v1507, %v1499
    %v2484 = vpack.c.b16 %v1508, %v1500
    %v2485 = vpack.c.b16 %v1509, %v1501
    %v2486 = vpack.c.b16 %v1510, %v1502
    %v2487 = vpack.c.b16 %v1519, %v1511
    %v2488 = vpack.c.b16 %v1520, %v1512
    %v2489 = vpack.c.b16 %v1521, %v1513
    %v2490 = vpack.c.b16 %v1522, %v1514
    %v2491 = vpack.c.b16 %v1523, %v1515
    %v2492 = vpack.c.b16 %v1524, %v1516
    %v2493 = vpack.c.b16 %v1525, %v1517
    %v2494 = vpack.c.b16 %v1526, %v1518
    %v2495 = vpack.c.b16 %v1535, %v1527
    %v2496 = vpack.c.b16 %v1536, %v1528
    %v2497 = vpack.c.b16 %v1537, %v1529
    %v2498 = vpack.c.b16 %v1538, %v1530
    %v2499 = vpack.c.b16 %v1539, %v1531
    %v2500 = vpack.c.b16 %v1540, %v1532
    %v2501 = vpack.c.b16 %v1541, %v1533
    %v2502 = vpack.c.b16 %v1542, %v1534
    %v2503 = vpack.c.b16 %v1551, %v1543
    %v2504 = vpack.c.b16 %v1552, %v1544
    %v2505 = vpack.c.b16 %v1553, %v1545
    %v2506 = vpack.c.b16 %v1554, %v1546
    %v2507 = vpack.c.b16 %v1555, %v1547
    %v2508 = vpack.c.b16 %v1556, %v1548
    %v2509 = vpack.c.b16 %v1557, %v1549
    %v2510 = vpack.c.b16 %v1558, %v1550
    %v2511 = vpack.c.b16 %v1567, %v1559
    %v2512 = vpack.c.b16 %v1568, %v1560
    %v2513 = vpack.c.b16 %v1569, %v1561
    %v2514 = vpack.c.b16 %v1570, %v1562
    %v2515 = vpack.c.b16 %v1571, %v1563
    %v2516 = vpack.c.b16 %v1572, %v1564
    %v2517 = vpack.c.b16 %v1573, %v1565
    %v2518 = vpack.c.b16 %v1574, %v1566
    %v2519 = vpack.c.b16 %v1583, %v1575
    %v2520 = vpack.c.b16 %v1584, %v1576
    %v2521 = vpack.c.b16 %v1585, %v1577
    %v2522 = vpack.c.b16 %v1586, %v1578
    %v2523 = vpack.c.b16 %v1587, %v1579
    %v2524 = vpack.c.b16 %v1588, %v1580
    %v2525 = vpack.c.b16 %v1589, %v1581
    %v2526 = vpack.c.b16 %v1590, %v1582
    %v2527 = vpack.c.b16 %v1599, %v1591
    %v2528 = vpack.c.b16 %v1600, %v1592
    %v2529 = vpack.c.b16 %v1601, %v1593
    %v2530 = vpack.c.b16 %v1602, %v1594
    %v2531 = vpack.c.b16 %v1603, %v1595
    %v2532 = vpack.c.b16 %v1604, %v1596
    %v2533 = vpack.c.b16 %v1605, %v1597
    %v2534 = vpack.c.b16 %v1606, %v1598
    %v2535 = vpack.c.b16 %v1615, %v1607
    %v2536 = vpack.c.b16 %v1616, %v1608
    %v2537 = vpack.c.b16 %v1617, %v1609
    %v2538 = vpack.c.b16 %v1618, %v1610
    %v2539 = vpack.c.b16 %v1619, %v1611
    %v2540 = vpack.c.b16 %v1620, %v1612
    %v2541 = vpack.c.b16 %v1621, %v1613
    %v2542 = vpack.c.b16 %v1622, %v1614
    %v2543 = vpack.c.b16 %v1631, %v1623
    %v2544 = vpack.c.b16 %v1632, %v1624
    %v2545 = vpack.c.b16 %v1633, %v1625
    %v2546 = vpack.c.b16 %v1634, %v1626
    %v2547 = vpack.c.b16 %v1635, %v1627
    %v2548 = vpack.c.b16 %v1636, %v1628
    %v2549 = vpack.c.b16 %v1637, %v1629
    %v2550 = vpack.c.b16 %v1638, %v1630
    %v2551 = vpack.c.b16 %v1647, %v1639
    %v2552 = vpack.c.b16 %v1648, %v1640
    %v2553 = vpack.c.b16 %v1649, %v1641
    %v2554 = vpack.c.b16 %v1650, %v1642
    %v2555 = vpack.c.b16 %v1651, %v1643
    %v2556 = vpack.c.b16 %v1652, %v1644
    %v2557 = vpack.c.b16 %v1653, %v1645
    %v2558 = vpack.c.b16 %v1654, %v1646
    %v2559 = vpack.c.b16 %v1663, %v1655
    %v2560 = vpack.c.b16 %v1664, %v1656
    %v2561 = vpack.c.b16 %v1665, %v1657
    %v2562 = vpack.c.b16 %v1666, %v1658
    %v2563 = vpack.c.b16 %v1667, %v1659
    %v2564 = vpack.c.b16 %v1668, %v1660
    %v2565 = vpack.c.b16 %v1669, %v1661
    %v2566 = vpack.c.b16 %v1670, %v1662
    %v2567 = vpack.c.b16 %v1679, %v1671
    %v2568 = vpack.c.b16 %v1680, %v1672
    %v2569 = vpack.c.b16 %v1681, %v1673
    %v2570 = vpack.c.b16 %v1682, %v1674
    %v2571 = vpack.c.b16 %v1683, %v1675
    %v2572 = vpack.c.b16 %v1684, %v1676
    %v2573 = vpack.c.b16 %v1685, %v1677
    %v2574 = vpack.c.b16 %v1686, %v1678
    %v2575 = vpack.c.b16 %v1695, %v1687
    %v2576 = vpack.c.b16 %v1696, %v1688
    %v2577 = vpack.c.b16 %v1697, %v1689
    %v2578 = vpack.c.b16 %v1698, %v1690
    %v2579 = vpack.c.b16 %v1699, %v1691
    %v2580 = vpack.c.b16 %v1700, %v1692
    %v2581 = vpack.c.b16 %v1701, %v1693
    %v2582 = vpack.c.b16 %v1702, %v1694
    %v2583 = vpack.c.b16 %v1711, %v1703
    %v2584 = vpack.c.b16 %v1712, %v1704
    %v2585 = vpack.c.b16 %v1713, %v1705
    %v2586 = vpack.c.b16 %v1714, %v1706
    %v2587 = vpack.c.b16 %v1715, %v1707
    %v2588 = vpack.c.b16 %v1716, %v1708
    %v2589 = vpack.c.b16 %v1717, %v1709
    %v2590 = vpack.c.b16 %v1718, %v1710
    %v2591 = vpack.c.b16 %v1727, %v1719
    %v2592 = vpack.c.b16 %v1728, %v1720
    %v2593 = vpack.c.b16 %v1729, %v1721
    %v2594 = vpack.c.b16 %v1730, %v1722
    %v2595 = vpack.c.b16 %v1731, %v1723
    %v2596 = vpack.c.b16 %v1732, %v1724
    %v2597 = vpack.c.b16 %v1733, %v1725
    %v2598 = vpack.c.b16 %v1734, %v1726
    %v2599 = vpack.c.b16 %v1743, %v1735
    %v2600 = vpack.c.b16 %v1744, %v1736
    %v2601 = vpack.c.b16 %v1745, %v1737
    %v2602 = vpack.c.b16 %v1746, %v1738
    %v2603 = vpack.c.b16 %v1747, %v1739
    %v2604 = vpack.c.b16 %v1748, %v1740
    %v2605 = vpack.c.b16 %v1749, %v1741
    %v2606 = vpack.c.b16 %v1750, %v1742
    %v2607 = vpack.c.b16 %v1759, %v1751
    %v2608 = vpack.c.b16 %v1760, %v1752
    %v2609 = vpack.c.b16 %v1761, %v1753
    %v2610 = vpack.c.b16 %v1762, %v1754
    %v2611 = vpack.c.b16 %v1763, %v1755
    %v2612 = vpack.c.b16 %v1764, %v1756
    %v2613 = vpack.c.b16 %v1765, %v1757
    %v2614 = vpack.c.b16 %v1766, %v1758
    %v2615 = vpack.c.b16 %v1775, %v1767
    %v2616 = vpack.c.b16 %v1776, %v1768
    %v2617 = vpack.c.b16 %v1777, %v1769
    %v2618 = vpack.c.b16 %v1778, %v1770
    %v2619 = vpack.c.b16 %v1779, %v1771
    %v2620 = vpack.c.b16 %v1780, %v1772
    %v2621 = vpack.c.b16 %v1781, %v1773
    %v2622 = vpack.c.b16 %v1782, %v1774
    %v2623 = vpack.c.b16 %v1791, %v1783
    %v2624 = vpack.c.b16 %v1792, %v1784
    %v2625 = vpack.c.b16 %v1793, %v1785
    %v2626 = vpack.c.b16 %v1794, %v1786
    %v2627 = vpack.c.b16 %v1795, %v1787
    %v2628 = vpack.c.b16 %v1796, %v1788
    %v2629 = vpack.c.b16 %v1797, %v1789
    %v2630 = vpack.c.b16 %v1798, %v1790
    %v2631 = vpack.c.b16 %v1807, %v1799
    %v2632 = vpack.c.b16 %v1808, %v1800
    %v2633 = vpack.c.b16 %v1809, %v1801
    %v2634 = vpack.c.b16 %v1810, %v1802
    %v2635 = vpack.c.b16 %v1811, %v1803
    %v2636 = vpack.c.b16 %v1812, %v1804
    %v2637 = vpack.c.b16 %v1813, %v1805
    %v2638 = vpack.c.b16 %v1814, %v1806
    %v2639 = vpack.c.b16 %v1823, %v1815
    %v2640 = vpack.c.b16 %v1824, %v1816
    %v2641 = vpack.c.b16 %v1825, %v1817
    %v2642 = vpack.c.b16 %v1826, %v1818
    %v2643 = vpack.c.b16 %v1827, %v1819
    %v2644 = vpack.c.b16 %v1828, %v1820
    %v2645 = vpack.c.b16 %v1829, %v1821
    %v2646 = vpack.c.b16 %v1830, %v1822
    %v2647 = vpack.c.b16 %v1839, %v1831
    %v2648 = vpack.c.b16 %v1840, %v1832
    %v2649 = vpack.c.b16 %v1841, %v1833
    %v2650 = vpack.c.b16 %v1842, %v1834
    %v2651 = vpack.c.b16 %v1843, %v1835
    %v2652 = vpack.c.b16 %v1844, %v1836
    %v2653 = vpack.c.b16 %v1845, %v1837
    %v2654 = vpack.c.b16 %v1846, %v1838
    %v2655 = vpack.c.b16 %v1855, %v1847
    %v2656 = vpack.c.b16 %v1856, %v1848
    %v2657 = vpack.c.b16 %v1857, %v1849
    %v2658 = vpack.c.b16 %v1858, %v1850
    %v2659 = vpack.c.b16 %v1859, %v1851
    %v2660 = vpack.c.b16 %v1860, %v1852
    %v2661 = vpack.c.b16 %v1861, %v1853
    %v2662 = vpack.c.b16 %v1862, %v1854
    %v2663 = vpack.c.b16 %v1871, %v1863
    %v2664 = vpack.c.b16 %v1872, %v1864
    %v2665 = vpack.c.b16 %v1873, %v1865
    %v2666 = vpack.c.b16 %v1874, %v1866
    %v2667 = vpack.c.b16 %v1875, %v1867
    %v2668 = vpack.c.b16 %v1876, %v1868
    %v2669 = vpack.c.b16 %v1877, %v1869
    %v2670 = vpack.c.b16 %v1878, %v1870
    %v2671 = vpack.c.b16 %v1887, %v1879
    %v2672 = vpack.c.b16 %v1888, %v1880
    %v2673 = vpack.c.b16 %v1889, %v1881
    %v2674 = vpack.c.b16 %v1890, %v1882
    %v2675 = vpack.c.b16 %v1891, %v1883
    %v2676 = vpack.c.b16 %v1892, %v1884
    %v2677 = vpack.c.b16 %v1893, %v1885
    %v2678 = vpack.c.b16 %v1894, %v1886
    %v2679 = vpack.c.b16 %v1903, %v1895
    %v2680 = vpack.c.b16 %v1904, %v1896
    %v2681 = vpack.c.b16 %v1905, %v1897
    %v2682 = vpack.c.b16 %v1906, %v1898
    %v2683 = vpack.c.b16 %v1907, %v1899
    %v2684 = vpack.c.b16 %v1908, %v1900
    %v2685 = vpack.c.b16 %v1909, %v1901
    %v2686 = vpack.c.b16 %v1910, %v1902
    %v2687 = vpack.c.b16 %v1919, %v1911
    %v2688 = vpack.c.b16 %v1920, %v1912
    %v2689 = vpack.c.b16 %v1921, %v1913
    %v2690 = vpack.c.b16 %v1922, %v1914
    %v2691 = vpack.c.b16 %v1923, %v1915
    %v2692 = vpack.c.b16 %v1924, %v1916
    %v2693 = vpack.c.b16 %v1925, %v1917
    %v2694 = vpack.c.b16 %v1926, %v1918
    %v2695 = vpack.c.b16 %v1935, %v1927
    %v2696 = vpack.c.b16 %v1936, %v1928
    %v2697 = vpack.c.b16 %v1937, %v1929
    %v2698 = vpack.c.b16 %v1938, %v1930
    %v2699 = vpack.c.b16 %v1939, %v1931
    %v2700 = vpack.c.b16 %v1940, %v1932
    %v2701 = vpack.c.b16 %v1941, %v1933
    %v2702 = vpack.c.b16 %v1942, %v1934
    %v2703 = vpack.c.b16 %v1951, %v1943
    %v2704 = vpack.c.b16 %v1952, %v1944
    %v2705 = vpack.c.b16 %v1953, %v1945
    %v2706 = vpack.c.b16 %v1954, %v1946
    %v2707 = vpack.c.b16 %v1955, %v1947
    %v2708 = vpack.c.b16 %v1956, %v1948
    %v2709 = vpack.c.b16 %v1957, %v1949
    %v2710 = vpack.c.b16 %v1958, %v1950
    %v2711 = vpack.c.b16 %v1967, %v1959
    %v2712 = vpack.c.b16 %v1968, %v1960
    %v2713 = vpack.c.b16 %v1969, %v1961
    %v2714 = vpack.c.b16 %v1970, %v1962
    %v2715 = vpack.c.b16 %v1971, %v1963
    %v2716 = vpack.c.b16 %v1972, %v1964
    %v2717 = vpack.c.b16 %v1973, %v1965
    %v2718 = vpack.c.b16 %v1974, %v1966
    %v2719 = vpack.c.b16 %v1983, %v1975
    %v2720 = vpack.c.b16 %v1984, %v1976
    %v2721 = vpack.c.b16 %v1985, %v1977
    %v2722 = vpack.c.b16 %v1986, %v1978
    %v2723 = vpack.c.b16 %v1987, %v1979
    %v2724 = vpack.c.b16 %v1988, %v1980
    %v2725 = vpack.c.b16 %v1989, %v1981
    %v2726 = vpack.c.b16 %v1990, %v1982
    %v2727 = vpack.c.b16 %v1999, %v1991
    %v2728 = vpack.c.b16 %v2000, %v1992
    %v2729 = vpack.c.b16 %v2001, %v1993
    %v2730 = vpack.c.b16 %v2002, %v1994
    %v2731 = vpack.c.b16 %v2003, %v1995
    %v2732 = vpack.c.b16 %v2004, %v1996
    %v2733 = vpack.c.b16 %v2005, %v1997
    %v2734 = vpack.c.b16 %v2006, %v1998
    %v2735 = vpack.c.b16 %v2015, %v2007
    %v2736 = vpack.c.b16 %v2016, %v2008
    %v2737 = vpack.c.b16 %v2017, %v2009
    %v2738 = vpack.c.b16 %v2018, %v2010
    %v2739 = vpack.c.b16 %v2019, %v2011
    %v2740 = vpack.c.b16 %v2020, %v2012
    %v2741 = vpack.c.b16 %v2021, %v2013
    %v2742 = vpack.c.b16 %v2022, %v2014
    %v2743 = vpack.c.b16 %v2031, %v2023
    %v2744 = vpack.c.b16 %v2032, %v2024
    %v2745 = vpack.c.b16 %v2033, %v2025
    %v2746 = vpack.c.b16 %v2034, %v2026
    %v2747 = vpack.c.b16 %v2035, %v2027
    %v2748 = vpack.c.b16 %v2036, %v2028
    %v2749 = vpack.c.b16 %v2037, %v2029
    %v2750 = vpack.c.b16 %v2038, %v2030
    %v2751 = vpack.c.b16 %v2047, %v2039
    %v2752 = vpack.c.b16 %v2048, %v2040
    %v2753 = vpack.c.b16 %v2049, %v2041
    %v2754 = vpack.c.b16 %v2050, %v2042
    %v2755 = vpack.c.b16 %v2051, %v2043
    %v2756 = vpack.c.b16 %v2052, %v2044
    %v2757 = vpack.c.b16 %v2053, %v2045
    %v2758 = vpack.c.b16 %v2054, %v2046
    %v2759 = vpack.c.b16 %v2063, %v2055
    %v2760 = vpack.c.b16 %v2064, %v2056
    %v2761 = vpack.c.b16 %v2065, %v2057
    %v2762 = vpack.c.b16 %v2066, %v2058
    %v2763 = vpack.c.b16 %v2067, %v2059
    %v2764 = vpack.c.b16 %v2068, %v2060
    %v2765 = vpack.c.b16 %v2069, %v2061
    %v2766 = vpack.c.b16 %v2070, %v2062
    %v2767 = vpack.c.b16 %v2079, %v2071
    %v2768 = vpack.c.b16 %v2080, %v2072
    %v2769 = vpack.c.b16 %v2081, %v2073
    %v2770 = vpack.c.b16 %v2082, %v2074
    %v2771 = vpack.c.b16 %v2083, %v2075
    %v2772 = vpack.c.b16 %v2084, %v2076
    %v2773 = vpack.c.b16 %v2085, %v2077
    %v2774 = vpack.c.b16 %v2086, %v2078
    %v2775 = vpack.c.b16 %v2095, %v2087
    %v2776 = vpack.c.b16 %v2096, %v2088
    %v2777 = vpack.c.b16 %v2097, %v2089
    %v2778 = vpack.c.b16 %v2098, %v2090
    %v2779 = vpack.c.b16 %v2099, %v2091
    %v2780 = vpack.c.b16 %v2100, %v2092
    %v2781 = vpack.c.b16 %v2101, %v2093
    %v2782 = vpack.c.b16 %v2102, %v2094
    %v2783 = vpack.c.b16 %v2111, %v2103
    %v2784 = vpack.c.b16 %v2112, %v2104
    %v2785 = vpack.c.b16 %v2113, %v2105
    %v2786 = vpack.c.b16 %v2114, %v2106
    %v2787 = vpack.c.b16 %v2115, %v2107
    %v2788 = vpack.c.b16 %v2116, %v2108
    %v2789 = vpack.c.b16 %v2117, %v2109
    %v2790 = vpack.c.b16 %v2118, %v2110
    %v2791 = vpack.c.b16 %v2127, %v2119
    %v2792 = vpack.c.b16 %v2128, %v2120
    %v2793 = vpack.c.b16 %v2129, %v2121
    %v2794 = vpack.c.b16 %v2130, %v2122
    %v2795 = vpack.c.b16 %v2131, %v2123
    %v2796 = vpack.c.b16 %v2132, %v2124
    %v2797 = vpack.c.b16 %v2133, %v2125
    %v2798 = vpack.c.b16 %v2134, %v2126
    %v2799 = vpack.c.b16 %v2143, %v2135
    %v2800 = vpack.c.b16 %v2144, %v2136
    %v2801 = vpack.c.b16 %v2145, %v2137
    %v2802 = vpack.c.b16 %v2146, %v2138
    %v2803 = vpack.c.b16 %v2147, %v2139
    %v2804 = vpack.c.b16 %v2148, %v2140
    %v2805 = vpack.c.b16 %v2149, %v2141
    %v2806 = vpack.c.b16 %v2150, %v2142
    %v2807 = vpack.c.b16 %v2159, %v2151
    %v2808 = vpack.c.b16 %v2160, %v2152
    %v2809 = vpack.c.b16 %v2161, %v2153
    %v2810 = vpack.c.b16 %v2162, %v2154
    %v2811 = vpack.c.b16 %v2163, %v2155
    %v2812 = vpack.c.b16 %v2164, %v2156
    %v2813 = vpack.c.b16 %v2165, %v2157
    %v2814 = vpack.c.b16 %v2166, %v2158
    %v2815 = vpack.c.b16 %v2175, %v2167
    %v2816 = vpack.c.b16 %v2176, %v2168
    %v2817 = vpack.c.b16 %v2177, %v2169
    %v2818 = vpack.c.b16 %v2178, %v2170
    %v2819 = vpack.c.b16 %v2179, %v2171
    %v2820 = vpack.c.b16 %v2180, %v2172
    %v2821 = vpack.c.b16 %v2181, %v2173
    %v2822 = vpack.c.b16 %v2182, %v2174
    %v2823 = vpack.c.b16 %v2191, %v2183
    %v2824 = vpack.c.b16 %v2192, %v2184
    %v2825 = vpack.c.b16 %v2193, %v2185
    %v2826 = vpack.c.b16 %v2194, %v2186
    %v2827 = vpack.c.b16 %v2195, %v2187
    %v2828 = vpack.c.b16 %v2196, %v2188
    %v2829 = vpack.c.b16 %v2197, %v2189
    %v2830 = vpack.c.b16 %v2198, %v2190
    %v2831 = vpack.c.b16 %v2207, %v2199
    %v2832 = vpack.c.b16 %v2208, %v2200
    %v2833 = vpack.c.b16 %v2209, %v2201
    %v2834 = vpack.c.b16 %v2210, %v2202
    %v2835 = vpack.c.b16 %v2211, %v2203
    %v2836 = vpack.c.b16 %v2212, %v2204
    %v2837 = vpack.c.b16 %v2213, %v2205
    %v2838 = vpack.c.b16 %v2214, %v2206
    %v2839 = vpack.c.b16 %v2223, %v2215
    %v2840 = vpack.c.b16 %v2224, %v2216
    %v2841 = vpack.c.b16 %v2225, %v2217
    %v2842 = vpack.c.b16 %v2226, %v2218
    %v2843 = vpack.c.b16 %v2227, %v2219
    %v2844 = vpack.c.b16 %v2228, %v2220
    %v2845 = vpack.c.b16 %v2229, %v2221
    %v2846 = vpack.c.b16 %v2230, %v2222
    %v2847 = vpack.c.b16 %v2239, %v2231
    %v2848 = vpack.c.b16 %v2240, %v2232
    %v2849 = vpack.c.b16 %v2241, %v2233
    %v2850 = vpack.c.b16 %v2242, %v2234
    %v2851 = vpack.c.b16 %v2243, %v2235
    %v2852 = vpack.c.b16 %v2244, %v2236
    %v2853 = vpack.c.b16 %v2245, %v2237
    %v2854 = vpack.c.b16 %v2246, %v2238
    %v2855 = vpack.c.b16 %v2255, %v2247
    %v2856 = vpack.c.b16 %v2256, %v2248
    %v2857 = vpack.c.b16 %v2257, %v2249
    %v2858 = vpack.c.b16 %v2258, %v2250
    %v2859 = vpack.c.b16 %v2259, %v2251
    %v2860 = vpack.c.b16 %v2260, %v2252
    %v2861 = vpack.c.b16 %v2261, %v2253
    %v2862 = vpack.c.b16 %v2262, %v2254
    %v2863 = vpack.c.b16 %v2271, %v2263
    %v2864 = vpack.c.b16 %v2272, %v2264
    %v2865 = vpack.c.b16 %v2273, %v2265
    %v2866 = vpack.c.b16 %v2274, %v2266
    %v2867 = vpack.c.b16 %v2275, %v2267
    %v2868 = vpack.c.b16 %v2276, %v2268
    %v2869 = vpack.c.b16 %v2277, %v2269
    %v2870 = vpack.c.b16 %v2278, %v2270
    %v2871 = vpack.c.b16 %v2287, %v2279
    %v2872 = vpack.c.b16 %v2288, %v2280
    %v2873 = vpack.c.b16 %v2289, %v2281
    %v2874 = vpack.c.b16 %v2290, %v2282
    %v2875 = vpack.c.b16 %v2291, %v2283
    %v2876 = vpack.c.b16 %v2292, %v2284
    %v2877 = vpack.c.b16 %v2293, %v2285
    %v2878 = vpack.c.b16 %v2294, %v2286
    %v2879 = vpack.c.b16 %v2303, %v2295
    %v2880 = vpack.c.b16 %v2304, %v2296
    %v2881 = vpack.c.b16 %v2305, %v2297
    %v2882 = vpack.c.b16 %v2306, %v2298
    %v2883 = vpack.c.b16 %v2307, %v2299
    %v2884 = vpack.c.b16 %v2308, %v2300
    %v2885 = vpack.c.b16 %v2309, %v2301
    %v2886 = vpack.c.b16 %v2310, %v2302
    %v2887 = vpack.c.b16 %v2319, %v2311
    %v2888 = vpack.c.b16 %v2320, %v2312
    %v2889 = vpack.c.b16 %v2321, %v2313
    %v2890 = vpack.c.b16 %v2322, %v2314
    %v2891 = vpack.c.b16 %v2323, %v2315
    %v2892 = vpack.c.b16 %v2324, %v2316
    %v2893 = vpack.c.b16 %v2325, %v2317
    %v2894 = vpack.c.b16 %v2326, %v2318
    %v2895 = vpack.c.b16 %v2335, %v2327
    %v2896 = vpack.c.b16 %v2336, %v2328
    %v2897 = vpack.c.b16 %v2337, %v2329
    %v2898 = vpack.c.b16 %v2338, %v2330
    %v2899 = vpack.c.b16 %v2339, %v2331
    %v2900 = vpack.c.b16 %v2340, %v2332
    %v2901 = vpack.c.b16 %v2341, %v2333
    %v2902 = vpack.c.b16 %v2342, %v2334
    %v2903 = vpack.c.b16 %v2351, %v2343
    %v2904 = vpack.c.b16 %v2352, %v2344
    %v2905 = vpack.c.b16 %v2353, %v2345
    %v2906 = vpack.c.b16 %v2354, %v2346
    %v2907 = vpack.c.b16 %v2355, %v2347
    %v2908 = vpack.c.b16 %v2356, %v2348
    %v2909 = vpack.c.b16 %v2357, %v2349
    %v2910 = vpack.c.b16 %v2358, %v2350
    %v2911 = vpack.c.b16 %v2367, %v2359
    %v2912 = vpack.c.b16 %v2368, %v2360
    %v2913 = vpack.c.b16 %v2369, %v2361
    %v2914 = vpack.c.b16 %v2370, %v2362
    %v2915 = vpack.c.b16 %v2371, %v2363
    %v2916 = vpack.c.b16 %v2372, %v2364
    %v2917 = vpack.c.b16 %v2373, %v2365
    %v2918 = vpack.c.b16 %v2374, %v2366
    %v2919 = vpack.c.b16 %v2383, %v2375
    %v2920 = vpack.c.b16 %v2384, %v2376
    %v2921 = vpack.c.b16 %v2385, %v2377
    %v2922 = vpack.c.b16 %v2386, %v2378
    %v2923 = vpack.c.b16 %v2387, %v2379
    %v2924 = vpack.c.b16 %v2388, %v2380
    %v2925 = vpack.c.b16 %v2389, %v2381
    %v2926 = vpack.c.b16 %v2390, %v2382
    %v2927 = vpack.c.b16 %v2399, %v2391
    %v2928 = vpack.c.b16 %v2400, %v2392
    %v2929 = vpack.c.b16 %v2401, %v2393
    %v2930 = vpack.c.b16 %v2402, %v2394
    %v2931 = vpack.c.b16 %v2403, %v2395
    %v2932 = vpack.c.b16 %v2404, %v2396
    %v2933 = vpack.c.b16 %v2405, %v2397
    %v2934 = vpack.c.b16 %v2406, %v2398
    %v2935 = vpack.c.b16 %v2415, %v2407
    %v2936 = vpack.c.b16 %v2416, %v2408
    %v2937 = vpack.c.b16 %v2417, %v2409
    %v2938 = vpack.c.b16 %v2418, %v2410
    %v2939 = vpack.c.b16 %v2419, %v2411
    %v2940 = vpack.c.b16 %v2420, %v2412
    %v2941 = vpack.c.b16 %v2421, %v2413
    %v2942 = vpack.c.b16 %v2422, %v2414
    %v2943 = vpack.c.b16 %v2431, %v2423
    %v2944 = vpack.c.b16 %v2432, %v2424
    %v2945 = vpack.c.b16 %v2433, %v2425
    %v2946 = vpack.c.b16 %v2434, %v2426
    %v2947 = vpack.c.b16 %v2435, %v2427
    %v2948 = vpack.c.b16 %v2436, %v2428
    %v2949 = vpack.c.b16 %v2437, %v2429
    %v2950 = vpack.c.b16 %v2438, %v2430
    %3463 = vmatprep.subr.bf16.mxu0 %v2440
    %3464 = vmatpush1.bf16.msra.mxu0 %v2439
    %3465 = vmatprep.subr.bf16.mxu0 %v2448
    %3466 = vmatpush1.bf16.msra.mxu0 %v2447
    %3467 = vmatprep.subr.bf16.mxu0 %v2456
    %3468 = vmatpush1.bf16.msra.mxu0 %v2455
    %3469 = vmatprep.subr.bf16.mxu0 %v2464
    %3470 = vmatpush1.bf16.msra.mxu0 %v2463
    %3471 = vmatprep.subr.bf16.mxu0 %v2472
    %3472 = vmatpush1.bf16.msra.mxu0 %v2471
    %3473 = vmatprep.subr.bf16.mxu0 %v2480
    %3474 = vmatpush1.bf16.msra.mxu0 %v2479
    %3475 = vmatprep.subr.bf16.mxu0 %v2488
    %3476 = vmatpush1.bf16.msra.mxu0 %v2487
    %3477 = vmatprep.subr.bf16.mxu0 %v2496
    %3478 = vmatpush1.bf16.msra.mxu0 %v2495
    %3479 = vmatprep.subr.bf16.mxu0 %v2504
    %3480 = vmatpush1.bf16.msra.mxu0 %v2503
    %3481 = vmatprep.subr.bf16.mxu0 %v2512
    %3482 = vmatpush1.bf16.msra.mxu0 %v2511
    %3483 = vmatprep.subr.bf16.mxu0 %v2520
    %3484 = vmatpush1.bf16.msra.mxu0 %v2519
    %3485 = vmatprep.subr.bf16.mxu0 %v2528
    %3486 = vmatpush1.bf16.msra.mxu0 %v2527
    %3487 = vmatprep.subr.bf16.mxu0 %v2536
    %3488 = vmatpush1.bf16.msra.mxu0 %v2535
    %3489 = vmatprep.subr.bf16.mxu0 %v2544
    %3490 = vmatpush1.bf16.msra.mxu0 %v2543
    %3491 = vmatprep.subr.bf16.mxu0 %v2552
    %3492 = vmatpush1.bf16.msra.mxu0 %v2551
    %3493 = vmatprep.subr.bf16.mxu0 %v2560
    %3494 = vmatpush1.bf16.msra.mxu0 %v2559
    %3495 = vmatprep.mubr.bf16.mxu0 %v342
    %3496 = vmatmul.mubr.bf16.gmra.mrb[0].mxu0 %v341
    %v3497 = vpop.f32.mrb[0].mxu0
    %v3498 = vadd.f32 %v866, %v3497
    %v3499 = vpop.f32.mrb[0].mxu0
    %v3500 = vadd.f32 %v870, %v3499
    %v3501 = vpop.f32.mrb[0].mxu0
    %v3502 = vpop.f32.mrb[0].mxu0
    %3503 = vdwg.mxu0
    %3504 = vmatprep.subr.bf16.mxu0 %v2568
    %3505 = vmatpush1.bf16.msra.mxu0 %v2567
    %3506 = vmatprep.subr.bf16.mxu0 %v2576
    %3507 = vmatpush1.bf16.msra.mxu0 %v2575
    %3508 = vmatprep.subr.bf16.mxu0 %v2584
    %3509 = vmatpush1.bf16.msra.mxu0 %v2583
    %3510 = vmatprep.subr.bf16.mxu0 %v2592
    %3511 = vmatpush1.bf16.msra.mxu0 %v2591
    %3512 = vmatprep.subr.bf16.mxu0 %v2600
    %3513 = vmatpush1.bf16.msra.mxu0 %v2599
    %3514 = vmatprep.subr.bf16.mxu0 %v2608
    %3515 = vmatpush1.bf16.msra.mxu0 %v2607
    %3516 = vmatprep.subr.bf16.mxu0 %v2616
    %3517 = vmatpush1.bf16.msra.mxu0 %v2615
    %3518 = vmatprep.subr.bf16.mxu0 %v2624
    %3519 = vmatpush1.bf16.msra.mxu0 %v2623
    %3520 = vmatprep.subr.bf16.mxu0 %v2632
    %3521 = vmatpush1.bf16.msra.mxu0 %v2631
    %3522 = vmatprep.subr.bf16.mxu0 %v2640
    %3523 = vmatpush1.bf16.msra.mxu0 %v2639
    %3524 = vmatprep.subr.bf16.mxu0 %v2648
    %3525 = vmatpush1.bf16.msra.mxu0 %v2647
    %3526 = vmatprep.subr.bf16.mxu0 %v2656
    %3527 = vmatpush1.bf16.msra.mxu0 %v2655
    %3528 = vmatprep.subr.bf16.mxu0 %v2664
    %3529 = vmatpush1.bf16.msra.mxu0 %v2663
    %3530 = vmatprep.subr.bf16.mxu0 %v2672
    %3531 = vmatpush1.bf16.msra.mxu0 %v2671
    %3532 = vmatprep.subr.bf16.mxu0 %v2680
    %3533 = vmatpush1.bf16.msra.mxu0 %v2679
    %3534 = vmatprep.subr.bf16.mxu0 %v2688
    %3535 = vmatpush1.bf16.msra.mxu0 %v2687
    %3536 = vmatprep.mubr.bf16.mxu0 %v344
    %3537 = vmatmul.mubr.bf16.gmra.mrb[0].mxu0 %v343
    %v3538 = vpop.f32.mrb[0].mxu0
    %v3539 = vadd.f32 %v3498, %v3538
    %v3540 = vpop.f32.mrb[0].mxu0
    %v3541 = vadd.f32 %v3500, %v3540
    %v3542 = vpop.f32.mrb[0].mxu0
    %v3543 = vpop.f32.mrb[0].mxu0
    %3544 = vdwg.mxu0
    %3545 = vmatprep.subr.bf16.mxu0 %v2696
    %3546 = vmatpush1.bf16.msra.mxu0 %v2695
    %3547 = vmatprep.subr.bf16.mxu0 %v2704
    %3548 = vmatpush1.bf16.msra.mxu0 %v2703
    %3549 = vmatprep.subr.bf16.mxu0 %v2712
    %3550 = vmatpush1.bf16.msra.mxu0 %v2711
    %3551 = vmatprep.subr.bf16.mxu0 %v2720
    %3552 = vmatpush1.bf16.msra.mxu0 %v2719
    %3553 = vmatprep.subr.bf16.mxu0 %v2728
    %3554 = vmatpush1.bf16.msra.mxu0 %v2727
    %3555 = vmatprep.subr.bf16.mxu0 %v2736
    %3556 = vmatpush1.bf16.msra.mxu0 %v2735
    %3557 = vmatprep.subr.bf16.mxu0 %v2744
    %3558 = vmatpush1.bf16.msra.mxu0 %v2743
    %3559 = vmatprep.subr.bf16.mxu0 %v2752
    %3560 = vmatpush1.bf16.msra.mxu0 %v2751
    %3561 = vmatprep.subr.bf16.mxu0 %v2760
    %3562 = vmatpush1.bf16.msra.mxu0 %v2759
    %3563 = vmatprep.subr.bf16.mxu0 %v2768
    %3564 = vmatpush1.bf16.msra.mxu0 %v2767
    %3565 = vmatprep.subr.bf16.mxu0 %v2776
    %3566 = vmatpush1.bf16.msra.mxu0 %v2775
    %3567 = vmatprep.subr.bf16.mxu0 %v2784
    %3568 = vmatpush1.bf16.msra.mxu0 %v2783
    %3569 = vmatprep.subr.bf16.mxu0 %v2792
    %3570 = vmatpush1.bf16.msra.mxu0 %v2791
    %3571 = vmatprep.subr.bf16.mxu0 %v2800
    %3572 = vmatpush1.bf16.msra.mxu0 %v2799
    %3573 = vmatprep.subr.bf16.mxu0 %v2808
    %3574 = vmatpush1.bf16.msra.mxu0 %v2807
    %3575 = vmatprep.subr.bf16.mxu0 %v2816
    %3576 = vmatpush1.bf16.msra.mxu0 %v2815
    %3577 = vmatprep.mubr.bf16.mxu0 %v346
    %3578 = vmatmul.mubr.bf16.gmra.mrb[0].mxu0 %v345
    %v3579 = vpop.f32.mrb[0].mxu0
    %v3580 = vadd.f32 %v3539, %v3579
    %v3581 = vpop.f32.mrb[0].mxu0
    %v3582 = vadd.f32 %v3541, %v3581
    %v3583 = vpop.f32.mrb[0].mxu0
    %v3584 = vpop.f32.mrb[0].mxu0
    %3585 = vdwg.mxu0
    %3586 = vmatprep.subr.bf16.mxu0 %v2824
    %3587 = vmatpush1.bf16.msra.mxu0 %v2823
    %3588 = vmatprep.subr.bf16.mxu0 %v2832
    %3589 = vmatpush1.bf16.msra.mxu0 %v2831
    %3590 = vmatprep.subr.bf16.mxu0 %v2840
    %3591 = vmatpush1.bf16.msra.mxu0 %v2839
    %3592 = vmatprep.subr.bf16.mxu0 %v2848
    %3593 = vmatpush1.bf16.msra.mxu0 %v2847
    %3594 = vmatprep.subr.bf16.mxu0 %v2856
    %3595 = vmatpush1.bf16.msra.mxu0 %v2855
    %3596 = vmatprep.subr.bf16.mxu0 %v2864
    %3597 = vmatpush1.bf16.msra.mxu0 %v2863
    %3598 = vmatprep.subr.bf16.mxu0 %v2872
    %3599 = vmatpush1.bf16.msra.mxu0 %v2871
    %3600 = vmatprep.subr.bf16.mxu0 %v2880
    %3601 = vmatpush1.bf16.msra.mxu0 %v2879
    %3602 = vmatprep.subr.bf16.mxu0 %v2888
    %3603 = vmatpush1.bf16.msra.mxu0 %v2887
    %3604 = vmatprep.subr.bf16.mxu0 %v2896
    %3605 = vmatpush1.bf16.msra.mxu0 %v2895
    %3606 = vmatprep.subr.bf16.mxu0 %v2904
    %3607 = vmatpush1.bf16.msra.mxu0 %v2903
    %3608 = vmatprep.subr.bf16.mxu0 %v2912
    %3609 = vmatpush1.bf16.msra.mxu0 %v2911
    %3610 = vmatprep.subr.bf16.mxu0 %v2920
    %3611 = vmatpush1.bf16.msra.mxu0 %v2919
    %3612 = vmatprep.subr.bf16.mxu0 %v2928
    %3613 = vmatpush1.bf16.msra.mxu0 %v2927
    %3614 = vmatprep.subr.bf16.mxu0 %v2936
    %3615 = vmatpush1.bf16.msra.mxu0 %v2935
    %3616 = vmatprep.subr.bf16.mxu0 %v2944
    %3617 = vmatpush1.bf16.msra.mxu0 %v2943
    %3618 = vmatprep.mubr.bf16.mxu0 %v348
    %3619 = vmatmul.mubr.bf16.gmra.mrb[0].mxu0 %v347
    %v3620 = vpop.f32.mrb[0].mxu0
    %v3621 = vadd.f32 %v3580, %v3620
    %v3622 = vpop.f32.mrb[0].mxu0
    %v3623 = vadd.f32 %v3582, %v3622
    %v3624 = vpop.f32.mrb[0].mxu0
    %v3625 = vpop.f32.mrb[0].mxu0
    %3626 = vdwg.mxu0
    %3627 = vmatprep.subr.bf16.mxu0 %v2442
    %3628 = vmatpush1.bf16.msra.mxu0 %v2441
    %3629 = vmatprep.subr.bf16.mxu0 %v2450
    %3630 = vmatpush1.bf16.msra.mxu0 %v2449
    %3631 = vmatprep.subr.bf16.mxu0 %v2458
    %3632 = vmatpush1.bf16.msra.mxu0 %v2457
    %3633 = vmatprep.subr.bf16.mxu0 %v2466
    %3634 = vmatpush1.bf16.msra.mxu0 %v2465
    %3635 = vmatprep.subr.bf16.mxu0 %v2474
    %3636 = vmatpush1.bf16.msra.mxu0 %v2473
    %3637 = vmatprep.subr.bf16.mxu0 %v2482
    %3638 = vmatpush1.bf16.msra.mxu0 %v2481
    %3639 = vmatprep.subr.bf16.mxu0 %v2490
    %3640 = vmatpush1.bf16.msra.mxu0 %v2489
    %3641 = vmatprep.subr.bf16.mxu0 %v2498
    %3642 = vmatpush1.bf16.msra.mxu0 %v2497
    %3643 = vmatprep.subr.bf16.mxu0 %v2506
    %3644 = vmatpush1.bf16.msra.mxu0 %v2505
    %3645 = vmatprep.subr.bf16.mxu0 %v2514
    %3646 = vmatpush1.bf16.msra.mxu0 %v2513
    %3647 = vmatprep.subr.bf16.mxu0 %v2522
    %3648 = vmatpush1.bf16.msra.mxu0 %v2521
    %3649 = vmatprep.subr.bf16.mxu0 %v2530
    %3650 = vmatpush1.bf16.msra.mxu0 %v2529
    %3651 = vmatprep.subr.bf16.mxu0 %v2538
    %3652 = vmatpush1.bf16.msra.mxu0 %v2537
    %3653 = vmatprep.subr.bf16.mxu0 %v2546
    %3654 = vmatpush1.bf16.msra.mxu0 %v2545
    %3655 = vmatprep.subr.bf16.mxu0 %v2554
    %3656 = vmatpush1.bf16.msra.mxu0 %v2553
    %3657 = vmatprep.subr.bf16.mxu0 %v2562
    %3658 = vmatpush1.bf16.msra.mxu0 %v2561
    %3659 = vmatprep.mubr.bf16.mxu0 %v342
    %3660 = vmatmul.mubr.bf16.gmra.mrb[0].mxu0 %v341
    %v3661 = vpop.f32.mrb[0].mxu0
    %v3662 = vadd.f32 %v874, %v3661
    %v3663 = vpop.f32.mrb[0].mxu0
    %v3664 = vadd.f32 %v878, %v3663
    %v3665 = vpop.f32.mrb[0].mxu0
    %v3666 = vpop.f32.mrb[0].mxu0
    %3667 = vdwg.mxu0
    %3668 = vmatprep.subr.bf16.mxu0 %v2570
    %3669 = vmatpush1.bf16.msra.mxu0 %v2569
    %3670 = vmatprep.subr.bf16.mxu0 %v2578
    %3671 = vmatpush1.bf16.msra.mxu0 %v2577
    %3672 = vmatprep.subr.bf16.mxu0 %v2586
    %3673 = vmatpush1.bf16.msra.mxu0 %v2585
    %3674 = vmatprep.subr.bf16.mxu0 %v2594
    %3675 = vmatpush1.bf16.msra.mxu0 %v2593
    %3676 = vmatprep.subr.bf16.mxu0 %v2602
    %3677 = vmatpush1.bf16.msra.mxu0 %v2601
    %3678 = vmatprep.subr.bf16.mxu0 %v2610
    %3679 = vmatpush1.bf16.msra.mxu0 %v2609
    %3680 = vmatprep.subr.bf16.mxu0 %v2618
    %3681 = vmatpush1.bf16.msra.mxu0 %v2617
    %3682 = vmatprep.subr.bf16.mxu0 %v2626
    %3683 = vmatpush1.bf16.msra.mxu0 %v2625
    %3684 = vmatprep.subr.bf16.mxu0 %v2634
    %3685 = vmatpush1.bf16.msra.mxu0 %v2633
    %3686 = vmatprep.subr.bf16.mxu0 %v2642
    %3687 = vmatpush1.bf16.msra.mxu0 %v2641
    %3688 = vmatprep.subr.bf16.mxu0 %v2650
    %3689 = vmatpush1.bf16.msra.mxu0 %v2649
    %3690 = vmatprep.subr.bf16.mxu0 %v2658
    %3691 = vmatpush1.bf16.msra.mxu0 %v2657
    %3692 = vmatprep.subr.bf16.mxu0 %v2666
    %3693 = vmatpush1.bf16.msra.mxu0 %v2665
    %3694 = vmatprep.subr.bf16.mxu0 %v2674
    %3695 = vmatpush1.bf16.msra.mxu0 %v2673
    %3696 = vmatprep.subr.bf16.mxu0 %v2682
    %3697 = vmatpush1.bf16.msra.mxu0 %v2681
    %3698 = vmatprep.subr.bf16.mxu0 %v2690
    %3699 = vmatpush1.bf16.msra.mxu0 %v2689
    %3700 = vmatprep.mubr.bf16.mxu0 %v344
    %3701 = vmatmul.mubr.bf16.gmra.mrb[0].mxu0 %v343
    %v3702 = vpop.f32.mrb[0].mxu0
    %v3703 = vadd.f32 %v3662, %v3702
    %v3704 = vpop.f32.mrb[0].mxu0
    %v3705 = vadd.f32 %v3664, %v3704
    %v3706 = vpop.f32.mrb[0].mxu0
    %v3707 = vpop.f32.mrb[0].mxu0
    %3708 = vdwg.mxu0
    %3709 = vmatprep.subr.bf16.mxu0 %v2698
    %3710 = vmatpush1.bf16.msra.mxu0 %v2697
    %3711 = vmatprep.subr.bf16.mxu0 %v2706
    %3712 = vmatpush1.bf16.msra.mxu0 %v2705
    %3713 = vmatprep.subr.bf16.mxu0 %v2714
    %3714 = vmatpush1.bf16.msra.mxu0 %v2713
    %3715 = vmatprep.subr.bf16.mxu0 %v2722
    %3716 = vmatpush1.bf16.msra.mxu0 %v2721
    %3717 = vmatprep.subr.bf16.mxu0 %v2730
    %3718 = vmatpush1.bf16.msra.mxu0 %v2729
    %3719 = vmatprep.subr.bf16.mxu0 %v2738
    %3720 = vmatpush1.bf16.msra.mxu0 %v2737
    %3721 = vmatprep.subr.bf16.mxu0 %v2746
    %3722 = vmatpush1.bf16.msra.mxu0 %v2745
    %3723 = vmatprep.subr.bf16.mxu0 %v2754
    %3724 = vmatpush1.bf16.msra.mxu0 %v2753
    %3725 = vmatprep.subr.bf16.mxu0 %v2762
    %3726 = vmatpush1.bf16.msra.mxu0 %v2761
    %3727 = vmatprep.subr.bf16.mxu0 %v2770
    %3728 = vmatpush1.bf16.msra.mxu0 %v2769
    %3729 = vmatprep.subr.bf16.mxu0 %v2778
    %3730 = vmatpush1.bf16.msra.mxu0 %v2777
    %3731 = vmatprep.subr.bf16.mxu0 %v2786
    %3732 = vmatpush1.bf16.msra.mxu0 %v2785
    %3733 = vmatprep.subr.bf16.mxu0 %v2794
    %3734 = vmatpush1.bf16.msra.mxu0 %v2793
    %3735 = vmatprep.subr.bf16.mxu0 %v2802
    %3736 = vmatpush1.bf16.msra.mxu0 %v2801
    %3737 = vmatprep.subr.bf16.mxu0 %v2810
    %3738 = vmatpush1.bf16.msra.mxu0 %v2809
    %3739 = vmatprep.subr.bf16.mxu0 %v2818
    %3740 = vmatpush1.bf16.msra.mxu0 %v2817
    %3741 = vmatprep.mubr.bf16.mxu0 %v346
    %3742 = vmatmul.mubr.bf16.gmra.mrb[0].mxu0 %v345
    %v3743 = vpop.f32.mrb[0].mxu0
    %v3744 = vadd.f32 %v3703, %v3743
    %v3745 = vpop.f32.mrb[0].mxu0
    %v3746 = vadd.f32 %v3705, %v3745
    %v3747 = vpop.f32.mrb[0].mxu0
    %v3748 = vpop.f32.mrb[0].mxu0
    %3749 = vdwg.mxu0
    %3750 = vmatprep.subr.bf16.mxu0 %v2826
    %3751 = vmatpush1.bf16.msra.mxu0 %v2825
    %3752 = vmatprep.subr.bf16.mxu0 %v2834
    %3753 = vmatpush1.bf16.msra.mxu0 %v2833
    %3754 = vmatprep.subr.bf16.mxu0 %v2842
    %3755 = vmatpush1.bf16.msra.mxu0 %v2841
    %3756 = vmatprep.subr.bf16.mxu0 %v2850
    %3757 = vmatpush1.bf16.msra.mxu0 %v2849
    %3758 = vmatprep.subr.bf16.mxu0 %v2858
    %3759 = vmatpush1.bf16.msra.mxu0 %v2857
    %3760 = vmatprep.subr.bf16.mxu0 %v2866
    %3761 = vmatpush1.bf16.msra.mxu0 %v2865
    %3762 = vmatprep.subr.bf16.mxu0 %v2874
    %3763 = vmatpush1.bf16.msra.mxu0 %v2873
    %3764 = vmatprep.subr.bf16.mxu0 %v2882
    %3765 = vmatpush1.bf16.msra.mxu0 %v2881
    %3766 = vmatprep.subr.bf16.mxu0 %v2890
    %3767 = vmatpush1.bf16.msra.mxu0 %v2889
    %3768 = vmatprep.subr.bf16.mxu0 %v2898
    %3769 = vmatpush1.bf16.msra.mxu0 %v2897
    %3770 = vmatprep.subr.bf16.mxu0 %v2906
    %3771 = vmatpush1.bf16.msra.mxu0 %v2905
    %3772 = vmatprep.subr.bf16.mxu0 %v2914
    %3773 = vmatpush1.bf16.msra.mxu0 %v2913
    %3774 = vmatprep.subr.bf16.mxu0 %v2922
    %3775 = vmatpush1.bf16.msra.mxu0 %v2921
    %3776 = vmatprep.subr.bf16.mxu0 %v2930
    %3777 = vmatpush1.bf16.msra.mxu0 %v2929
    %3778 = vmatprep.subr.bf16.mxu0 %v2938
    %3779 = vmatpush1.bf16.msra.mxu0 %v2937
    %3780 = vmatprep.subr.bf16.mxu0 %v2946
    %3781 = vmatpush1.bf16.msra.mxu0 %v2945
    %3782 = vmatprep.mubr.bf16.mxu0 %v348
    %3783 = vmatmul.mubr.bf16.gmra.mrb[0].mxu0 %v347
    %v3784 = vpop.f32.mrb[0].mxu0
    %v3785 = vadd.f32 %v3744, %v3784
    %v3786 = vpop.f32.mrb[0].mxu0
    %v3787 = vadd.f32 %v3746, %v3786
    %v3788 = vpop.f32.mrb[0].mxu0
    %v3789 = vpop.f32.mrb[0].mxu0
    %3790 = vdwg.mxu0
    %3791 = vmatprep.subr.bf16.mxu0 %v2444
    %3792 = vmatpush1.bf16.msra.mxu0 %v2443
    %3793 = vmatprep.subr.bf16.mxu0 %v2452
    %3794 = vmatpush1.bf16.msra.mxu0 %v2451
    %3795 = vmatprep.subr.bf16.mxu0 %v2460
    %3796 = vmatpush1.bf16.msra.mxu0 %v2459
    %3797 = vmatprep.subr.bf16.mxu0 %v2468
    %3798 = vmatpush1.bf16.msra.mxu0 %v2467
    %3799 = vmatprep.subr.bf16.mxu0 %v2476
    %3800 = vmatpush1.bf16.msra.mxu0 %v2475
    %3801 = vmatprep.subr.bf16.mxu0 %v2484
    %3802 = vmatpush1.bf16.msra.mxu0 %v2483
    %3803 = vmatprep.subr.bf16.mxu0 %v2492
    %3804 = vmatpush1.bf16.msra.mxu0 %v2491
    %3805 = vmatprep.subr.bf16.mxu0 %v2500
    %3806 = vmatpush1.bf16.msra.mxu0 %v2499
    %3807 = vmatprep.subr.bf16.mxu0 %v2508
    %3808 = vmatpush1.bf16.msra.mxu0 %v2507
    %3809 = vmatprep.subr.bf16.mxu0 %v2516
    %3810 = vmatpush1.bf16.msra.mxu0 %v2515
    %3811 = vmatprep.subr.bf16.mxu0 %v2524
    %3812 = vmatpush1.bf16.msra.mxu0 %v2523
    %3813 = vmatprep.subr.bf16.mxu0 %v2532
    %3814 = vmatpush1.bf16.msra.mxu0 %v2531
    %3815 = vmatprep.subr.bf16.mxu0 %v2540
    %3816 = vmatpush1.bf16.msra.mxu0 %v2539
    %3817 = vmatprep.subr.bf16.mxu0 %v2548
    %3818 = vmatpush1.bf16.msra.mxu0 %v2547
    %3819 = vmatprep.subr.bf16.mxu0 %v2556
    %3820 = vmatpush1.bf16.msra.mxu0 %v2555
    %3821 = vmatprep.subr.bf16.mxu0 %v2564
    %3822 = vmatpush1.bf16.msra.mxu0 %v2563
    %3823 = vmatprep.mubr.bf16.mxu0 %v342
    %3824 = vmatmul.mubr.bf16.gmra.mrb[0].mxu0 %v341
    %v3825 = vpop.f32.mrb[0].mxu0
    %v3826 = vadd.f32 %v882, %v3825
    %v3827 = vpop.f32.mrb[0].mxu0
    %v3828 = vadd.f32 %v886, %v3827
    %v3829 = vpop.f32.mrb[0].mxu0
    %v3830 = vpop.f32.mrb[0].mxu0
    %3831 = vdwg.mxu0
    %3832 = vmatprep.subr.bf16.mxu0 %v2572
    %3833 = vmatpush1.bf16.msra.mxu0 %v2571
    %3834 = vmatprep.subr.bf16.mxu0 %v2580
    %3835 = vmatpush1.bf16.msra.mxu0 %v2579
    %3836 = vmatprep.subr.bf16.mxu0 %v2588
    %3837 = vmatpush1.bf16.msra.mxu0 %v2587
    %3838 = vmatprep.subr.bf16.mxu0 %v2596
    %3839 = vmatpush1.bf16.msra.mxu0 %v2595
    %3840 = vmatprep.subr.bf16.mxu0 %v2604
    %3841 = vmatpush1.bf16.msra.mxu0 %v2603
    %3842 = vmatprep.subr.bf16.mxu0 %v2612
    %3843 = vmatpush1.bf16.msra.mxu0 %v2611
    %3844 = vmatprep.subr.bf16.mxu0 %v2620
    %3845 = vmatpush1.bf16.msra.mxu0 %v2619
    %3846 = vmatprep.subr.bf16.mxu0 %v2628
    %3847 = vmatpush1.bf16.msra.mxu0 %v2627
    %3848 = vmatprep.subr.bf16.mxu0 %v2636
    %3849 = vmatpush1.bf16.msra.mxu0 %v2635
    %3850 = vmatprep.subr.bf16.mxu0 %v2644
    %3851 = vmatpush1.bf16.msra.mxu0 %v2643
    %3852 = vmatprep.subr.bf16.mxu0 %v2652
    %3853 = vmatpush1.bf16.msra.mxu0 %v2651
    %3854 = vmatprep.subr.bf16.mxu0 %v2660
    %3855 = vmatpush1.bf16.msra.mxu0 %v2659
    %3856 = vmatprep.subr.bf16.mxu0 %v2668
    %3857 = vmatpush1.bf16.msra.mxu0 %v2667
    %3858 = vmatprep.subr.bf16.mxu0 %v2676
    %3859 = vmatpush1.bf16.msra.mxu0 %v2675
    %3860 = vmatprep.subr.bf16.mxu0 %v2684
    %3861 = vmatpush1.bf16.msra.mxu0 %v2683
    %3862 = vmatprep.subr.bf16.mxu0 %v2692
    %3863 = vmatpush1.bf16.msra.mxu0 %v2691
    %3864 = vmatprep.mubr.bf16.mxu0 %v344
    %3865 = vmatmul.mubr.bf16.gmra.mrb[0].mxu0 %v343
    %v3866 = vpop.f32.mrb[0].mxu0
    %v3867 = vadd.f32 %v3826, %v3866
    %v3868 = vpop.f32.mrb[0].mxu0
    %v3869 = vadd.f32 %v3828, %v3868
    %v3870 = vpop.f32.mrb[0].mxu0
    %v3871 = vpop.f32.mrb[0].mxu0
    %3872 = vdwg.mxu0
    %3873 = vmatprep.subr.bf16.mxu0 %v2700
    %3874 = vmatpush1.bf16.msra.mxu0 %v2699
    %3875 = vmatprep.subr.bf16.mxu0 %v2708
    %3876 = vmatpush1.bf16.msra.mxu0 %v2707
    %3877 = vmatprep.subr.bf16.mxu0 %v2716
    %3878 = vmatpush1.bf16.msra.mxu0 %v2715
    %3879 = vmatprep.subr.bf16.mxu0 %v2724
    %3880 = vmatpush1.bf16.msra.mxu0 %v2723
    %3881 = vmatprep.subr.bf16.mxu0 %v2732
    %3882 = vmatpush1.bf16.msra.mxu0 %v2731
    %3883 = vmatprep.subr.bf16.mxu0 %v2740
    %3884 = vmatpush1.bf16.msra.mxu0 %v2739
    %3885 = vmatprep.subr.bf16.mxu0 %v2748
    %3886 = vmatpush1.bf16.msra.mxu0 %v2747
    %3887 = vmatprep.subr.bf16.mxu0 %v2756
    %3888 = vmatpush1.bf16.msra.mxu0 %v2755
    %3889 = vmatprep.subr.bf16.mxu0 %v2764
    %3890 = vmatpush1.bf16.msra.mxu0 %v2763
    %3891 = vmatprep.subr.bf16.mxu0 %v2772
    %3892 = vmatpush1.bf16.msra.mxu0 %v2771
    %3893 = vmatprep.subr.bf16.mxu0 %v2780
    %3894 = vmatpush1.bf16.msra.mxu0 %v2779
    %3895 = vmatprep.subr.bf16.mxu0 %v2788
    %3896 = vmatpush1.bf16.msra.mxu0 %v2787
    %3897 = vmatprep.subr.bf16.mxu0 %v2796
    %3898 = vmatpush1.bf16.msra.mxu0 %v2795
    %3899 = vmatprep.subr.bf16.mxu0 %v2804
    %3900 = vmatpush1.bf16.msra.mxu0 %v2803
    %3901 = vmatprep.subr.bf16.mxu0 %v2812
    %3902 = vmatpush1.bf16.msra.mxu0 %v2811
    %3903 = vmatprep.subr.bf16.mxu0 %v2820
    %3904 = vmatpush1.bf16.msra.mxu0 %v2819
    %3905 = vmatprep.mubr.bf16.mxu0 %v346
    %3906 = vmatmul.mubr.bf16.gmra.mrb[0].mxu0 %v345
    %v3907 = vpop.f32.mrb[0].mxu0
    %v3908 = vadd.f32 %v3867, %v3907
    %v3909 = vpop.f32.mrb[0].mxu0
    %v3910 = vadd.f32 %v3869, %v3909
    %v3911 = vpop.f32.mrb[0].mxu0
    %v3912 = vpop.f32.mrb[0].mxu0
    %3913 = vdwg.mxu0
    %3914 = vmatprep.subr.bf16.mxu0 %v2828
    %3915 = vmatpush1.bf16.msra.mxu0 %v2827
    %3916 = vmatprep.subr.bf16.mxu0 %v2836
    %3917 = vmatpush1.bf16.msra.mxu0 %v2835
    %3918 = vmatprep.subr.bf16.mxu0 %v2844
    %3919 = vmatpush1.bf16.msra.mxu0 %v2843
    %3920 = vmatprep.subr.bf16.mxu0 %v2852
    %3921 = vmatpush1.bf16.msra.mxu0 %v2851
    %3922 = vmatprep.subr.bf16.mxu0 %v2860
    %3923 = vmatpush1.bf16.msra.mxu0 %v2859
    %3924 = vmatprep.subr.bf16.mxu0 %v2868
    %3925 = vmatpush1.bf16.msra.mxu0 %v2867
    %3926 = vmatprep.subr.bf16.mxu0 %v2876
    %3927 = vmatpush1.bf16.msra.mxu0 %v2875
    %3928 = vmatprep.subr.bf16.mxu0 %v2884
    %3929 = vmatpush1.bf16.msra.mxu0 %v2883
    %3930 = vmatprep.subr.bf16.mxu0 %v2892
    %3931 = vmatpush1.bf16.msra.mxu0 %v2891
    %3932 = vmatprep.subr.bf16.mxu0 %v2900
    %3933 = vmatpush1.bf16.msra.mxu0 %v2899
    %3934 = vmatprep.subr.bf16.mxu0 %v2908
    %3935 = vmatpush1.bf16.msra.mxu0 %v2907
    %3936 = vmatprep.subr.bf16.mxu0 %v2916
    %3937 = vmatpush1.bf16.msra.mxu0 %v2915
    %3938 = vmatprep.subr.bf16.mxu0 %v2924
    %3939 = vmatpush1.bf16.msra.mxu0 %v2923
    %3940 = vmatprep.subr.bf16.mxu0 %v2932
    %3941 = vmatpush1.bf16.msra.mxu0 %v2931
    %3942 = vmatprep.subr.bf16.mxu0 %v2940
    %3943 = vmatpush1.bf16.msra.mxu0 %v2939
    %3944 = vmatprep.subr.bf16.mxu0 %v2948
    %3945 = vmatpush1.bf16.msra.mxu0 %v2947
    %3946 = vmatprep.mubr.bf16.mxu0 %v348
    %3947 = vmatmul.mubr.bf16.gmra.mrb[0].mxu0 %v347
    %v3948 = vpop.f32.mrb[0].mxu0
    %v3949 = vadd.f32 %v3908, %v3948
    %v3950 = vpop.f32.mrb[0].mxu0
    %v3951 = vadd.f32 %v3910, %v3950
    %v3952 = vpop.f32.mrb[0].mxu0
    %v3953 = vpop.f32.mrb[0].mxu0
    %3954 = vdwg.mxu0
    %3955 = vmatprep.subr.bf16.mxu0 %v2446
    %3956 = vmatpush1.bf16.msra.mxu0 %v2445
    %3957 = vmatprep.subr.bf16.mxu0 %v2454
    %3958 = vmatpush1.bf16.msra.mxu0 %v2453
    %3959 = vmatprep.subr.bf16.mxu0 %v2462
    %3960 = vmatpush1.bf16.msra.mxu0 %v2461
    %3961 = vmatprep.subr.bf16.mxu0 %v2470
    %3962 = vmatpush1.bf16.msra.mxu0 %v2469
    %3963 = vmatprep.subr.bf16.mxu0 %v2478
    %3964 = vmatpush1.bf16.msra.mxu0 %v2477
    %3965 = vmatprep.subr.bf16.mxu0 %v2486
    %3966 = vmatpush1.bf16.msra.mxu0 %v2485
    %3967 = vmatprep.subr.bf16.mxu0 %v2494
    %3968 = vmatpush1.bf16.msra.mxu0 %v2493
    %3969 = vmatprep.subr.bf16.mxu0 %v2502
    %3970 = vmatpush1.bf16.msra.mxu0 %v2501
    %3971 = vmatprep.subr.bf16.mxu0 %v2510
    %3972 = vmatpush1.bf16.msra.mxu0 %v2509
    %3973 = vmatprep.subr.bf16.mxu0 %v2518
    %3974 = vmatpush1.bf16.msra.mxu0 %v2517
    %3975 = vmatprep.subr.bf16.mxu0 %v2526
    %3976 = vmatpush1.bf16.msra.mxu0 %v2525
    %3977 = vmatprep.subr.bf16.mxu0 %v2534
    %3978 = vmatpush1.bf16.msra.mxu0 %v2533
    %3979 = vmatprep.subr.bf16.mxu0 %v2542
    %3980 = vmatpush1.bf16.msra.mxu0 %v2541
    %3981 = vmatprep.subr.bf16.mxu0 %v2550
    %3982 = vmatpush1.bf16.msra.mxu0 %v2549
    %3983 = vmatprep.subr.bf16.mxu0 %v2558
    %3984 = vmatpush1.bf16.msra.mxu0 %v2557
    %3985 = vmatprep.subr.bf16.mxu0 %v2566
    %3986 = vmatpush1.bf16.msra.mxu0 %v2565
    %3987 = vmatprep.mubr.bf16.mxu0 %v342
    %3988 = vmatmul.mubr.bf16.gmra.mrb[0].mxu0 %v341
    %v3989 = vpop.f32.mrb[0].mxu0
    %v3990 = vadd.f32 %v890, %v3989
    %v3991 = vpop.f32.mrb[0].mxu0
    %v3992 = vadd.f32 %v894, %v3991
    %v3993 = vpop.f32.mrb[0].mxu0
    %v3994 = vpop.f32.mrb[0].mxu0
    %3995 = vdwg.mxu0
    %3996 = vmatprep.subr.bf16.mxu0 %v2574
    %3997 = vmatpush1.bf16.msra.mxu0 %v2573
    %3998 = vmatprep.subr.bf16.mxu0 %v2582
    %3999 = vmatpush1.bf16.msra.mxu0 %v2581
    %4000 = vmatprep.subr.bf16.mxu0 %v2590
    %4001 = vmatpush1.bf16.msra.mxu0 %v2589
    %4002 = vmatprep.subr.bf16.mxu0 %v2598
    %4003 = vmatpush1.bf16.msra.mxu0 %v2597
    %4004 = vmatprep.subr.bf16.mxu0 %v2606
    %4005 = vmatpush1.bf16.msra.mxu0 %v2605
    %4006 = vmatprep.subr.bf16.mxu0 %v2614
    %4007 = vmatpush1.bf16.msra.mxu0 %v2613
    %4008 = vmatprep.subr.bf16.mxu0 %v2622
    %4009 = vmatpush1.bf16.msra.mxu0 %v2621
    %4010 = vmatprep.subr.bf16.mxu0 %v2630
    %4011 = vmatpush1.bf16.msra.mxu0 %v2629
    %4012 = vmatprep.subr.bf16.mxu0 %v2638
    %4013 = vmatpush1.bf16.msra.mxu0 %v2637
    %4014 = vmatprep.subr.bf16.mxu0 %v2646
    %4015 = vmatpush1.bf16.msra.mxu0 %v2645
    %4016 = vmatprep.subr.bf16.mxu0 %v2654
    %4017 = vmatpush1.bf16.msra.mxu0 %v2653
    %4018 = vmatprep.subr.bf16.mxu0 %v2662
    %4019 = vmatpush1.bf16.msra.mxu0 %v2661
    %4020 = vmatprep.subr.bf16.mxu0 %v2670
    %4021 = vmatpush1.bf16.msra.mxu0 %v2669
    %4022 = vmatprep.subr.bf16.mxu0 %v2678
    %4023 = vmatpush1.bf16.msra.mxu0 %v2677
    %4024 = vmatprep.subr.bf16.mxu0 %v2686
    %4025 = vmatpush1.bf16.msra.mxu0 %v2685
    %4026 = vmatprep.subr.bf16.mxu0 %v2694
    %4027 = vmatpush1.bf16.msra.mxu0 %v2693
    %4028 = vmatprep.mubr.bf16.mxu0 %v344
    %4029 = vmatmul.mubr.bf16.gmra.mrb[0].mxu0 %v343
    %v4030 = vpop.f32.mrb[0].mxu0
    %v4031 = vadd.f32 %v3990, %v4030
    %v4032 = vpop.f32.mrb[0].mxu0
    %v4033 = vadd.f32 %v3992, %v4032
    %v4034 = vpop.f32.mrb[0].mxu0
    %v4035 = vpop.f32.mrb[0].mxu0
    %4036 = vdwg.mxu0
    %4037 = vmatprep.subr.bf16.mxu0 %v2702
    %4038 = vmatpush1.bf16.msra.mxu0 %v2701
    %4039 = vmatprep.subr.bf16.mxu0 %v2710
    %4040 = vmatpush1.bf16.msra.mxu0 %v2709
    %4041 = vmatprep.subr.bf16.mxu0 %v2718
    %4042 = vmatpush1.bf16.msra.mxu0 %v2717
    %4043 = vmatprep.subr.bf16.mxu0 %v2726
    %4044 = vmatpush1.bf16.msra.mxu0 %v2725
    %4045 = vmatprep.subr.bf16.mxu0 %v2734
    %4046 = vmatpush1.bf16.msra.mxu0 %v2733
    %4047 = vmatprep.subr.bf16.mxu0 %v2742
    %4048 = vmatpush1.bf16.msra.mxu0 %v2741
    %4049 = vmatprep.subr.bf16.mxu0 %v2750
    %4050 = vmatpush1.bf16.msra.mxu0 %v2749
    %4051 = vmatprep.subr.bf16.mxu0 %v2758
    %4052 = vmatpush1.bf16.msra.mxu0 %v2757
    %4053 = vmatprep.subr.bf16.mxu0 %v2766
    %4054 = vmatpush1.bf16.msra.mxu0 %v2765
    %4055 = vmatprep.subr.bf16.mxu0 %v2774
    %4056 = vmatpush1.bf16.msra.mxu0 %v2773
    %4057 = vmatprep.subr.bf16.mxu0 %v2782
    %4058 = vmatpush1.bf16.msra.mxu0 %v2781
    %4059 = vmatprep.subr.bf16.mxu0 %v2790
    %4060 = vmatpush1.bf16.msra.mxu0 %v2789
    %4061 = vmatprep.subr.bf16.mxu0 %v2798
    %4062 = vmatpush1.bf16.msra.mxu0 %v2797
    %4063 = vmatprep.subr.bf16.mxu0 %v2806
    %4064 = vmatpush1.bf16.msra.mxu0 %v2805
    %4065 = vmatprep.subr.bf16.mxu0 %v2814
    %4066 = vmatpush1.bf16.msra.mxu0 %v2813
    %4067 = vmatprep.subr.bf16.mxu0 %v2822
    %4068 = vmatpush1.bf16.msra.mxu0 %v2821
    %4069 = vmatprep.mubr.bf16.mxu0 %v346
    %4070 = vmatmul.mubr.bf16.gmra.mrb[0].mxu0 %v345
    %v4071 = vpop.f32.mrb[0].mxu0
    %v4072 = vadd.f32 %v4031, %v4071
    %v4073 = vpop.f32.mrb[0].mxu0
    %v4074 = vadd.f32 %v4033, %v4073
    %v4075 = vpop.f32.mrb[0].mxu0
    %v4076 = vpop.f32.mrb[0].mxu0
    %4077 = vdwg.mxu0
    %4078 = vmatprep.subr.bf16.mxu0 %v2830
    %4079 = vmatpush1.bf16.msra.mxu0 %v2829
    %4080 = vmatprep.subr.bf16.mxu0 %v2838
    %4081 = vmatpush1.bf16.msra.mxu0 %v2837
    %4082 = vmatprep.subr.bf16.mxu0 %v2846
    %4083 = vmatpush1.bf16.msra.mxu0 %v2845
    %4084 = vmatprep.subr.bf16.mxu0 %v2854
    %4085 = vmatpush1.bf16.msra.mxu0 %v2853
    %4086 = vmatprep.subr.bf16.mxu0 %v2862
    %4087 = vmatpush1.bf16.msra.mxu0 %v2861
    %4088 = vmatprep.subr.bf16.mxu0 %v2870
    %4089 = vmatpush1.bf16.msra.mxu0 %v2869
    %4090 = vmatprep.subr.bf16.mxu0 %v2878
    %4091 = vmatpush1.bf16.msra.mxu0 %v2877
    %4092 = vmatprep.subr.bf16.mxu0 %v2886
    %4093 = vmatpush1.bf16.msra.mxu0 %v2885
    %4094 = vmatprep.subr.bf16.mxu0 %v2894
    %4095 = vmatpush1.bf16.msra.mxu0 %v2893
    %4096 = vmatprep.subr.bf16.mxu0 %v2902
    %4097 = vmatpush1.bf16.msra.mxu0 %v2901
    %4098 = vmatprep.subr.bf16.mxu0 %v2910
    %4099 = vmatpush1.bf16.msra.mxu0 %v2909
    %4100 = vmatprep.subr.bf16.mxu0 %v2918
    %4101 = vmatpush1.bf16.msra.mxu0 %v2917
    %4102 = vmatprep.subr.bf16.mxu0 %v2926
    %4103 = vmatpush1.bf16.msra.mxu0 %v2925
    %4104 = vmatprep.subr.bf16.mxu0 %v2934
    %4105 = vmatpush1.bf16.msra.mxu0 %v2933
    %4106 = vmatprep.subr.bf16.mxu0 %v2942
    %4107 = vmatpush1.bf16.msra.mxu0 %v2941
    %4108 = vmatprep.subr.bf16.mxu0 %v2950
    %4109 = vmatpush1.bf16.msra.mxu0 %v2949
    %4110 = vmatprep.mubr.bf16.mxu0 %v348
    %4111 = vmatmul.mubr.bf16.gmra.mrb[0].mxu0 %v347
    %v4112 = vpop.f32.mrb[0].mxu0
    %v4113 = vadd.f32 %v4072, %v4112
    %v4114 = vpop.f32.mrb[0].mxu0
    %v4115 = vadd.f32 %v4074, %v4114
    %v4116 = vpop.f32.mrb[0].mxu0
    %v4117 = vpop.f32.mrb[0].mxu0
    %4118 = vdwg.mxu0
    %v4119 = vmul.f32 %v3621, 0.01
    %v4120 = vmul.f32 %v3623, 0.01
    %v4121 = vmul.f32 %v3785, 0.01
    %v4122 = vmul.f32 %v3787, 0.01
    %v4123 = vmul.f32 %v3949, 0.01
    %v4124 = vmul.f32 %v3951, 0.01
    %v4125 = vmul.f32 %v4113, 0.01
    %v4126 = vmul.f32 %v4115, 0.01
    %v4127 = vmax.f32 %v3621, %v4119
    %v4128 = vmax.f32 %v3623, %v4120
    %v4129 = vmax.f32 %v3785, %v4121
    %v4130 = vmax.f32 %v3787, %v4122
    %v4131 = vmax.f32 %v3949, %v4123
    %v4132 = vmax.f32 %v3951, %v4124
    %v4133 = vmax.f32 %v4113, %v4125
    %v4134 = vmax.f32 %v4115, %v4126
    %v4135 = vpack.c.bf16 %v4127, %v4127
    %v4136 = vpack.c.bf16 %v4128, %v4128
    %v4137 = vpack.c.bf16 %v4129, %v4129
    %v4138 = vpack.c.bf16 %v4130, %v4130
    %v4139 = vpack.c.bf16 %v4131, %v4131
    %v4140 = vpack.c.bf16 %v4132, %v4132
    %v4141 = vpack.c.bf16 %v4133, %v4133
    %v4142 = vpack.c.bf16 %v4134, %v4134
    %v4143 = vld [vmem:[#allocation11] sm:$0xf]
    %v4144 = vld [vmem:[#allocation11 + $0x4] sm:$0xf]
    %v4145 = vld [vmem:[#allocation11 + $0x8] sm:$0xf]
    %v4146 = vld [vmem:[#allocation11 + $0xc] sm:$0xf]
    %v4147 = vld [vmem:[#allocation11 + $0x10] sm:$0xf]
    %v4148 = vld [vmem:[#allocation11 + $0x14] sm:$0xf]
    %v4149 = vld [vmem:[#allocation11 + $0x18] sm:$0xf]
    %v4150 = vld [vmem:[#allocation11 + $0x1c] sm:$0xf]
    %v4151 = vld [vmem:[#allocation11 + $0x20] sm:$0xf]
    %v4152 = vld [vmem:[#allocation11 + $0x24] sm:$0xf]
    %v4153 = vld [vmem:[#allocation11 + $0x28] sm:$0xf]
    %v4154 = vld [vmem:[#allocation11 + $0x2c] sm:$0xf]
    %v4155 = vld [vmem:[#allocation11 + $0x30] sm:$0xf]
    %v4156 = vld [vmem:[#allocation11 + $0x34] sm:$0xf]
    %v4157 = vld [vmem:[#allocation11 + $0x38] sm:$0xf]
    %v4158 = vld [vmem:[#allocation11 + $0x3c] sm:$0xf]
    %v4159 = vld [vmem:[#allocation11 + $0x40] sm:$0xf]
    %v4160 = vld [vmem:[#allocation11 + $0x44] sm:$0xf]
    %v4161 = vld [vmem:[#allocation11 + $0x48] sm:$0xf]
    %v4162 = vld [vmem:[#allocation11 + $0x4c] sm:$0xf]
    %v4163 = vld [vmem:[#allocation11 + $0x50] sm:$0xf]
    %v4164 = vld [vmem:[#allocation11 + $0x54] sm:$0xf]
    %v4165 = vld [vmem:[#allocation11 + $0x58] sm:$0xf]
    %v4166 = vld [vmem:[#allocation11 + $0x5c] sm:$0xf]
    %v4167 = vld [vmem:[#allocation11 + $0x60] sm:$0xf]
    %v4168 = vld [vmem:[#allocation11 + $0x64] sm:$0xf]
    %v4169 = vld [vmem:[#allocation11 + $0x68] sm:$0xf]
    %v4170 = vld [vmem:[#allocation11 + $0x6c] sm:$0xf]
    %v4171 = vld [vmem:[#allocation11 + $0x70] sm:$0xf]
    %v4172 = vld [vmem:[#allocation11 + $0x74] sm:$0xf]
    %v4173 = vld [vmem:[#allocation11 + $0x78] sm:$0xf]
    %v4174 = vld [vmem:[#allocation11 + $0x7c] sm:$0xf]
    %v4175 = vld [vmem:[#allocation11 + $0x80] sm:$0xf]
    %v4176 = vld [vmem:[#allocation11 + $0x84] sm:$0xf]
    %v4177 = vld [vmem:[#allocation11 + $0x88] sm:$0xf]
    %v4178 = vld [vmem:[#allocation11 + $0x8c] sm:$0xf]
    %v4179 = vld [vmem:[#allocation11 + $0x90] sm:$0xf]
    %v4180 = vld [vmem:[#allocation11 + $0x94] sm:$0xf]
    %v4181 = vld [vmem:[#allocation11 + $0x98] sm:$0xf]
    %v4182 = vld [vmem:[#allocation11 + $0x9c] sm:$0xf]
    %v4183 = vld [vmem:[#allocation11 + $0xa0] sm:$0xf]
    %v4184 = vld [vmem:[#allocation11 + $0xa4] sm:$0xf]
    %v4185 = vld [vmem:[#allocation11 + $0xa8] sm:$0xf]
    %v4186 = vld [vmem:[#allocation11 + $0xac] sm:$0xf]
    %v4187 = vld [vmem:[#allocation11 + $0xb0] sm:$0xf]
    %v4188 = vld [vmem:[#allocation11 + $0xb4] sm:$0xf]
    %v4189 = vld [vmem:[#allocation11 + $0xb8] sm:$0xf]
    %v4190 = vld [vmem:[#allocation11 + $0xbc] sm:$0xf]
    %v4191 = vld [vmem:[#allocation11 + $0xc0] sm:$0xf]
    %v4192 = vld [vmem:[#allocation11 + $0xc4] sm:$0xf]
    %v4193 = vld [vmem:[#allocation11 + $0xc8] sm:$0xf]
    %v4194 = vld [vmem:[#allocation11 + $0xcc] sm:$0xf]
    %v4195 = vld [vmem:[#allocation11 + $0xd0] sm:$0xf]
    %v4196 = vld [vmem:[#allocation11 + $0xd4] sm:$0xf]
    %v4197 = vld [vmem:[#allocation11 + $0xd8] sm:$0xf]
    %v4198 = vld [vmem:[#allocation11 + $0xdc] sm:$0xf]
    %v4199 = vld [vmem:[#allocation11 + $0xe0] sm:$0xf]
    %v4200 = vld [vmem:[#allocation11 + $0xe4] sm:$0xf]
    %v4201 = vld [vmem:[#allocation11 + $0xe8] sm:$0xf]
    %v4202 = vld [vmem:[#allocation11 + $0xec] sm:$0xf]
    %v4203 = vld [vmem:[#allocation11 + $0xf0] sm:$0xf]
    %v4204 = vld [vmem:[#allocation11 + $0xf4] sm:$0xf]
    %v4205 = vld [vmem:[#allocation11 + $0xf8] sm:$0xf]
    %v4206 = vld [vmem:[#allocation11 + $0xfc] sm:$0xf]
    %v4207 = vld [vmem:[#allocation11 + $0x100] sm:$0xf]
    %v4208 = vld [vmem:[#allocation11 + $0x104] sm:$0xf]
    %v4209 = vld [vmem:[#allocation11 + $0x108] sm:$0xf]
    %v4210 = vld [vmem:[#allocation11 + $0x10c] sm:$0xf]
    %v4211 = vld [vmem:[#allocation11 + $0x110] sm:$0xf]
    %v4212 = vld [vmem:[#allocation11 + $0x114] sm:$0xf]
    %v4213 = vld [vmem:[#allocation11 + $0x118] sm:$0xf]
    %v4214 = vld [vmem:[#allocation11 + $0x11c] sm:$0xf]
    %v4215 = vld [vmem:[#allocation11 + $0x120] sm:$0xf]
    %v4216 = vld [vmem:[#allocation11 + $0x124] sm:$0xf]
    %v4217 = vld [vmem:[#allocation11 + $0x128] sm:$0xf]
    %v4218 = vld [vmem:[#allocation11 + $0x12c] sm:$0xf]
    %v4219 = vld [vmem:[#allocation11 + $0x130] sm:$0xf]
    %v4220 = vld [vmem:[#allocation11 + $0x134] sm:$0xf]
    %v4221 = vld [vmem:[#allocation11 + $0x138] sm:$0xf]
    %v4222 = vld [vmem:[#allocation11 + $0x13c] sm:$0xf]
    %v4223 = vld [vmem:[#allocation11 + $0x140] sm:$0xf]
    %v4224 = vld [vmem:[#allocation11 + $0x144] sm:$0xf]
    %v4225 = vld [vmem:[#allocation11 + $0x148] sm:$0xf]
    %v4226 = vld [vmem:[#allocation11 + $0x14c] sm:$0xf]
    %v4227 = vld [vmem:[#allocation11 + $0x150] sm:$0xf]
    %v4228 = vld [vmem:[#allocation11 + $0x154] sm:$0xf]
    %v4229 = vld [vmem:[#allocation11 + $0x158] sm:$0xf]
    %v4230 = vld [vmem:[#allocation11 + $0x15c] sm:$0xf]
    %v4231 = vld [vmem:[#allocation11 + $0x160] sm:$0xf]
    %v4232 = vld [vmem:[#allocation11 + $0x164] sm:$0xf]
    %v4233 = vld [vmem:[#allocation11 + $0x168] sm:$0xf]
    %v4234 = vld [vmem:[#allocation11 + $0x16c] sm:$0xf]
    %v4235 = vld [vmem:[#allocation11 + $0x170] sm:$0xf]
    %v4236 = vld [vmem:[#allocation11 + $0x174] sm:$0xf]
    %v4237 = vld [vmem:[#allocation11 + $0x178] sm:$0xf]
    %v4238 = vld [vmem:[#allocation11 + $0x17c] sm:$0xf]
    %v4239 = vld [vmem:[#allocation11 + $0x180] sm:$0xf]
    %v4240 = vld [vmem:[#allocation11 + $0x184] sm:$0xf]
    %v4241 = vld [vmem:[#allocation11 + $0x188] sm:$0xf]
    %v4242 = vld [vmem:[#allocation11 + $0x18c] sm:$0xf]
    %v4243 = vld [vmem:[#allocation11 + $0x190] sm:$0xf]
    %v4244 = vld [vmem:[#allocation11 + $0x194] sm:$0xf]
    %v4245 = vld [vmem:[#allocation11 + $0x198] sm:$0xf]
    %v4246 = vld [vmem:[#allocation11 + $0x19c] sm:$0xf]
    %v4247 = vld [vmem:[#allocation11 + $0x1a0] sm:$0xf]
    %v4248 = vld [vmem:[#allocation11 + $0x1a4] sm:$0xf]
    %v4249 = vld [vmem:[#allocation11 + $0x1a8] sm:$0xf]
    %v4250 = vld [vmem:[#allocation11 + $0x1ac] sm:$0xf]
    %v4251 = vld [vmem:[#allocation11 + $0x1b0] sm:$0xf]
    %v4252 = vld [vmem:[#allocation11 + $0x1b4] sm:$0xf]
    %v4253 = vld [vmem:[#allocation11 + $0x1b8] sm:$0xf]
    %v4254 = vld [vmem:[#allocation11 + $0x1bc] sm:$0xf]
    %v4255 = vld [vmem:[#allocation11 + $0x1c0] sm:$0xf]
    %v4256 = vld [vmem:[#allocation11 + $0x1c4] sm:$0xf]
    %v4257 = vld [vmem:[#allocation11 + $0x1c8] sm:$0xf]
    %v4258 = vld [vmem:[#allocation11 + $0x1cc] sm:$0xf]
    %v4259 = vld [vmem:[#allocation11 + $0x1d0] sm:$0xf]
    %v4260 = vld [vmem:[#allocation11 + $0x1d4] sm:$0xf]
    %v4261 = vld [vmem:[#allocation11 + $0x1d8] sm:$0xf]
    %v4262 = vld [vmem:[#allocation11 + $0x1dc] sm:$0xf]
    %v4263 = vld [vmem:[#allocation11 + $0x1e0] sm:$0xf]
    %v4264 = vld [vmem:[#allocation11 + $0x1e4] sm:$0xf]
    %v4265 = vld [vmem:[#allocation11 + $0x1e8] sm:$0xf]
    %v4266 = vld [vmem:[#allocation11 + $0x1ec] sm:$0xf]
    %v4267 = vld [vmem:[#allocation11 + $0x1f0] sm:$0xf]
    %v4268 = vld [vmem:[#allocation11 + $0x1f4] sm:$0xf]
    %v4269 = vld [vmem:[#allocation11 + $0x1f8] sm:$0xf]
    %v4270 = vld [vmem:[#allocation11 + $0x1fc] sm:$0xf]
    %v4271 = vld [vmem:[#allocation13] sm:$0x1]
    %v4273 = vlaneseq
    %v4274 = vshrl.u32 %v4273, 7
    %v4275 = vsub.s32 0, %v4274
    %v4276 = vrot.slane %v4271, %v4275
    %v4406 = vunpack.c.l.b16 %v4143
    %v4407 = vunpack.c.l.b16 %v4144
    %v4408 = vunpack.c.l.b16 %v4145
    %v4409 = vunpack.c.l.b16 %v4146
    %v4410 = vunpack.c.l.b16 %v4147
    %v4411 = vunpack.c.l.b16 %v4148
    %v4412 = vunpack.c.l.b16 %v4149
    %v4413 = vunpack.c.l.b16 %v4150
    %v4414 = vunpack.c.l.b16 %v4151
    %v4415 = vunpack.c.l.b16 %v4152
    %v4416 = vunpack.c.l.b16 %v4153
    %v4417 = vunpack.c.l.b16 %v4154
    %v4418 = vunpack.c.l.b16 %v4155
    %v4419 = vunpack.c.l.b16 %v4156
    %v4420 = vunpack.c.l.b16 %v4157
    %v4421 = vunpack.c.l.b16 %v4158
    %v4422 = vunpack.c.l.b16 %v4159
    %v4423 = vunpack.c.l.b16 %v4160
    %v4424 = vunpack.c.l.b16 %v4161
    %v4425 = vunpack.c.l.b16 %v4162
    %v4426 = vunpack.c.l.b16 %v4163
    %v4427 = vunpack.c.l.b16 %v4164
    %v4428 = vunpack.c.l.b16 %v4165
    %v4429 = vunpack.c.l.b16 %v4166
    %v4430 = vunpack.c.l.b16 %v4167
    %v4431 = vunpack.c.l.b16 %v4168
    %v4432 = vunpack.c.l.b16 %v4169
    %v4433 = vunpack.c.l.b16 %v4170
    %v4434 = vunpack.c.l.b16 %v4171
    %v4435 = vunpack.c.l.b16 %v4172
    %v4436 = vunpack.c.l.b16 %v4173
    %v4437 = vunpack.c.l.b16 %v4174
    %v4438 = vunpack.c.l.b16 %v4175
    %v4439 = vunpack.c.l.b16 %v4176
    %v4440 = vunpack.c.l.b16 %v4177
    %v4441 = vunpack.c.l.b16 %v4178
    %v4442 = vunpack.c.l.b16 %v4179
    %v4443 = vunpack.c.l.b16 %v4180
    %v4444 = vunpack.c.l.b16 %v4181
    %v4445 = vunpack.c.l.b16 %v4182
    %v4446 = vunpack.c.l.b16 %v4183
    %v4447 = vunpack.c.l.b16 %v4184
    %v4448 = vunpack.c.l.b16 %v4185
    %v4449 = vunpack.c.l.b16 %v4186
    %v4450 = vunpack.c.l.b16 %v4187
    %v4451 = vunpack.c.l.b16 %v4188
    %v4452 = vunpack.c.l.b16 %v4189
    %v4453 = vunpack.c.l.b16 %v4190
    %v4454 = vunpack.c.l.b16 %v4191
    %v4455 = vunpack.c.l.b16 %v4192
    %v4456 = vunpack.c.l.b16 %v4193
    %v4457 = vunpack.c.l.b16 %v4194
    %v4458 = vunpack.c.l.b16 %v4195
    %v4459 = vunpack.c.l.b16 %v4196
    %v4460 = vunpack.c.l.b16 %v4197
    %v4461 = vunpack.c.l.b16 %v4198
    %v4462 = vunpack.c.l.b16 %v4199
    %v4463 = vunpack.c.l.b16 %v4200
    %v4464 = vunpack.c.l.b16 %v4201
    %v4465 = vunpack.c.l.b16 %v4202
    %v4466 = vunpack.c.l.b16 %v4203
    %v4467 = vunpack.c.l.b16 %v4204
    %v4468 = vunpack.c.l.b16 %v4205
    %v4469 = vunpack.c.l.b16 %v4206
    %v4470 = vunpack.c.l.b16 %v4207
    %v4471 = vunpack.c.l.b16 %v4208
    %v4472 = vunpack.c.l.b16 %v4209
    %v4473 = vunpack.c.l.b16 %v4210
    %v4474 = vunpack.c.l.b16 %v4211
    %v4475 = vunpack.c.l.b16 %v4212
    %v4476 = vunpack.c.l.b16 %v4213
    %v4477 = vunpack.c.l.b16 %v4214
    %v4478 = vunpack.c.l.b16 %v4215
    %v4479 = vunpack.c.l.b16 %v4216
    %v4480 = vunpack.c.l.b16 %v4217
    %v4481 = vunpack.c.l.b16 %v4218
    %v4482 = vunpack.c.l.b16 %v4219
    %v4483 = vunpack.c.l.b16 %v4220
    %v4484 = vunpack.c.l.b16 %v4221
    %v4485 = vunpack.c.l.b16 %v4222
    %v4486 = vunpack.c.l.b16 %v4223
    %v4487 = vunpack.c.l.b16 %v4224
    %v4488 = vunpack.c.l.b16 %v4225
    %v4489 = vunpack.c.l.b16 %v4226
    %v4490 = vunpack.c.l.b16 %v4227
    %v4491 = vunpack.c.l.b16 %v4228
    %v4492 = vunpack.c.l.b16 %v4229
    %v4493 = vunpack.c.l.b16 %v4230
    %v4494 = vunpack.c.l.b16 %v4231
    %v4495 = vunpack.c.l.b16 %v4232
    %v4496 = vunpack.c.l.b16 %v4233
    %v4497 = vunpack.c.l.b16 %v4234
    %v4498 = vunpack.c.l.b16 %v4235
    %v4499 = vunpack.c.l.b16 %v4236
    %v4500 = vunpack.c.l.b16 %v4237
    %v4501 = vunpack.c.l.b16 %v4238
    %v4502 = vunpack.c.l.b16 %v4239
    %v4503 = vunpack.c.l.b16 %v4240
    %v4504 = vunpack.c.l.b16 %v4241
    %v4505 = vunpack.c.l.b16 %v4242
    %v4506 = vunpack.c.l.b16 %v4243
    %v4507 = vunpack.c.l.b16 %v4244
    %v4508 = vunpack.c.l.b16 %v4245
    %v4509 = vunpack.c.l.b16 %v4246
    %v4510 = vunpack.c.l.b16 %v4247
    %v4511 = vunpack.c.l.b16 %v4248
    %v4512 = vunpack.c.l.b16 %v4249
    %v4513 = vunpack.c.l.b16 %v4250
    %v4514 = vunpack.c.l.b16 %v4251
    %v4515 = vunpack.c.l.b16 %v4252
    %v4516 = vunpack.c.l.b16 %v4253
    %v4517 = vunpack.c.l.b16 %v4254
    %v4518 = vunpack.c.l.b16 %v4255
    %v4519 = vunpack.c.l.b16 %v4256
    %v4520 = vunpack.c.l.b16 %v4257
    %v4521 = vunpack.c.l.b16 %v4258
    %v4522 = vunpack.c.l.b16 %v4259
    %v4523 = vunpack.c.l.b16 %v4260
    %v4524 = vunpack.c.l.b16 %v4261
    %v4525 = vunpack.c.l.b16 %v4262
    %v4526 = vunpack.c.l.b16 %v4263
    %v4527 = vunpack.c.l.b16 %v4264
    %v4528 = vunpack.c.l.b16 %v4265
    %v4529 = vunpack.c.l.b16 %v4266
    %v4530 = vunpack.c.l.b16 %v4267
    %v4531 = vunpack.c.l.b16 %v4268
    %v4532 = vunpack.c.l.b16 %v4269
    %v4533 = vunpack.c.l.b16 %v4270
    %v4534 = vpack.c.b16 %v4407, %v4406
    %v4535 = vpack.c.b16 %v4409, %v4408
    %v4536 = vpack.c.b16 %v4411, %v4410
    %v4537 = vpack.c.b16 %v4413, %v4412
    %v4538 = vpack.c.b16 %v4415, %v4414
    %v4539 = vpack.c.b16 %v4417, %v4416
    %v4540 = vpack.c.b16 %v4419, %v4418
    %v4541 = vpack.c.b16 %v4421, %v4420
    %v4542 = vpack.c.b16 %v4423, %v4422
    %v4543 = vpack.c.b16 %v4425, %v4424
    %v4544 = vpack.c.b16 %v4427, %v4426
    %v4545 = vpack.c.b16 %v4429, %v4428
    %v4546 = vpack.c.b16 %v4431, %v4430
    %v4547 = vpack.c.b16 %v4433, %v4432
    %v4548 = vpack.c.b16 %v4435, %v4434
    %v4549 = vpack.c.b16 %v4437, %v4436
    %v4550 = vpack.c.b16 %v4439, %v4438
    %v4551 = vpack.c.b16 %v4441, %v4440
    %v4552 = vpack.c.b16 %v4443, %v4442
    %v4553 = vpack.c.b16 %v4445, %v4444
    %v4554 = vpack.c.b16 %v4447, %v4446
    %v4555 = vpack.c.b16 %v4449, %v4448
    %v4556 = vpack.c.b16 %v4451, %v4450
    %v4557 = vpack.c.b16 %v4453, %v4452
    %v4558 = vpack.c.b16 %v4455, %v4454
    %v4559 = vpack.c.b16 %v4457, %v4456
    %v4560 = vpack.c.b16 %v4459, %v4458
    %v4561 = vpack.c.b16 %v4461, %v4460
    %v4562 = vpack.c.b16 %v4463, %v4462
    %v4563 = vpack.c.b16 %v4465, %v4464
    %v4564 = vpack.c.b16 %v4467, %v4466
    %v4565 = vpack.c.b16 %v4469, %v4468
    %v4566 = vpack.c.b16 %v4471, %v4470
    %v4567 = vpack.c.b16 %v4473, %v4472
    %v4568 = vpack.c.b16 %v4475, %v4474
    %v4569 = vpack.c.b16 %v4477, %v4476
    %v4570 = vpack.c.b16 %v4479, %v4478
    %v4571 = vpack.c.b16 %v4481, %v4480
    %v4572 = vpack.c.b16 %v4483, %v4482
    %v4573 = vpack.c.b16 %v4485, %v4484
    %v4574 = vpack.c.b16 %v4487, %v4486
    %v4575 = vpack.c.b16 %v4489, %v4488
    %v4576 = vpack.c.b16 %v4491, %v4490
    %v4577 = vpack.c.b16 %v4493, %v4492
    %v4578 = vpack.c.b16 %v4495, %v4494
    %v4579 = vpack.c.b16 %v4497, %v4496
    %v4580 = vpack.c.b16 %v4499, %v4498
    %v4581 = vpack.c.b16 %v4501, %v4500
    %v4582 = vpack.c.b16 %v4503, %v4502
    %v4583 = vpack.c.b16 %v4505, %v4504
    %v4584 = vpack.c.b16 %v4507, %v4506
    %v4585 = vpack.c.b16 %v4509, %v4508
    %v4586 = vpack.c.b16 %v4511, %v4510
    %v4587 = vpack.c.b16 %v4513, %v4512
    %v4588 = vpack.c.b16 %v4515, %v4514
    %v4589 = vpack.c.b16 %v4517, %v4516
    %v4590 = vpack.c.b16 %v4519, %v4518
    %v4591 = vpack.c.b16 %v4521, %v4520
    %v4592 = vpack.c.b16 %v4523, %v4522
    %v4593 = vpack.c.b16 %v4525, %v4524
    %v4594 = vpack.c.b16 %v4527, %v4526
    %v4595 = vpack.c.b16 %v4529, %v4528
    %v4596 = vpack.c.b16 %v4531, %v4530
    %v4597 = vpack.c.b16 %v4533, %v4532
    %4662 = vmatprep.subr.bf16.mxu0 0
    %4663 = vmatpush1.bf16.msra.mxu0 %v4534
    %4664 = vmatprep.subr.bf16.mxu0 0
    %4665 = vmatpush1.bf16.msra.mxu0 %v4535
    %4666 = vmatprep.subr.bf16.mxu0 0
    %4667 = vmatpush1.bf16.msra.mxu0 %v4536
    %4668 = vmatprep.subr.bf16.mxu0 0
    %4669 = vmatpush1.bf16.msra.mxu0 %v4537
    %4670 = vmatprep.subr.bf16.mxu0 0
    %4671 = vmatpush1.bf16.msra.mxu0 %v4538
    %4672 = vmatprep.subr.bf16.mxu0 0
    %4673 = vmatpush1.bf16.msra.mxu0 %v4539
    %4674 = vmatprep.subr.bf16.mxu0 0
    %4675 = vmatpush1.bf16.msra.mxu0 %v4540
    %4676 = vmatprep.subr.bf16.mxu0 0
    %4677 = vmatpush1.bf16.msra.mxu0 %v4541
    %4678 = vmatprep.subr.bf16.mxu0 0
    %4679 = vmatpush1.bf16.msra.mxu0 %v4542
    %4680 = vmatprep.subr.bf16.mxu0 0
    %4681 = vmatpush1.bf16.msra.mxu0 %v4543
    %4682 = vmatprep.subr.bf16.mxu0 0
    %4683 = vmatpush1.bf16.msra.mxu0 %v4544
    %4684 = vmatprep.subr.bf16.mxu0 0
    %4685 = vmatpush1.bf16.msra.mxu0 %v4545
    %4686 = vmatprep.subr.bf16.mxu0 0
    %4687 = vmatpush1.bf16.msra.mxu0 %v4546
    %4688 = vmatprep.subr.bf16.mxu0 0
    %4689 = vmatpush1.bf16.msra.mxu0 %v4547
    %4690 = vmatprep.subr.bf16.mxu0 0
    %4691 = vmatpush1.bf16.msra.mxu0 %v4548
    %4692 = vmatprep.subr.bf16.mxu0 0
    %4693 = vmatpush1.bf16.msra.mxu0 %v4549
    %4694 = vmatprep.mubr.bf16.mxu0 %v4136
    %4695 = vmatmul.mubr.bf16.gmra.mrb[0].mxu0 %v4135
    %v4696 = vpop.f32.mrb[0].mxu0
    %v4697 = vadd.f32 %v4276, %v4696
    %v4698 = vpop.f32.mrb[0].mxu0
    %v4699 = vpop.f32.mrb[0].mxu0
    %v4700 = vpop.f32.mrb[0].mxu0
    %4701 = vdwg.mxu0
    %4702 = vmatprep.subr.bf16.mxu0 0
    %4703 = vmatpush1.bf16.msra.mxu0 %v4550
    %4704 = vmatprep.subr.bf16.mxu0 0
    %4705 = vmatpush1.bf16.msra.mxu0 %v4551
    %4706 = vmatprep.subr.bf16.mxu0 0
    %4707 = vmatpush1.bf16.msra.mxu0 %v4552
    %4708 = vmatprep.subr.bf16.mxu0 0
    %4709 = vmatpush1.bf16.msra.mxu0 %v4553
    %4710 = vmatprep.subr.bf16.mxu0 0
    %4711 = vmatpush1.bf16.msra.mxu0 %v4554
    %4712 = vmatprep.subr.bf16.mxu0 0
    %4713 = vmatpush1.bf16.msra.mxu0 %v4555
    %4714 = vmatprep.subr.bf16.mxu0 0
    %4715 = vmatpush1.bf16.msra.mxu0 %v4556
    %4716 = vmatprep.subr.bf16.mxu0 0
    %4717 = vmatpush1.bf16.msra.mxu0 %v4557
    %4718 = vmatprep.subr.bf16.mxu0 0
    %4719 = vmatpush1.bf16.msra.mxu0 %v4558
    %4720 = vmatprep.subr.bf16.mxu0 0
    %4721 = vmatpush1.bf16.msra.mxu0 %v4559
    %4722 = vmatprep.subr.bf16.mxu0 0
    %4723 = vmatpush1.bf16.msra.mxu0 %v4560
    %4724 = vmatprep.subr.bf16.mxu0 0
    %4725 = vmatpush1.bf16.msra.mxu0 %v4561
    %4726 = vmatprep.subr.bf16.mxu0 0
    %4727 = vmatpush1.bf16.msra.mxu0 %v4562
    %4728 = vmatprep.subr.bf16.mxu0 0
    %4729 = vmatpush1.bf16.msra.mxu0 %v4563
    %4730 = vmatprep.subr.bf16.mxu0 0
    %4731 = vmatpush1.bf16.msra.mxu0 %v4564
    %4732 = vmatprep.subr.bf16.mxu0 0
    %4733 = vmatpush1.bf16.msra.mxu0 %v4565
    %4734 = vmatprep.mubr.bf16.mxu0 %v4138
    %4735 = vmatmul.mubr.bf16.gmra.mrb[0].mxu0 %v4137
    %v4736 = vpop.f32.mrb[0].mxu0
    %v4737 = vadd.f32 %v4697, %v4736
    %v4738 = vpop.f32.mrb[0].mxu0
    %v4739 = vpop.f32.mrb[0].mxu0
    %v4740 = vpop.f32.mrb[0].mxu0
    %4741 = vdwg.mxu0
    %4742 = vmatprep.subr.bf16.mxu0 0
    %4743 = vmatpush1.bf16.msra.mxu0 %v4566
    %4744 = vmatprep.subr.bf16.mxu0 0
    %4745 = vmatpush1.bf16.msra.mxu0 %v4567
    %4746 = vmatprep.subr.bf16.mxu0 0
    %4747 = vmatpush1.bf16.msra.mxu0 %v4568
    %4748 = vmatprep.subr.bf16.mxu0 0
    %4749 = vmatpush1.bf16.msra.mxu0 %v4569
    %4750 = vmatprep.subr.bf16.mxu0 0
    %4751 = vmatpush1.bf16.msra.mxu0 %v4570
    %4752 = vmatprep.subr.bf16.mxu0 0
    %4753 = vmatpush1.bf16.msra.mxu0 %v4571
    %4754 = vmatprep.subr.bf16.mxu0 0
    %4755 = vmatpush1.bf16.msra.mxu0 %v4572
    %4756 = vmatprep.subr.bf16.mxu0 0
    %4757 = vmatpush1.bf16.msra.mxu0 %v4573
    %4758 = vmatprep.subr.bf16.mxu0 0
    %4759 = vmatpush1.bf16.msra.mxu0 %v4574
    %4760 = vmatprep.subr.bf16.mxu0 0
    %4761 = vmatpush1.bf16.msra.mxu0 %v4575
    %4762 = vmatprep.subr.bf16.mxu0 0
    %4763 = vmatpush1.bf16.msra.mxu0 %v4576
    %4764 = vmatprep.subr.bf16.mxu0 0
    %4765 = vmatpush1.bf16.msra.mxu0 %v4577
    %4766 = vmatprep.subr.bf16.mxu0 0
    %4767 = vmatpush1.bf16.msra.mxu0 %v4578
    %4768 = vmatprep.subr.bf16.mxu0 0
    %4769 = vmatpush1.bf16.msra.mxu0 %v4579
    %4770 = vmatprep.subr.bf16.mxu0 0
    %4771 = vmatpush1.bf16.msra.mxu0 %v4580
    %4772 = vmatprep.subr.bf16.mxu0 0
    %4773 = vmatpush1.bf16.msra.mxu0 %v4581
    %4774 = vmatprep.mubr.bf16.mxu0 %v4140
    %4775 = vmatmul.mubr.bf16.gmra.mrb[0].mxu0 %v4139
    %v4776 = vpop.f32.mrb[0].mxu0
    %v4777 = vadd.f32 %v4737, %v4776
    %v4778 = vpop.f32.mrb[0].mxu0
    %v4779 = vpop.f32.mrb[0].mxu0
    %v4780 = vpop.f32.mrb[0].mxu0
    %4781 = vdwg.mxu0
    %4782 = vmatprep.subr.bf16.mxu0 0
    %4783 = vmatpush1.bf16.msra.mxu0 %v4582
    %4784 = vmatprep.subr.bf16.mxu0 0
    %4785 = vmatpush1.bf16.msra.mxu0 %v4583
    %4786 = vmatprep.subr.bf16.mxu0 0
    %4787 = vmatpush1.bf16.msra.mxu0 %v4584
    %4788 = vmatprep.subr.bf16.mxu0 0
    %4789 = vmatpush1.bf16.msra.mxu0 %v4585
    %4790 = vmatprep.subr.bf16.mxu0 0
    %4791 = vmatpush1.bf16.msra.mxu0 %v4586
    %4792 = vmatprep.subr.bf16.mxu0 0
    %4793 = vmatpush1.bf16.msra.mxu0 %v4587
    %4794 = vmatprep.subr.bf16.mxu0 0
    %4795 = vmatpush1.bf16.msra.mxu0 %v4588
    %4796 = vmatprep.subr.bf16.mxu0 0
    %4797 = vmatpush1.bf16.msra.mxu0 %v4589
    %4798 = vmatprep.subr.bf16.mxu0 0
    %4799 = vmatpush1.bf16.msra.mxu0 %v4590
    %4800 = vmatprep.subr.bf16.mxu0 0
    %4801 = vmatpush1.bf16.msra.mxu0 %v4591
    %4802 = vmatprep.subr.bf16.mxu0 0
    %4803 = vmatpush1.bf16.msra.mxu0 %v4592
    %4804 = vmatprep.subr.bf16.mxu0 0
    %4805 = vmatpush1.bf16.msra.mxu0 %v4593
    %4806 = vmatprep.subr.bf16.mxu0 0
    %4807 = vmatpush1.bf16.msra.mxu0 %v4594
    %4808 = vmatprep.subr.bf16.mxu0 0
    %4809 = vmatpush1.bf16.msra.mxu0 %v4595
    %4810 = vmatprep.subr.bf16.mxu0 0
    %4811 = vmatpush1.bf16.msra.mxu0 %v4596
    %4812 = vmatprep.subr.bf16.mxu0 0
    %4813 = vmatpush1.bf16.msra.mxu0 %v4597
    %4814 = vmatprep.mubr.bf16.mxu0 %v4142
    %4815 = vmatmul.mubr.bf16.gmra.mrb[0].mxu0 %v4141
    %v4816 = vpop.f32.mrb[0].mxu0
    %v4817 = vadd.f32 %v4777, %v4816
    %v4818 = vpop.f32.mrb[0].mxu0
    %v4819 = vpop.f32.mrb[0].mxu0
    %v4820 = vpop.f32.mrb[0].mxu0
    %4821 = vdwg.mxu0
    %4822 = vmax.xlane.f32.xlu0 %v4817
    %v4823 = vpop.xlane.xlu0 %4822
    %v4824 = vsub.f32 %v4817, %v4823
    %v4825 = vmul.f32 %v4824, 1.442695
    %v4826 = vpow.pop %v4825
    %4827 = vadd.xlane.f32.xlu0 %v4826
    %v4828 = vpop.xlane.xlu0 %4827
    %v4829 = vlog2.pop %v4828
    %v4830 = vmul.f32 %v4829, 0.6931472
    %v4831 = vsub.f32 %v4824, %v4830
    %4832 = vst [vmem:[#allocation14] sm:$0xff] %v4831
    // Predicated region
    $region58: #{tpu_custom_call.1} parent=1 // pred_check
      _
    $region59: #{tpu_custom_call.1} parent=1 // pred_check_branch
      %4834 = sbr.rel (0) target = $region61
    $region60: #{tpu_custom_call.1} parent=1 // pred_region
      %s4836 = ssub.s32 128, 128
      %4837 = vsyncadd [#allocation4], %s4836
      %s4839 = sshll.u32 [#allocation14], 4
      %s4840 = int_to_ptr.vmem [resolvable:$true] %s4839
      %4842 = dma.vmem_to_hbm [thread:$0]  %s4840, 128, %s7, [#allocation4]
    $region61: #{tpu_custom_call.1} parent=1 // pred_fallthru
      _
    // Predicated region
    $region62: #{tpu_custom_call.1} parent=1 // pred_check
      _
    $region63: #{tpu_custom_call.1} parent=1 // pred_check_branch
      %4844 = sbr.rel (0) target = $region65
    $region64: #{tpu_custom_call.1} parent=1 // pred_region
      %4845 = dma.done [#allocation4], 128
    $region65: #{tpu_custom_call.1} parent=1 // pred_fallthru
      _
    %4846 = vsyncpa [#allocation3], 1
    %4847 = vsyncpa [#allocation6], 1
    %4848 = vsyncpa [#allocation9], 1
    %4849 = vsyncpa [#allocation12], 1
    %4850 = vsyncpa [#allocation4], 1

// kernel: tpu_custom_call.1
$region0: #{tpu_custom_call.1}
  #allocation0 [shape = 'u32[]', space=smem, size = 0x4, offset = 0x4, fixed_abs, tag = 'smem constant byte address 0x4 - core index']
  #allocation1 [shape = 'u32[144,128]{1,0:T(1,128)}', space=vmem, size = 0x12000, scoped, tag = 'internal scratch']
  %s0 = inlined_call_operand.hbm [shape: f32[8,8], index: 0, kind: input, shape index: {}]
  %s1 = inlined_call_operand.hbm [shape: bf16[8,1024], index: 1, kind: input, shape index: {}]
  %s2 = inlined_call_operand.hbm [shape: f32[1,1024], index: 2, kind: input, shape index: {}]
  %s3 = inlined_call_operand.hbm [shape: bf16[1024,1024], index: 3, kind: input, shape index: {}]
  %s4 = inlined_call_operand.hbm [shape: f32[1,1024], index: 4, kind: input, shape index: {}]
  %s5 = inlined_call_operand.hbm [shape: bf16[1024,128], index: 5, kind: input, shape index: {}]
  %s6 = inlined_call_operand.hbm [shape: f32[1,128], index: 6, kind: input, shape index: {}]
  %s7 = inlined_call_operand.hbm [shape: f32[8,128], index: 7, kind: output, shape index: {}]
  %s8 = sld [smem:[#allocation0]]
  $region66: #{tpu_custom_call.1} parent=0
    _
  %s10 = ssub.s32 1, %s8
  %s11 = scalar_select 0, %s10, %s8
  $region1: #{tpu_custom_call.1} parent=0
    #allocation2 [shape = 'u8[4096]{0}', space=vmem, size = 0x1000, scoped, tag = 'input window, operand 0, single buffered']
    #allocation3 [shape = 's32[1]{0}', space=sflag, size = 0x4, scoped, tag = 'scoped memory for tpu_custom_call.1']
    #allocation4 [shape = 's32[1]{0}', space=sflag, size = 0x4, scoped, tag = 'scoped memory for tpu_custom_call.1']
    #allocation5 [shape = 'u8[16384]{0}', space=vmem, size = 0x4000, scoped, tag = 'input window, operand 1, single buffered']
    #allocation6 [shape = 's32[1]{0}', space=sflag, size = 0x4, scoped, tag = 'scoped memory for tpu_custom_call.1']
    #allocation7 [shape = 'u8[4096]{0}', space=vmem, size = 0x1000, scoped, tag = 'input window, operand 2, single buffered']
    #allocation8 [shape = 'u8[2097152]{0}', space=vmem, size = 0x200000, scoped, tag = 'input window, operand 3, single buffered']
    #allocation9 [shape = 's32[1]{0}', space=sflag, size = 0x4, scoped, tag = 'scoped memory for tpu_custom_call.1']
    #allocation10 [shape = 'u8[4096]{0}', space=vmem, size = 0x1000, scoped, tag = 'input window, operand 4, single buffered']
    #allocation11 [shape = 'u8[262144]{0}', space=vmem, size = 0x40000, scoped, tag = 'input window, operand 5, single buffered']
    #allocation12 [shape = 's32[1]{0}', space=sflag, size = 0x4, scoped, tag = 'scoped memory for tpu_custom_call.1']
    #allocation13 [shape = 'u8[512]{0}', space=vmem, size = 0x400, scoped, tag = 'input window, operand 6, single buffered']
    #allocation14 [shape = 'u8[4096]{0}', space=vmem, size = 0x1000, scoped, tag = 'output window, operand 0, single buffered']
    %12 = vsyncpa [#allocation3], 0
    %13 = vsyncpa [#allocation6], 0
    %14 = vsyncpa [#allocation9], 0
    %15 = vsyncpa [#allocation12], 0
    %16 = vsyncpa [#allocation4], 0
    // Predicated region
    $region2: #{tpu_custom_call.1} parent=1 // pred_check
      _
    $region3: #{tpu_custom_call.1} parent=1 // pred_check_branch
      %18 = sbr.rel (0) target = $region5
    $region4: #{tpu_custom_call.1} parent=1 // pred_region
      %s20 = ssub.s32 128, 128
      %21 = vsyncadd [#allocation3], %s20
      %s23 = sshll.u32 [#allocation2], 4
      %s24 = int_to_ptr.vmem [resolvable:$true] %s23
      %26 = dma.hbm_to_vmem [thread:$0]  %s0, 128, %s24, [#allocation3]
    $region5: #{tpu_custom_call.1} parent=1 // pred_fallthru
      _
    // Predicated region
    $region6: #{tpu_custom_call.1} parent=1 // pred_check
      _
    $region7: #{tpu_custom_call.1} parent=1 // pred_check_branch
      %28 = sbr.rel (0) target = $region9
    $region8: #{tpu_custom_call.1} parent=1 // pred_region
      %s30 = ssub.s32 512, 512
      %31 = vsyncadd [#allocation6], %s30
      %s33 = sshll.u32 [#allocation5], 4
      %s34 = int_to_ptr.vmem [resolvable:$true] %s33
      %36 = dma.hbm_to_vmem [thread:$0]  %s1, 512, %s34, [#allocation6]
    $region9: #{tpu_custom_call.1} parent=1 // pred_fallthru
      _
    // Predicated region
    $region10: #{tpu_custom_call.1} parent=1 // pred_check
      _
    $region11: #{tpu_custom_call.1} parent=1 // pred_check_branch
      %38 = sbr.rel (0) target = $region13
    $region12: #{tpu_custom_call.1} parent=1 // pred_region
      %s40 = ssub.s32 128, 128
      %41 = vsyncadd [#allocation6], %s40
      %s43 = sshll.u32 [#allocation7], 4
      %s44 = int_to_ptr.vmem [resolvable:$true] %s43
      %46 = dma.hbm_to_vmem [thread:$0]  %s2, 128, %s44, [#allocation6]
    $region13: #{tpu_custom_call.1} parent=1 // pred_fallthru
      _
    // Predicated region
    $region14: #{tpu_custom_call.1} parent=1 // pred_check
      _
    $region15: #{tpu_custom_call.1} parent=1 // pred_check_branch
      %48 = sbr.rel (0) target = $region17
    $region16: #{tpu_custom_call.1} parent=1 // pred_region
      %s50 = ssub.s32 65536, 65536
      %51 = vsyncadd [#allocation9], %s50
      %s52 = sshll.u32 [#allocation8], 4
      %s53 = int_to_ptr.vmem [resolvable:$true] %s52
      %58 = dma.hbm_to_vmem [thread:$0]  %s3, 65536, %s53, [#allocation9], 512, 512, 32
    $region17: #{tpu_custom_call.1} parent=1 // pred_fallthru
      _
    // Predicated region
    $region18: #{tpu_custom_call.1} parent=1 // pred_check
      _
    $region19: #{tpu_custom_call.1} parent=1 // pred_check_branch
      %60 = sbr.rel (0) target = $region21
    $region20: #{tpu_custom_call.1} parent=1 // pred_region
      %s62 = ssub.s32 128, 128
      %63 = vsyncadd [#allocation9], %s62
      %s65 = sshll.u32 [#allocation10], 4
      %s66 = int_to_ptr.vmem [resolvable:$true] %s65
      %68 = dma.hbm_to_vmem [thread:$0]  %s4, 128, %s66, [#allocation9]
    $region21: #{tpu_custom_call.1} parent=1 // pred_fallthru
      _
    // Predicated region
    $region22: #{tpu_custom_call.1} parent=1 // pred_check
      _
    $region23: #{tpu_custom_call.1} parent=1 // pred_check_branch
      %70 = sbr.rel (0) target = $region25
    $region24: #{tpu_custom_call.1} parent=1 // pred_region
      %s72 = ssub.s32 8192, 8192
      %73 = vsyncadd [#allocation12], %s72
      %s74 = sshll.u32 [#allocation11], 4
      %s75 = int_to_ptr.vmem [resolvable:$true] %s74
      %80 = dma.hbm_to_vmem [thread:$0]  %s5, 8192, %s75, [#allocation12], 64, 64, 4
    $region25: #{tpu_custom_call.1} parent=1 // pred_fallthru
      _
    // Predicated region
    $region26: #{tpu_custom_call.1} parent=1 // pred_check
      _
    $region27: #{tpu_custom_call.1} parent=1 // pred_check_branch
      %82 = sbr.rel (0) target = $region29
    $region28: #{tpu_custom_call.1} parent=1 // pred_region
      %s84 = ssub.s32 16, 16
      %85 = vsyncadd [#allocation12], %s84
      %s87 = sshll.u32 [#allocation13], 4
      %s88 = int_to_ptr.vmem [resolvable:$true] %s87
      %90 = dma.hbm_to_vmem [thread:$0]  %s6, 16, %s88, [#allocation12]
    $region29: #{tpu_custom_call.1} parent=1 // pred_fallthru
      _
    // Predicated region
    $region30: #{tpu_custom_call.1} parent=1 // pred_check
      _
    $region31: #{tpu_custom_call.1} parent=1 // pred_check_branch
      %92 = sbr.rel (0) target = $region33
    $region32: #{tpu_custom_call.1} parent=1 // pred_region
      %93 = dma.done [#allocation3], 128
    $region33: #{tpu_custom_call.1} parent=1 // pred_fallthru
      _
    // Predicated region
    $region34: #{tpu_custom_call.1} parent=1 // pred_check
      _
    $region35: #{tpu_custom_call.1} parent=1 // pred_check_branch
      %95 = sbr.rel (0) target = $region37
    $region36: #{tpu_custom_call.1} parent=1 // pred_region
      %96 = dma.done [#allocation6], 512
    $region37: #{tpu_custom_call.1} parent=1 // pred_fallthru
      _
    // Predicated region
    $region38: #{tpu_custom_call.1} parent=1 // pred_check
      _
    $region39: #{tpu_custom_call.1} parent=1 // pred_check_branch
      %98 = sbr.rel (0) target = $region41
    $region40: #{tpu_custom_call.1} parent=1 // pred_region
      %99 = dma.done [#allocation6], 128
    $region41: #{tpu_custom_call.1} parent=1 // pred_fallthru
      _
    // Predicated region
    $region42: #{tpu_custom_call.1} parent=1 // pred_check
      _
    $region43: #{tpu_custom_call.1} parent=1 // pred_check_branch
      %101 = sbr.rel (0) target = $region45
    $region44: #{tpu_custom_call.1} parent=1 // pred_region
      %102 = dma.done [#allocation9], 65536
    $region45: #{tpu_custom_call.1} parent=1 // pred_fallthru
      _
    // Predicated region
    $region46: #{tpu_custom_call.1} parent=1 // pred_check
      _
    $region47: #{tpu_custom_call.1} parent=1 // pred_check_branch
      %104 = sbr.rel (0) target = $region49
    $region48: #{tpu_custom_call.1} parent=1 // pred_region
      %105 = dma.done [#allocation9], 128
    $region49: #{tpu_custom_call.1} parent=1 // pred_fallthru
      _
    // Predicated region
    $region50: #{tpu_custom_call.1} parent=1 // pred_check
      _
    $region51: #{tpu_custom_call.1} parent=1 // pred_check_branch
      %107 = sbr.rel (0) target = $region53
    $region52: #{tpu_custom_call.1} parent=1 // pred_region
      %108 = dma.done [#allocation12], 8192
    $region53: #{tpu_custom_call.1} parent=1 // pred_fallthru
      _
    // Predicated region
    $region54: #{tpu_custom_call.1} parent=1 // pred_check
      _
    $region55: #{tpu_custom_call.1} parent=1 // pred_check_branch
      %110 = sbr.rel (0) target = $region57
    $region56: #{tpu_custom_call.1} parent=1 // pred_region
      %111 = dma.done [#allocation12], 16
    $region57: #{tpu_custom_call.1} parent=1 // pred_fallthru
      _
    %v113 = vld [vmem:[#allocation2] sm:$0xff]
    %v114 = vld [vmem:[#allocation5] sm:$0xff]
    %v115 = vld [vmem:[#allocation5 + $0x8] sm:$0xff]
    %v116 = vld [vmem:[#allocation5 + $0x10] sm:$0xff]
    %v117 = vld [vmem:[#allocation5 + $0x18] sm:$0xff]
    %v118 = vunpack.c.l.bf16 %v114
    %v119 = vunpack.c.h.bf16 %v114
    %v120 = vunpack.c.l.bf16 %v115
    %v121 = vunpack.c.h.bf16 %v115
    %v122 = vunpack.c.l.bf16 %v116
    %v123 = vunpack.c.h.bf16 %v116
    %v124 = vunpack.c.l.bf16 %v117
    %v125 = vunpack.c.h.bf16 %v117
    %127 = vset.pattern.permute.xlu0 0
    %128 = vperm.xlu0 %127, %v113
    %v129 = vpop.permute.xlu0 %128
    %v131 = vlaneseq
    %v132 = vshrl.u32 %v131, 7
    %v133 = vsub.s32 0, %v132
    %v134 = vrot.slane %v118, %v133
    %v135 = vlaneseq
    %v136 = vshrl.u32 %v135, 7
    %v137 = vsub.s32 0, %v136
    %v138 = vrot.slane %v119, %v137
    %v139 = vlaneseq
    %v140 = vshrl.u32 %v139, 7
    %v141 = vsub.s32 0, %v140
    %v142 = vrot.slane %v120, %v141
    %v143 = vlaneseq
    %v144 = vshrl.u32 %v143, 7
    %v145 = vsub.s32 0, %v144
    %v146 = vrot.slane %v121, %v145
    %v147 = vlaneseq
    %v148 = vshrl.u32 %v147, 7
    %v149 = vsub.s32 0, %v148
    %v150 = vrot.slane %v122, %v149
    %v151 = vlaneseq
    %v152 = vshrl.u32 %v151, 7
    %v153 = vsub.s32 0, %v152
    %v154 = vrot.slane %v123, %v153
    %v155 = vlaneseq
    %v156 = vshrl.u32 %v155, 7
    %v157 = vsub.s32 0, %v156
    %v158 = vrot.slane %v124, %v157
    %v159 = vlaneseq
    %v160 = vshrl.u32 %v159, 7
    %v161 = vsub.s32 0, %v160
    %v162 = vrot.slane %v125, %v161
    %v163 = vmul.f32 %v129, %v134
    %v164 = vmul.f32 %v129, %v138
    %v165 = vmul.f32 %v129, %v142
    %v166 = vmul.f32 %v129, %v146
    %v167 = vmul.f32 %v129, %v150
    %v168 = vmul.f32 %v129, %v154
    %v169 = vmul.f32 %v129, %v158
    %v170 = vmul.f32 %v129, %v162
    %171 = vset.pattern.permute.xlu0 1
    %172 = vperm.xlu0 %171, %v113
    %v173 = vpop.permute.xlu0 %172
    %v175 = vlaneseq
    %v176 = vshrl.u32 %v175, 7
    %v177 = vsub.s32 1, %v176
    %v178 = vrot.slane %v118, %v177
    %v179 = vlaneseq
    %v180 = vshrl.u32 %v179, 7
    %v181 = vsub.s32 1, %v180
    %v182 = vrot.slane %v119, %v181
    %v183 = vlaneseq
    %v184 = vshrl.u32 %v183, 7
    %v185 = vsub.s32 1, %v184
    %v186 = vrot.slane %v120, %v185
    %v187 = vlaneseq
    %v188 = vshrl.u32 %v187, 7
    %v189 = vsub.s32 1, %v188
    %v190 = vrot.slane %v121, %v189
    %v191 = vlaneseq
    %v192 = vshrl.u32 %v191, 7
    %v193 = vsub.s32 1, %v192
    %v194 = vrot.slane %v122, %v193
    %v195 = vlaneseq
    %v196 = vshrl.u32 %v195, 7
    %v197 = vsub.s32 1, %v196
    %v198 = vrot.slane %v123, %v197
    %v199 = vlaneseq
    %v200 = vshrl.u32 %v199, 7
    %v201 = vsub.s32 1, %v200
    %v202 = vrot.slane %v124, %v201
    %v203 = vlaneseq
    %v204 = vshrl.u32 %v203, 7
    %v205 = vsub.s32 1, %v204
    %v206 = vrot.slane %v125, %v205
    %v207 = vmul.f32 %v173, %v178
    %v208 = vmul.f32 %v173, %v182
    %v209 = vmul.f32 %v173, %v186
    %v210 = vmul.f32 %v173, %v190
    %v211 = vmul.f32 %v173, %v194
    %v212 = vmul.f32 %v173, %v198
    %v213 = vmul.f32 %v173, %v202
    %v214 = vmul.f32 %v173, %v206
    %v215 = vadd.f32 %v163, %v207
    %v216 = vadd.f32 %v164, %v208
    %v217 = vadd.f32 %v165, %v209
    %v218 = vadd.f32 %v166, %v210
    %v219 = vadd.f32 %v167, %v211
    %v220 = vadd.f32 %v168, %v212
    %v221 = vadd.f32 %v169, %v213
    %v222 = vadd.f32 %v170, %v214
    %223 = vset.pattern.permute.xlu0 2
    %224 = vperm.xlu0 %223, %v113
    %v225 = vpop.permute.xlu0 %224
    %v227 = vlaneseq
    %v228 = vshrl.u32 %v227, 7
    %v229 = vsub.s32 2, %v228
    %v230 = vrot.slane %v118, %v229
    %v231 = vlaneseq
    %v232 = vshrl.u32 %v231, 7
    %v233 = vsub.s32 2, %v232
    %v234 = vrot.slane %v119, %v233
    %v235 = vlaneseq
    %v236 = vshrl.u32 %v235, 7
    %v237 = vsub.s32 2, %v236
    %v238 = vrot.slane %v120, %v237
    %v239 = vlaneseq
    %v240 = vshrl.u32 %v239, 7
    %v241 = vsub.s32 2, %v240
    %v242 = vrot.slane %v121, %v241
    %v243 = vlaneseq
    %v244 = vshrl.u32 %v243, 7
    %v245 = vsub.s32 2, %v244
    %v246 = vrot.slane %v122, %v245
    %v247 = vlaneseq
    %v248 = vshrl.u32 %v247, 7
    %v249 = vsub.s32 2, %v248
    %v250 = vrot.slane %v123, %v249
    %v251 = vlaneseq
    %v252 = vshrl.u32 %v251, 7
    %v253 = vsub.s32 2, %v252
    %v254 = vrot.slane %v124, %v253
    %v255 = vlaneseq
    %v256 = vshrl.u32 %v255, 7
    %v257 = vsub.s32 2, %v256
    %v258 = vrot.slane %v125, %v257
    %v259 = vmul.f32 %v225, %v230
    %v260 = vmul.f32 %v225, %v234
    %v261 = vmul.f32 %v225, %v238
    %v262 = vmul.f32 %v225, %v242
    %v263 = vmul.f32 %v225, %v246
    %v264 = vmul.f32 %v225, %v250
    %v265 = vmul.f32 %v225, %v254
    %v266 = vmul.f32 %v225, %v258
    %v267 = vadd.f32 %v215, %v259
    %v268 = vadd.f32 %v216, %v260
    %v269 = vadd.f32 %v217, %v261
    %v270 = vadd.f32 %v218, %v262
    %v271 = vadd.f32 %v219, %v263
    %v272 = vadd.f32 %v220, %v264
    %v273 = vadd.f32 %v221, %v265
    %v274 = vadd.f32 %v222, %v266
    %v275 = vld [vmem:[#allocation7] sm:$0xff]
    %v277 = vlaneseq
    %v278 = vshrl.u32 %v277, 7
    %v279 = vsub.s32 0, %v278
    %v280 = vrot.slane %v275, %v279
    %v281 = vlaneseq
    %v282 = vshrl.u32 %v281, 7
    %v283 = vsub.s32 1, %v282
    %v284 = vrot.slane %v275, %v283
    %v285 = vlaneseq
    %v286 = vshrl.u32 %v285, 7
    %v287 = vsub.s32 2, %v286
    %v288 = vrot.slane %v275, %v287
    %v289 = vlaneseq
    %v290 = vshrl.u32 %v289, 7
    %v291 = vsub.s32 3, %v290
    %v292 = vrot.slane %v275, %v291
    %v293 = vlaneseq
    %v294 = vshrl.u32 %v293, 7
    %v295 = vsub.s32 4, %v294
    %v296 = vrot.slane %v275, %v295
    %v297 = vlaneseq
    %v298 = vshrl.u32 %v297, 7
    %v299 = vsub.s32 5, %v298
    %v300 = vrot.slane %v275, %v299
    %v301 = vlaneseq
    %v302 = vshrl.u32 %v301, 7
    %v303 = vsub.s32 6, %v302
    %v304 = vrot.slane %v275, %v303
    %v305 = vlaneseq
    %v306 = vshrl.u32 %v305, 7
    %v307 = vsub.s32 7, %v306
    %v308 = vrot.slane %v275, %v307
    %v317 = vadd.f32 %v267, %v280
    %v318 = vadd.f32 %v268, %v284
    %v319 = vadd.f32 %v269, %v288
    %v320 = vadd.f32 %v270, %v292
    %v321 = vadd.f32 %v271, %v296
    %v322 = vadd.f32 %v272, %v300
    %v323 = vadd.f32 %v273, %v304
    %v324 = vadd.f32 %v274, %v308
    %v325 = vmul.f32 %v317, 0.01
    %v326 = vmul.f32 %v318, 0.01
    %v327 = vmul.f32 %v319, 0.01
    %v328 = vmul.f32 %v320, 0.01
    %v329 = vmul.f32 %v321, 0.01
    %v330 = vmul.f32 %v322, 0.01
    %v331 = vmul.f32 %v323, 0.01
    %v332 = vmul.f32 %v324, 0.01
    %v333 = vmax.f32 %v317, %v325
    %v334 = vmax.f32 %v318, %v326
    %v335 = vmax.f32 %v319, %v327
    %v336 = vmax.f32 %v320, %v328
    %v337 = vmax.f32 %v321, %v329
    %v338 = vmax.f32 %v322, %v330
    %v339 = vmax.f32 %v323, %v331
    %v340 = vmax.f32 %v324, %v332
    %v341 = vpack.c.bf16 %v333, %v333
    %v342 = vpack.c.bf16 %v334, %v334
    %v343 = vpack.c.bf16 %v335, %v335
    %v344 = vpack.c.bf16 %v336, %v336
    %v345 = vpack.c.bf16 %v337, %v337
    %v346 = vpack.c.bf16 %v338, %v338
    %v347 = vpack.c.bf16 %v339, %v339
    %v348 = vpack.c.bf16 %v340, %v340
    %v349 = vld [vmem:[#allocation8] sm:$0xff]
    %v350 = vld [vmem:[#allocation8 + $0x8] sm:$0xff]
    %v351 = vld [vmem:[#allocation8 + $0x10] sm:$0xff]
    %v352 = vld [vmem:[#allocation8 + $0x18] sm:$0xff]
    %v353 = vld [vmem:[#allocation8 + $0x20] sm:$0xff]
    %v354 = vld [vmem:[#allocation8 + $0x28] sm:$0xff]
    %v355 = vld [vmem:[#allocation8 + $0x30] sm:$0xff]
    %v356 = vld [vmem:[#allocation8 + $0x38] sm:$0xff]
    %v357 = vld [vmem:[#allocation8 + $0x40] sm:$0xff]
    %v358 = vld [vmem:[#allocation8 + $0x48] sm:$0xff]
    %v359 = vld [vmem:[#allocation8 + $0x50] sm:$0xff]
    %v360 = vld [vmem:[#allocation8 + $0x58] sm:$0xff]
    %v361 = vld [vmem:[#allocation8 + $0x60] sm:$0xff]
    %v362 = vld [vmem:[#allocation8 + $0x68] sm:$0xff]
    %v363 = vld [vmem:[#allocation8 + $0x70] sm:$0xff]
    %v364 = vld [vmem:[#allocation8 + $0x78] sm:$0xff]
    %v365 = vld [vmem:[#allocation8 + $0x80] sm:$0xff]
    %v366 = vld [vmem:[#allocation8 + $0x88] sm:$0xff]
    %v367 = vld [vmem:[#allocation8 + $0x90] sm:$0xff]
    %v368 = vld [vmem:[#allocation8 + $0x98] sm:$0xff]
    %v369 = vld [vmem:[#allocation8 + $0xa0] sm:$0xff]
    %v370 = vld [vmem:[#allocation8 + $0xa8] sm:$0xff]
    %v371 = vld [vmem:[#allocation8 + $0xb0] sm:$0xff]
    %v372 = vld [vmem:[#allocation8 + $0xb8] sm:$0xff]
    %v373 = vld [vmem:[#allocation8 + $0xc0] sm:$0xff]
    %v374 = vld [vmem:[#allocation8 + $0xc8] sm:$0xff]
    %v375 = vld [vmem:[#allocation8 + $0xd0] sm:$0xff]
    %v376 = vld [vmem:[#allocation8 + $0xd8] sm:$0xff]
    %v377 = vld [vmem:[#allocation8 + $0xe0] sm:$0xff]
    %v378 = vld [vmem:[#allocation8 + $0xe8] sm:$0xff]
    %v379 = vld [vmem:[#allocation8 + $0xf0] sm:$0xff]
    %v380 = vld [vmem:[#allocation8 + $0xf8] sm:$0xff]
    %v381 = vld [vmem:[#allocation8 + $0x100] sm:$0xff]
    %v382 = vld [vmem:[#allocation8 + $0x108] sm:$0xff]
    %v383 = vld [vmem:[#allocation8 + $0x110] sm:$0xff]
    %v384 = vld [vmem:[#allocation8 + $0x118] sm:$0xff]
    %v385 = vld [vmem:[#allocation8 + $0x120] sm:$0xff]
    %v386 = vld [vmem:[#allocation8 + $0x128] sm:$0xff]
    %v387 = vld [vmem:[#allocation8 + $0x130] sm:$0xff]
    %v388 = vld [vmem:[#allocation8 + $0x138] sm:$0xff]
    %v389 = vld [vmem:[#allocation8 + $0x140] sm:$0xff]
    %v390 = vld [vmem:[#allocation8 + $0x148] sm:$0xff]
    %v391 = vld [vmem:[#allocation8 + $0x150] sm:$0xff]
    %v392 = vld [vmem:[#allocation8 + $0x158] sm:$0xff]
    %v393 = vld [vmem:[#allocation8 + $0x160] sm:$0xff]
    %v394 = vld [vmem:[#allocation8 + $0x168] sm:$0xff]
    %v395 = vld [vmem:[#allocation8 + $0x170] sm:$0xff]
    %v396 = vld [vmem:[#allocation8 + $0x178] sm:$0xff]
    %v397 = vld [vmem:[#allocation8 + $0x180] sm:$0xff]
    %v398 = vld [vmem:[#allocation8 + $0x188] sm:$0xff]
    %v399 = vld [vmem:[#allocation8 + $0x190] sm:$0xff]
    %v400 = vld [vmem:[#allocation8 + $0x198] sm:$0xff]
    %v401 = vld [vmem:[#allocation8 + $0x1a0] sm:$0xff]
    %v402 = vld [vmem:[#allocation8 + $0x1a8] sm:$0xff]
    %v403 = vld [vmem:[#allocation8 + $0x1b0] sm:$0xff]
    %v404 = vld [vmem:[#allocation8 + $0x1b8] sm:$0xff]
    %v405 = vld [vmem:[#allocation8 + $0x1c0] sm:$0xff]
    %v406 = vld [vmem:[#allocation8 + $0x1c8] sm:$0xff]
    %v407 = vld [vmem:[#allocation8 + $0x1d0] sm:$0xff]
    %v408 = vld [vmem:[#allocation8 + $0x1d8] sm:$0xff]
    %v409 = vld [vmem:[#allocation8 + $0x1e0] sm:$0xff]
    %v410 = vld [vmem:[#allocation8 + $0x1e8] sm:$0xff]
    %v411 = vld [vmem:[#allocation8 + $0x1f0] sm:$0xff]
    %v412 = vld [vmem:[#allocation8 + $0x1f8] sm:$0xff]
    %v413 = vld [vmem:[#allocation8 + $0x200] sm:$0xff]
    %v414 = vld [vmem:[#allocation8 + $0x208] sm:$0xff]
    %v415 = vld [vmem:[#allocation8 + $0x210] sm:$0xff]
    %v416 = vld [vmem:[#allocation8 + $0x218] sm:$0xff]
    %v417 = vld [vmem:[#allocation8 + $0x220] sm:$0xff]
    %v418 = vld [vmem:[#allocation8 + $0x228] sm:$0xff]
    %v419 = vld [vmem:[#allocation8 + $0x230] sm:$0xff]
    %v420 = vld [vmem:[#allocation8 + $0x238] sm:$0xff]
    %v421 = vld [vmem:[#allocation8 + $0x240] sm:$0xff]
    %v422 = vld [vmem:[#allocation8 + $0x248] sm:$0xff]
    %v423 = vld [vmem:[#allocation8 + $0x250] sm:$0xff]
    %v424 = vld [vmem:[#allocation8 + $0x258] sm:$0xff]
    %v425 = vld [vmem:[#allocation8 + $0x260] sm:$0xff]
    %v426 = vld [vmem:[#allocation8 + $0x268] sm:$0xff]
    %v427 = vld [vmem:[#allocation8 + $0x270] sm:$0xff]
    %v428 = vld [vmem:[#allocation8 + $0x278] sm:$0xff]
    %v429 = vld [vmem:[#allocation8 + $0x280] sm:$0xff]
    %v430 = vld [vmem:[#allocation8 + $0x288] sm:$0xff]
    %v431 = vld [vmem:[#allocation8 + $0x290] sm:$0xff]
    %v432 = vld [vmem:[#allocation8 + $0x298] sm:$0xff]
    %v433 = vld [vmem:[#allocation8 + $0x2a0] sm:$0xff]
    %v434 = vld [vmem:[#allocation8 + $0x2a8] sm:$0xff]
    %v435 = vld [vmem:[#allocation8 + $0x2b0] sm:$0xff]
    %v436 = vld [vmem:[#allocation8 + $0x2b8] sm:$0xff]
    %v437 = vld [vmem:[#allocation8 + $0x2c0] sm:$0xff]
    %v438 = vld [vmem:[#allocation8 + $0x2c8] sm:$0xff]
    %v439 = vld [vmem:[#allocation8 + $0x2d0] sm:$0xff]
    %v440 = vld [vmem:[#allocation8 + $0x2d8] sm:$0xff]
    %v441 = vld [vmem:[#allocation8 + $0x2e0] sm:$0xff]
    %v442 = vld [vmem:[#allocation8 + $0x2e8] sm:$0xff]
    %v443 = vld [vmem:[#allocation8 + $0x2f0] sm:$0xff]
    %v444 = vld [vmem:[#allocation8 + $0x2f8] sm:$0xff]
    %v445 = vld [vmem:[#allocation8 + $0x300] sm:$0xff]
    %v446 = vld [vmem:[#allocation8 + $0x308] sm:$0xff]
    %v447 = vld [vmem:[#allocation8 + $0x310] sm:$0xff]
    %v448 = vld [vmem:[#allocation8 + $0x318] sm:$0xff]
    %v449 = vld [vmem:[#allocation8 + $0x320] sm:$0xff]
    %v450 = vld [vmem:[#allocation8 + $0x328] sm:$0xff]
    %v451 = vld [vmem:[#allocation8 + $0x330] sm:$0xff]
    %v452 = vld [vmem:[#allocation8 + $0x338] sm:$0xff]
    %v453 = vld [vmem:[#allocation8 + $0x340] sm:$0xff]
    %v454 = vld [vmem:[#allocation8 + $0x348] sm:$0xff]
    %v455 = vld [vmem:[#allocation8 + $0x350] sm:$0xff]
    %v456 = vld [vmem:[#allocation8 + $0x358] sm:$0xff]
    %v457 = vld [vmem:[#allocation8 + $0x360] sm:$0xff]
    %v458 = vld [vmem:[#allocation8 + $0x368] sm:$0xff]
    %v459 = vld [vmem:[#allocation8 + $0x370] sm:$0xff]
    %v460 = vld [vmem:[#allocation8 + $0x378] sm:$0xff]
    %v461 = vld [vmem:[#allocation8 + $0x380] sm:$0xff]
    %v462 = vld [vmem:[#allocation8 + $0x388] sm:$0xff]
    %v463 = vld [vmem:[#allocation8 + $0x390] sm:$0xff]
    %v464 = vld [vmem:[#allocation8 + $0x398] sm:$0xff]
    %v465 = vld [vmem:[#allocation8 + $0x3a0] sm:$0xff]
    %v466 = vld [vmem:[#allocation8 + $0x3a8] sm:$0xff]
    %v467 = vld [vmem:[#allocation8 + $0x3b0] sm:$0xff]
    %v468 = vld [vmem:[#allocation8 + $0x3b8] sm:$0xff]
    %v469 = vld [vmem:[#allocation8 + $0x3c0] sm:$0xff]
    %v470 = vld [vmem:[#allocation8 + $0x3c8] sm:$0xff]
    %v471 = vld [vmem:[#allocation8 + $0x3d0] sm:$0xff]
    %v472 = vld [vmem:[#allocation8 + $0x3d8] sm:$0xff]
    %v473 = vld [vmem:[#allocation8 + $0x3e0] sm:$0xff]
    %v474 = vld [vmem:[#allocation8 + $0x3e8] sm:$0xff]
    %v475 = vld [vmem:[#allocation8 + $0x3f0] sm:$0xff]
    %v476 = vld [vmem:[#allocation8 + $0x3f8] sm:$0xff]
    %v477 = vld [vmem:[#allocation8 + $0x400] sm:$0xff]
    %v478 = vld [vmem:[#allocation8 + $0x408] sm:$0xff]
    %v479 = vld [vmem:[#allocation8 + $0x410] sm:$0xff]
    %v480 = vld [vmem:[#allocation8 + $0x418] sm:$0xff]
    %v481 = vld [vmem:[#allocation8 + $0x420] sm:$0xff]
    %v482 = vld [vmem:[#allocation8 + $0x428] sm:$0xff]
    %v483 = vld [vmem:[#allocation8 + $0x430] sm:$0xff]
    %v484 = vld [vmem:[#allocation8 + $0x438] sm:$0xff]
    %v485 = vld [vmem:[#allocation8 + $0x440] sm:$0xff]
    %v486 = vld [vmem:[#allocation8 + $0x448] sm:$0xff]
    %v487 = vld [vmem:[#allocation8 + $0x450] sm:$0xff]
    %v488 = vld [vmem:[#allocation8 + $0x458] sm:$0xff]
    %v489 = vld [vmem:[#allocation8 + $0x460] sm:$0xff]
    %v490 = vld [vmem:[#allocation8 + $0x468] sm:$0xff]
    %v491 = vld [vmem:[#allocation8 + $0x470] sm:$0xff]
    %v492 = vld [vmem:[#allocation8 + $0x478] sm:$0xff]
    %v493 = vld [vmem:[#allocation8 + $0x480] sm:$0xff]
    %v494 = vld [vmem:[#allocation8 + $0x488] sm:$0xff]
    %v495 = vld [vmem:[#allocation8 + $0x490] sm:$0xff]
    %v496 = vld [vmem:[#allocation8 + $0x498] sm:$0xff]
    %v497 = vld [vmem:[#allocation8 + $0x4a0] sm:$0xff]
    %v498 = vld [vmem:[#allocation8 + $0x4a8] sm:$0xff]
    %v499 = vld [vmem:[#allocation8 + $0x4b0] sm:$0xff]
    %v500 = vld [vmem:[#allocation8 + $0x4b8] sm:$0xff]
    %v501 = vld [vmem:[#allocation8 + $0x4c0] sm:$0xff]
    %v502 = vld [vmem:[#allocation8 + $0x4c8] sm:$0xff]
    %v503 = vld [vmem:[#allocation8 + $0x4d0] sm:$0xff]
    %v504 = vld [vmem:[#allocation8 + $0x4d8] sm:$0xff]
    %v505 = vld [vmem:[#allocation8 + $0x4e0] sm:$0xff]
    %v506 = vld [vmem:[#allocation8 + $0x4e8] sm:$0xff]
    %v507 = vld [vmem:[#allocation8 + $0x4f0] sm:$0xff]
    %v508 = vld [vmem:[#allocation8 + $0x4f8] sm:$0xff]
    %v509 = vld [vmem:[#allocation8 + $0x500] sm:$0xff]
    %v510 = vld [vmem:[#allocation8 + $0x508] sm:$0xff]
    %v511 = vld [vmem:[#allocation8 + $0x510] sm:$0xff]
    %v512 = vld [vmem:[#allocation8 + $0x518] sm:$0xff]
    %v513 = vld [vmem:[#allocation8 + $0x520] sm:$0xff]
    %v514 = vld [vmem:[#allocation8 + $0x528] sm:$0xff]
    %v515 = vld [vmem:[#allocation8 + $0x530] sm:$0xff]
    %v516 = vld [vmem:[#allocation8 + $0x538] sm:$0xff]
    %v517 = vld [vmem:[#allocation8 + $0x540] sm:$0xff]
    %v518 = vld [vmem:[#allocation8 + $0x548] sm:$0xff]
    %v519 = vld [vmem:[#allocation8 + $0x550] sm:$0xff]
    %v520 = vld [vmem:[#allocation8 + $0x558] sm:$0xff]
    %v521 = vld [vmem:[#allocation8 + $0x560] sm:$0xff]
    %v522 = vld [vmem:[#allocation8 + $0x568] sm:$0xff]
    %v523 = vld [vmem:[#allocation8 + $0x570] sm:$0xff]
    %v524 = vld [vmem:[#allocation8 + $0x578] sm:$0xff]
    %v525 = vld [vmem:[#allocation8 + $0x580] sm:$0xff]
    %v526 = vld [vmem:[#allocation8 + $0x588] sm:$0xff]
    %v527 = vld [vmem:[#allocation8 + $0x590] sm:$0xff]
    %v528 = vld [vmem:[#allocation8 + $0x598] sm:$0xff]
    %v529 = vld [vmem:[#allocation8 + $0x5a0] sm:$0xff]
    %v530 = vld [vmem:[#allocation8 + $0x5a8] sm:$0xff]
    %v531 = vld [vmem:[#allocation8 + $0x5b0] sm:$0xff]
    %v532 = vld [vmem:[#allocation8 + $0x5b8] sm:$0xff]
    %v533 = vld [vmem:[#allocation8 + $0x5c0] sm:$0xff]
    %v534 = vld [vmem:[#allocation8 + $0x5c8] sm:$0xff]
    %v535 = vld [vmem:[#allocation8 + $0x5d0] sm:$0xff]
    %v536 = vld [vmem:[#allocation8 + $0x5d8] sm:$0xff]
    %v537 = vld [vmem:[#allocation8 + $0x5e0] sm:$0xff]
    %v538 = vld [vmem:[#allocation8 + $0x5e8] sm:$0xff]
    %v539 = vld [vmem:[#allocation8 + $0x5f0] sm:$0xff]
    %v540 = vld [vmem:[#allocation8 + $0x5f8] sm:$0xff]
    %v541 = vld [vmem:[#allocation8 + $0x600] sm:$0xff]
    %v542 = vld [vmem:[#allocation8 + $0x608] sm:$0xff]
    %v543 = vld [vmem:[#allocation8 + $0x610] sm:$0xff]
    %v544 = vld [vmem:[#allocation8 + $0x618] sm:$0xff]
    %v545 = vld [vmem:[#allocation8 + $0x620] sm:$0xff]
    %v546 = vld [vmem:[#allocation8 + $0x628] sm:$0xff]
    %v547 = vld [vmem:[#allocation8 + $0x630] sm:$0xff]
    %v548 = vld [vmem:[#allocation8 + $0x638] sm:$0xff]
    %v549 = vld [vmem:[#allocation8 + $0x640] sm:$0xff]
    %v550 = vld [vmem:[#allocation8 + $0x648] sm:$0xff]
    %v551 = vld [vmem:[#allocation8 + $0x650] sm:$0xff]
    %v552 = vld [vmem:[#allocation8 + $0x658] sm:$0xff]
    %v553 = vld [vmem:[#allocation8 + $0x660] sm:$0xff]
    %v554 = vld [vmem:[#allocation8 + $0x668] sm:$0xff]
    %v555 = vld [vmem:[#allocation8 + $0x670] sm:$0xff]
    %v556 = vld [vmem:[#allocation8 + $0x678] sm:$0xff]
    %v557 = vld [vmem:[#allocation8 + $0x680] sm:$0xff]
    %v558 = vld [vmem:[#allocation8 + $0x688] sm:$0xff]
    %v559 = vld [vmem:[#allocation8 + $0x690] sm:$0xff]
    %v560 = vld [vmem:[#allocation8 + $0x698] sm:$0xff]
    %v561 = vld [vmem:[#allocation8 + $0x6a0] sm:$0xff]
    %v562 = vld [vmem:[#allocation8 + $0x6a8] sm:$0xff]
    %v563 = vld [vmem:[#allocation8 + $0x6b0] sm:$0xff]
    %v564 = vld [vmem:[#allocation8 + $0x6b8] sm:$0xff]
    %v565 = vld [vmem:[#allocation8 + $0x6c0] sm:$0xff]
    %v566 = vld [vmem:[#allocation8 + $0x6c8] sm:$0xff]
    %v567 = vld [vmem:[#allocation8 + $0x6d0] sm:$0xff]
    %v568 = vld [vmem:[#allocation8 + $0x6d8] sm:$0xff]
    %v569 = vld [vmem:[#allocation8 + $0x6e0] sm:$0xff]
    %v570 = vld [vmem:[#allocation8 + $0x6e8] sm:$0xff]
    %v571 = vld [vmem:[#allocation8 + $0x6f0] sm:$0xff]
    %v572 = vld [vmem:[#allocation8 + $0x6f8] sm:$0xff]
    %v573 = vld [vmem:[#allocation8 + $0x700] sm:$0xff]
    %v574 = vld [vmem:[#allocation8 + $0x708] sm:$0xff]
    %v575 = vld [vmem:[#allocation8 + $0x710] sm:$0xff]
    %v576 = vld [vmem:[#allocation8 + $0x718] sm:$0xff]
    %v577 = vld [vmem:[#allocation8 + $0x720] sm:$0xff]
    %v578 = vld [vmem:[#allocation8 + $0x728] sm:$0xff]
    %v579 = vld [vmem:[#allocation8 + $0x730] sm:$0xff]
    %v580 = vld [vmem:[#allocation8 + $0x738] sm:$0xff]
    %v581 = vld [vmem:[#allocation8 + $0x740] sm:$0xff]
    %v582 = vld [vmem:[#allocation8 + $0x748] sm:$0xff]
    %v583 = vld [vmem:[#allocation8 + $0x750] sm:$0xff]
    %v584 = vld [vmem:[#allocation8 + $0x758] sm:$0xff]
    %v585 = vld [vmem:[#allocation8 + $0x760] sm:$0xff]
    %v586 = vld [vmem:[#allocation8 + $0x768] sm:$0xff]
    %v587 = vld [vmem:[#allocation8 + $0x770] sm:$0xff]
    %v588 = vld [vmem:[#allocation8 + $0x778] sm:$0xff]
    %v589 = vld [vmem:[#allocation8 + $0x780] sm:$0xff]
    %v590 = vld [vmem:[#allocation8 + $0x788] sm:$0xff]
    %v591 = vld [vmem:[#allocation8 + $0x790] sm:$0xff]
    %v592 = vld [vmem:[#allocation8 + $0x798] sm:$0xff]
    %v593 = vld [vmem:[#allocation8 + $0x7a0] sm:$0xff]
    %v594 = vld [vmem:[#allocation8 + $0x7a8] sm:$0xff]
    %v595 = vld [vmem:[#allocation8 + $0x7b0] sm:$0xff]
    %v596 = vld [vmem:[#allocation8 + $0x7b8] sm:$0xff]
    %v597 = vld [vmem:[#allocation8 + $0x7c0] sm:$0xff]
    %v598 = vld [vmem:[#allocation8 + $0x7c8] sm:$0xff]
    %v599 = vld [vmem:[#allocation8 + $0x7d0] sm:$0xff]
    %v600 = vld [vmem:[#allocation8 + $0x7d8] sm:$0xff]
    %v601 = vld [vmem:[#allocation8 + $0x7e0] sm:$0xff]
    %v602 = vld [vmem:[#allocation8 + $0x7e8] sm:$0xff]
    %v603 = vld [vmem:[#allocation8 + $0x7f0] sm:$0xff]
    %v604 = vld [vmem:[#allocation8 + $0x7f8] sm:$0xff]
    %v605 = vld [vmem:[#allocation8 + $0x800] sm:$0xff]
    %v606 = vld [vmem:[#allocation8 + $0x808] sm:$0xff]
    %v607 = vld [vmem:[#allocation8 + $0x810] sm:$0xff]
    %v608 = vld [vmem:[#allocation8 + $0x818] sm:$0xff]
    %v609 = vld [vmem:[#allocation8 + $0x820] sm:$0xff]
    %v610 = vld [vmem:[#allocation8 + $0x828] sm:$0xff]
    %v611 = vld [vmem:[#allocation8 + $0x830] sm:$0xff]
    %v612 = vld [vmem:[#allocation8 + $0x838] sm:$0xff]
    %v613 = vld [vmem:[#allocation8 + $0x840] sm:$0xff]
    %v614 = vld [vmem:[#allocation8 + $0x848] sm:$0xff]
    %v615 = vld [vmem:[#allocation8 + $0x850] sm:$0xff]
    %v616 = vld [vmem:[#allocation8 + $0x858] sm:$0xff]
    %v617 = vld [vmem:[#allocation8 + $0x860] sm:$0xff]
    %v618 = vld [vmem:[#allocation8 + $0x868] sm:$0xff]
    %v619 = vld [vmem:[#allocation8 + $0x870] sm:$0xff]
    %v620 = vld [vmem:[#allocation8 + $0x878] sm:$0xff]
    %v621 = vld [vmem:[#allocation8 + $0x880] sm:$0xff]
    %v622 = vld [vmem:[#allocation8 + $0x888] sm:$0xff]
    %v623 = vld [vmem:[#allocation8 + $0x890] sm:$0xff]
    %v624 = vld [vmem:[#allocation8 + $0x898] sm:$0xff]
    %v625 = vld [vmem:[#allocation8 + $0x8a0] sm:$0xff]
    %v626 = vld [vmem:[#allocation8 + $0x8a8] sm:$0xff]
    %v627 = vld [vmem:[#allocation8 + $0x8b0] sm:$0xff]
    %v628 = vld [vmem:[#allocation8 + $0x8b8] sm:$0xff]
    %v629 = vld [vmem:[#allocation8 + $0x8c0] sm:$0xff]
    %v630 = vld [vmem:[#allocation8 + $0x8c8] sm:$0xff]
    %v631 = vld [vmem:[#allocation8 + $0x8d0] sm:$0xff]
    %v632 = vld [vmem:[#allocation8 + $0x8d8] sm:$0xff]
    %v633 = vld [vmem:[#allocation8 + $0x8e0] sm:$0xff]
    %v634 = vld [vmem:[#allocation8 + $0x8e8] sm:$0xff]
    %v635 = vld [vmem:[#allocation8 + $0x8f0] sm:$0xff]
    %v636 = vld [vmem:[#allocation8 + $0x8f8] sm:$0xff]
    %v637 = vld [vmem:[#allocation8 + $0x900] sm:$0xff]
    %v638 = vld [vmem:[#allocation8 + $0x908] sm:$0xff]
    %v639 = vld [vmem:[#allocation8 + $0x910] sm:$0xff]
    %v640 = vld [vmem:[#allocation8 + $0x918] sm:$0xff]
    %v641 = vld [vmem:[#allocation8 + $0x920] sm:$0xff]
    %v642 = vld [vmem:[#allocation8 + $0x928] sm:$0xff]
    %v643 = vld [vmem:[#allocation8 + $0x930] sm:$0xff]
    %v644 = vld [vmem:[#allocation8 + $0x938] sm:$0xff]
    %v645 = vld [vmem:[#allocation8 + $0x940] sm:$0xff]
    %v646 = vld [vmem:[#allocation8 + $0x948] sm:$0xff]
    %v647 = vld [vmem:[#allocation8 + $0x950] sm:$0xff]
    %v648 = vld [vmem:[#allocation8 + $0x958] sm:$0xff]
    %v649 = vld [vmem:[#allocation8 + $0x960] sm:$0xff]
    %v650 = vld [vmem:[#allocation8 + $0x968] sm:$0xff]
    %v651 = vld [vmem:[#allocation8 + $0x970] sm:$0xff]
    %v652 = vld [vmem:[#allocation8 + $0x978] sm:$0xff]
    %v653 = vld [vmem:[#allocation8 + $0x980] sm:$0xff]
    %v654 = vld [vmem:[#allocation8 + $0x988] sm:$0xff]
    %v655 = vld [vmem:[#allocation8 + $0x990] sm:$0xff]
    %v656 = vld [vmem:[#allocation8 + $0x998] sm:$0xff]
    %v657 = vld [vmem:[#allocation8 + $0x9a0] sm:$0xff]
    %v658 = vld [vmem:[#allocation8 + $0x9a8] sm:$0xff]
    %v659 = vld [vmem:[#allocation8 + $0x9b0] sm:$0xff]
    %v660 = vld [vmem:[#allocation8 + $0x9b8] sm:$0xff]
    %v661 = vld [vmem:[#allocation8 + $0x9c0] sm:$0xff]
    %v662 = vld [vmem:[#allocation8 + $0x9c8] sm:$0xff]
    %v663 = vld [vmem:[#allocation8 + $0x9d0] sm:$0xff]
    %v664 = vld [vmem:[#allocation8 + $0x9d8] sm:$0xff]
    %v665 = vld [vmem:[#allocation8 + $0x9e0] sm:$0xff]
    %v666 = vld [vmem:[#allocation8 + $0x9e8] sm:$0xff]
    %v667 = vld [vmem:[#allocation8 + $0x9f0] sm:$0xff]
    %v668 = vld [vmem:[#allocation8 + $0x9f8] sm:$0xff]
    %v669 = vld [vmem:[#allocation8 + $0xa00] sm:$0xff]
    %v670 = vld [vmem:[#allocation8 + $0xa08] sm:$0xff]
    %v671 = vld [vmem:[#allocation8 + $0xa10] sm:$0xff]
    %v672 = vld [vmem:[#allocation8 + $0xa18] sm:$0xff]
    %v673 = vld [vmem:[#allocation8 + $0xa20] sm:$0xff]
    %v674 = vld [vmem:[#allocation8 + $0xa28] sm:$0xff]
    %v675 = vld [vmem:[#allocation8 + $0xa30] sm:$0xff]
    %v676 = vld [vmem:[#allocation8 + $0xa38] sm:$0xff]
    %v677 = vld [vmem:[#allocation8 + $0xa40] sm:$0xff]
    %v678 = vld [vmem:[#allocation8 + $0xa48] sm:$0xff]
    %v679 = vld [vmem:[#allocation8 + $0xa50] sm:$0xff]
    %v680 = vld [vmem:[#allocation8 + $0xa58] sm:$0xff]
    %v681 = vld [vmem:[#allocation8 + $0xa60] sm:$0xff]
    %v682 = vld [vmem:[#allocation8 + $0xa68] sm:$0xff]
    %v683 = vld [vmem:[#allocation8 + $0xa70] sm:$0xff]
    %v684 = vld [vmem:[#allocation8 + $0xa78] sm:$0xff]
    %v685 = vld [vmem:[#allocation8 + $0xa80] sm:$0xff]
    %v686 = vld [vmem:[#allocation8 + $0xa88] sm:$0xff]
    %v687 = vld [vmem:[#allocation8 + $0xa90] sm:$0xff]
    %v688 = vld [vmem:[#allocation8 + $0xa98] sm:$0xff]
    %v689 = vld [vmem:[#allocation8 + $0xaa0] sm:$0xff]
    %v690 = vld [vmem:[#allocation8 + $0xaa8] sm:$0xff]
    %v691 = vld [vmem:[#allocation8 + $0xab0] sm:$0xff]
    %v692 = vld [vmem:[#allocation8 + $0xab8] sm:$0xff]
    %v693 = vld [vmem:[#allocation8 + $0xac0] sm:$0xff]
    %v694 = vld [vmem:[#allocation8 + $0xac8] sm:$0xff]
    %v695 = vld [vmem:[#allocation8 + $0xad0] sm:$0xff]
    %v696 = vld [vmem:[#allocation8 + $0xad8] sm:$0xff]
    %v697 = vld [vmem:[#allocation8 + $0xae0] sm:$0xff]
    %v698 = vld [vmem:[#allocation8 + $0xae8] sm:$0xff]
    %v699 = vld [vmem:[#allocation8 + $0xaf0] sm:$0xff]
    %v700 = vld [vmem:[#allocation8 + $0xaf8] sm:$0xff]
    %v701 = vld [vmem:[#allocation8 + $0xb00] sm:$0xff]
    %v702 = vld [vmem:[#allocation8 + $0xb08] sm:$0xff]
    %v703 = vld [vmem:[#allocation8 + $0xb10] sm:$0xff]
    %v704 = vld [vmem:[#allocation8 + $0xb18] sm:$0xff]
    %v705 = vld [vmem:[#allocation8 + $0xb20] sm:$0xff]
    %v706 = vld [vmem:[#allocation8 + $0xb28] sm:$0xff]
    %v707 = vld [vmem:[#allocation8 + $0xb30] sm:$0xff]
    %v708 = vld [vmem:[#allocation8 + $0xb38] sm:$0xff]
    %v709 = vld [vmem:[#allocation8 + $0xb40] sm:$0xff]
    %v710 = vld [vmem:[#allocation8 + $0xb48] sm:$0xff]
    %v711 = vld [vmem:[#allocation8 + $0xb50] sm:$0xff]
    %v712 = vld [vmem:[#allocation8 + $0xb58] sm:$0xff]
    %v713 = vld [vmem:[#allocation8 + $0xb60] sm:$0xff]
    %v714 = vld [vmem:[#allocation8 + $0xb68] sm:$0xff]
    %v715 = vld [vmem:[#allocation8 + $0xb70] sm:$0xff]
    %v716 = vld [vmem:[#allocation8 + $0xb78] sm:$0xff]
    %v717 = vld [vmem:[#allocation8 + $0xb80] sm:$0xff]
    %v718 = vld [vmem:[#allocation8 + $0xb88] sm:$0xff]
    %v719 = vld [vmem:[#allocation8 + $0xb90] sm:$0xff]
    %v720 = vld [vmem:[#allocation8 + $0xb98] sm:$0xff]
    %v721 = vld [vmem:[#allocation8 + $0xba0] sm:$0xff]
    %v722 = vld [vmem:[#allocation8 + $0xba8] sm:$0xff]
    %v723 = vld [vmem:[#allocation8 + $0xbb0] sm:$0xff]
    %v724 = vld [vmem:[#allocation8 + $0xbb8] sm:$0xff]
    %v725 = vld [vmem:[#allocation8 + $0xbc0] sm:$0xff]
    %v726 = vld [vmem:[#allocation8 + $0xbc8] sm:$0xff]
    %v727 = vld [vmem:[#allocation8 + $0xbd0] sm:$0xff]
    %v728 = vld [vmem:[#allocation8 + $0xbd8] sm:$0xff]
    %v729 = vld [vmem:[#allocation8 + $0xbe0] sm:$0xff]
    %v730 = vld [vmem:[#allocation8 + $0xbe8] sm:$0xff]
    %v731 = vld [vmem:[#allocation8 + $0xbf0] sm:$0xff]
    %v732 = vld [vmem:[#allocation8 + $0xbf8] sm:$0xff]
    %v733 = vld [vmem:[#allocation8 + $0xc00] sm:$0xff]
    %v734 = vld [vmem:[#allocation8 + $0xc08] sm:$0xff]
    %v735 = vld [vmem:[#allocation8 + $0xc10] sm:$0xff]
    %v736 = vld [vmem:[#allocation8 + $0xc18] sm:$0xff]
    %v737 = vld [vmem:[#allocation8 + $0xc20] sm:$0xff]
    %v738 = vld [vmem:[#allocation8 + $0xc28] sm:$0xff]
    %v739 = vld [vmem:[#allocation8 + $0xc30] sm:$0xff]
    %v740 = vld [vmem:[#allocation8 + $0xc38] sm:$0xff]
    %v741 = vld [vmem:[#allocation8 + $0xc40] sm:$0xff]
    %v742 = vld [vmem:[#allocation8 + $0xc48] sm:$0xff]
    %v743 = vld [vmem:[#allocation8 + $0xc50] sm:$0xff]
    %v744 = vld [vmem:[#allocation8 + $0xc58] sm:$0xff]
    %v745 = vld [vmem:[#allocation8 + $0xc60] sm:$0xff]
    %v746 = vld [vmem:[#allocation8 + $0xc68] sm:$0xff]
    %v747 = vld [vmem:[#allocation8 + $0xc70] sm:$0xff]
    %v748 = vld [vmem:[#allocation8 + $0xc78] sm:$0xff]
    %v749 = vld [vmem:[#allocation8 + $0xc80] sm:$0xff]
    %v750 = vld [vmem:[#allocation8 + $0xc88] sm:$0xff]
    %v751 = vld [vmem:[#allocation8 + $0xc90] sm:$0xff]
    %v752 = vld [vmem:[#allocation8 + $0xc98] sm:$0xff]
    %v753 = vld [vmem:[#allocation8 + $0xca0] sm:$0xff]
    %v754 = vld [vmem:[#allocation8 + $0xca8] sm:$0xff]
    %v755 = vld [vmem:[#allocation8 + $0xcb0] sm:$0xff]
    %v756 = vld [vmem:[#allocation8 + $0xcb8] sm:$0xff]
    %v757 = vld [vmem:[#allocation8 + $0xcc0] sm:$0xff]
    %v758 = vld [vmem:[#allocation8 + $0xcc8] sm:$0xff]
    %v759 = vld [vmem:[#allocation8 + $0xcd0] sm:$0xff]
    %v760 = vld [vmem:[#allocation8 + $0xcd8] sm:$0xff]
    %v761 = vld [vmem:[#allocation8 + $0xce0] sm:$0xff]
    %v762 = vld [vmem:[#allocation8 + $0xce8] sm:$0xff]
    %v763 = vld [vmem:[#allocation8 + $0xcf0] sm:$0xff]
    %v764 = vld [vmem:[#allocation8 + $0xcf8] sm:$0xff]
    %v765 = vld [vmem:[#allocation8 + $0xd00] sm:$0xff]
    %v766 = vld [vmem:[#allocation8 + $0xd08] sm:$0xff]
    %v767 = vld [vmem:[#allocation8 + $0xd10] sm:$0xff]
    %v768 = vld [vmem:[#allocation8 + $0xd18] sm:$0xff]
    %v769 = vld [vmem:[#allocation8 + $0xd20] sm:$0xff]
    %v770 = vld [vmem:[#allocation8 + $0xd28] sm:$0xff]
    %v771 = vld [vmem:[#allocation8 + $0xd30] sm:$0xff]
    %v772 = vld [vmem:[#allocation8 + $0xd38] sm:$0xff]
    %v773 = vld [vmem:[#allocation8 + $0xd40] sm:$0xff]
    %v774 = vld [vmem:[#allocation8 + $0xd48] sm:$0xff]
    %v775 = vld [vmem:[#allocation8 + $0xd50] sm:$0xff]
    %v776 = vld [vmem:[#allocation8 + $0xd58] sm:$0xff]
    %v777 = vld [vmem:[#allocation8 + $0xd60] sm:$0xff]
    %v778 = vld [vmem:[#allocation8 + $0xd68] sm:$0xff]
    %v779 = vld [vmem:[#allocation8 + $0xd70] sm:$0xff]
    %v780 = vld [vmem:[#allocation8 + $0xd78] sm:$0xff]
    %v781 = vld [vmem:[#allocation8 + $0xd80] sm:$0xff]
    %v782 = vld [vmem:[#allocation8 + $0xd88] sm:$0xff]
    %v783 = vld [vmem:[#allocation8 + $0xd90] sm:$0xff]
    %v784 = vld [vmem:[#allocation8 + $0xd98] sm:$0xff]
    %v785 = vld [vmem:[#allocation8 + $0xda0] sm:$0xff]
    %v786 = vld [vmem:[#allocation8 + $0xda8] sm:$0xff]
    %v787 = vld [vmem:[#allocation8 + $0xdb0] sm:$0xff]
    %v788 = vld [vmem:[#allocation8 + $0xdb8] sm:$0xff]
    %v789 = vld [vmem:[#allocation8 + $0xdc0] sm:$0xff]
    %v790 = vld [vmem:[#allocation8 + $0xdc8] sm:$0xff]
    %v791 = vld [vmem:[#allocation8 + $0xdd0] sm:$0xff]
    %v792 = vld [vmem:[#allocation8 + $0xdd8] sm:$0xff]
    %v793 = vld [vmem:[#allocation8 + $0xde0] sm:$0xff]
    %v794 = vld [vmem:[#allocation8 + $0xde8] sm:$0xff]
    %v795 = vld [vmem:[#allocation8 + $0xdf0] sm:$0xff]
    %v796 = vld [vmem:[#allocation8 + $0xdf8] sm:$0xff]
    %v797 = vld [vmem:[#allocation8 + $0xe00] sm:$0xff]
    %v798 = vld [vmem:[#allocation8 + $0xe08] sm:$0xff]
    %v799 = vld [vmem:[#allocation8 + $0xe10] sm:$0xff]
    %v800 = vld [vmem:[#allocation8 + $0xe18] sm:$0xff]
    %v801 = vld [vmem:[#allocation8 + $0xe20] sm:$0xff]
    %v802 = vld [vmem:[#allocation8 + $0xe28] sm:$0xff]
    %v803 = vld [vmem:[#allocation8 + $0xe30] sm:$0xff]
    %v804 = vld [vmem:[#allocation8 + $0xe38] sm:$0xff]
    %v805 = vld [vmem:[#allocation8 + $0xe40] sm:$0xff]
    %v806 = vld [vmem:[#allocation8 + $0xe48] sm:$0xff]
    %v807 = vld [vmem:[#allocation8 + $0xe50] sm:$0xff]
    %v808 = vld [vmem:[#allocation8 + $0xe58] sm:$0xff]
    %v809 = vld [vmem:[#allocation8 + $0xe60] sm:$0xff]
    %v810 = vld [vmem:[#allocation8 + $0xe68] sm:$0xff]
    %v811 = vld [vmem:[#allocation8 + $0xe70] sm:$0xff]
    %v812 = vld [vmem:[#allocation8 + $0xe78] sm:$0xff]
    %v813 = vld [vmem:[#allocation8 + $0xe80] sm:$0xff]
    %v814 = vld [vmem:[#allocation8 + $0xe88] sm:$0xff]
    %v815 = vld [vmem:[#allocation8 + $0xe90] sm:$0xff]
    %v816 = vld [vmem:[#allocation8 + $0xe98] sm:$0xff]
    %v817 = vld [vmem:[#allocation8 + $0xea0] sm:$0xff]
    %v818 = vld [vmem:[#allocation8 + $0xea8] sm:$0xff]
    %v819 = vld [vmem:[#allocation8 + $0xeb0] sm:$0xff]
    %v820 = vld [vmem:[#allocation8 + $0xeb8] sm:$0xff]
    %v821 = vld [vmem:[#allocation8 + $0xec0] sm:$0xff]
    %v822 = vld [vmem:[#allocation8 + $0xec8] sm:$0xff]
    %v823 = vld [vmem:[#allocation8 + $0xed0] sm:$0xff]
    %v824 = vld [vmem:[#allocation8 + $0xed8] sm:$0xff]
    %v825 = vld [vmem:[#allocation8 + $0xee0] sm:$0xff]
    %v826 = vld [vmem:[#allocation8 + $0xee8] sm:$0xff]
    %v827 = vld [vmem:[#allocation8 + $0xef0] sm:$0xff]
    %v828 = vld [vmem:[#allocation8 + $0xef8] sm:$0xff]
    %v829 = vld [vmem:[#allocation8 + $0xf00] sm:$0xff]
    %v830 = vld [vmem:[#allocation8 + $0xf08] sm:$0xff]
    %v831 = vld [vmem:[#allocation8 + $0xf10] sm:$0xff]
    %v832 = vld [vmem:[#allocation8 + $0xf18] sm:$0xff]
    %v833 = vld [vmem:[#allocation8 + $0xf20] sm:$0xff]
    %v834 = vld [vmem:[#allocation8 + $0xf28] sm:$0xff]
    %v835 = vld [vmem:[#allocation8 + $0xf30] sm:$0xff]
    %v836 = vld [vmem:[#allocation8 + $0xf38] sm:$0xff]
    %v837 = vld [vmem:[#allocation8 + $0xf40] sm:$0xff]
    %v838 = vld [vmem:[#allocation8 + $0xf48] sm:$0xff]
    %v839 = vld [vmem:[#allocation8 + $0xf50] sm:$0xff]
    %v840 = vld [vmem:[#allocation8 + $0xf58] sm:$0xff]
    %v841 = vld [vmem:[#allocation8 + $0xf60] sm:$0xff]
    %v842 = vld [vmem:[#allocation8 + $0xf68] sm:$0xff]
    %v843 = vld [vmem:[#allocation8 + $0xf70] sm:$0xff]
    %v844 = vld [vmem:[#allocation8 + $0xf78] sm:$0xff]
    %v845 = vld [vmem:[#allocation8 + $0xf80] sm:$0xff]
    %v846 = vld [vmem:[#allocation8 + $0xf88] sm:$0xff]
    %v847 = vld [vmem:[#allocation8 + $0xf90] sm:$0xff]
    %v848 = vld [vmem:[#allocation8 + $0xf98] sm:$0xff]
    %v849 = vld [vmem:[#allocation8 + $0xfa0] sm:$0xff]
    %v850 = vld [vmem:[#allocation8 + $0xfa8] sm:$0xff]
    %v851 = vld [vmem:[#allocation8 + $0xfb0] sm:$0xff]
    %v852 = vld [vmem:[#allocation8 + $0xfb8] sm:$0xff]
    %v853 = vld [vmem:[#allocation8 + $0xfc0] sm:$0xff]
    %v854 = vld [vmem:[#allocation8 + $0xfc8] sm:$0xff]
    %v855 = vld [vmem:[#allocation8 + $0xfd0] sm:$0xff]
    %v856 = vld [vmem:[#allocation8 + $0xfd8] sm:$0xff]
    %v857 = vld [vmem:[#allocation8 + $0xfe0] sm:$0xff]
    %v858 = vld [vmem:[#allocation8 + $0xfe8] sm:$0xff]
    %v859 = vld [vmem:[#allocation8 + $0xff0] sm:$0xff]
    %v860 = vld [vmem:[#allocation8 + $0xff8] sm:$0xff]
    %v861 = vld [vmem:[#allocation10] sm:$0xff]
    %v863 = vlaneseq
    %v864 = vshrl.u32 %v863, 7
    %v865 = vsub.s32 0, %v864
    %v866 = vrot.slane %v861, %v865
    %v867 = vlaneseq
    %v868 = vshrl.u32 %v867, 7
    %v869 = vsub.s32 1, %v868
    %v870 = vrot.slane %v861, %v869
    %v871 = vlaneseq
    %v872 = vshrl.u32 %v871, 7
    %v873 = vsub.s32 2, %v872
    %v874 = vrot.slane %v861, %v873
    %v875 = vlaneseq
    %v876 = vshrl.u32 %v875, 7
    %v877 = vsub.s32 3, %v876
    %v878 = vrot.slane %v861, %v877
    %v879 = vlaneseq
    %v880 = vshrl.u32 %v879, 7
    %v881 = vsub.s32 4, %v880
    %v882 = vrot.slane %v861, %v881
    %v883 = vlaneseq
    %v884 = vshrl.u32 %v883, 7
    %v885 = vsub.s32 5, %v884
    %v886 = vrot.slane %v861, %v885
    %v887 = vlaneseq
    %v888 = vshrl.u32 %v887, 7
    %v889 = vsub.s32 6, %v888
    %v890 = vrot.slane %v861, %v889
    %v891 = vlaneseq
    %v892 = vshrl.u32 %v891, 7
    %v893 = vsub.s32 7, %v892
    %v894 = vrot.slane %v861, %v893
    %v1415 = vunpack.c.l.b16 %v349
    %v1416 = vunpack.c.h.b16 %v349
    %v1417 = vunpack.c.l.b16 %v350
    %v1418 = vunpack.c.h.b16 %v350
    %v1419 = vunpack.c.l.b16 %v351
    %v1420 = vunpack.c.h.b16 %v351
    %v1421 = vunpack.c.l.b16 %v352
    %v1422 = vunpack.c.h.b16 %v352
    %v1423 = vunpack.c.l.b16 %v353
    %v1424 = vunpack.c.h.b16 %v353
    %v1425 = vunpack.c.l.b16 %v354
    %v1426 = vunpack.c.h.b16 %v354
    %v1427 = vunpack.c.l.b16 %v355
    %v1428 = vunpack.c.h.b16 %v355
    %v1429 = vunpack.c.l.b16 %v356
    %v1430 = vunpack.c.h.b16 %v356
    %v1431 = vunpack.c.l.b16 %v357
    %v1432 = vunpack.c.h.b16 %v357
    %v1433 = vunpack.c.l.b16 %v358
    %v1434 = vunpack.c.h.b16 %v358
    %v1435 = vunpack.c.l.b16 %v359
    %v1436 = vunpack.c.h.b16 %v359
    %v1437 = vunpack.c.l.b16 %v360
    %v1438 = vunpack.c.h.b16 %v360
    %v1439 = vunpack.c.l.b16 %v361
    %v1440 = vunpack.c.h.b16 %v361
    %v1441 = vunpack.c.l.b16 %v362
    %v1442 = vunpack.c.h.b16 %v362
    %v1443 = vunpack.c.l.b16 %v363
    %v1444 = vunpack.c.h.b16 %v363
    %v1445 = vunpack.c.l.b16 %v364
    %v1446 = vunpack.c.h.b16 %v364
    %v1447 = vunpack.c.l.b16 %v365
    %v1448 = vunpack.c.h.b16 %v365
    %v1449 = vunpack.c.l.b16 %v366
    %v1450 = vunpack.c.h.b16 %v366
    %v1451 = vunpack.c.l.b16 %v367
    %v1452 = vunpack.c.h.b16 %v367
    %v1453 = vunpack.c.l.b16 %v368
    %v1454 = vunpack.c.h.b16 %v368
    %v1455 = vunpack.c.l.b16 %v369
    %v1456 = vunpack.c.h.b16 %v369
    %v1457 = vunpack.c.l.b16 %v370
    %v1458 = vunpack.c.h.b16 %v370
    %v1459 = vunpack.c.l.b16 %v371
    %v1460 = vunpack.c.h.b16 %v371
    %v1461 = vunpack.c.l.b16 %v372
    %v1462 = vunpack.c.h.b16 %v372
    %v1463 = vunpack.c.l.b16 %v373
    %v1464 = vunpack.c.h.b16 %v373
    %v1465 = vunpack.c.l.b16 %v374
    %v1466 = vunpack.c.h.b16 %v374
    %v1467 = vunpack.c.l.b16 %v375
    %v1468 = vunpack.c.h.b16 %v375
    %v1469 = vunpack.c.l.b16 %v376
    %v1470 = vunpack.c.h.b16 %v376
    %v1471 = vunpack.c.l.b16 %v377
    %v1472 = vunpack.c.h.b16 %v377
    %v1473 = vunpack.c.l.b16 %v378
    %v1474 = vunpack.c.h.b16 %v378
    %v1475 = vunpack.c.l.b16 %v379
    %v1476 = vunpack.c.h.b16 %v379
    %v1477 = vunpack.c.l.b16 %v380
    %v1478 = vunpack.c.h.b16 %v380
    %v1479 = vunpack.c.l.b16 %v381
    %v1480 = vunpack.c.h.b16 %v381
    %v1481 = vunpack.c.l.b16 %v382
    %v1482 = vunpack.c.h.b16 %v382
    %v1483 = vunpack.c.l.b16 %v383
    %v1484 = vunpack.c.h.b16 %v383
    %v1485 = vunpack.c.l.b16 %v384
    %v1486 = vunpack.c.h.b16 %v384
    %v1487 = vunpack.c.l.b16 %v385
    %v1488 = vunpack.c.h.b16 %v385
    %v1489 = vunpack.c.l.b16 %v386
    %v1490 = vunpack.c.h.b16 %v386
    %v1491 = vunpack.c.l.b16 %v387
    %v1492 = vunpack.c.h.b16 %v387
    %v1493 = vunpack.c.l.b16 %v388
    %v1494 = vunpack.c.h.b16 %v388
    %v1495 = vunpack.c.l.b16 %v389
    %v1496 = vunpack.c.h.b16 %v389
    %v1497 = vunpack.c.l.b16 %v390
    %v1498 = vunpack.c.h.b16 %v390
    %v1499 = vunpack.c.l.b16 %v391
    %v1500 = vunpack.c.h.b16 %v391
    %v1501 = vunpack.c.l.b16 %v392
    %v1502 = vunpack.c.h.b16 %v392
    %v1503 = vunpack.c.l.b16 %v393
    %v1504 = vunpack.c.h.b16 %v393
    %v1505 = vunpack.c.l.b16 %v394
    %v1506 = vunpack.c.h.b16 %v394
    %v1507 = vunpack.c.l.b16 %v395
    %v1508 = vunpack.c.h.b16 %v395
    %v1509 = vunpack.c.l.b16 %v396
    %v1510 = vunpack.c.h.b16 %v396
    %v1511 = vunpack.c.l.b16 %v397
    %v1512 = vunpack.c.h.b16 %v397
    %v1513 = vunpack.c.l.b16 %v398
    %v1514 = vunpack.c.h.b16 %v398
    %v1515 = vunpack.c.l.b16 %v399
    %v1516 = vunpack.c.h.b16 %v399
    %v1517 = vunpack.c.l.b16 %v400
    %v1518 = vunpack.c.h.b16 %v400
    %v1519 = vunpack.c.l.b16 %v401
    %v1520 = vunpack.c.h.b16 %v401
    %v1521 = vunpack.c.l.b16 %v402
    %v1522 = vunpack.c.h.b16 %v402
    %v1523 = vunpack.c.l.b16 %v403
    %v1524 = vunpack.c.h.b16 %v403
    %v1525 = vunpack.c.l.b16 %v404
    %v1526 = vunpack.c.h.b16 %v404
    %v1527 = vunpack.c.l.b16 %v405
    %v1528 = vunpack.c.h.b16 %v405
    %v1529 = vunpack.c.l.b16 %v406
    %v1530 = vunpack.c.h.b16 %v406
    %v1531 = vunpack.c.l.b16 %v407
    %v1532 = vunpack.c.h.b16 %v407
    %v1533 = vunpack.c.l.b16 %v408
    %v1534 = vunpack.c.h.b16 %v408
    %v1535 = vunpack.c.l.b16 %v409
    %v1536 = vunpack.c.h.b16 %v409
    %v1537 = vunpack.c.l.b16 %v410
    %v1538 = vunpack.c.h.b16 %v410
    %v1539 = vunpack.c.l.b16 %v411
    %v1540 = vunpack.c.h.b16 %v411
    %v1541 = vunpack.c.l.b16 %v412
    %v1542 = vunpack.c.h.b16 %v412
    %v1543 = vunpack.c.l.b16 %v413
    %v1544 = vunpack.c.h.b16 %v413
    %v1545 = vunpack.c.l.b16 %v414
    %v1546 = vunpack.c.h.b16 %v414
    %v1547 = vunpack.c.l.b16 %v415
    %v1548 = vunpack.c.h.b16 %v415
    %v1549 = vunpack.c.l.b16 %v416
    %v1550 = vunpack.c.h.b16 %v416
    %v1551 = vunpack.c.l.b16 %v417
    %v1552 = vunpack.c.h.b16 %v417
    %v1553 = vunpack.c.l.b16 %v418
    %v1554 = vunpack.c.h.b16 %v418
    %v1555 = vunpack.c.l.b16 %v419
    %v1556 = vunpack.c.h.b16 %v419
    %v1557 = vunpack.c.l.b16 %v420
    %v1558 = vunpack.c.h.b16 %v420
    %v1559 = vunpack.c.l.b16 %v421
    %v1560 = vunpack.c.h.b16 %v421
    %v1561 = vunpack.c.l.b16 %v422
    %v1562 = vunpack.c.h.b16 %v422
    %v1563 = vunpack.c.l.b16 %v423
    %v1564 = vunpack.c.h.b16 %v423
    %v1565 = vunpack.c.l.b16 %v424
    %v1566 = vunpack.c.h.b16 %v424
    %v1567 = vunpack.c.l.b16 %v425
    %v1568 = vunpack.c.h.b16 %v425
    %v1569 = vunpack.c.l.b16 %v426
    %v1570 = vunpack.c.h.b16 %v426
    %v1571 = vunpack.c.l.b16 %v427
    %v1572 = vunpack.c.h.b16 %v427
    %v1573 = vunpack.c.l.b16 %v428
    %v1574 = vunpack.c.h.b16 %v428
    %v1575 = vunpack.c.l.b16 %v429
    %v1576 = vunpack.c.h.b16 %v429
    %v1577 = vunpack.c.l.b16 %v430
    %v1578 = vunpack.c.h.b16 %v430
    %v1579 = vunpack.c.l.b16 %v431
    %v1580 = vunpack.c.h.b16 %v431
    %v1581 = vunpack.c.l.b16 %v432
    %v1582 = vunpack.c.h.b16 %v432
    %v1583 = vunpack.c.l.b16 %v433
    %v1584 = vunpack.c.h.b16 %v433
    %v1585 = vunpack.c.l.b16 %v434
    %v1586 = vunpack.c.h.b16 %v434
    %v1587 = vunpack.c.l.b16 %v435
    %v1588 = vunpack.c.h.b16 %v435
    %v1589 = vunpack.c.l.b16 %v436
    %v1590 = vunpack.c.h.b16 %v436
    %v1591 = vunpack.c.l.b16 %v437
    %v1592 = vunpack.c.h.b16 %v437
    %v1593 = vunpack.c.l.b16 %v438
    %v1594 = vunpack.c.h.b16 %v438
    %v1595 = vunpack.c.l.b16 %v439
    %v1596 = vunpack.c.h.b16 %v439
    %v1597 = vunpack.c.l.b16 %v440
    %v1598 = vunpack.c.h.b16 %v440
    %v1599 = vunpack.c.l.b16 %v441
    %v1600 = vunpack.c.h.b16 %v441
    %v1601 = vunpack.c.l.b16 %v442
    %v1602 = vunpack.c.h.b16 %v442
    %v1603 = vunpack.c.l.b16 %v443
    %v1604 = vunpack.c.h.b16 %v443
    %v1605 = vunpack.c.l.b16 %v444
    %v1606 = vunpack.c.h.b16 %v444
    %v1607 = vunpack.c.l.b16 %v445
    %v1608 = vunpack.c.h.b16 %v445
    %v1609 = vunpack.c.l.b16 %v446
    %v1610 = vunpack.c.h.b16 %v446
    %v1611 = vunpack.c.l.b16 %v447
    %v1612 = vunpack.c.h.b16 %v447
    %v1613 = vunpack.c.l.b16 %v448
    %v1614 = vunpack.c.h.b16 %v448
    %v1615 = vunpack.c.l.b16 %v449
    %v1616 = vunpack.c.h.b16 %v449
    %v1617 = vunpack.c.l.b16 %v450
    %v1618 = vunpack.c.h.b16 %v450
    %v1619 = vunpack.c.l.b16 %v451
    %v1620 = vunpack.c.h.b16 %v451
    %v1621 = vunpack.c.l.b16 %v452
    %v1622 = vunpack.c.h.b16 %v452
    %v1623 = vunpack.c.l.b16 %v453
    %v1624 = vunpack.c.h.b16 %v453
    %v1625 = vunpack.c.l.b16 %v454
    %v1626 = vunpack.c.h.b16 %v454
    %v1627 = vunpack.c.l.b16 %v455
    %v1628 = vunpack.c.h.b16 %v455
    %v1629 = vunpack.c.l.b16 %v456
    %v1630 = vunpack.c.h.b16 %v456
    %v1631 = vunpack.c.l.b16 %v457
    %v1632 = vunpack.c.h.b16 %v457
    %v1633 = vunpack.c.l.b16 %v458
    %v1634 = vunpack.c.h.b16 %v458
    %v1635 = vunpack.c.l.b16 %v459
    %v1636 = vunpack.c.h.b16 %v459
    %v1637 = vunpack.c.l.b16 %v460
    %v1638 = vunpack.c.h.b16 %v460
    %v1639 = vunpack.c.l.b16 %v461
    %v1640 = vunpack.c.h.b16 %v461
    %v1641 = vunpack.c.l.b16 %v462
    %v1642 = vunpack.c.h.b16 %v462
    %v1643 = vunpack.c.l.b16 %v463
    %v1644 = vunpack.c.h.b16 %v463
    %v1645 = vunpack.c.l.b16 %v464
    %v1646 = vunpack.c.h.b16 %v464
    %v1647 = vunpack.c.l.b16 %v465
    %v1648 = vunpack.c.h.b16 %v465
    %v1649 = vunpack.c.l.b16 %v466
    %v1650 = vunpack.c.h.b16 %v466
    %v1651 = vunpack.c.l.b16 %v467
    %v1652 = vunpack.c.h.b16 %v467
    %v1653 = vunpack.c.l.b16 %v468
    %v1654 = vunpack.c.h.b16 %v468
    %v1655 = vunpack.c.l.b16 %v469
    %v1656 = vunpack.c.h.b16 %v469
    %v1657 = vunpack.c.l.b16 %v470
    %v1658 = vunpack.c.h.b16 %v470
    %v1659 = vunpack.c.l.b16 %v471
    %v1660 = vunpack.c.h.b16 %v471
    %v1661 = vunpack.c.l.b16 %v472
    %v1662 = vunpack.c.h.b16 %v472
    %v1663 = vunpack.c.l.b16 %v473
    %v1664 = vunpack.c.h.b16 %v473
    %v1665 = vunpack.c.l.b16 %v474
    %v1666 = vunpack.c.h.b16 %v474
    %v1667 = vunpack.c.l.b16 %v475
    %v1668 = vunpack.c.h.b16 %v475
    %v1669 = vunpack.c.l.b16 %v476
    %v1670 = vunpack.c.h.b16 %v476
    %v1671 = vunpack.c.l.b16 %v477
    %v1672 = vunpack.c.h.b16 %v477
    %v1673 = vunpack.c.l.b16 %v478
    %v1674 = vunpack.c.h.b16 %v478
    %v1675 = vunpack.c.l.b16 %v479
    %v1676 = vunpack.c.h.b16 %v479
    %v1677 = vunpack.c.l.b16 %v480
    %v1678 = vunpack.c.h.b16 %v480
    %v1679 = vunpack.c.l.b16 %v481
    %v1680 = vunpack.c.h.b16 %v481
    %v1681 = vunpack.c.l.b16 %v482
    %v1682 = vunpack.c.h.b16 %v482
    %v1683 = vunpack.c.l.b16 %v483
    %v1684 = vunpack.c.h.b16 %v483
    %v1685 = vunpack.c.l.b16 %v484
    %v1686 = vunpack.c.h.b16 %v484
    %v1687 = vunpack.c.l.b16 %v485
    %v1688 = vunpack.c.h.b16 %v485
    %v1689 = vunpack.c.l.b16 %v486
    %v1690 = vunpack.c.h.b16 %v486
    %v1691 = vunpack.c.l.b16 %v487
    %v1692 = vunpack.c.h.b16 %v487
    %v1693 = vunpack.c.l.b16 %v488
    %v1694 = vunpack.c.h.b16 %v488
    %v1695 = vunpack.c.l.b16 %v489
    %v1696 = vunpack.c.h.b16 %v489
    %v1697 = vunpack.c.l.b16 %v490
    %v1698 = vunpack.c.h.b16 %v490
    %v1699 = vunpack.c.l.b16 %v491
    %v1700 = vunpack.c.h.b16 %v491
    %v1701 = vunpack.c.l.b16 %v492
    %v1702 = vunpack.c.h.b16 %v492
    %v1703 = vunpack.c.l.b16 %v493
    %v1704 = vunpack.c.h.b16 %v493
    %v1705 = vunpack.c.l.b16 %v494
    %v1706 = vunpack.c.h.b16 %v494
    %v1707 = vunpack.c.l.b16 %v495
    %v1708 = vunpack.c.h.b16 %v495
    %v1709 = vunpack.c.l.b16 %v496
    %v1710 = vunpack.c.h.b16 %v496
    %v1711 = vunpack.c.l.b16 %v497
    %v1712 = vunpack.c.h.b16 %v497
    %v1713 = vunpack.c.l.b16 %v498
    %v1714 = vunpack.c.h.b16 %v498
    %v1715 = vunpack.c.l.b16 %v499
    %v1716 = vunpack.c.h.b16 %v499
    %v1717 = vunpack.c.l.b16 %v500
    %v1718 = vunpack.c.h.b16 %v500
    %v1719 = vunpack.c.l.b16 %v501
    %v1720 = vunpack.c.h.b16 %v501
    %v1721 = vunpack.c.l.b16 %v502
    %v1722 = vunpack.c.h.b16 %v502
    %v1723 = vunpack.c.l.b16 %v503
    %v1724 = vunpack.c.h.b16 %v503
    %v1725 = vunpack.c.l.b16 %v504
    %v1726 = vunpack.c.h.b16 %v504
    %v1727 = vunpack.c.l.b16 %v505
    %v1728 = vunpack.c.h.b16 %v505
    %v1729 = vunpack.c.l.b16 %v506
    %v1730 = vunpack.c.h.b16 %v506
    %v1731 = vunpack.c.l.b16 %v507
    %v1732 = vunpack.c.h.b16 %v507
    %v1733 = vunpack.c.l.b16 %v508
    %v1734 = vunpack.c.h.b16 %v508
    %v1735 = vunpack.c.l.b16 %v509
    %v1736 = vunpack.c.h.b16 %v509
    %v1737 = vunpack.c.l.b16 %v510
    %v1738 = vunpack.c.h.b16 %v510
    %v1739 = vunpack.c.l.b16 %v511
    %v1740 = vunpack.c.h.b16 %v511
    %v1741 = vunpack.c.l.b16 %v512
    %v1742 = vunpack.c.h.b16 %v512
    %v1743 = vunpack.c.l.b16 %v513
    %v1744 = vunpack.c.h.b16 %v513
    %v1745 = vunpack.c.l.b16 %v514
    %v1746 = vunpack.c.h.b16 %v514
    %v1747 = vunpack.c.l.b16 %v515
    %v1748 = vunpack.c.h.b16 %v515
    %v1749 = vunpack.c.l.b16 %v516
    %v1750 = vunpack.c.h.b16 %v516
    %v1751 = vunpack.c.l.b16 %v517
    %v1752 = vunpack.c.h.b16 %v517
    %v1753 = vunpack.c.l.b16 %v518
    %v1754 = vunpack.c.h.b16 %v518
    %v1755 = vunpack.c.l.b16 %v519
    %v1756 = vunpack.c.h.b16 %v519
    %v1757 = vunpack.c.l.b16 %v520
    %v1758 = vunpack.c.h.b16 %v520
    %v1759 = vunpack.c.l.b16 %v521
    %v1760 = vunpack.c.h.b16 %v521
    %v1761 = vunpack.c.l.b16 %v522
    %v1762 = vunpack.c.h.b16 %v522
    %v1763 = vunpack.c.l.b16 %v523
    %v1764 = vunpack.c.h.b16 %v523
    %v1765 = vunpack.c.l.b16 %v524
    %v1766 = vunpack.c.h.b16 %v524
    %v1767 = vunpack.c.l.b16 %v525
    %v1768 = vunpack.c.h.b16 %v525
    %v1769 = vunpack.c.l.b16 %v526
    %v1770 = vunpack.c.h.b16 %v526
    %v1771 = vunpack.c.l.b16 %v527
    %v1772 = vunpack.c.h.b16 %v527
    %v1773 = vunpack.c.l.b16 %v528
    %v1774 = vunpack.c.h.b16 %v528
    %v1775 = vunpack.c.l.b16 %v529
    %v1776 = vunpack.c.h.b16 %v529
    %v1777 = vunpack.c.l.b16 %v530
    %v1778 = vunpack.c.h.b16 %v530
    %v1779 = vunpack.c.l.b16 %v531
    %v1780 = vunpack.c.h.b16 %v531
    %v1781 = vunpack.c.l.b16 %v532
    %v1782 = vunpack.c.h.b16 %v532
    %v1783 = vunpack.c.l.b16 %v533
    %v1784 = vunpack.c.h.b16 %v533
    %v1785 = vunpack.c.l.b16 %v534
    %v1786 = vunpack.c.h.b16 %v534
    %v1787 = vunpack.c.l.b16 %v535
    %v1788 = vunpack.c.h.b16 %v535
    %v1789 = vunpack.c.l.b16 %v536
    %v1790 = vunpack.c.h.b16 %v536
    %v1791 = vunpack.c.l.b16 %v537
    %v1792 = vunpack.c.h.b16 %v537
    %v1793 = vunpack.c.l.b16 %v538
    %v1794 = vunpack.c.h.b16 %v538
    %v1795 = vunpack.c.l.b16 %v539
    %v1796 = vunpack.c.h.b16 %v539
    %v1797 = vunpack.c.l.b16 %v540
    %v1798 = vunpack.c.h.b16 %v540
    %v1799 = vunpack.c.l.b16 %v541
    %v1800 = vunpack.c.h.b16 %v541
    %v1801 = vunpack.c.l.b16 %v542
    %v1802 = vunpack.c.h.b16 %v542
    %v1803 = vunpack.c.l.b16 %v543
    %v1804 = vunpack.c.h.b16 %v543
    %v1805 = vunpack.c.l.b16 %v544
    %v1806 = vunpack.c.h.b16 %v544
    %v1807 = vunpack.c.l.b16 %v545
    %v1808 = vunpack.c.h.b16 %v545
    %v1809 = vunpack.c.l.b16 %v546
    %v1810 = vunpack.c.h.b16 %v546
    %v1811 = vunpack.c.l.b16 %v547
    %v1812 = vunpack.c.h.b16 %v547
    %v1813 = vunpack.c.l.b16 %v548
    %v1814 = vunpack.c.h.b16 %v548
    %v1815 = vunpack.c.l.b16 %v549
    %v1816 = vunpack.c.h.b16 %v549
    %v1817 = vunpack.c.l.b16 %v550
    %v1818 = vunpack.c.h.b16 %v550
    %v1819 = vunpack.c.l.b16 %v551
    %v1820 = vunpack.c.h.b16 %v551
    %v1821 = vunpack.c.l.b16 %v552
    %v1822 = vunpack.c.h.b16 %v552
    %v1823 = vunpack.c.l.b16 %v553
    %v1824 = vunpack.c.h.b16 %v553
    %v1825 = vunpack.c.l.b16 %v554
    %v1826 = vunpack.c.h.b16 %v554
    %v1827 = vunpack.c.l.b16 %v555
    %v1828 = vunpack.c.h.b16 %v555
    %v1829 = vunpack.c.l.b16 %v556
    %v1830 = vunpack.c.h.b16 %v556
    %v1831 = vunpack.c.l.b16 %v557
    %v1832 = vunpack.c.h.b16 %v557
    %v1833 = vunpack.c.l.b16 %v558
    %v1834 = vunpack.c.h.b16 %v558
    %v1835 = vunpack.c.l.b16 %v559
    %v1836 = vunpack.c.h.b16 %v559
    %v1837 = vunpack.c.l.b16 %v560
    %v1838 = vunpack.c.h.b16 %v560
    %v1839 = vunpack.c.l.b16 %v561
    %v1840 = vunpack.c.h.b16 %v561
    %v1841 = vunpack.c.l.b16 %v562
    %v1842 = vunpack.c.h.b16 %v562
    %v1843 = vunpack.c.l.b16 %v563
    %v1844 = vunpack.c.h.b16 %v563
    %v1845 = vunpack.c.l.b16 %v564
    %v1846 = vunpack.c.h.b16 %v564
    %v1847 = vunpack.c.l.b16 %v565
    %v1848 = vunpack.c.h.b16 %v565
    %v1849 = vunpack.c.l.b16 %v566
    %v1850 = vunpack.c.h.b16 %v566
    %v1851 = vunpack.c.l.b16 %v567
    %v1852 = vunpack.c.h.b16 %v567
    %v1853 = vunpack.c.l.b16 %v568
    %v1854 = vunpack.c.h.b16 %v568
    %v1855 = vunpack.c.l.b16 %v569
    %v1856 = vunpack.c.h.b16 %v569
    %v1857 = vunpack.c.l.b16 %v570
    %v1858 = vunpack.c.h.b16 %v570
    %v1859 = vunpack.c.l.b16 %v571
    %v1860 = vunpack.c.h.b16 %v571
    %v1861 = vunpack.c.l.b16 %v572
    %v1862 = vunpack.c.h.b16 %v572
    %v1863 = vunpack.c.l.b16 %v573
    %v1864 = vunpack.c.h.b16 %v573
    %v1865 = vunpack.c.l.b16 %v574
    %v1866 = vunpack.c.h.b16 %v574
    %v1867 = vunpack.c.l.b16 %v575
    %v1868 = vunpack.c.h.b16 %v575
    %v1869 = vunpack.c.l.b16 %v576
    %v1870 = vunpack.c.h.b16 %v576
    %v1871 = vunpack.c.l.b16 %v577
    %v1872 = vunpack.c.h.b16 %v577
    %v1873 = vunpack.c.l.b16 %v578
    %v1874 = vunpack.c.h.b16 %v578
    %v1875 = vunpack.c.l.b16 %v579
    %v1876 = vunpack.c.h.b16 %v579
    %v1877 = vunpack.c.l.b16 %v580
    %v1878 = vunpack.c.h.b16 %v580
    %v1879 = vunpack.c.l.b16 %v581
    %v1880 = vunpack.c.h.b16 %v581
    %v1881 = vunpack.c.l.b16 %v582
    %v1882 = vunpack.c.h.b16 %v582
    %v1883 = vunpack.c.l.b16 %v583
    %v1884 = vunpack.c.h.b16 %v583
    %v1885 = vunpack.c.l.b16 %v584
    %v1886 = vunpack.c.h.b16 %v584
    %v1887 = vunpack.c.l.b16 %v585
    %v1888 = vunpack.c.h.b16 %v585
    %v1889 = vunpack.c.l.b16 %v586
    %v1890 = vunpack.c.h.b16 %v586
    %v1891 = vunpack.c.l.b16 %v587
    %v1892 = vunpack.c.h.b16 %v587
    %v1893 = vunpack.c.l.b16 %v588
    %v1894 = vunpack.c.h.b16 %v588
    %v1895 = vunpack.c.l.b16 %v589
    %v1896 = vunpack.c.h.b16 %v589
    %v1897 = vunpack.c.l.b16 %v590
    %v1898 = vunpack.c.h.b16 %v590
    %v1899 = vunpack.c.l.b16 %v591
    %v1900 = vunpack.c.h.b16 %v591
    %v1901 = vunpack.c.l.b16 %v592
    %v1902 = vunpack.c.h.b16 %v592
    %v1903 = vunpack.c.l.b16 %v593
    %v1904 = vunpack.c.h.b16 %v593
    %v1905 = vunpack.c.l.b16 %v594
    %v1906 = vunpack.c.h.b16 %v594
    %v1907 = vunpack.c.l.b16 %v595
    %v1908 = vunpack.c.h.b16 %v595
    %v1909 = vunpack.c.l.b16 %v596
    %v1910 = vunpack.c.h.b16 %v596
    %v1911 = vunpack.c.l.b16 %v597
    %v1912 = vunpack.c.h.b16 %v597
    %v1913 = vunpack.c.l.b16 %v598
    %v1914 = vunpack.c.h.b16 %v598
    %v1915 = vunpack.c.l.b16 %v599
    %v1916 = vunpack.c.h.b16 %v599
    %v1917 = vunpack.c.l.b16 %v600
    %v1918 = vunpack.c.h.b16 %v600
    %v1919 = vunpack.c.l.b16 %v601
    %v1920 = vunpack.c.h.b16 %v601
    %v1921 = vunpack.c.l.b16 %v602
    %v1922 = vunpack.c.h.b16 %v602
    %v1923 = vunpack.c.l.b16 %v603
    %v1924 = vunpack.c.h.b16 %v603
    %v1925 = vunpack.c.l.b16 %v604
    %v1926 = vunpack.c.h.b16 %v604
    %v1927 = vunpack.c.l.b16 %v605
    %v1928 = vunpack.c.h.b16 %v605
    %v1929 = vunpack.c.l.b16 %v606
    %v1930 = vunpack.c.h.b16 %v606
    %v1931 = vunpack.c.l.b16 %v607
    %v1932 = vunpack.c.h.b16 %v607
    %v1933 = vunpack.c.l.b16 %v608
    %v1934 = vunpack.c.h.b16 %v608
    %v1935 = vunpack.c.l.b16 %v609
    %v1936 = vunpack.c.h.b16 %v609
    %v1937 = vunpack.c.l.b16 %v610
    %v1938 = vunpack.c.h.b16 %v610
    %v1939 = vunpack.c.l.b16 %v611
    %v1940 = vunpack.c.h.b16 %v611
    %v1941 = vunpack.c.l.b16 %v612
    %v1942 = vunpack.c.h.b16 %v612
    %v1943 = vunpack.c.l.b16 %v613
    %v1944 = vunpack.c.h.b16 %v613
    %v1945 = vunpack.c.l.b16 %v614
    %v1946 = vunpack.c.h.b16 %v614
    %v1947 = vunpack.c.l.b16 %v615
    %v1948 = vunpack.c.h.b16 %v615
    %v1949 = vunpack.c.l.b16 %v616
    %v1950 = vunpack.c.h.b16 %v616
    %v1951 = vunpack.c.l.b16 %v617
    %v1952 = vunpack.c.h.b16 %v617
    %v1953 = vunpack.c.l.b16 %v618
    %v1954 = vunpack.c.h.b16 %v618
    %v1955 = vunpack.c.l.b16 %v619
    %v1956 = vunpack.c.h.b16 %v619
    %v1957 = vunpack.c.l.b16 %v620
    %v1958 = vunpack.c.h.b16 %v620
    %v1959 = vunpack.c.l.b16 %v621
    %v1960 = vunpack.c.h.b16 %v621
    %v1961 = vunpack.c.l.b16 %v622
    %v1962 = vunpack.c.h.b16 %v622
    %v1963 = vunpack.c.l.b16 %v623
    %v1964 = vunpack.c.h.b16 %v623
    %v1965 = vunpack.c.l.b16 %v624
    %v1966 = vunpack.c.h.b16 %v624
    %v1967 = vunpack.c.l.b16 %v625
    %v1968 = vunpack.c.h.b16 %v625
    %v1969 = vunpack.c.l.b16 %v626
    %v1970 = vunpack.c.h.b16 %v626
    %v1971 = vunpack.c.l.b16 %v627
    %v1972 = vunpack.c.h.b16 %v627
    %v1973 = vunpack.c.l.b16 %v628
    %v1974 = vunpack.c.h.b16 %v628
    %v1975 = vunpack.c.l.b16 %v629
    %v1976 = vunpack.c.h.b16 %v629
    %v1977 = vunpack.c.l.b16 %v630
    %v1978 = vunpack.c.h.b16 %v630
    %v1979 = vunpack.c.l.b16 %v631
    %v1980 = vunpack.c.h.b16 %v631
    %v1981 = vunpack.c.l.b16 %v632
    %v1982 = vunpack.c.h.b16 %v632
    %v1983 = vunpack.c.l.b16 %v633
    %v1984 = vunpack.c.h.b16 %v633
    %v1985 = vunpack.c.l.b16 %v634
    %v1986 = vunpack.c.h.b16 %v634
    %v1987 = vunpack.c.l.b16 %v635
    %v1988 = vunpack.c.h.b16 %v635
    %v1989 = vunpack.c.l.b16 %v636
    %v1990 = vunpack.c.h.b16 %v636
    %v1991 = vunpack.c.l.b16 %v637
    %v1992 = vunpack.c.h.b16 %v637
    %v1993 = vunpack.c.l.b16 %v638
    %v1994 = vunpack.c.h.b16 %v638
    %v1995 = vunpack.c.l.b16 %v639
    %v1996 = vunpack.c.h.b16 %v639
    %v1997 = vunpack.c.l.b16 %v640
    %v1998 = vunpack.c.h.b16 %v640
    %v1999 = vunpack.c.l.b16 %v641
    %v2000 = vunpack.c.h.b16 %v641
    %v2001 = vunpack.c.l.b16 %v642
    %v2002 = vunpack.c.h.b16 %v642
    %v2003 = vunpack.c.l.b16 %v643
    %v2004 = vunpack.c.h.b16 %v643
    %v2005 = vunpack.c.l.b16 %v644
    %v2006 = vunpack.c.h.b16 %v644
    %v2007 = vunpack.c.l.b16 %v645
    %v2008 = vunpack.c.h.b16 %v645
    %v2009 = vunpack.c.l.b16 %v646
    %v2010 = vunpack.c.h.b16 %v646
    %v2011 = vunpack.c.l.b16 %v647
    %v2012 = vunpack.c.h.b16 %v647
    %v2013 = vunpack.c.l.b16 %v648
    %v2014 = vunpack.c.h.b16 %v648
    %v2015 = vunpack.c.l.b16 %v649
    %v2016 = vunpack.c.h.b16 %v649
    %v2017 = vunpack.c.l.b16 %v650
    %v2018 = vunpack.c.h.b16 %v650
    %v2019 = vunpack.c.l.b16 %v651
    %v2020 = vunpack.c.h.b16 %v651
    %v2021 = vunpack.c.l.b16 %v652
    %v2022 = vunpack.c.h.b16 %v652
    %v2023 = vunpack.c.l.b16 %v653
    %v2024 = vunpack.c.h.b16 %v653
    %v2025 = vunpack.c.l.b16 %v654
    %v2026 = vunpack.c.h.b16 %v654
    %v2027 = vunpack.c.l.b16 %v655
    %v2028 = vunpack.c.h.b16 %v655
    %v2029 = vunpack.c.l.b16 %v656
    %v2030 = vunpack.c.h.b16 %v656
    %v2031 = vunpack.c.l.b16 %v657
    %v2032 = vunpack.c.h.b16 %v657
    %v2033 = vunpack.c.l.b16 %v658
    %v2034 = vunpack.c.h.b16 %v658
    %v2035 = vunpack.c.l.b16 %v659
    %v2036 = vunpack.c.h.b16 %v659
    %v2037 = vunpack.c.l.b16 %v660
    %v2038 = vunpack.c.h.b16 %v660
    %v2039 = vunpack.c.l.b16 %v661
    %v2040 = vunpack.c.h.b16 %v661
    %v2041 = vunpack.c.l.b16 %v662
    %v2042 = vunpack.c.h.b16 %v662
    %v2043 = vunpack.c.l.b16 %v663
    %v2044 = vunpack.c.h.b16 %v663
    %v2045 = vunpack.c.l.b16 %v664
    %v2046 = vunpack.c.h.b16 %v664
    %v2047 = vunpack.c.l.b16 %v665
    %v2048 = vunpack.c.h.b16 %v665
    %v2049 = vunpack.c.l.b16 %v666
    %v2050 = vunpack.c.h.b16 %v666
    %v2051 = vunpack.c.l.b16 %v667
    %v2052 = vunpack.c.h.b16 %v667
    %v2053 = vunpack.c.l.b16 %v668
    %v2054 = vunpack.c.h.b16 %v668
    %v2055 = vunpack.c.l.b16 %v669
    %v2056 = vunpack.c.h.b16 %v669
    %v2057 = vunpack.c.l.b16 %v670
    %v2058 = vunpack.c.h.b16 %v670
    %v2059 = vunpack.c.l.b16 %v671
    %v2060 = vunpack.c.h.b16 %v671
    %v2061 = vunpack.c.l.b16 %v672
    %v2062 = vunpack.c.h.b16 %v672
    %v2063 = vunpack.c.l.b16 %v673
    %v2064 = vunpack.c.h.b16 %v673
    %v2065 = vunpack.c.l.b16 %v674
    %v2066 = vunpack.c.h.b16 %v674
    %v2067 = vunpack.c.l.b16 %v675
    %v2068 = vunpack.c.h.b16 %v675
    %v2069 = vunpack.c.l.b16 %v676
    %v2070 = vunpack.c.h.b16 %v676
    %v2071 = vunpack.c.l.b16 %v677
    %v2072 = vunpack.c.h.b16 %v677
    %v2073 = vunpack.c.l.b16 %v678
    %v2074 = vunpack.c.h.b16 %v678
    %v2075 = vunpack.c.l.b16 %v679
    %v2076 = vunpack.c.h.b16 %v679
    %v2077 = vunpack.c.l.b16 %v680
    %v2078 = vunpack.c.h.b16 %v680
    %v2079 = vunpack.c.l.b16 %v681
    %v2080 = vunpack.c.h.b16 %v681
    %v2081 = vunpack.c.l.b16 %v682
    %v2082 = vunpack.c.h.b16 %v682
    %v2083 = vunpack.c.l.b16 %v683
    %v2084 = vunpack.c.h.b16 %v683
    %v2085 = vunpack.c.l.b16 %v684
    %v2086 = vunpack.c.h.b16 %v684
    %v2087 = vunpack.c.l.b16 %v685
    %v2088 = vunpack.c.h.b16 %v685
    %v2089 = vunpack.c.l.b16 %v686
    %v2090 = vunpack.c.h.b16 %v686
    %v2091 = vunpack.c.l.b16 %v687
    %v2092 = vunpack.c.h.b16 %v687
    %v2093 = vunpack.c.l.b16 %v688
    %v2094 = vunpack.c.h.b16 %v688
    %v2095 = vunpack.c.l.b16 %v689
    %v2096 = vunpack.c.h.b16 %v689
    %v2097 = vunpack.c.l.b16 %v690
    %v2098 = vunpack.c.h.b16 %v690
    %v2099 = vunpack.c.l.b16 %v691
    %v2100 = vunpack.c.h.b16 %v691
    %v2101 = vunpack.c.l.b16 %v692
    %v2102 = vunpack.c.h.b16 %v692
    %v2103 = vunpack.c.l.b16 %v693
    %v2104 = vunpack.c.h.b16 %v693
    %v2105 = vunpack.c.l.b16 %v694
    %v2106 = vunpack.c.h.b16 %v694
    %v2107 = vunpack.c.l.b16 %v695
    %v2108 = vunpack.c.h.b16 %v695
    %v2109 = vunpack.c.l.b16 %v696
    %v2110 = vunpack.c.h.b16 %v696
    %v2111 = vunpack.c.l.b16 %v697
    %v2112 = vunpack.c.h.b16 %v697
    %v2113 = vunpack.c.l.b16 %v698
    %v2114 = vunpack.c.h.b16 %v698
    %v2115 = vunpack.c.l.b16 %v699
    %v2116 = vunpack.c.h.b16 %v699
    %v2117 = vunpack.c.l.b16 %v700
    %v2118 = vunpack.c.h.b16 %v700
    %v2119 = vunpack.c.l.b16 %v701
    %v2120 = vunpack.c.h.b16 %v701
    %v2121 = vunpack.c.l.b16 %v702
    %v2122 = vunpack.c.h.b16 %v702
    %v2123 = vunpack.c.l.b16 %v703
    %v2124 = vunpack.c.h.b16 %v703
    %v2125 = vunpack.c.l.b16 %v704
    %v2126 = vunpack.c.h.b16 %v704
    %v2127 = vunpack.c.l.b16 %v705
    %v2128 = vunpack.c.h.b16 %v705
    %v2129 = vunpack.c.l.b16 %v706
    %v2130 = vunpack.c.h.b16 %v706
    %v2131 = vunpack.c.l.b16 %v707
    %v2132 = vunpack.c.h.b16 %v707
    %v2133 = vunpack.c.l.b16 %v708
    %v2134 = vunpack.c.h.b16 %v708
    %v2135 = vunpack.c.l.b16 %v709
    %v2136 = vunpack.c.h.b16 %v709
    %v2137 = vunpack.c.l.b16 %v710
    %v2138 = vunpack.c.h.b16 %v710
    %v2139 = vunpack.c.l.b16 %v711
    %v2140 = vunpack.c.h.b16 %v711
    %v2141 = vunpack.c.l.b16 %v712
    %v2142 = vunpack.c.h.b16 %v712
    %v2143 = vunpack.c.l.b16 %v713
    %v2144 = vunpack.c.h.b16 %v713
    %v2145 = vunpack.c.l.b16 %v714
    %v2146 = vunpack.c.h.b16 %v714
    %v2147 = vunpack.c.l.b16 %v715
    %v2148 = vunpack.c.h.b16 %v715
    %v2149 = vunpack.c.l.b16 %v716
    %v2150 = vunpack.c.h.b16 %v716
    %v2151 = vunpack.c.l.b16 %v717
    %v2152 = vunpack.c.h.b16 %v717
    %v2153 = vunpack.c.l.b16 %v718
    %v2154 = vunpack.c.h.b16 %v718
    %v2155 = vunpack.c.l.b16 %v719
    %v2156 = vunpack.c.h.b16 %v719
    %v2157 = vunpack.c.l.b16 %v720
    %v2158 = vunpack.c.h.b16 %v720
    %v2159 = vunpack.c.l.b16 %v721
    %v2160 = vunpack.c.h.b16 %v721
    %v2161 = vunpack.c.l.b16 %v722
    %v2162 = vunpack.c.h.b16 %v722
    %v2163 = vunpack.c.l.b16 %v723
    %v2164 = vunpack.c.h.b16 %v723
    %v2165 = vunpack.c.l.b16 %v724
    %v2166 = vunpack.c.h.b16 %v724
    %v2167 = vunpack.c.l.b16 %v725
    %v2168 = vunpack.c.h.b16 %v725
    %v2169 = vunpack.c.l.b16 %v726
    %v2170 = vunpack.c.h.b16 %v726
    %v2171 = vunpack.c.l.b16 %v727
    %v2172 = vunpack.c.h.b16 %v727
    %v2173 = vunpack.c.l.b16 %v728
    %v2174 = vunpack.c.h.b16 %v728
    %v2175 = vunpack.c.l.b16 %v729
    %v2176 = vunpack.c.h.b16 %v729
    %v2177 = vunpack.c.l.b16 %v730
    %v2178 = vunpack.c.h.b16 %v730
    %v2179 = vunpack.c.l.b16 %v731
    %v2180 = vunpack.c.h.b16 %v731
    %v2181 = vunpack.c.l.b16 %v732
    %v2182 = vunpack.c.h.b16 %v732
    %v2183 = vunpack.c.l.b16 %v733
    %v2184 = vunpack.c.h.b16 %v733
    %v2185 = vunpack.c.l.b16 %v734
    %v2186 = vunpack.c.h.b16 %v734
    %v2187 = vunpack.c.l.b16 %v735
    %v2188 = vunpack.c.h.b16 %v735
    %v2189 = vunpack.c.l.b16 %v736
    %v2190 = vunpack.c.h.b16 %v736
    %v2191 = vunpack.c.l.b16 %v737
    %v2192 = vunpack.c.h.b16 %v737
    %v2193 = vunpack.c.l.b16 %v738
    %v2194 = vunpack.c.h.b16 %v738
    %v2195 = vunpack.c.l.b16 %v739
    %v2196 = vunpack.c.h.b16 %v739
    %v2197 = vunpack.c.l.b16 %v740
    %v2198 = vunpack.c.h.b16 %v740
    %v2199 = vunpack.c.l.b16 %v741
    %v2200 = vunpack.c.h.b16 %v741
    %v2201 = vunpack.c.l.b16 %v742
    %v2202 = vunpack.c.h.b16 %v742
    %v2203 = vunpack.c.l.b16 %v743
    %v2204 = vunpack.c.h.b16 %v743
    %v2205 = vunpack.c.l.b16 %v744
    %v2206 = vunpack.c.h.b16 %v744
    %v2207 = vunpack.c.l.b16 %v745
    %v2208 = vunpack.c.h.b16 %v745
    %v2209 = vunpack.c.l.b16 %v746
    %v2210 = vunpack.c.h.b16 %v746
    %v2211 = vunpack.c.l.b16 %v747
    %v2212 = vunpack.c.h.b16 %v747
    %v2213 = vunpack.c.l.b16 %v748
    %v2214 = vunpack.c.h.b16 %v748
    %v2215 = vunpack.c.l.b16 %v749
    %v2216 = vunpack.c.h.b16 %v749
    %v2217 = vunpack.c.l.b16 %v750
    %v2218 = vunpack.c.h.b16 %v750
    %v2219 = vunpack.c.l.b16 %v751
    %v2220 = vunpack.c.h.b16 %v751
    %v2221 = vunpack.c.l.b16 %v752
    %v2222 = vunpack.c.h.b16 %v752
    %v2223 = vunpack.c.l.b16 %v753
    %v2224 = vunpack.c.h.b16 %v753
    %v2225 = vunpack.c.l.b16 %v754
    %v2226 = vunpack.c.h.b16 %v754
    %v2227 = vunpack.c.l.b16 %v755
    %v2228 = vunpack.c.h.b16 %v755
    %v2229 = vunpack.c.l.b16 %v756
    %v2230 = vunpack.c.h.b16 %v756
    %v2231 = vunpack.c.l.b16 %v757
    %v2232 = vunpack.c.h.b16 %v757
    %v2233 = vunpack.c.l.b16 %v758
    %v2234 = vunpack.c.h.b16 %v758
    %v2235 = vunpack.c.l.b16 %v759
    %v2236 = vunpack.c.h.b16 %v759
    %v2237 = vunpack.c.l.b16 %v760
    %v2238 = vunpack.c.h.b16 %v760
    %v2239 = vunpack.c.l.b16 %v761
    %v2240 = vunpack.c.h.b16 %v761
    %v2241 = vunpack.c.l.b16 %v762
    %v2242 = vunpack.c.h.b16 %v762
    %v2243 = vunpack.c.l.b16 %v763
    %v2244 = vunpack.c.h.b16 %v763
    %v2245 = vunpack.c.l.b16 %v764
    %v2246 = vunpack.c.h.b16 %v764
    %v2247 = vunpack.c.l.b16 %v765
    %v2248 = vunpack.c.h.b16 %v765
    %v2249 = vunpack.c.l.b16 %v766
    %v2250 = vunpack.c.h.b16 %v766
    %v2251 = vunpack.c.l.b16 %v767
    %v2252 = vunpack.c.h.b16 %v767
    %v2253 = vunpack.c.l.b16 %v768
    %v2254 = vunpack.c.h.b16 %v768
    %v2255 = vunpack.c.l.b16 %v769
    %v2256 = vunpack.c.h.b16 %v769
    %v2257 = vunpack.c.l.b16 %v770
    %v2258 = vunpack.c.h.b16 %v770
    %v2259 = vunpack.c.l.b16 %v771
    %v2260 = vunpack.c.h.b16 %v771
    %v2261 = vunpack.c.l.b16 %v772
    %v2262 = vunpack.c.h.b16 %v772
    %v2263 = vunpack.c.l.b16 %v773
    %v2264 = vunpack.c.h.b16 %v773
    %v2265 = vunpack.c.l.b16 %v774
    %v2266 = vunpack.c.h.b16 %v774
    %v2267 = vunpack.c.l.b16 %v775
    %v2268 = vunpack.c.h.b16 %v775
    %v2269 = vunpack.c.l.b16 %v776
    %v2270 = vunpack.c.h.b16 %v776
    %v2271 = vunpack.c.l.b16 %v777
    %v2272 = vunpack.c.h.b16 %v777
    %v2273 = vunpack.c.l.b16 %v778
    %v2274 = vunpack.c.h.b16 %v778
    %v2275 = vunpack.c.l.b16 %v779
    %v2276 = vunpack.c.h.b16 %v779
    %v2277 = vunpack.c.l.b16 %v780
    %v2278 = vunpack.c.h.b16 %v780
    %v2279 = vunpack.c.l.b16 %v781
    %v2280 = vunpack.c.h.b16 %v781
    %v2281 = vunpack.c.l.b16 %v782
    %v2282 = vunpack.c.h.b16 %v782
    %v2283 = vunpack.c.l.b16 %v783
    %v2284 = vunpack.c.h.b16 %v783
    %v2285 = vunpack.c.l.b16 %v784
    %v2286 = vunpack.c.h.b16 %v784
    %v2287 = vunpack.c.l.b16 %v785
    %v2288 = vunpack.c.h.b16 %v785
    %v2289 = vunpack.c.l.b16 %v786
    %v2290 = vunpack.c.h.b16 %v786
    %v2291 = vunpack.c.l.b16 %v787
    %v2292 = vunpack.c.h.b16 %v787
    %v2293 = vunpack.c.l.b16 %v788
    %v2294 = vunpack.c.h.b16 %v788
    %v2295 = vunpack.c.l.b16 %v789
    %v2296 = vunpack.c.h.b16 %v789
    %v2297 = vunpack.c.l.b16 %v790
    %v2298 = vunpack.c.h.b16 %v790
    %v2299 = vunpack.c.l.b16 %v791
    %v2300 = vunpack.c.h.b16 %v791
    %v2301 = vunpack.c.l.b16 %v792
    %v2302 = vunpack.c.h.b16 %v792
    %v2303 = vunpack.c.l.b16 %v793
    %v2304 = vunpack.c.h.b16 %v793
    %v2305 = vunpack.c.l.b16 %v794
    %v2306 = vunpack.c.h.b16 %v794
    %v2307 = vunpack.c.l.b16 %v795
    %v2308 = vunpack.c.h.b16 %v795
    %v2309 = vunpack.c.l.b16 %v796
    %v2310 = vunpack.c.h.b16 %v796
    %v2311 = vunpack.c.l.b16 %v797
    %v2312 = vunpack.c.h.b16 %v797
    %v2313 = vunpack.c.l.b16 %v798
    %v2314 = vunpack.c.h.b16 %v798
    %v2315 = vunpack.c.l.b16 %v799
    %v2316 = vunpack.c.h.b16 %v799
    %v2317 = vunpack.c.l.b16 %v800
    %v2318 = vunpack.c.h.b16 %v800
    %v2319 = vunpack.c.l.b16 %v801
    %v2320 = vunpack.c.h.b16 %v801
    %v2321 = vunpack.c.l.b16 %v802
    %v2322 = vunpack.c.h.b16 %v802
    %v2323 = vunpack.c.l.b16 %v803
    %v2324 = vunpack.c.h.b16 %v803
    %v2325 = vunpack.c.l.b16 %v804
    %v2326 = vunpack.c.h.b16 %v804
    %v2327 = vunpack.c.l.b16 %v805
    %v2328 = vunpack.c.h.b16 %v805
    %v2329 = vunpack.c.l.b16 %v806
    %v2330 = vunpack.c.h.b16 %v806
    %v2331 = vunpack.c.l.b16 %v807
    %v2332 = vunpack.c.h.b16 %v807
    %v2333 = vunpack.c.l.b16 %v808
    %v2334 = vunpack.c.h.b16 %v808
    %v2335 = vunpack.c.l.b16 %v809
    %v2336 = vunpack.c.h.b16 %v809
    %v2337 = vunpack.c.l.b16 %v810
    %v2338 = vunpack.c.h.b16 %v810
    %v2339 = vunpack.c.l.b16 %v811
    %v2340 = vunpack.c.h.b16 %v811
    %v2341 = vunpack.c.l.b16 %v812
    %v2342 = vunpack.c.h.b16 %v812
    %v2343 = vunpack.c.l.b16 %v813
    %v2344 = vunpack.c.h.b16 %v813
    %v2345 = vunpack.c.l.b16 %v814
    %v2346 = vunpack.c.h.b16 %v814
    %v2347 = vunpack.c.l.b16 %v815
    %v2348 = vunpack.c.h.b16 %v815
    %v2349 = vunpack.c.l.b16 %v816
    %v2350 = vunpack.c.h.b16 %v816
    %v2351 = vunpack.c.l.b16 %v817
    %v2352 = vunpack.c.h.b16 %v817
    %v2353 = vunpack.c.l.b16 %v818
    %v2354 = vunpack.c.h.b16 %v818
    %v2355 = vunpack.c.l.b16 %v819
    %v2356 = vunpack.c.h.b16 %v819
    %v2357 = vunpack.c.l.b16 %v820
    %v2358 = vunpack.c.h.b16 %v820
    %v2359 = vunpack.c.l.b16 %v821
    %v2360 = vunpack.c.h.b16 %v821
    %v2361 = vunpack.c.l.b16 %v822
    %v2362 = vunpack.c.h.b16 %v822
    %v2363 = vunpack.c.l.b16 %v823
    %v2364 = vunpack.c.h.b16 %v823
    %v2365 = vunpack.c.l.b16 %v824
    %v2366 = vunpack.c.h.b16 %v824
    %v2367 = vunpack.c.l.b16 %v825
    %v2368 = vunpack.c.h.b16 %v825
    %v2369 = vunpack.c.l.b16 %v826
    %v2370 = vunpack.c.h.b16 %v826
    %v2371 = vunpack.c.l.b16 %v827
    %v2372 = vunpack.c.h.b16 %v827
    %v2373 = vunpack.c.l.b16 %v828
    %v2374 = vunpack.c.h.b16 %v828
    %v2375 = vunpack.c.l.b16 %v829
    %v2376 = vunpack.c.h.b16 %v829
    %v2377 = vunpack.c.l.b16 %v830
    %v2378 = vunpack.c.h.b16 %v830
    %v2379 = vunpack.c.l.b16 %v831
    %v2380 = vunpack.c.h.b16 %v831
    %v2381 = vunpack.c.l.b16 %v832
    %v2382 = vunpack.c.h.b16 %v832
    %v2383 = vunpack.c.l.b16 %v833
    %v2384 = vunpack.c.h.b16 %v833
    %v2385 = vunpack.c.l.b16 %v834
    %v2386 = vunpack.c.h.b16 %v834
    %v2387 = vunpack.c.l.b16 %v835
    %v2388 = vunpack.c.h.b16 %v835
    %v2389 = vunpack.c.l.b16 %v836
    %v2390 = vunpack.c.h.b16 %v836
    %v2391 = vunpack.c.l.b16 %v837
    %v2392 = vunpack.c.h.b16 %v837
    %v2393 = vunpack.c.l.b16 %v838
    %v2394 = vunpack.c.h.b16 %v838
    %v2395 = vunpack.c.l.b16 %v839
    %v2396 = vunpack.c.h.b16 %v839
    %v2397 = vunpack.c.l.b16 %v840
    %v2398 = vunpack.c.h.b16 %v840
    %v2399 = vunpack.c.l.b16 %v841
    %v2400 = vunpack.c.h.b16 %v841
    %v2401 = vunpack.c.l.b16 %v842
    %v2402 = vunpack.c.h.b16 %v842
    %v2403 = vunpack.c.l.b16 %v843
    %v2404 = vunpack.c.h.b16 %v843
    %v2405 = vunpack.c.l.b16 %v844
    %v2406 = vunpack.c.h.b16 %v844
    %v2407 = vunpack.c.l.b16 %v845
    %v2408 = vunpack.c.h.b16 %v845
    %v2409 = vunpack.c.l.b16 %v846
    %v2410 = vunpack.c.h.b16 %v846
    %v2411 = vunpack.c.l.b16 %v847
    %v2412 = vunpack.c.h.b16 %v847
    %v2413 = vunpack.c.l.b16 %v848
    %v2414 = vunpack.c.h.b16 %v848
    %v2415 = vunpack.c.l.b16 %v849
    %v2416 = vunpack.c.h.b16 %v849
    %v2417 = vunpack.c.l.b16 %v850
    %v2418 = vunpack.c.h.b16 %v850
    %v2419 = vunpack.c.l.b16 %v851
    %v2420 = vunpack.c.h.b16 %v851
    %v2421 = vunpack.c.l.b16 %v852
    %v2422 = vunpack.c.h.b16 %v852
    %v2423 = vunpack.c.l.b16 %v853
    %v2424 = vunpack.c.h.b16 %v853
    %v2425 = vunpack.c.l.b16 %v854
    %v2426 = vunpack.c.h.b16 %v854
    %v2427 = vunpack.c.l.b16 %v855
    %v2428 = vunpack.c.h.b16 %v855
    %v2429 = vunpack.c.l.b16 %v856
    %v2430 = vunpack.c.h.b16 %v856
    %v2431 = vunpack.c.l.b16 %v857
    %v2432 = vunpack.c.h.b16 %v857
    %v2433 = vunpack.c.l.b16 %v858
    %v2434 = vunpack.c.h.b16 %v858
    %v2435 = vunpack.c.l.b16 %v859
    %v2436 = vunpack.c.h.b16 %v859
    %v2437 = vunpack.c.l.b16 %v860
    %v2438 = vunpack.c.h.b16 %v860
    %v2439 = vpack.c.b16 %v1423, %v1415
    %v2440 = vpack.c.b16 %v1424, %v1416
    %v2441 = vpack.c.b16 %v1425, %v1417
    %v2442 = vpack.c.b16 %v1426, %v1418
    %v2443 = vpack.c.b16 %v1427, %v1419
    %v2444 = vpack.c.b16 %v1428, %v1420
    %v2445 = vpack.c.b16 %v1429, %v1421
    %v2446 = vpack.c.b16 %v1430, %v1422
    %v2447 = vpack.c.b16 %v1439, %v1431
    %v2448 = vpack.c.b16 %v1440, %v1432
    %v2449 = vpack.c.b16 %v1441, %v1433
    %v2450 = vpack.c.b16 %v1442, %v1434
    %v2451 = vpack.c.b16 %v1443, %v1435
    %v2452 = vpack.c.b16 %v1444, %v1436
    %v2453 = vpack.c.b16 %v1445, %v1437
    %v2454 = vpack.c.b16 %v1446, %v1438
    %v2455 = vpack.c.b16 %v1455, %v1447
    %v2456 = vpack.c.b16 %v1456, %v1448
    %v2457 = vpack.c.b16 %v1457, %v1449
    %v2458 = vpack.c.b16 %v1458, %v1450
    %v2459 = vpack.c.b16 %v1459, %v1451
    %v2460 = vpack.c.b16 %v1460, %v1452
    %v2461 = vpack.c.b16 %v1461, %v1453
    %v2462 = vpack.c.b16 %v1462, %v1454
    %v2463 = vpack.c.b16 %v1471, %v1463
    %v2464 = vpack.c.b16 %v1472, %v1464
    %v2465 = vpack.c.b16 %v1473, %v1465
    %v2466 = vpack.c.b16 %v1474, %v1466
    %v2467 = vpack.c.b16 %v1475, %v1467
    %v2468 = vpack.c.b16 %v1476, %v1468
    %v2469 = vpack.c.b16 %v1477, %v1469
    %v2470 = vpack.c.b16 %v1478, %v1470
    %v2471 = vpack.c.b16 %v1487, %v1479
    %v2472 = vpack.c.b16 %v1488, %v1480
    %v2473 = vpack.c.b16 %v1489, %v1481
    %v2474 = vpack.c.b16 %v1490, %v1482
    %v2475 = vpack.c.b16 %v1491, %v1483
    %v2476 = vpack.c.b16 %v1492, %v1484
    %v2477 = vpack.c.b16 %v1493, %v1485
    %v2478 = vpack.c.b16 %v1494, %v1486
    %v2479 = vpack.c.b16 %v1503, %v1495
    %v2480 = vpack.c.b16 %v1504, %v1496
    %v2481 = vpack.c.b16 %v1505, %v1497
    %v2482 = vpack.c.b16 %v1506, %v1498
    %v2483 = vpack.c.b16 %v1507, %v1499
    %v2484 = vpack.c.b16 %v1508, %v1500
    %v2485 = vpack.c.b16 %v1509, %v1501
    %v2486 = vpack.c.b16 %v1510, %v1502
    %v2487 = vpack.c.b16 %v1519, %v1511
    %v2488 = vpack.c.b16 %v1520, %v1512
    %v2489 = vpack.c.b16 %v1521, %v1513
    %v2490 = vpack.c.b16 %v1522, %v1514
    %v2491 = vpack.c.b16 %v1523, %v1515
    %v2492 = vpack.c.b16 %v1524, %v1516
    %v2493 = vpack.c.b16 %v1525, %v1517
    %v2494 = vpack.c.b16 %v1526, %v1518
    %v2495 = vpack.c.b16 %v1535, %v1527
    %v2496 = vpack.c.b16 %v1536, %v1528
    %v2497 = vpack.c.b16 %v1537, %v1529
    %v2498 = vpack.c.b16 %v1538, %v1530
    %v2499 = vpack.c.b16 %v1539, %v1531
    %v2500 = vpack.c.b16 %v1540, %v1532
    %v2501 = vpack.c.b16 %v1541, %v1533
    %v2502 = vpack.c.b16 %v1542, %v1534
    %v2503 = vpack.c.b16 %v1551, %v1543
    %v2504 = vpack.c.b16 %v1552, %v1544
    %v2505 = vpack.c.b16 %v1553, %v1545
    %v2506 = vpack.c.b16 %v1554, %v1546
    %v2507 = vpack.c.b16 %v1555, %v1547
    %v2508 = vpack.c.b16 %v1556, %v1548
    %v2509 = vpack.c.b16 %v1557, %v1549
    %v2510 = vpack.c.b16 %v1558, %v1550
    %v2511 = vpack.c.b16 %v1567, %v1559
    %v2512 = vpack.c.b16 %v1568, %v1560
    %v2513 = vpack.c.b16 %v1569, %v1561
    %v2514 = vpack.c.b16 %v1570, %v1562
    %v2515 = vpack.c.b16 %v1571, %v1563
    %v2516 = vpack.c.b16 %v1572, %v1564
    %v2517 = vpack.c.b16 %v1573, %v1565
    %v2518 = vpack.c.b16 %v1574, %v1566
    %v2519 = vpack.c.b16 %v1583, %v1575
    %v2520 = vpack.c.b16 %v1584, %v1576
    %v2521 = vpack.c.b16 %v1585, %v1577
    %v2522 = vpack.c.b16 %v1586, %v1578
    %v2523 = vpack.c.b16 %v1587, %v1579
    %v2524 = vpack.c.b16 %v1588, %v1580
    %v2525 = vpack.c.b16 %v1589, %v1581
    %v2526 = vpack.c.b16 %v1590, %v1582
    %v2527 = vpack.c.b16 %v1599, %v1591
    %v2528 = vpack.c.b16 %v1600, %v1592
    %v2529 = vpack.c.b16 %v1601, %v1593
    %v2530 = vpack.c.b16 %v1602, %v1594
    %v2531 = vpack.c.b16 %v1603, %v1595
    %v2532 = vpack.c.b16 %v1604, %v1596
    %v2533 = vpack.c.b16 %v1605, %v1597
    %v2534 = vpack.c.b16 %v1606, %v1598
    %v2535 = vpack.c.b16 %v1615, %v1607
    %v2536 = vpack.c.b16 %v1616, %v1608
    %v2537 = vpack.c.b16 %v1617, %v1609
    %v2538 = vpack.c.b16 %v1618, %v1610
    %v2539 = vpack.c.b16 %v1619, %v1611
    %v2540 = vpack.c.b16 %v1620, %v1612
    %v2541 = vpack.c.b16 %v1621, %v1613
    %v2542 = vpack.c.b16 %v1622, %v1614
    %v2543 = vpack.c.b16 %v1631, %v1623
    %v2544 = vpack.c.b16 %v1632, %v1624
    %v2545 = vpack.c.b16 %v1633, %v1625
    %v2546 = vpack.c.b16 %v1634, %v1626
    %v2547 = vpack.c.b16 %v1635, %v1627
    %v2548 = vpack.c.b16 %v1636, %v1628
    %v2549 = vpack.c.b16 %v1637, %v1629
    %v2550 = vpack.c.b16 %v1638, %v1630
    %v2551 = vpack.c.b16 %v1647, %v1639
    %v2552 = vpack.c.b16 %v1648, %v1640
    %v2553 = vpack.c.b16 %v1649, %v1641
    %v2554 = vpack.c.b16 %v1650, %v1642
    %v2555 = vpack.c.b16 %v1651, %v1643
    %v2556 = vpack.c.b16 %v1652, %v1644
    %v2557 = vpack.c.b16 %v1653, %v1645
    %v2558 = vpack.c.b16 %v1654, %v1646
    %v2559 = vpack.c.b16 %v1663, %v1655
    %v2560 = vpack.c.b16 %v1664, %v1656
    %v2561 = vpack.c.b16 %v1665, %v1657
    %v2562 = vpack.c.b16 %v1666, %v1658
    %v2563 = vpack.c.b16 %v1667, %v1659
    %v2564 = vpack.c.b16 %v1668, %v1660
    %v2565 = vpack.c.b16 %v1669, %v1661
    %v2566 = vpack.c.b16 %v1670, %v1662
    %v2567 = vpack.c.b16 %v1679, %v1671
    %v2568 = vpack.c.b16 %v1680, %v1672
    %v2569 = vpack.c.b16 %v1681, %v1673
    %v2570 = vpack.c.b16 %v1682, %v1674
    %v2571 = vpack.c.b16 %v1683, %v1675
    %v2572 = vpack.c.b16 %v1684, %v1676
    %v2573 = vpack.c.b16 %v1685, %v1677
    %v2574 = vpack.c.b16 %v1686, %v1678
    %v2575 = vpack.c.b16 %v1695, %v1687
    %v2576 = vpack.c.b16 %v1696, %v1688
    %v2577 = vpack.c.b16 %v1697, %v1689
    %v2578 = vpack.c.b16 %v1698, %v1690
    %v2579 = vpack.c.b16 %v1699, %v1691
    %v2580 = vpack.c.b16 %v1700, %v1692
    %v2581 = vpack.c.b16 %v1701, %v1693
    %v2582 = vpack.c.b16 %v1702, %v1694
    %v2583 = vpack.c.b16 %v1711, %v1703
    %v2584 = vpack.c.b16 %v1712, %v1704
    %v2585 = vpack.c.b16 %v1713, %v1705
    %v2586 = vpack.c.b16 %v1714, %v1706
    %v2587 = vpack.c.b16 %v1715, %v1707
    %v2588 = vpack.c.b16 %v1716, %v1708
    %v2589 = vpack.c.b16 %v1717, %v1709
    %v2590 = vpack.c.b16 %v1718, %v1710
    %v2591 = vpack.c.b16 %v1727, %v1719
    %v2592 = vpack.c.b16 %v1728, %v1720
    %v2593 = vpack.c.b16 %v1729, %v1721
    %v2594 = vpack.c.b16 %v1730, %v1722
    %v2595 = vpack.c.b16 %v1731, %v1723
    %v2596 = vpack.c.b16 %v1732, %v1724
    %v2597 = vpack.c.b16 %v1733, %v1725
    %v2598 = vpack.c.b16 %v1734, %v1726
    %v2599 = vpack.c.b16 %v1743, %v1735
    %v2600 = vpack.c.b16 %v1744, %v1736
    %v2601 = vpack.c.b16 %v1745, %v1737
    %v2602 = vpack.c.b16 %v1746, %v1738
    %v2603 = vpack.c.b16 %v1747, %v1739
    %v2604 = vpack.c.b16 %v1748, %v1740
    %v2605 = vpack.c.b16 %v1749, %v1741
    %v2606 = vpack.c.b16 %v1750, %v1742
    %v2607 = vpack.c.b16 %v1759, %v1751
    %v2608 = vpack.c.b16 %v1760, %v1752
    %v2609 = vpack.c.b16 %v1761, %v1753
    %v2610 = vpack.c.b16 %v1762, %v1754
    %v2611 = vpack.c.b16 %v1763, %v1755
    %v2612 = vpack.c.b16 %v1764, %v1756
    %v2613 = vpack.c.b16 %v1765, %v1757
    %v2614 = vpack.c.b16 %v1766, %v1758
    %v2615 = vpack.c.b16 %v1775, %v1767
    %v2616 = vpack.c.b16 %v1776, %v1768
    %v2617 = vpack.c.b16 %v1777, %v1769
    %v2618 = vpack.c.b16 %v1778, %v1770
    %v2619 = vpack.c.b16 %v1779, %v1771
    %v2620 = vpack.c.b16 %v1780, %v1772
    %v2621 = vpack.c.b16 %v1781, %v1773
    %v2622 = vpack.c.b16 %v1782, %v1774
    %v2623 = vpack.c.b16 %v1791, %v1783
    %v2624 = vpack.c.b16 %v1792, %v1784
    %v2625 = vpack.c.b16 %v1793, %v1785
    %v2626 = vpack.c.b16 %v1794, %v1786
    %v2627 = vpack.c.b16 %v1795, %v1787
    %v2628 = vpack.c.b16 %v1796, %v1788
    %v2629 = vpack.c.b16 %v1797, %v1789
    %v2630 = vpack.c.b16 %v1798, %v1790
    %v2631 = vpack.c.b16 %v1807, %v1799
    %v2632 = vpack.c.b16 %v1808, %v1800
    %v2633 = vpack.c.b16 %v1809, %v1801
    %v2634 = vpack.c.b16 %v1810, %v1802
    %v2635 = vpack.c.b16 %v1811, %v1803
    %v2636 = vpack.c.b16 %v1812, %v1804
    %v2637 = vpack.c.b16 %v1813, %v1805
    %v2638 = vpack.c.b16 %v1814, %v1806
    %v2639 = vpack.c.b16 %v1823, %v1815
    %v2640 = vpack.c.b16 %v1824, %v1816
    %v2641 = vpack.c.b16 %v1825, %v1817
    %v2642 = vpack.c.b16 %v1826, %v1818
    %v2643 = vpack.c.b16 %v1827, %v1819
    %v2644 = vpack.c.b16 %v1828, %v1820
    %v2645 = vpack.c.b16 %v1829, %v1821
    %v2646 = vpack.c.b16 %v1830, %v1822
    %v2647 = vpack.c.b16 %v1839, %v1831
    %v2648 = vpack.c.b16 %v1840, %v1832
    %v2649 = vpack.c.b16 %v1841, %v1833
    %v2650 = vpack.c.b16 %v1842, %v1834
    %v2651 = vpack.c.b16 %v1843, %v1835
    %v2652 = vpack.c.b16 %v1844, %v1836
    %v2653 = vpack.c.b16 %v1845, %v1837
    %v2654 = vpack.c.b16 %v1846, %v1838
    %v2655 = vpack.c.b16 %v1855, %v1847
    %v2656 = vpack.c.b16 %v1856, %v1848
    %v2657 = vpack.c.b16 %v1857, %v1849
    %v2658 = vpack.c.b16 %v1858, %v1850
    %v2659 = vpack.c.b16 %v1859, %v1851
    %v2660 = vpack.c.b16 %v1860, %v1852
    %v2661 = vpack.c.b16 %v1861, %v1853
    %v2662 = vpack.c.b16 %v1862, %v1854
    %v2663 = vpack.c.b16 %v1871, %v1863
    %v2664 = vpack.c.b16 %v1872, %v1864
    %v2665 = vpack.c.b16 %v1873, %v1865
    %v2666 = vpack.c.b16 %v1874, %v1866
    %v2667 = vpack.c.b16 %v1875, %v1867
    %v2668 = vpack.c.b16 %v1876, %v1868
    %v2669 = vpack.c.b16 %v1877, %v1869
    %v2670 = vpack.c.b16 %v1878, %v1870
    %v2671 = vpack.c.b16 %v1887, %v1879
    %v2672 = vpack.c.b16 %v1888, %v1880
    %v2673 = vpack.c.b16 %v1889, %v1881
    %v2674 = vpack.c.b16 %v1890, %v1882
    %v2675 = vpack.c.b16 %v1891, %v1883
    %v2676 = vpack.c.b16 %v1892, %v1884
    %v2677 = vpack.c.b16 %v1893, %v1885
    %v2678 = vpack.c.b16 %v1894, %v1886
    %v2679 = vpack.c.b16 %v1903, %v1895
    %v2680 = vpack.c.b16 %v1904, %v1896
    %v2681 = vpack.c.b16 %v1905, %v1897
    %v2682 = vpack.c.b16 %v1906, %v1898
    %v2683 = vpack.c.b16 %v1907, %v1899
    %v2684 = vpack.c.b16 %v1908, %v1900
    %v2685 = vpack.c.b16 %v1909, %v1901
    %v2686 = vpack.c.b16 %v1910, %v1902
    %v2687 = vpack.c.b16 %v1919, %v1911
    %v2688 = vpack.c.b16 %v1920, %v1912
    %v2689 = vpack.c.b16 %v1921, %v1913
    %v2690 = vpack.c.b16 %v1922, %v1914
    %v2691 = vpack.c.b16 %v1923, %v1915
    %v2692 = vpack.c.b16 %v1924, %v1916
    %v2693 = vpack.c.b16 %v1925, %v1917
    %v2694 = vpack.c.b16 %v1926, %v1918
    %v2695 = vpack.c.b16 %v1935, %v1927
    %v2696 = vpack.c.b16 %v1936, %v1928
    %v2697 = vpack.c.b16 %v1937, %v1929
    %v2698 = vpack.c.b16 %v1938, %v1930
    %v2699 = vpack.c.b16 %v1939, %v1931
    %v2700 = vpack.c.b16 %v1940, %v1932
    %v2701 = vpack.c.b16 %v1941, %v1933
    %v2702 = vpack.c.b16 %v1942, %v1934
    %v2703 = vpack.c.b16 %v1951, %v1943
    %v2704 = vpack.c.b16 %v1952, %v1944
    %v2705 = vpack.c.b16 %v1953, %v1945
    %v2706 = vpack.c.b16 %v1954, %v1946
    %v2707 = vpack.c.b16 %v1955, %v1947
    %v2708 = vpack.c.b16 %v1956, %v1948
    %v2709 = vpack.c.b16 %v1957, %v1949
    %v2710 = vpack.c.b16 %v1958, %v1950
    %v2711 = vpack.c.b16 %v1967, %v1959
    %v2712 = vpack.c.b16 %v1968, %v1960
    %v2713 = vpack.c.b16 %v1969, %v1961
    %v2714 = vpack.c.b16 %v1970, %v1962
    %v2715 = vpack.c.b16 %v1971, %v1963
    %v2716 = vpack.c.b16 %v1972, %v1964
    %v2717 = vpack.c.b16 %v1973, %v1965
    %v2718 = vpack.c.b16 %v1974, %v1966
    %v2719 = vpack.c.b16 %v1983, %v1975
    %v2720 = vpack.c.b16 %v1984, %v1976
    %v2721 = vpack.c.b16 %v1985, %v1977
    %v2722 = vpack.c.b16 %v1986, %v1978
    %v2723 = vpack.c.b16 %v1987, %v1979
    %v2724 = vpack.c.b16 %v1988, %v1980
    %v2725 = vpack.c.b16 %v1989, %v1981
    %v2726 = vpack.c.b16 %v1990, %v1982
    %v2727 = vpack.c.b16 %v1999, %v1991
    %v2728 = vpack.c.b16 %v2000, %v1992
    %v2729 = vpack.c.b16 %v2001, %v1993
    %v2730 = vpack.c.b16 %v2002, %v1994
    %v2731 = vpack.c.b16 %v2003, %v1995
    %v2732 = vpack.c.b16 %v2004, %v1996
    %v2733 = vpack.c.b16 %v2005, %v1997
    %v2734 = vpack.c.b16 %v2006, %v1998
    %v2735 = vpack.c.b16 %v2015, %v2007
    %v2736 = vpack.c.b16 %v2016, %v2008
    %v2737 = vpack.c.b16 %v2017, %v2009
    %v2738 = vpack.c.b16 %v2018, %v2010
    %v2739 = vpack.c.b16 %v2019, %v2011
    %v2740 = vpack.c.b16 %v2020, %v2012
    %v2741 = vpack.c.b16 %v2021, %v2013
    %v2742 = vpack.c.b16 %v2022, %v2014
    %v2743 = vpack.c.b16 %v2031, %v2023
    %v2744 = vpack.c.b16 %v2032, %v2024
    %v2745 = vpack.c.b16 %v2033, %v2025
    %v2746 = vpack.c.b16 %v2034, %v2026
    %v2747 = vpack.c.b16 %v2035, %v2027
    %v2748 = vpack.c.b16 %v2036, %v2028
    %v2749 = vpack.c.b16 %v2037, %v2029
    %v2750 = vpack.c.b16 %v2038, %v2030
    %v2751 = vpack.c.b16 %v2047, %v2039
    %v2752 = vpack.c.b16 %v2048, %v2040
    %v2753 = vpack.c.b16 %v2049, %v2041
    %v2754 = vpack.c.b16 %v2050, %v2042
    %v2755 = vpack.c.b16 %v2051, %v2043
    %v2756 = vpack.c.b16 %v2052, %v2044
    %v2757 = vpack.c.b16 %v2053, %v2045
    %v2758 = vpack.c.b16 %v2054, %v2046
    %v2759 = vpack.c.b16 %v2063, %v2055
    %v2760 = vpack.c.b16 %v2064, %v2056
    %v2761 = vpack.c.b16 %v2065, %v2057
    %v2762 = vpack.c.b16 %v2066, %v2058
    %v2763 = vpack.c.b16 %v2067, %v2059
    %v2764 = vpack.c.b16 %v2068, %v2060
    %v2765 = vpack.c.b16 %v2069, %v2061
    %v2766 = vpack.c.b16 %v2070, %v2062
    %v2767 = vpack.c.b16 %v2079, %v2071
    %v2768 = vpack.c.b16 %v2080, %v2072
    %v2769 = vpack.c.b16 %v2081, %v2073
    %v2770 = vpack.c.b16 %v2082, %v2074
    %v2771 = vpack.c.b16 %v2083, %v2075
    %v2772 = vpack.c.b16 %v2084, %v2076
    %v2773 = vpack.c.b16 %v2085, %v2077
    %v2774 = vpack.c.b16 %v2086, %v2078
    %v2775 = vpack.c.b16 %v2095, %v2087
    %v2776 = vpack.c.b16 %v2096, %v2088
    %v2777 = vpack.c.b16 %v2097, %v2089
    %v2778 = vpack.c.b16 %v2098, %v2090
    %v2779 = vpack.c.b16 %v2099, %v2091
    %v2780 = vpack.c.b16 %v2100, %v2092
    %v2781 = vpack.c.b16 %v2101, %v2093
    %v2782 = vpack.c.b16 %v2102, %v2094
    %v2783 = vpack.c.b16 %v2111, %v2103
    %v2784 = vpack.c.b16 %v2112, %v2104
    %v2785 = vpack.c.b16 %v2113, %v2105
    %v2786 = vpack.c.b16 %v2114, %v2106
    %v2787 = vpack.c.b16 %v2115, %v2107
    %v2788 = vpack.c.b16 %v2116, %v2108
    %v2789 = vpack.c.b16 %v2117, %v2109
    %v2790 = vpack.c.b16 %v2118, %v2110
    %v2791 = vpack.c.b16 %v2127, %v2119
    %v2792 = vpack.c.b16 %v2128, %v2120
    %v2793 = vpack.c.b16 %v2129, %v2121
    %v2794 = vpack.c.b16 %v2130, %v2122
    %v2795 = vpack.c.b16 %v2131, %v2123
    %v2796 = vpack.c.b16 %v2132, %v2124
    %v2797 = vpack.c.b16 %v2133, %v2125
    %v2798 = vpack.c.b16 %v2134, %v2126
    %v2799 = vpack.c.b16 %v2143, %v2135
    %v2800 = vpack.c.b16 %v2144, %v2136
    %v2801 = vpack.c.b16 %v2145, %v2137
    %v2802 = vpack.c.b16 %v2146, %v2138
    %v2803 = vpack.c.b16 %v2147, %v2139
    %v2804 = vpack.c.b16 %v2148, %v2140
    %v2805 = vpack.c.b16 %v2149, %v2141
    %v2806 = vpack.c.b16 %v2150, %v2142
    %v2807 = vpack.c.b16 %v2159, %v2151
    %v2808 = vpack.c.b16 %v2160, %v2152
    %v2809 = vpack.c.b16 %v2161, %v2153
    %v2810 = vpack.c.b16 %v2162, %v2154
    %v2811 = vpack.c.b16 %v2163, %v2155
    %v2812 = vpack.c.b16 %v2164, %v2156
    %v2813 = vpack.c.b16 %v2165, %v2157
    %v2814 = vpack.c.b16 %v2166, %v2158
    %v2815 = vpack.c.b16 %v2175, %v2167
    %v2816 = vpack.c.b16 %v2176, %v2168
    %v2817 = vpack.c.b16 %v2177, %v2169
    %v2818 = vpack.c.b16 %v2178, %v2170
    %v2819 = vpack.c.b16 %v2179, %v2171
    %v2820 = vpack.c.b16 %v2180, %v2172
    %v2821 = vpack.c.b16 %v2181, %v2173
    %v2822 = vpack.c.b16 %v2182, %v2174
    %v2823 = vpack.c.b16 %v2191, %v2183
    %v2824 = vpack.c.b16 %v2192, %v2184
    %v2825 = vpack.c.b16 %v2193, %v2185
    %v2826 = vpack.c.b16 %v2194, %v2186
    %v2827 = vpack.c.b16 %v2195, %v2187
    %v2828 = vpack.c.b16 %v2196, %v2188
    %v2829 = vpack.c.b16 %v2197, %v2189
    %v2830 = vpack.c.b16 %v2198, %v2190
    %v2831 = vpack.c.b16 %v2207, %v2199
    %v2832 = vpack.c.b16 %v2208, %v2200
    %v2833 = vpack.c.b16 %v2209, %v2201
    %v2834 = vpack.c.b16 %v2210, %v2202
    %v2835 = vpack.c.b16 %v2211, %v2203
    %v2836 = vpack.c.b16 %v2212, %v2204
    %v2837 = vpack.c.b16 %v2213, %v2205
    %v2838 = vpack.c.b16 %v2214, %v2206
    %v2839 = vpack.c.b16 %v2223, %v2215
    %v2840 = vpack.c.b16 %v2224, %v2216
    %v2841 = vpack.c.b16 %v2225, %v2217
    %v2842 = vpack.c.b16 %v2226, %v2218
    %v2843 = vpack.c.b16 %v2227, %v2219
    %v2844 = vpack.c.b16 %v2228, %v2220
    %v2845 = vpack.c.b16 %v2229, %v2221
    %v2846 = vpack.c.b16 %v2230, %v2222
    %v2847 = vpack.c.b16 %v2239, %v2231
    %v2848 = vpack.c.b16 %v2240, %v2232
    %v2849 = vpack.c.b16 %v2241, %v2233
    %v2850 = vpack.c.b16 %v2242, %v2234
    %v2851 = vpack.c.b16 %v2243, %v2235
    %v2852 = vpack.c.b16 %v2244, %v2236
    %v2853 = vpack.c.b16 %v2245, %v2237
    %v2854 = vpack.c.b16 %v2246, %v2238
    %v2855 = vpack.c.b16 %v2255, %v2247
    %v2856 = vpack.c.b16 %v2256, %v2248
    %v2857 = vpack.c.b16 %v2257, %v2249
    %v2858 = vpack.c.b16 %v2258, %v2250
    %v2859 = vpack.c.b16 %v2259, %v2251
    %v2860 = vpack.c.b16 %v2260, %v2252
    %v2861 = vpack.c.b16 %v2261, %v2253
    %v2862 = vpack.c.b16 %v2262, %v2254
    %v2863 = vpack.c.b16 %v2271, %v2263
    %v2864 = vpack.c.b16 %v2272, %v2264
    %v2865 = vpack.c.b16 %v2273, %v2265
    %v2866 = vpack.c.b16 %v2274, %v2266
    %v2867 = vpack.c.b16 %v2275, %v2267
    %v2868 = vpack.c.b16 %v2276, %v2268
    %v2869 = vpack.c.b16 %v2277, %v2269
    %v2870 = vpack.c.b16 %v2278, %v2270
    %v2871 = vpack.c.b16 %v2287, %v2279
    %v2872 = vpack.c.b16 %v2288, %v2280
    %v2873 = vpack.c.b16 %v2289, %v2281
    %v2874 = vpack.c.b16 %v2290, %v2282
    %v2875 = vpack.c.b16 %v2291, %v2283
    %v2876 = vpack.c.b16 %v2292, %v2284
    %v2877 = vpack.c.b16 %v2293, %v2285
    %v2878 = vpack.c.b16 %v2294, %v2286
    %v2879 = vpack.c.b16 %v2303, %v2295
    %v2880 = vpack.c.b16 %v2304, %v2296
    %v2881 = vpack.c.b16 %v2305, %v2297
    %v2882 = vpack.c.b16 %v2306, %v2298
    %v2883 = vpack.c.b16 %v2307, %v2299
    %v2884 = vpack.c.b16 %v2308, %v2300
    %v2885 = vpack.c.b16 %v2309, %v2301
    %v2886 = vpack.c.b16 %v2310, %v2302
    %v2887 = vpack.c.b16 %v2319, %v2311
    %v2888 = vpack.c.b16 %v2320, %v2312
    %v2889 = vpack.c.b16 %v2321, %v2313
    %v2890 = vpack.c.b16 %v2322, %v2314
    %v2891 = vpack.c.b16 %v2323, %v2315
    %v2892 = vpack.c.b16 %v2324, %v2316
    %v2893 = vpack.c.b16 %v2325, %v2317
    %v2894 = vpack.c.b16 %v2326, %v2318
    %v2895 = vpack.c.b16 %v2335, %v2327
    %v2896 = vpack.c.b16 %v2336, %v2328
    %v2897 = vpack.c.b16 %v2337, %v2329
    %v2898 = vpack.c.b16 %v2338, %v2330
    %v2899 = vpack.c.b16 %v2339, %v2331
    %v2900 = vpack.c.b16 %v2340, %v2332
    %v2901 = vpack.c.b16 %v2341, %v2333
    %v2902 = vpack.c.b16 %v2342, %v2334
    %v2903 = vpack.c.b16 %v2351, %v2343
    %v2904 = vpack.c.b16 %v2352, %v2344
    %v2905 = vpack.c.b16 %v2353, %v2345
    %v2906 = vpack.c.b16 %v2354, %v2346
    %v2907 = vpack.c.b16 %v2355, %v2347
    %v2908 = vpack.c.b16 %v2356, %v2348
    %v2909 = vpack.c.b16 %v2357, %v2349
    %v2910 = vpack.c.b16 %v2358, %v2350
    %v2911 = vpack.c.b16 %v2367, %v2359
    %v2912 = vpack.c.b16 %v2368, %v2360
    %v2913 = vpack.c.b16 %v2369, %v2361
    %v2914 = vpack.c.b16 %v2370, %v2362
    %v2915 = vpack.c.b16 %v2371, %v2363
    %v2916 = vpack.c.b16 %v2372, %v2364
    %v2917 = vpack.c.b16 %v2373, %v2365
    %v2918 = vpack.c.b16 %v2374, %v2366
    %v2919 = vpack.c.b16 %v2383, %v2375
    %v2920 = vpack.c.b16 %v2384, %v2376
    %v2921 = vpack.c.b16 %v2385, %v2377
    %v2922 = vpack.c.b16 %v2386, %v2378
    %v2923 = vpack.c.b16 %v2387, %v2379
    %v2924 = vpack.c.b16 %v2388, %v2380
    %v2925 = vpack.c.b16 %v2389, %v2381
    %v2926 = vpack.c.b16 %v2390, %v2382
    %v2927 = vpack.c.b16 %v2399, %v2391
    %v2928 = vpack.c.b16 %v2400, %v2392
    %v2929 = vpack.c.b16 %v2401, %v2393
    %v2930 = vpack.c.b16 %v2402, %v2394
    %v2931 = vpack.c.b16 %v2403, %v2395
    %v2932 = vpack.c.b16 %v2404, %v2396
    %v2933 = vpack.c.b16 %v2405, %v2397
    %v2934 = vpack.c.b16 %v2406, %v2398
    %v2935 = vpack.c.b16 %v2415, %v2407
    %v2936 = vpack.c.b16 %v2416, %v2408
    %v2937 = vpack.c.b16 %v2417, %v2409
    %v2938 = vpack.c.b16 %v2418, %v2410
    %v2939 = vpack.c.b16 %v2419, %v2411
    %v2940 = vpack.c.b16 %v2420, %v2412
    %v2941 = vpack.c.b16 %v2421, %v2413
    %v2942 = vpack.c.b16 %v2422, %v2414
    %v2943 = vpack.c.b16 %v2431, %v2423
    %v2944 = vpack.c.b16 %v2432, %v2424
    %v2945 = vpack.c.b16 %v2433, %v2425
    %v2946 = vpack.c.b16 %v2434, %v2426
    %v2947 = vpack.c.b16 %v2435, %v2427
    %v2948 = vpack.c.b16 %v2436, %v2428
    %v2949 = vpack.c.b16 %v2437, %v2429
    %v2950 = vpack.c.b16 %v2438, %v2430
    %3463 = vmatprep.subr.bf16.mxu0 %v2440
    %3464 = vmatpush1.bf16.msra.mxu0 %v2439
    %3465 = vmatprep.subr.bf16.mxu0 %v2448
    %3466 = vmatpush1.bf16.msra.mxu0 %v2447
    %3467 = vmatprep.subr.bf16.mxu0 %v2456
    %3468 = vmatpush1.bf16.msra.mxu0 %v2455
    %3469 = vmatprep.subr.bf16.mxu0 %v2464
    %3470 = vmatpush1.bf16.msra.mxu0 %v2463
    %3471 = vmatprep.subr.bf16.mxu0 %v2472
    %3472 = vmatpush1.bf16.msra.mxu0 %v2471
    %3473 = vmatprep.subr.bf16.mxu0 %v2480
    %3474 = vmatpush1.bf16.msra.mxu0 %v2479
    %3475 = vmatprep.subr.bf16.mxu0 %v2488
    %3476 = vmatpush1.bf16.msra.mxu0 %v2487
    %3477 = vmatprep.subr.bf16.mxu0 %v2496
    %3478 = vmatpush1.bf16.msra.mxu0 %v2495
    %3479 = vmatprep.subr.bf16.mxu0 %v2504
    %3480 = vmatpush1.bf16.msra.mxu0 %v2503
    %3481 = vmatprep.subr.bf16.mxu0 %v2512
    %3482 = vmatpush1.bf16.msra.mxu0 %v2511
    %3483 = vmatprep.subr.bf16.mxu0 %v2520
    %3484 = vmatpush1.bf16.msra.mxu0 %v2519
    %3485 = vmatprep.subr.bf16.mxu0 %v2528
    %3486 = vmatpush1.bf16.msra.mxu0 %v2527
    %3487 = vmatprep.subr.bf16.mxu0 %v2536
    %3488 = vmatpush1.bf16.msra.mxu0 %v2535
    %3489 = vmatprep.subr.bf16.mxu0 %v2544
    %3490 = vmatpush1.bf16.msra.mxu0 %v2543
    %3491 = vmatprep.subr.bf16.mxu0 %v2552
    %3492 = vmatpush1.bf16.msra.mxu0 %v2551
    %3493 = vmatprep.subr.bf16.mxu0 %v2560
    %3494 = vmatpush1.bf16.msra.mxu0 %v2559
    %3495 = vmatprep.mubr.bf16.mxu0 %v342
    %3496 = vmatmul.mubr.bf16.gmra.mrb[0].mxu0 %v341
    %v3497 = vpop.f32.mrb[0].mxu0
    %v3498 = vadd.f32 %v866, %v3497
    %v3499 = vpop.f32.mrb[0].mxu0
    %v3500 = vadd.f32 %v870, %v3499
    %v3501 = vpop.f32.mrb[0].mxu0
    %v3502 = vpop.f32.mrb[0].mxu0
    %3503 = vdwg.mxu0
    %3504 = vmatprep.subr.bf16.mxu0 %v2568
    %3505 = vmatpush1.bf16.msra.mxu0 %v2567
    %3506 = vmatprep.subr.bf16.mxu0 %v2576
    %3507 = vmatpush1.bf16.msra.mxu0 %v2575
    %3508 = vmatprep.subr.bf16.mxu0 %v2584
    %3509 = vmatpush1.bf16.msra.mxu0 %v2583
    %3510 = vmatprep.subr.bf16.mxu0 %v2592
    %3511 = vmatpush1.bf16.msra.mxu0 %v2591
    %3512 = vmatprep.subr.bf16.mxu0 %v2600
    %3513 = vmatpush1.bf16.msra.mxu0 %v2599
    %3514 = vmatprep.subr.bf16.mxu0 %v2608
    %3515 = vmatpush1.bf16.msra.mxu0 %v2607
    %3516 = vmatprep.subr.bf16.mxu0 %v2616
    %3517 = vmatpush1.bf16.msra.mxu0 %v2615
    %3518 = vmatprep.subr.bf16.mxu0 %v2624
    %3519 = vmatpush1.bf16.msra.mxu0 %v2623
    %3520 = vmatprep.subr.bf16.mxu0 %v2632
    %3521 = vmatpush1.bf16.msra.mxu0 %v2631
    %3522 = vmatprep.subr.bf16.mxu0 %v2640
    %3523 = vmatpush1.bf16.msra.mxu0 %v2639
    %3524 = vmatprep.subr.bf16.mxu0 %v2648
    %3525 = vmatpush1.bf16.msra.mxu0 %v2647
    %3526 = vmatprep.subr.bf16.mxu0 %v2656
    %3527 = vmatpush1.bf16.msra.mxu0 %v2655
    %3528 = vmatprep.subr.bf16.mxu0 %v2664
    %3529 = vmatpush1.bf16.msra.mxu0 %v2663
    %3530 = vmatprep.subr.bf16.mxu0 %v2672
    %3531 = vmatpush1.bf16.msra.mxu0 %v2671
    %3532 = vmatprep.subr.bf16.mxu0 %v2680
    %3533 = vmatpush1.bf16.msra.mxu0 %v2679
    %3534 = vmatprep.subr.bf16.mxu0 %v2688
    %3535 = vmatpush1.bf16.msra.mxu0 %v2687
    %3536 = vmatprep.mubr.bf16.mxu0 %v344
    %3537 = vmatmul.mubr.bf16.gmra.mrb[0].mxu0 %v343
    %v3538 = vpop.f32.mrb[0].mxu0
    %v3539 = vadd.f32 %v3498, %v3538
    %v3540 = vpop.f32.mrb[0].mxu0
    %v3541 = vadd.f32 %v3500, %v3540
    %v3542 = vpop.f32.mrb[0].mxu0
    %v3543 = vpop.f32.mrb[0].mxu0
    %3544 = vdwg.mxu0
    %3545 = vmatprep.subr.bf16.mxu0 %v2696
    %3546 = vmatpush1.bf16.msra.mxu0 %v2695
    %3547 = vmatprep.subr.bf16.mxu0 %v2704
    %3548 = vmatpush1.bf16.msra.mxu0 %v2703
    %3549 = vmatprep.subr.bf16.mxu0 %v2712
    %3550 = vmatpush1.bf16.msra.mxu0 %v2711
    %3551 = vmatprep.subr.bf16.mxu0 %v2720
    %3552 = vmatpush1.bf16.msra.mxu0 %v2719
    %3553 = vmatprep.subr.bf16.mxu0 %v2728
    %3554 = vmatpush1.bf16.msra.mxu0 %v2727
    %3555 = vmatprep.subr.bf16.mxu0 %v2736
    %3556 = vmatpush1.bf16.msra.mxu0 %v2735
    %3557 = vmatprep.subr.bf16.mxu0 %v2744
    %3558 = vmatpush1.bf16.msra.mxu0 %v2743
    %3559 = vmatprep.subr.bf16.mxu0 %v2752
    %3560 = vmatpush1.bf16.msra.mxu0 %v2751
    %3561 = vmatprep.subr.bf16.mxu0 %v2760
    %3562 = vmatpush1.bf16.msra.mxu0 %v2759
    %3563 = vmatprep.subr.bf16.mxu0 %v2768
    %3564 = vmatpush1.bf16.msra.mxu0 %v2767
    %3565 = vmatprep.subr.bf16.mxu0 %v2776
    %3566 = vmatpush1.bf16.msra.mxu0 %v2775
    %3567 = vmatprep.subr.bf16.mxu0 %v2784
    %3568 = vmatpush1.bf16.msra.mxu0 %v2783
    %3569 = vmatprep.subr.bf16.mxu0 %v2792
    %3570 = vmatpush1.bf16.msra.mxu0 %v2791
    %3571 = vmatprep.subr.bf16.mxu0 %v2800
    %3572 = vmatpush1.bf16.msra.mxu0 %v2799
    %3573 = vmatprep.subr.bf16.mxu0 %v2808
    %3574 = vmatpush1.bf16.msra.mxu0 %v2807
    %3575 = vmatprep.subr.bf16.mxu0 %v2816
    %3576 = vmatpush1.bf16.msra.mxu0 %v2815
    %3577 = vmatprep.mubr.bf16.mxu0 %v346
    %3578 = vmatmul.mubr.bf16.gmra.mrb[0].mxu0 %v345
    %v3579 = vpop.f32.mrb[0].mxu0
    %v3580 = vadd.f32 %v3539, %v3579
    %v3581 = vpop.f32.mrb[0].mxu0
    %v3582 = vadd.f32 %v3541, %v3581
    %v3583 = vpop.f32.mrb[0].mxu0
    %v3584 = vpop.f32.mrb[0].mxu0
    %3585 = vdwg.mxu0
    %3586 = vmatprep.subr.bf16.mxu0 %v2824
    %3587 = vmatpush1.bf16.msra.mxu0 %v2823
    %3588 = vmatprep.subr.bf16.mxu0 %v2832
    %3589 = vmatpush1.bf16.msra.mxu0 %v2831
    %3590 = vmatprep.subr.bf16.mxu0 %v2840
    %3591 = vmatpush1.bf16.msra.mxu0 %v2839
    %3592 = vmatprep.subr.bf16.mxu0 %v2848
    %3593 = vmatpush1.bf16.msra.mxu0 %v2847
    %3594 = vmatprep.subr.bf16.mxu0 %v2856
    %3595 = vmatpush1.bf16.msra.mxu0 %v2855
    %3596 = vmatprep.subr.bf16.mxu0 %v2864
    %3597 = vmatpush1.bf16.msra.mxu0 %v2863
    %3598 = vmatprep.subr.bf16.mxu0 %v2872
    %3599 = vmatpush1.bf16.msra.mxu0 %v2871
    %3600 = vmatprep.subr.bf16.mxu0 %v2880
    %3601 = vmatpush1.bf16.msra.mxu0 %v2879
    %3602 = vmatprep.subr.bf16.mxu0 %v2888
    %3603 = vmatpush1.bf16.msra.mxu0 %v2887
    %3604 = vmatprep.subr.bf16.mxu0 %v2896
    %3605 = vmatpush1.bf16.msra.mxu0 %v2895
    %3606 = vmatprep.subr.bf16.mxu0 %v2904
    %3607 = vmatpush1.bf16.msra.mxu0 %v2903
    %3608 = vmatprep.subr.bf16.mxu0 %v2912
    %3609 = vmatpush1.bf16.msra.mxu0 %v2911
    %3610 = vmatprep.subr.bf16.mxu0 %v2920
    %3611 = vmatpush1.bf16.msra.mxu0 %v2919
    %3612 = vmatprep.subr.bf16.mxu0 %v2928
    %3613 = vmatpush1.bf16.msra.mxu0 %v2927
    %3614 = vmatprep.subr.bf16.mxu0 %v2936
    %3615 = vmatpush1.bf16.msra.mxu0 %v2935
    %3616 = vmatprep.subr.bf16.mxu0 %v2944
    %3617 = vmatpush1.bf16.msra.mxu0 %v2943
    %3618 = vmatprep.mubr.bf16.mxu0 %v348
    %3619 = vmatmul.mubr.bf16.gmra.mrb[0].mxu0 %v347
    %v3620 = vpop.f32.mrb[0].mxu0
    %v3621 = vadd.f32 %v3580, %v3620
    %v3622 = vpop.f32.mrb[0].mxu0
    %v3623 = vadd.f32 %v3582, %v3622
    %v3624 = vpop.f32.mrb[0].mxu0
    %v3625 = vpop.f32.mrb[0].mxu0
    %3626 = vdwg.mxu0
    %3627 = vmatprep.subr.bf16.mxu0 %v2442
    %3628 = vmatpush1.bf16.msra.mxu0 %v2441
    %3629 = vmatprep.subr.bf16.mxu0 %v2450
    %3630 = vmatpush1.bf16.msra.mxu0 %v2449
    %3631 = vmatprep.subr.bf16.mxu0 %v2458
    %3632 = vmatpush1.bf16.msra.mxu0 %v2457
    %3633 = vmatprep.subr.bf16.mxu0 %v2466
    %3634 = vmatpush1.bf16.msra.mxu0 %v2465
    %3635 = vmatprep.subr.bf16.mxu0 %v2474
    %3636 = vmatpush1.bf16.msra.mxu0 %v2473
    %3637 = vmatprep.subr.bf16.mxu0 %v2482
    %3638 = vmatpush1.bf16.msra.mxu0 %v2481
    %3639 = vmatprep.subr.bf16.mxu0 %v2490
    %3640 = vmatpush1.bf16.msra.mxu0 %v2489
    %3641 = vmatprep.subr.bf16.mxu0 %v2498
    %3642 = vmatpush1.bf16.msra.mxu0 %v2497
    %3643 = vmatprep.subr.bf16.mxu0 %v2506
    %3644 = vmatpush1.bf16.msra.mxu0 %v2505
    %3645 = vmatprep.subr.bf16.mxu0 %v2514
    %3646 = vmatpush1.bf16.msra.mxu0 %v2513
    %3647 = vmatprep.subr.bf16.mxu0 %v2522
    %3648 = vmatpush1.bf16.msra.mxu0 %v2521
    %3649 = vmatprep.subr.bf16.mxu0 %v2530
    %3650 = vmatpush1.bf16.msra.mxu0 %v2529
    %3651 = vmatprep.subr.bf16.mxu0 %v2538
    %3652 = vmatpush1.bf16.msra.mxu0 %v2537
    %3653 = vmatprep.subr.bf16.mxu0 %v2546
    %3654 = vmatpush1.bf16.msra.mxu0 %v2545
    %3655 = vmatprep.subr.bf16.mxu0 %v2554
    %3656 = vmatpush1.bf16.msra.mxu0 %v2553
    %3657 = vmatprep.subr.bf16.mxu0 %v2562
    %3658 = vmatpush1.bf16.msra.mxu0 %v2561
    %3659 = vmatprep.mubr.bf16.mxu0 %v342
    %3660 = vmatmul.mubr.bf16.gmra.mrb[0].mxu0 %v341
    %v3661 = vpop.f32.mrb[0].mxu0
    %v3662 = vadd.f32 %v874, %v3661
    %v3663 = vpop.f32.mrb[0].mxu0
    %v3664 = vadd.f32 %v878, %v3663
    %v3665 = vpop.f32.mrb[0].mxu0
    %v3666 = vpop.f32.mrb[0].mxu0
    %3667 = vdwg.mxu0
    %3668 = vmatprep.subr.bf16.mxu0 %v2570
    %3669 = vmatpush1.bf16.msra.mxu0 %v2569
    %3670 = vmatprep.subr.bf16.mxu0 %v2578
    %3671 = vmatpush1.bf16.msra.mxu0 %v2577
    %3672 = vmatprep.subr.bf16.mxu0 %v2586
    %3673 = vmatpush1.bf16.msra.mxu0 %v2585
    %3674 = vmatprep.subr.bf16.mxu0 %v2594
    %3675 = vmatpush1.bf16.msra.mxu0 %v2593
    %3676 = vmatprep.subr.bf16.mxu0 %v2602
    %3677 = vmatpush1.bf16.msra.mxu0 %v2601
    %3678 = vmatprep.subr.bf16.mxu0 %v2610
    %3679 = vmatpush1.bf16.msra.mxu0 %v2609
    %3680 = vmatprep.subr.bf16.mxu0 %v2618
    %3681 = vmatpush1.bf16.msra.mxu0 %v2617
    %3682 = vmatprep.subr.bf16.mxu0 %v2626
    %3683 = vmatpush1.bf16.msra.mxu0 %v2625
    %3684 = vmatprep.subr.bf16.mxu0 %v2634
    %3685 = vmatpush1.bf16.msra.mxu0 %v2633
    %3686 = vmatprep.subr.bf16.mxu0 %v2642
    %3687 = vmatpush1.bf16.msra.mxu0 %v2641
    %3688 = vmatprep.subr.bf16.mxu0 %v2650
    %3689 = vmatpush1.bf16.msra.mxu0 %v2649
    %3690 = vmatprep.subr.bf16.mxu0 %v2658
    %3691 = vmatpush1.bf16.msra.mxu0 %v2657
    %3692 = vmatprep.subr.bf16.mxu0 %v2666
    %3693 = vmatpush1.bf16.msra.mxu0 %v2665
    %3694 = vmatprep.subr.bf16.mxu0 %v2674
    %3695 = vmatpush1.bf16.msra.mxu0 %v2673
    %3696 = vmatprep.subr.bf16.mxu0 %v2682
    %3697 = vmatpush1.bf16.msra.mxu0 %v2681
    %3698 = vmatprep.subr.bf16.mxu0 %v2690
    %3699 = vmatpush1.bf16.msra.mxu0 %v2689
    %3700 = vmatprep.mubr.bf16.mxu0 %v344
    %3701 = vmatmul.mubr.bf16.gmra.mrb[0].mxu0 %v343
    %v3702 = vpop.f32.mrb[0].mxu0
    %v3703 = vadd.f32 %v3662, %v3702
    %v3704 = vpop.f32.mrb[0].mxu0
    %v3705 = vadd.f32 %v3664, %v3704
    %v3706 = vpop.f32.mrb[0].mxu0
    %v3707 = vpop.f32.mrb[0].mxu0
    %3708 = vdwg.mxu0
    %3709 = vmatprep.subr.bf16.mxu0 %v2698
    %3710 = vmatpush1.bf16.msra.mxu0 %v2697
    %3711 = vmatprep.subr.bf16.mxu0 %v2706
    %3712 = vmatpush1.bf16.msra.mxu0 %v2705
    %3713 = vmatprep.subr.bf16.mxu0 %v2714
    %3714 = vmatpush1.bf16.msra.mxu0 %v2713
    %3715 = vmatprep.subr.bf16.mxu0 %v2722
    %3716 = vmatpush1.bf16.msra.mxu0 %v2721
    %3717 = vmatprep.subr.bf16.mxu0 %v2730
    %3718 = vmatpush1.bf16.msra.mxu0 %v2729
    %3719 = vmatprep.subr.bf16.mxu0 %v2738
    %3720 = vmatpush1.bf16.msra.mxu0 %v2737
    %3721 = vmatprep.subr.bf16.mxu0 %v2746
    %3722 = vmatpush1.bf16.msra.mxu0 %v2745
    %3723 = vmatprep.subr.bf16.mxu0 %v2754
    %3724 = vmatpush1.bf16.msra.mxu0 %v2753
    %3725 = vmatprep.subr.bf16.mxu0 %v2762
    %3726 = vmatpush1.bf16.msra.mxu0 %v2761
    %3727 = vmatprep.subr.bf16.mxu0 %v2770
    %3728 = vmatpush1.bf16.msra.mxu0 %v2769
    %3729 = vmatprep.subr.bf16.mxu0 %v2778
    %3730 = vmatpush1.bf16.msra.mxu0 %v2777
    %3731 = vmatprep.subr.bf16.mxu0 %v2786
    %3732 = vmatpush1.bf16.msra.mxu0 %v2785
    %3733 = vmatprep.subr.bf16.mxu0 %v2794
    %3734 = vmatpush1.bf16.msra.mxu0 %v2793
    %3735 = vmatprep.subr.bf16.mxu0 %v2802
    %3736 = vmatpush1.bf16.msra.mxu0 %v2801
    %3737 = vmatprep.subr.bf16.mxu0 %v2810
    %3738 = vmatpush1.bf16.msra.mxu0 %v2809
    %3739 = vmatprep.subr.bf16.mxu0 %v2818
    %3740 = vmatpush1.bf16.msra.mxu0 %v2817
    %3741 = vmatprep.mubr.bf16.mxu0 %v346
    %3742 = vmatmul.mubr.bf16.gmra.mrb[0].mxu0 %v345
    %v3743 = vpop.f32.mrb[0].mxu0
    %v3744 = vadd.f32 %v3703, %v3743
    %v3745 = vpop.f32.mrb[0].mxu0
    %v3746 = vadd.f32 %v3705, %v3745
    %v3747 = vpop.f32.mrb[0].mxu0
    %v3748 = vpop.f32.mrb[0].mxu0
    %3749 = vdwg.mxu0
    %3750 = vmatprep.subr.bf16.mxu0 %v2826
    %3751 = vmatpush1.bf16.msra.mxu0 %v2825
    %3752 = vmatprep.subr.bf16.mxu0 %v2834
    %3753 = vmatpush1.bf16.msra.mxu0 %v2833
    %3754 = vmatprep.subr.bf16.mxu0 %v2842
    %3755 = vmatpush1.bf16.msra.mxu0 %v2841
    %3756 = vmatprep.subr.bf16.mxu0 %v2850
    %3757 = vmatpush1.bf16.msra.mxu0 %v2849
    %3758 = vmatprep.subr.bf16.mxu0 %v2858
    %3759 = vmatpush1.bf16.msra.mxu0 %v2857
    %3760 = vmatprep.subr.bf16.mxu0 %v2866
    %3761 = vmatpush1.bf16.msra.mxu0 %v2865
    %3762 = vmatprep.subr.bf16.mxu0 %v2874
    %3763 = vmatpush1.bf16.msra.mxu0 %v2873
    %3764 = vmatprep.subr.bf16.mxu0 %v2882
    %3765 = vmatpush1.bf16.msra.mxu0 %v2881
    %3766 = vmatprep.subr.bf16.mxu0 %v2890
    %3767 = vmatpush1.bf16.msra.mxu0 %v2889
    %3768 = vmatprep.subr.bf16.mxu0 %v2898
    %3769 = vmatpush1.bf16.msra.mxu0 %v2897
    %3770 = vmatprep.subr.bf16.mxu0 %v2906
    %3771 = vmatpush1.bf16.msra.mxu0 %v2905
    %3772 = vmatprep.subr.bf16.mxu0 %v2914
    %3773 = vmatpush1.bf16.msra.mxu0 %v2913
    %3774 = vmatprep.subr.bf16.mxu0 %v2922
    %3775 = vmatpush1.bf16.msra.mxu0 %v2921
    %3776 = vmatprep.subr.bf16.mxu0 %v2930
    %3777 = vmatpush1.bf16.msra.mxu0 %v2929
    %3778 = vmatprep.subr.bf16.mxu0 %v2938
    %3779 = vmatpush1.bf16.msra.mxu0 %v2937
    %3780 = vmatprep.subr.bf16.mxu0 %v2946
    %3781 = vmatpush1.bf16.msra.mxu0 %v2945
    %3782 = vmatprep.mubr.bf16.mxu0 %v348
    %3783 = vmatmul.mubr.bf16.gmra.mrb[0].mxu0 %v347
    %v3784 = vpop.f32.mrb[0].mxu0
    %v3785 = vadd.f32 %v3744, %v3784
    %v3786 = vpop.f32.mrb[0].mxu0
    %v3787 = vadd.f32 %v3746, %v3786
    %v3788 = vpop.f32.mrb[0].mxu0
    %v3789 = vpop.f32.mrb[0].mxu0
    %3790 = vdwg.mxu0
    %3791 = vmatprep.subr.bf16.mxu0 %v2444
    %3792 = vmatpush1.bf16.msra.mxu0 %v2443
    %3793 = vmatprep.subr.bf16.mxu0 %v2452
    %3794 = vmatpush1.bf16.msra.mxu0 %v2451
    %3795 = vmatprep.subr.bf16.mxu0 %v2460
    %3796 = vmatpush1.bf16.msra.mxu0 %v2459
    %3797 = vmatprep.subr.bf16.mxu0 %v2468
    %3798 = vmatpush1.bf16.msra.mxu0 %v2467
    %3799 = vmatprep.subr.bf16.mxu0 %v2476
    %3800 = vmatpush1.bf16.msra.mxu0 %v2475
    %3801 = vmatprep.subr.bf16.mxu0 %v2484
    %3802 = vmatpush1.bf16.msra.mxu0 %v2483
    %3803 = vmatprep.subr.bf16.mxu0 %v2492
    %3804 = vmatpush1.bf16.msra.mxu0 %v2491
    %3805 = vmatprep.subr.bf16.mxu0 %v2500
    %3806 = vmatpush1.bf16.msra.mxu0 %v2499
    %3807 = vmatprep.subr.bf16.mxu0 %v2508
    %3808 = vmatpush1.bf16.msra.mxu0 %v2507
    %3809 = vmatprep.subr.bf16.mxu0 %v2516
    %3810 = vmatpush1.bf16.msra.mxu0 %v2515
    %3811 = vmatprep.subr.bf16.mxu0 %v2524
    %3812 = vmatpush1.bf16.msra.mxu0 %v2523
    %3813 = vmatprep.subr.bf16.mxu0 %v2532
    %3814 = vmatpush1.bf16.msra.mxu0 %v2531
    %3815 = vmatprep.subr.bf16.mxu0 %v2540
    %3816 = vmatpush1.bf16.msra.mxu0 %v2539
    %3817 = vmatprep.subr.bf16.mxu0 %v2548
    %3818 = vmatpush1.bf16.msra.mxu0 %v2547
    %3819 = vmatprep.subr.bf16.mxu0 %v2556
    %3820 = vmatpush1.bf16.msra.mxu0 %v2555
    %3821 = vmatprep.subr.bf16.mxu0 %v2564
    %3822 = vmatpush1.bf16.msra.mxu0 %v2563
    %3823 = vmatprep.mubr.bf16.mxu0 %v342
    %3824 = vmatmul.mubr.bf16.gmra.mrb[0].mxu0 %v341
    %v3825 = vpop.f32.mrb[0].mxu0
    %v3826 = vadd.f32 %v882, %v3825
    %v3827 = vpop.f32.mrb[0].mxu0
    %v3828 = vadd.f32 %v886, %v3827
    %v3829 = vpop.f32.mrb[0].mxu0
    %v3830 = vpop.f32.mrb[0].mxu0
    %3831 = vdwg.mxu0
    %3832 = vmatprep.subr.bf16.mxu0 %v2572
    %3833 = vmatpush1.bf16.msra.mxu0 %v2571
    %3834 = vmatprep.subr.bf16.mxu0 %v2580
    %3835 = vmatpush1.bf16.msra.mxu0 %v2579
    %3836 = vmatprep.subr.bf16.mxu0 %v2588
    %3837 = vmatpush1.bf16.msra.mxu0 %v2587
    %3838 = vmatprep.subr.bf16.mxu0 %v2596
    %3839 = vmatpush1.bf16.msra.mxu0 %v2595
    %3840 = vmatprep.subr.bf16.mxu0 %v2604
    %3841 = vmatpush1.bf16.msra.mxu0 %v2603
    %3842 = vmatprep.subr.bf16.mxu0 %v2612
    %3843 = vmatpush1.bf16.msra.mxu0 %v2611
    %3844 = vmatprep.subr.bf16.mxu0 %v2620
    %3845 = vmatpush1.bf16.msra.mxu0 %v2619
    %3846 = vmatprep.subr.bf16.mxu0 %v2628
    %3847 = vmatpush1.bf16.msra.mxu0 %v2627
    %3848 = vmatprep.subr.bf16.mxu0 %v2636
    %3849 = vmatpush1.bf16.msra.mxu0 %v2635
    %3850 = vmatprep.subr.bf16.mxu0 %v2644
    %3851 = vmatpush1.bf16.msra.mxu0 %v2643
    %3852 = vmatprep.subr.bf16.mxu0 %v2652
    %3853 = vmatpush1.bf16.msra.mxu0 %v2651
    %3854 = vmatprep.subr.bf16.mxu0 %v2660
    %3855 = vmatpush1.bf16.msra.mxu0 %v2659
    %3856 = vmatprep.subr.bf16.mxu0 %v2668
    %3857 = vmatpush1.bf16.msra.mxu0 %v2667
    %3858 = vmatprep.subr.bf16.mxu0 %v2676
    %3859 = vmatpush1.bf16.msra.mxu0 %v2675
    %3860 = vmatprep.subr.bf16.mxu0 %v2684
    %3861 = vmatpush1.bf16.msra.mxu0 %v2683
    %3862 = vmatprep.subr.bf16.mxu0 %v2692
    %3863 = vmatpush1.bf16.msra.mxu0 %v2691
    %3864 = vmatprep.mubr.bf16.mxu0 %v344
    %3865 = vmatmul.mubr.bf16.gmra.mrb[0].mxu0 %v343
    %v3866 = vpop.f32.mrb[0].mxu0
    %v3867 = vadd.f32 %v3826, %v3866
    %v3868 = vpop.f32.mrb[0].mxu0
    %v3869 = vadd.f32 %v3828, %v3868
    %v3870 = vpop.f32.mrb[0].mxu0
    %v3871 = vpop.f32.mrb[0].mxu0
    %3872 = vdwg.mxu0
    %3873 = vmatprep.subr.bf16.mxu0 %v2700
    %3874 = vmatpush1.bf16.msra.mxu0 %v2699
    %3875 = vmatprep.subr.bf16.mxu0 %v2708
    %3876 = vmatpush1.bf16.msra.mxu0 %v2707
    %3877 = vmatprep.subr.bf16.mxu0 %v2716
    %3878 = vmatpush1.bf16.msra.mxu0 %v2715
    %3879 = vmatprep.subr.bf16.mxu0 %v2724
    %3880 = vmatpush1.bf16.msra.mxu0 %v2723
    %3881 = vmatprep.subr.bf16.mxu0 %v2732
    %3882 = vmatpush1.bf16.msra.mxu0 %v2731
    %3883 = vmatprep.subr.bf16.mxu0 %v2740
    %3884 = vmatpush1.bf16.msra.mxu0 %v2739
    %3885 = vmatprep.subr.bf16.mxu0 %v2748
    %3886 = vmatpush1.bf16.msra.mxu0 %v2747
    %3887 = vmatprep.subr.bf16.mxu0 %v2756
    %3888 = vmatpush1.bf16.msra.mxu0 %v2755
    %3889 = vmatprep.subr.bf16.mxu0 %v2764
    %3890 = vmatpush1.bf16.msra.mxu0 %v2763
    %3891 = vmatprep.subr.bf16.mxu0 %v2772
    %3892 = vmatpush1.bf16.msra.mxu0 %v2771
    %3893 = vmatprep.subr.bf16.mxu0 %v2780
    %3894 = vmatpush1.bf16.msra.mxu0 %v2779
    %3895 = vmatprep.subr.bf16.mxu0 %v2788
    %3896 = vmatpush1.bf16.msra.mxu0 %v2787
    %3897 = vmatprep.subr.bf16.mxu0 %v2796
    %3898 = vmatpush1.bf16.msra.mxu0 %v2795
    %3899 = vmatprep.subr.bf16.mxu0 %v2804
    %3900 = vmatpush1.bf16.msra.mxu0 %v2803
    %3901 = vmatprep.subr.bf16.mxu0 %v2812
    %3902 = vmatpush1.bf16.msra.mxu0 %v2811
    %3903 = vmatprep.subr.bf16.mxu0 %v2820
    %3904 = vmatpush1.bf16.msra.mxu0 %v2819
    %3905 = vmatprep.mubr.bf16.mxu0 %v346
    %3906 = vmatmul.mubr.bf16.gmra.mrb[0].mxu0 %v345
    %v3907 = vpop.f32.mrb[0].mxu0
    %v3908 = vadd.f32 %v3867, %v3907
    %v3909 = vpop.f32.mrb[0].mxu0
    %v3910 = vadd.f32 %v3869, %v3909
    %v3911 = vpop.f32.mrb[0].mxu0
    %v3912 = vpop.f32.mrb[0].mxu0
    %3913 = vdwg.mxu0
    %3914 = vmatprep.subr.bf16.mxu0 %v2828
    %3915 = vmatpush1.bf16.msra.mxu0 %v2827
    %3916 = vmatprep.subr.bf16.mxu0 %v2836
    %3917 = vmatpush1.bf16.msra.mxu0 %v2835
    %3918 = vmatprep.subr.bf16.mxu0 %v2844
    %3919 = vmatpush1.bf16.msra.mxu0 %v2843
    %3920 = vmatprep.subr.bf16.mxu0 %v2852
    %3921 = vmatpush1.bf16.msra.mxu0 %v2851
    %3922 = vmatprep.subr.bf16.mxu0 %v2860
    %3923 = vmatpush1.bf16.msra.mxu0 %v2859
    %3924 = vmatprep.subr.bf16.mxu0 %v2868
    %3925 = vmatpush1.bf16.msra.mxu0 %v2867
    %3926 = vmatprep.subr.bf16.mxu0 %v2876
    %3927 = vmatpush1.bf16.msra.mxu0 %v2875
    %3928 = vmatprep.subr.bf16.mxu0 %v2884
    %3929 = vmatpush1.bf16.msra.mxu0 %v2883
    %3930 = vmatprep.subr.bf16.mxu0 %v2892
    %3931 = vmatpush1.bf16.msra.mxu0 %v2891
    %3932 = vmatprep.subr.bf16.mxu0 %v2900
    %3933 = vmatpush1.bf16.msra.mxu0 %v2899
    %3934 = vmatprep.subr.bf16.mxu0 %v2908
    %3935 = vmatpush1.bf16.msra.mxu0 %v2907
    %3936 = vmatprep.subr.bf16.mxu0 %v2916
    %3937 = vmatpush1.bf16.msra.mxu0 %v2915
    %3938 = vmatprep.subr.bf16.mxu0 %v2924
    %3939 = vmatpush1.bf16.msra.mxu0 %v2923
    %3940 = vmatprep.subr.bf16.mxu0 %v2932
    %3941 = vmatpush1.bf16.msra.mxu0 %v2931
    %3942 = vmatprep.subr.bf16.mxu0 %v2940
    %3943 = vmatpush1.bf16.msra.mxu0 %v2939
    %3944 = vmatprep.subr.bf16.mxu0 %v2948
    %3945 = vmatpush1.bf16.msra.mxu0 %v2947
    %3946 = vmatprep.mubr.bf16.mxu0 %v348
    %3947 = vmatmul.mubr.bf16.gmra.mrb[0].mxu0 %v347
    %v3948 = vpop.f32.mrb[0].mxu0
    %v3949 = vadd.f32 %v3908, %v3948
    %v3950 = vpop.f32.mrb[0].mxu0
    %v3951 = vadd.f32 %v3910, %v3950
    %v3952 = vpop.f32.mrb[0].mxu0
    %v3953 = vpop.f32.mrb[0].mxu0
    %3954 = vdwg.mxu0
    %3955 = vmatprep.subr.bf16.mxu0 %v2446
    %3956 = vmatpush1.bf16.msra.mxu0 %v2445
    %3957 = vmatprep.subr.bf16.mxu0 %v2454
    %3958 = vmatpush1.bf16.msra.mxu0 %v2453
    %3959 = vmatprep.subr.bf16.mxu0 %v2462
    %3960 = vmatpush1.bf16.msra.mxu0 %v2461
    %3961 = vmatprep.subr.bf16.mxu0 %v2470
    %3962 = vmatpush1.bf16.msra.mxu0 %v2469
    %3963 = vmatprep.subr.bf16.mxu0 %v2478
    %3964 = vmatpush1.bf16.msra.mxu0 %v2477
    %3965 = vmatprep.subr.bf16.mxu0 %v2486
    %3966 = vmatpush1.bf16.msra.mxu0 %v2485
    %3967 = vmatprep.subr.bf16.mxu0 %v2494
    %3968 = vmatpush1.bf16.msra.mxu0 %v2493
    %3969 = vmatprep.subr.bf16.mxu0 %v2502
    %3970 = vmatpush1.bf16.msra.mxu0 %v2501
    %3971 = vmatprep.subr.bf16.mxu0 %v2510
    %3972 = vmatpush1.bf16.msra.mxu0 %v2509
    %3973 = vmatprep.subr.bf16.mxu0 %v2518
    %3974 = vmatpush1.bf16.msra.mxu0 %v2517
    %3975 = vmatprep.subr.bf16.mxu0 %v2526
    %3976 = vmatpush1.bf16.msra.mxu0 %v2525
    %3977 = vmatprep.subr.bf16.mxu0 %v2534
    %3978 = vmatpush1.bf16.msra.mxu0 %v2533
    %3979 = vmatprep.subr.bf16.mxu0 %v2542
    %3980 = vmatpush1.bf16.msra.mxu0 %v2541
    %3981 = vmatprep.subr.bf16.mxu0 %v2550
    %3982 = vmatpush1.bf16.msra.mxu0 %v2549
    %3983 = vmatprep.subr.bf16.mxu0 %v2558
    %3984 = vmatpush1.bf16.msra.mxu0 %v2557
    %3985 = vmatprep.subr.bf16.mxu0 %v2566
    %3986 = vmatpush1.bf16.msra.mxu0 %v2565
    %3987 = vmatprep.mubr.bf16.mxu0 %v342
    %3988 = vmatmul.mubr.bf16.gmra.mrb[0].mxu0 %v341
    %v3989 = vpop.f32.mrb[0].mxu0
    %v3990 = vadd.f32 %v890, %v3989
    %v3991 = vpop.f32.mrb[0].mxu0
    %v3992 = vadd.f32 %v894, %v3991
    %v3993 = vpop.f32.mrb[0].mxu0
    %v3994 = vpop.f32.mrb[0].mxu0
    %3995 = vdwg.mxu0
    %3996 = vmatprep.subr.bf16.mxu0 %v2574
    %3997 = vmatpush1.bf16.msra.mxu0 %v2573
    %3998 = vmatprep.subr.bf16.mxu0 %v2582
    %3999 = vmatpush1.bf16.msra.mxu0 %v2581
    %4000 = vmatprep.subr.bf16.mxu0 %v2590
    %4001 = vmatpush1.bf16.msra.mxu0 %v2589
    %4002 = vmatprep.subr.bf16.mxu0 %v2598
    %4003 = vmatpush1.bf16.msra.mxu0 %v2597
    %4004 = vmatprep.subr.bf16.mxu0 %v2606
    %4005 = vmatpush1.bf16.msra.mxu0 %v2605
    %4006 = vmatprep.subr.bf16.mxu0 %v2614
    %4007 = vmatpush1.bf16.msra.mxu0 %v2613
    %4008 = vmatprep.subr.bf16.mxu0 %v2622
    %4009 = vmatpush1.bf16.msra.mxu0 %v2621
    %4010 = vmatprep.subr.bf16.mxu0 %v2630
    %4011 = vmatpush1.bf16.msra.mxu0 %v2629
    %4012 = vmatprep.subr.bf16.mxu0 %v2638
    %4013 = vmatpush1.bf16.msra.mxu0 %v2637
    %4014 = vmatprep.subr.bf16.mxu0 %v2646
    %4015 = vmatpush1.bf16.msra.mxu0 %v2645
    %4016 = vmatprep.subr.bf16.mxu0 %v2654
    %4017 = vmatpush1.bf16.msra.mxu0 %v2653
    %4018 = vmatprep.subr.bf16.mxu0 %v2662
    %4019 = vmatpush1.bf16.msra.mxu0 %v2661
    %4020 = vmatprep.subr.bf16.mxu0 %v2670
    %4021 = vmatpush1.bf16.msra.mxu0 %v2669
    %4022 = vmatprep.subr.bf16.mxu0 %v2678
    %4023 = vmatpush1.bf16.msra.mxu0 %v2677
    %4024 = vmatprep.subr.bf16.mxu0 %v2686
    %4025 = vmatpush1.bf16.msra.mxu0 %v2685
    %4026 = vmatprep.subr.bf16.mxu0 %v2694
    %4027 = vmatpush1.bf16.msra.mxu0 %v2693
    %4028 = vmatprep.mubr.bf16.mxu0 %v344
    %4029 = vmatmul.mubr.bf16.gmra.mrb[0].mxu0 %v343
    %v4030 = vpop.f32.mrb[0].mxu0
    %v4031 = vadd.f32 %v3990, %v4030
    %v4032 = vpop.f32.mrb[0].mxu0
    %v4033 = vadd.f32 %v3992, %v4032
    %v4034 = vpop.f32.mrb[0].mxu0
    %v4035 = vpop.f32.mrb[0].mxu0
    %4036 = vdwg.mxu0
    %4037 = vmatprep.subr.bf16.mxu0 %v2702
    %4038 = vmatpush1.bf16.msra.mxu0 %v2701
    %4039 = vmatprep.subr.bf16.mxu0 %v2710
    %4040 = vmatpush1.bf16.msra.mxu0 %v2709
    %4041 = vmatprep.subr.bf16.mxu0 %v2718
    %4042 = vmatpush1.bf16.msra.mxu0 %v2717
    %4043 = vmatprep.subr.bf16.mxu0 %v2726
    %4044 = vmatpush1.bf16.msra.mxu0 %v2725
    %4045 = vmatprep.subr.bf16.mxu0 %v2734
    %4046 = vmatpush1.bf16.msra.mxu0 %v2733
    %4047 = vmatprep.subr.bf16.mxu0 %v2742
    %4048 = vmatpush1.bf16.msra.mxu0 %v2741
    %4049 = vmatprep.subr.bf16.mxu0 %v2750
    %4050 = vmatpush1.bf16.msra.mxu0 %v2749
    %4051 = vmatprep.subr.bf16.mxu0 %v2758
    %4052 = vmatpush1.bf16.msra.mxu0 %v2757
    %4053 = vmatprep.subr.bf16.mxu0 %v2766
    %4054 = vmatpush1.bf16.msra.mxu0 %v2765
    %4055 = vmatprep.subr.bf16.mxu0 %v2774
    %4056 = vmatpush1.bf16.msra.mxu0 %v2773
    %4057 = vmatprep.subr.bf16.mxu0 %v2782
    %4058 = vmatpush1.bf16.msra.mxu0 %v2781
    %4059 = vmatprep.subr.bf16.mxu0 %v2790
    %4060 = vmatpush1.bf16.msra.mxu0 %v2789
    %4061 = vmatprep.subr.bf16.mxu0 %v2798
    %4062 = vmatpush1.bf16.msra.mxu0 %v2797
    %4063 = vmatprep.subr.bf16.mxu0 %v2806
    %4064 = vmatpush1.bf16.msra.mxu0 %v2805
    %4065 = vmatprep.subr.bf16.mxu0 %v2814
    %4066 = vmatpush1.bf16.msra.mxu0 %v2813
    %4067 = vmatprep.subr.bf16.mxu0 %v2822
    %4068 = vmatpush1.bf16.msra.mxu0 %v2821
    %4069 = vmatprep.mubr.bf16.mxu0 %v346
    %4070 = vmatmul.mubr.bf16.gmra.mrb[0].mxu0 %v345
    %v4071 = vpop.f32.mrb[0].mxu0
    %v4072 = vadd.f32 %v4031, %v4071
    %v4073 = vpop.f32.mrb[0].mxu0
    %v4074 = vadd.f32 %v4033, %v4073
    %v4075 = vpop.f32.mrb[0].mxu0
    %v4076 = vpop.f32.mrb[0].mxu0
    %4077 = vdwg.mxu0
    %4078 = vmatprep.subr.bf16.mxu0 %v2830
    %4079 = vmatpush1.bf16.msra.mxu0 %v2829
    %4080 = vmatprep.subr.bf16.mxu0 %v2838
    %4081 = vmatpush1.bf16.msra.mxu0 %v2837
    %4082 = vmatprep.subr.bf16.mxu0 %v2846
    %4083 = vmatpush1.bf16.msra.mxu0 %v2845
    %4084 = vmatprep.subr.bf16.mxu0 %v2854
    %4085 = vmatpush1.bf16.msra.mxu0 %v2853
    %4086 = vmatprep.subr.bf16.mxu0 %v2862
    %4087 = vmatpush1.bf16.msra.mxu0 %v2861
    %4088 = vmatprep.subr.bf16.mxu0 %v2870
    %4089 = vmatpush1.bf16.msra.mxu0 %v2869
    %4090 = vmatprep.subr.bf16.mxu0 %v2878
    %4091 = vmatpush1.bf16.msra.mxu0 %v2877
    %4092 = vmatprep.subr.bf16.mxu0 %v2886
    %4093 = vmatpush1.bf16.msra.mxu0 %v2885
    %4094 = vmatprep.subr.bf16.mxu0 %v2894
    %4095 = vmatpush1.bf16.msra.mxu0 %v2893
    %4096 = vmatprep.subr.bf16.mxu0 %v2902
    %4097 = vmatpush1.bf16.msra.mxu0 %v2901
    %4098 = vmatprep.subr.bf16.mxu0 %v2910
    %4099 = vmatpush1.bf16.msra.mxu0 %v2909
    %4100 = vmatprep.subr.bf16.mxu0 %v2918
    %4101 = vmatpush1.bf16.msra.mxu0 %v2917
    %4102 = vmatprep.subr.bf16.mxu0 %v2926
    %4103 = vmatpush1.bf16.msra.mxu0 %v2925
    %4104 = vmatprep.subr.bf16.mxu0 %v2934
    %4105 = vmatpush1.bf16.msra.mxu0 %v2933
    %4106 = vmatprep.subr.bf16.mxu0 %v2942
    %4107 = vmatpush1.bf16.msra.mxu0 %v2941
    %4108 = vmatprep.subr.bf16.mxu0 %v2950
    %4109 = vmatpush1.bf16.msra.mxu0 %v2949
    %4110 = vmatprep.mubr.bf16.mxu0 %v348
    %4111 = vmatmul.mubr.bf16.gmra.mrb[0].mxu0 %v347
    %v4112 = vpop.f32.mrb[0].mxu0
    %v4113 = vadd.f32 %v4072, %v4112
    %v4114 = vpop.f32.mrb[0].mxu0
    %v4115 = vadd.f32 %v4074, %v4114
    %v4116 = vpop.f32.mrb[0].mxu0
    %v4117 = vpop.f32.mrb[0].mxu0
    %4118 = vdwg.mxu0
    %v4119 = vmul.f32 %v3621, 0.01
    %v4120 = vmul.f32 %v3623, 0.01
    %v4121 = vmul.f32 %v3785, 0.01
    %v4122 = vmul.f32 %v3787, 0.01
    %v4123 = vmul.f32 %v3949, 0.01
    %v4124 = vmul.f32 %v3951, 0.01
    %v4125 = vmul.f32 %v4113, 0.01
    %v4126 = vmul.f32 %v4115, 0.01
    %v4127 = vmax.f32 %v3621, %v4119
    %v4128 = vmax.f32 %v3623, %v4120
    %v4129 = vmax.f32 %v3785, %v4121
    %v4130 = vmax.f32 %v3787, %v4122
    %v4131 = vmax.f32 %v3949, %v4123
    %v4132 = vmax.f32 %v3951, %v4124
    %v4133 = vmax.f32 %v4113, %v4125
    %v4134 = vmax.f32 %v4115, %v4126
    %v4135 = vpack.c.bf16 %v4127, %v4127
    %v4136 = vpack.c.bf16 %v4128, %v4128
    %v4137 = vpack.c.bf16 %v4129, %v4129
    %v4138 = vpack.c.bf16 %v4130, %v4130
    %v4139 = vpack.c.bf16 %v4131, %v4131
    %v4140 = vpack.c.bf16 %v4132, %v4132
    %v4141 = vpack.c.bf16 %v4133, %v4133
    %v4142 = vpack.c.bf16 %v4134, %v4134
    %v4143 = vld [vmem:[#allocation11] sm:$0xf]
    %v4144 = vld [vmem:[#allocation11 + $0x4] sm:$0xf]
    %v4145 = vld [vmem:[#allocation11 + $0x8] sm:$0xf]
    %v4146 = vld [vmem:[#allocation11 + $0xc] sm:$0xf]
    %v4147 = vld [vmem:[#allocation11 + $0x10] sm:$0xf]
    %v4148 = vld [vmem:[#allocation11 + $0x14] sm:$0xf]
    %v4149 = vld [vmem:[#allocation11 + $0x18] sm:$0xf]
    %v4150 = vld [vmem:[#allocation11 + $0x1c] sm:$0xf]
    %v4151 = vld [vmem:[#allocation11 + $0x20] sm:$0xf]
    %v4152 = vld [vmem:[#allocation11 + $0x24] sm:$0xf]
    %v4153 = vld [vmem:[#allocation11 + $0x28] sm:$0xf]
    %v4154 = vld [vmem:[#allocation11 + $0x2c] sm:$0xf]
    %v4155 = vld [vmem:[#allocation11 + $0x30] sm:$0xf]
    %v4156 = vld [vmem:[#allocation11 + $0x34] sm:$0xf]
    %v4157 = vld [vmem:[#allocation11 + $0x38] sm:$0xf]
    %v4158 = vld [vmem:[#allocation11 + $0x3c] sm:$0xf]
    %v4159 = vld [vmem:[#allocation11 + $0x40] sm:$0xf]
    %v4160 = vld [vmem:[#allocation11 + $0x44] sm:$0xf]
    %v4161 = vld [vmem:[#allocation11 + $0x48] sm:$0xf]
    %v4162 = vld [vmem:[#allocation11 + $0x4c] sm:$0xf]
    %v4163 = vld [vmem:[#allocation11 + $0x50] sm:$0xf]
    %v4164 = vld [vmem:[#allocation11 + $0x54] sm:$0xf]
    %v4165 = vld [vmem:[#allocation11 + $0x58] sm:$0xf]
    %v4166 = vld [vmem:[#allocation11 + $0x5c] sm:$0xf]
    %v4167 = vld [vmem:[#allocation11 + $0x60] sm:$0xf]
    %v4168 = vld [vmem:[#allocation11 + $0x64] sm:$0xf]
    %v4169 = vld [vmem:[#allocation11 + $0x68] sm:$0xf]
    %v4170 = vld [vmem:[#allocation11 + $0x6c] sm:$0xf]
    %v4171 = vld [vmem:[#allocation11 + $0x70] sm:$0xf]
    %v4172 = vld [vmem:[#allocation11 + $0x74] sm:$0xf]
    %v4173 = vld [vmem:[#allocation11 + $0x78] sm:$0xf]
    %v4174 = vld [vmem:[#allocation11 + $0x7c] sm:$0xf]
    %v4175 = vld [vmem:[#allocation11 + $0x80] sm:$0xf]
    %v4176 = vld [vmem:[#allocation11 + $0x84] sm:$0xf]
    %v4177 = vld [vmem:[#allocation11 + $0x88] sm:$0xf]
    %v4178 = vld [vmem:[#allocation11 + $0x8c] sm:$0xf]
    %v4179 = vld [vmem:[#allocation11 + $0x90] sm:$0xf]
    %v4180 = vld [vmem:[#allocation11 + $0x94] sm:$0xf]
    %v4181 = vld [vmem:[#allocation11 + $0x98] sm:$0xf]
    %v4182 = vld [vmem:[#allocation11 + $0x9c] sm:$0xf]
    %v4183 = vld [vmem:[#allocation11 + $0xa0] sm:$0xf]
    %v4184 = vld [vmem:[#allocation11 + $0xa4] sm:$0xf]
    %v4185 = vld [vmem:[#allocation11 + $0xa8] sm:$0xf]
    %v4186 = vld [vmem:[#allocation11 + $0xac] sm:$0xf]
    %v4187 = vld [vmem:[#allocation11 + $0xb0] sm:$0xf]
    %v4188 = vld [vmem:[#allocation11 + $0xb4] sm:$0xf]
    %v4189 = vld [vmem:[#allocation11 + $0xb8] sm:$0xf]
    %v4190 = vld [vmem:[#allocation11 + $0xbc] sm:$0xf]
    %v4191 = vld [vmem:[#allocation11 + $0xc0] sm:$0xf]
    %v4192 = vld [vmem:[#allocation11 + $0xc4] sm:$0xf]
    %v4193 = vld [vmem:[#allocation11 + $0xc8] sm:$0xf]
    %v4194 = vld [vmem:[#allocation11 + $0xcc] sm:$0xf]
    %v4195 = vld [vmem:[#allocation11 + $0xd0] sm:$0xf]
    %v4196 = vld [vmem:[#allocation11 + $0xd4] sm:$0xf]
    %v4197 = vld [vmem:[#allocation11 + $0xd8] sm:$0xf]
    %v4198 = vld [vmem:[#allocation11 + $0xdc] sm:$0xf]
    %v4199 = vld [vmem:[#allocation11 + $0xe0] sm:$0xf]
    %v4200 = vld [vmem:[#allocation11 + $0xe4] sm:$0xf]
    %v4201 = vld [vmem:[#allocation11 + $0xe8] sm:$0xf]
    %v4202 = vld [vmem:[#allocation11 + $0xec] sm:$0xf]
    %v4203 = vld [vmem:[#allocation11 + $0xf0] sm:$0xf]
    %v4204 = vld [vmem:[#allocation11 + $0xf4] sm:$0xf]
    %v4205 = vld [vmem:[#allocation11 + $0xf8] sm:$0xf]
    %v4206 = vld [vmem:[#allocation11 + $0xfc] sm:$0xf]
    %v4207 = vld [vmem:[#allocation11 + $0x100] sm:$0xf]
    %v4208 = vld [vmem:[#allocation11 + $0x104] sm:$0xf]
    %v4209 = vld [vmem:[#allocation11 + $0x108] sm:$0xf]
    %v4210 = vld [vmem:[#allocation11 + $0x10c] sm:$0xf]
    %v4211 = vld [vmem:[#allocation11 + $0x110] sm:$0xf]
    %v4212 = vld [vmem:[#allocation11 + $0x114] sm:$0xf]
    %v4213 = vld [vmem:[#allocation11 + $0x118] sm:$0xf]
    %v4214 = vld [vmem:[#allocation11 + $0x11c] sm:$0xf]
    %v4215 = vld [vmem:[#allocation11 + $0x120] sm:$0xf]
    %v4216 = vld [vmem:[#allocation11 + $0x124] sm:$0xf]
    %v4217 = vld [vmem:[#allocation11 + $0x128] sm:$0xf]
    %v4218 = vld [vmem:[#allocation11 + $0x12c] sm:$0xf]
    %v4219 = vld [vmem:[#allocation11 + $0x130] sm:$0xf]
    %v4220 = vld [vmem:[#allocation11 + $0x134] sm:$0xf]
    %v4221 = vld [vmem:[#allocation11 + $0x138] sm:$0xf]
    %v4222 = vld [vmem:[#allocation11 + $0x13c] sm:$0xf]
    %v4223 = vld [vmem:[#allocation11 + $0x140] sm:$0xf]
    %v4224 = vld [vmem:[#allocation11 + $0x144] sm:$0xf]
    %v4225 = vld [vmem:[#allocation11 + $0x148] sm:$0xf]
    %v4226 = vld [vmem:[#allocation11 + $0x14c] sm:$0xf]
    %v4227 = vld [vmem:[#allocation11 + $0x150] sm:$0xf]
    %v4228 = vld [vmem:[#allocation11 + $0x154] sm:$0xf]
    %v4229 = vld [vmem:[#allocation11 + $0x158] sm:$0xf]
    %v4230 = vld [vmem:[#allocation11 + $0x15c] sm:$0xf]
    %v4231 = vld [vmem:[#allocation11 + $0x160] sm:$0xf]
    %v4232 = vld [vmem:[#allocation11 + $0x164] sm:$0xf]
    %v4233 = vld [vmem:[#allocation11 + $0x168] sm:$0xf]
    %v4234 = vld [vmem:[#allocation11 + $0x16c] sm:$0xf]
    %v4235 = vld [vmem:[#allocation11 + $0x170] sm:$0xf]
    %v4236 = vld [vmem:[#allocation11 + $0x174] sm:$0xf]
    %v4237 = vld [vmem:[#allocation11 + $0x178] sm:$0xf]
    %v4238 = vld [vmem:[#allocation11 + $0x17c] sm:$0xf]
    %v4239 = vld [vmem:[#allocation11 + $0x180] sm:$0xf]
    %v4240 = vld [vmem:[#allocation11 + $0x184] sm:$0xf]
    %v4241 = vld [vmem:[#allocation11 + $0x188] sm:$0xf]
    %v4242 = vld [vmem:[#allocation11 + $0x18c] sm:$0xf]
    %v4243 = vld [vmem:[#allocation11 + $0x190] sm:$0xf]
    %v4244 = vld [vmem:[#allocation11 + $0x194] sm:$0xf]
    %v4245 = vld [vmem:[#allocation11 + $0x198] sm:$0xf]
    %v4246 = vld [vmem:[#allocation11 + $0x19c] sm:$0xf]
    %v4247 = vld [vmem:[#allocation11 + $0x1a0] sm:$0xf]
    %v4248 = vld [vmem:[#allocation11 + $0x1a4] sm:$0xf]
    %v4249 = vld [vmem:[#allocation11 + $0x1a8] sm:$0xf]
    %v4250 = vld [vmem:[#allocation11 + $0x1ac] sm:$0xf]
    %v4251 = vld [vmem:[#allocation11 + $0x1b0] sm:$0xf]
    %v4252 = vld [vmem:[#allocation11 + $0x1b4] sm:$0xf]
    %v4253 = vld [vmem:[#allocation11 + $0x1b8] sm:$0xf]
    %v4254 = vld [vmem:[#allocation11 + $0x1bc] sm:$0xf]
    %v4255 = vld [vmem:[#allocation11 + $0x1c0] sm:$0xf]
    %v4256 = vld [vmem:[#allocation11 + $0x1c4] sm:$0xf]
    %v4257 = vld [vmem:[#allocation11 + $0x1c8] sm:$0xf]
    %v4258 = vld [vmem:[#allocation11 + $0x1cc] sm:$0xf]
    %v4259 = vld [vmem:[#allocation11 + $0x1d0] sm:$0xf]
    %v4260 = vld [vmem:[#allocation11 + $0x1d4] sm:$0xf]
    %v4261 = vld [vmem:[#allocation11 + $0x1d8] sm:$0xf]
    %v4262 = vld [vmem:[#allocation11 + $0x1dc] sm:$0xf]
    %v4263 = vld [vmem:[#allocation11 + $0x1e0] sm:$0xf]
    %v4264 = vld [vmem:[#allocation11 + $0x1e4] sm:$0xf]
    %v4265 = vld [vmem:[#allocation11 + $0x1e8] sm:$0xf]
    %v4266 = vld [vmem:[#allocation11 + $0x1ec] sm:$0xf]
    %v4267 = vld [vmem:[#allocation11 + $0x1f0] sm:$0xf]
    %v4268 = vld [vmem:[#allocation11 + $0x1f4] sm:$0xf]
    %v4269 = vld [vmem:[#allocation11 + $0x1f8] sm:$0xf]
    %v4270 = vld [vmem:[#allocation11 + $0x1fc] sm:$0xf]
    %v4271 = vld [vmem:[#allocation13] sm:$0x1]
    %v4273 = vlaneseq
    %v4274 = vshrl.u32 %v4273, 7
    %v4275 = vsub.s32 0, %v4274
    %v4276 = vrot.slane %v4271, %v4275
    %v4406 = vunpack.c.l.b16 %v4143
    %v4407 = vunpack.c.l.b16 %v4144
    %v4408 = vunpack.c.l.b16 %v4145
    %v4409 = vunpack.c.l.b16 %v4146
    %v4410 = vunpack.c.l.b16 %v4147
    %v4411 = vunpack.c.l.b16 %v4148
    %v4412 = vunpack.c.l.b16 %v4149
    %v4413 = vunpack.c.l.b16 %v4150
    %v4414 = vunpack.c.l.b16 %v4151
    %v4415 = vunpack.c.l.b16 %v4152
    %v4416 = vunpack.c.l.b16 %v4153
    %v4417 = vunpack.c.l.b16 %v4154
    %v4418 = vunpack.c.l.b16 %v4155
    %v4419 = vunpack.c.l.b16 %v4156
    %v4420 = vunpack.c.l.b16 %v4157
    %v4421 = vunpack.c.l.b16 %v4158
    %v4422 = vunpack.c.l.b16 %v4159
    %v4423 = vunpack.c.l.b16 %v4160
    %v4424 = vunpack.c.l.b16 %v4161
    %v4425 = vunpack.c.l.b16 %v4162
    %v4426 = vunpack.c.l.b16 %v4163
    %v4427 = vunpack.c.l.b16 %v4164
    %v4428 = vunpack.c.l.b16 %v4165
    %v4429 = vunpack.c.l.b16 %v4166
    %v4430 = vunpack.c.l.b16 %v4167
    %v4431 = vunpack.c.l.b16 %v4168
    %v4432 = vunpack.c.l.b16 %v4169
    %v4433 = vunpack.c.l.b16 %v4170
    %v4434 = vunpack.c.l.b16 %v4171
    %v4435 = vunpack.c.l.b16 %v4172
    %v4436 = vunpack.c.l.b16 %v4173
    %v4437 = vunpack.c.l.b16 %v4174
    %v4438 = vunpack.c.l.b16 %v4175
    %v4439 = vunpack.c.l.b16 %v4176
    %v4440 = vunpack.c.l.b16 %v4177
    %v4441 = vunpack.c.l.b16 %v4178
    %v4442 = vunpack.c.l.b16 %v4179
    %v4443 = vunpack.c.l.b16 %v4180
    %v4444 = vunpack.c.l.b16 %v4181
    %v4445 = vunpack.c.l.b16 %v4182
    %v4446 = vunpack.c.l.b16 %v4183
    %v4447 = vunpack.c.l.b16 %v4184
    %v4448 = vunpack.c.l.b16 %v4185
    %v4449 = vunpack.c.l.b16 %v4186
    %v4450 = vunpack.c.l.b16 %v4187
    %v4451 = vunpack.c.l.b16 %v4188
    %v4452 = vunpack.c.l.b16 %v4189
    %v4453 = vunpack.c.l.b16 %v4190
    %v4454 = vunpack.c.l.b16 %v4191
    %v4455 = vunpack.c.l.b16 %v4192
    %v4456 = vunpack.c.l.b16 %v4193
    %v4457 = vunpack.c.l.b16 %v4194
    %v4458 = vunpack.c.l.b16 %v4195
    %v4459 = vunpack.c.l.b16 %v4196
    %v4460 = vunpack.c.l.b16 %v4197
    %v4461 = vunpack.c.l.b16 %v4198
    %v4462 = vunpack.c.l.b16 %v4199
    %v4463 = vunpack.c.l.b16 %v4200
    %v4464 = vunpack.c.l.b16 %v4201
    %v4465 = vunpack.c.l.b16 %v4202
    %v4466 = vunpack.c.l.b16 %v4203
    %v4467 = vunpack.c.l.b16 %v4204
    %v4468 = vunpack.c.l.b16 %v4205
    %v4469 = vunpack.c.l.b16 %v4206
    %v4470 = vunpack.c.l.b16 %v4207
    %v4471 = vunpack.c.l.b16 %v4208
    %v4472 = vunpack.c.l.b16 %v4209
    %v4473 = vunpack.c.l.b16 %v4210
    %v4474 = vunpack.c.l.b16 %v4211
    %v4475 = vunpack.c.l.b16 %v4212
    %v4476 = vunpack.c.l.b16 %v4213
    %v4477 = vunpack.c.l.b16 %v4214
    %v4478 = vunpack.c.l.b16 %v4215
    %v4479 = vunpack.c.l.b16 %v4216
    %v4480 = vunpack.c.l.b16 %v4217
    %v4481 = vunpack.c.l.b16 %v4218
    %v4482 = vunpack.c.l.b16 %v4219
    %v4483 = vunpack.c.l.b16 %v4220
    %v4484 = vunpack.c.l.b16 %v4221
    %v4485 = vunpack.c.l.b16 %v4222
    %v4486 = vunpack.c.l.b16 %v4223
    %v4487 = vunpack.c.l.b16 %v4224
    %v4488 = vunpack.c.l.b16 %v4225
    %v4489 = vunpack.c.l.b16 %v4226
    %v4490 = vunpack.c.l.b16 %v4227
    %v4491 = vunpack.c.l.b16 %v4228
    %v4492 = vunpack.c.l.b16 %v4229
    %v4493 = vunpack.c.l.b16 %v4230
    %v4494 = vunpack.c.l.b16 %v4231
    %v4495 = vunpack.c.l.b16 %v4232
    %v4496 = vunpack.c.l.b16 %v4233
    %v4497 = vunpack.c.l.b16 %v4234
    %v4498 = vunpack.c.l.b16 %v4235
    %v4499 = vunpack.c.l.b16 %v4236
    %v4500 = vunpack.c.l.b16 %v4237
    %v4501 = vunpack.c.l.b16 %v4238
    %v4502 = vunpack.c.l.b16 %v4239
    %v4503 = vunpack.c.l.b16 %v4240
    %v4504 = vunpack.c.l.b16 %v4241
    %v4505 = vunpack.c.l.b16 %v4242
    %v4506 = vunpack.c.l.b16 %v4243
    %v4507 = vunpack.c.l.b16 %v4244
    %v4508 = vunpack.c.l.b16 %v4245
    %v4509 = vunpack.c.l.b16 %v4246
    %v4510 = vunpack.c.l.b16 %v4247
    %v4511 = vunpack.c.l.b16 %v4248
    %v4512 = vunpack.c.l.b16 %v4249
    %v4513 = vunpack.c.l.b16 %v4250
    %v4514 = vunpack.c.l.b16 %v4251
    %v4515 = vunpack.c.l.b16 %v4252
    %v4516 = vunpack.c.l.b16 %v4253
    %v4517 = vunpack.c.l.b16 %v4254
    %v4518 = vunpack.c.l.b16 %v4255
    %v4519 = vunpack.c.l.b16 %v4256
    %v4520 = vunpack.c.l.b16 %v4257
    %v4521 = vunpack.c.l.b16 %v4258
    %v4522 = vunpack.c.l.b16 %v4259
    %v4523 = vunpack.c.l.b16 %v4260
    %v4524 = vunpack.c.l.b16 %v4261
    %v4525 = vunpack.c.l.b16 %v4262
    %v4526 = vunpack.c.l.b16 %v4263
    %v4527 = vunpack.c.l.b16 %v4264
    %v4528 = vunpack.c.l.b16 %v4265
    %v4529 = vunpack.c.l.b16 %v4266
    %v4530 = vunpack.c.l.b16 %v4267
    %v4531 = vunpack.c.l.b16 %v4268
    %v4532 = vunpack.c.l.b16 %v4269
    %v4533 = vunpack.c.l.b16 %v4270
    %v4534 = vpack.c.b16 %v4407, %v4406
    %v4535 = vpack.c.b16 %v4409, %v4408
    %v4536 = vpack.c.b16 %v4411, %v4410
    %v4537 = vpack.c.b16 %v4413, %v4412
    %v4538 = vpack.c.b16 %v4415, %v4414
    %v4539 = vpack.c.b16 %v4417, %v4416
    %v4540 = vpack.c.b16 %v4419, %v4418
    %v4541 = vpack.c.b16 %v4421, %v4420
    %v4542 = vpack.c.b16 %v4423, %v4422
    %v4543 = vpack.c.b16 %v4425, %v4424
    %v4544 = vpack.c.b16 %v4427, %v4426
    %v4545 = vpack.c.b16 %v4429, %v4428
    %v4546 = vpack.c.b16 %v4431, %v4430
    %v4547 = vpack.c.b16 %v4433, %v4432
    %v4548 = vpack.c.b16 %v4435, %v4434
    %v4549 = vpack.c.b16 %v4437, %v4436
    %v4550 = vpack.c.b16 %v4439, %v4438
    %v4551 = vpack.c.b16 %v4441, %v4440
    %v4552 = vpack.c.b16 %v4443, %v4442
    %v4553 = vpack.c.b16 %v4445, %v4444
    %v4554 = vpack.c.b16 %v4447, %v4446
    %v4555 = vpack.c.b16 %v4449, %v4448
    %v4556 = vpack.c.b16 %v4451, %v4450
    %v4557 = vpack.c.b16 %v4453, %v4452
    %v4558 = vpack.c.b16 %v4455, %v4454
    %v4559 = vpack.c.b16 %v4457, %v4456
    %v4560 = vpack.c.b16 %v4459, %v4458
    %v4561 = vpack.c.b16 %v4461, %v4460
    %v4562 = vpack.c.b16 %v4463, %v4462
    %v4563 = vpack.c.b16 %v4465, %v4464
    %v4564 = vpack.c.b16 %v4467, %v4466
    %v4565 = vpack.c.b16 %v4469, %v4468
    %v4566 = vpack.c.b16 %v4471, %v4470
    %v4567 = vpack.c.b16 %v4473, %v4472
    %v4568 = vpack.c.b16 %v4475, %v4474
    %v4569 = vpack.c.b16 %v4477, %v4476
    %v4570 = vpack.c.b16 %v4479, %v4478
    %v4571 = vpack.c.b16 %v4481, %v4480
    %v4572 = vpack.c.b16 %v4483, %v4482
    %v4573 = vpack.c.b16 %v4485, %v4484
    %v4574 = vpack.c.b16 %v4487, %v4486
    %v4575 = vpack.c.b16 %v4489, %v4488
    %v4576 = vpack.c.b16 %v4491, %v4490
    %v4577 = vpack.c.b16 %v4493, %v4492
    %v4578 = vpack.c.b16 %v4495, %v4494
    %v4579 = vpack.c.b16 %v4497, %v4496
    %v4580 = vpack.c.b16 %v4499, %v4498
    %v4581 = vpack.c.b16 %v4501, %v4500
    %v4582 = vpack.c.b16 %v4503, %v4502
    %v4583 = vpack.c.b16 %v4505, %v4504
    %v4584 = vpack.c.b16 %v4507, %v4506
    %v4585 = vpack.c.b16 %v4509, %v4508
    %v4586 = vpack.c.b16 %v4511, %v4510
    %v4587 = vpack.c.b16 %v4513, %v4512
    %v4588 = vpack.c.b16 %v4515, %v4514
    %v4589 = vpack.c.b16 %v4517, %v4516
    %v4590 = vpack.c.b16 %v4519, %v4518
    %v4591 = vpack.c.b16 %v4521, %v4520
    %v4592 = vpack.c.b16 %v4523, %v4522
    %v4593 = vpack.c.b16 %v4525, %v4524
    %v4594 = vpack.c.b16 %v4527, %v4526
    %v4595 = vpack.c.b16 %v4529, %v4528
    %v4596 = vpack.c.b16 %v4531, %v4530
    %v4597 = vpack.c.b16 %v4533, %v4532
    %4662 = vmatprep.subr.bf16.mxu0 0
    %4663 = vmatpush1.bf16.msra.mxu0 %v4534
    %4664 = vmatprep.subr.bf16.mxu0 0
    %4665 = vmatpush1.bf16.msra.mxu0 %v4535
    %4666 = vmatprep.subr.bf16.mxu0 0
    %4667 = vmatpush1.bf16.msra.mxu0 %v4536
    %4668 = vmatprep.subr.bf16.mxu0 0
    %4669 = vmatpush1.bf16.msra.mxu0 %v4537
    %4670 = vmatprep.subr.bf16.mxu0 0
    %4671 = vmatpush1.bf16.msra.mxu0 %v4538
    %4672 = vmatprep.subr.bf16.mxu0 0
    %4673 = vmatpush1.bf16.msra.mxu0 %v4539
    %4674 = vmatprep.subr.bf16.mxu0 0
    %4675 = vmatpush1.bf16.msra.mxu0 %v4540
    %4676 = vmatprep.subr.bf16.mxu0 0
    %4677 = vmatpush1.bf16.msra.mxu0 %v4541
    %4678 = vmatprep.subr.bf16.mxu0 0
    %4679 = vmatpush1.bf16.msra.mxu0 %v4542
    %4680 = vmatprep.subr.bf16.mxu0 0
    %4681 = vmatpush1.bf16.msra.mxu0 %v4543
    %4682 = vmatprep.subr.bf16.mxu0 0
    %4683 = vmatpush1.bf16.msra.mxu0 %v4544
    %4684 = vmatprep.subr.bf16.mxu0 0
    %4685 = vmatpush1.bf16.msra.mxu0 %v4545
    %4686 = vmatprep.subr.bf16.mxu0 0
    %4687 = vmatpush1.bf16.msra.mxu0 %v4546
    %4688 = vmatprep.subr.bf16.mxu0 0
    %4689 = vmatpush1.bf16.msra.mxu0 %v4547
    %4690 = vmatprep.subr.bf16.mxu0 0
    %4691 = vmatpush1.bf16.msra.mxu0 %v4548
    %4692 = vmatprep.subr.bf16.mxu0 0
    %4693 = vmatpush1.bf16.msra.mxu0 %v4549
    %4694 = vmatprep.mubr.bf16.mxu0 %v4136
    %4695 = vmatmul.mubr.bf16.gmra.mrb[0].mxu0 %v4135
    %v4696 = vpop.f32.mrb[0].mxu0
    %v4697 = vadd.f32 %v4276, %v4696
    %v4698 = vpop.f32.mrb[0].mxu0
    %v4699 = vpop.f32.mrb[0].mxu0
    %v4700 = vpop.f32.mrb[0].mxu0
    %4701 = vdwg.mxu0
    %4702 = vmatprep.subr.bf16.mxu0 0
    %4703 = vmatpush1.bf16.msra.mxu0 %v4550
    %4704 = vmatprep.subr.bf16.mxu0 0
    %4705 = vmatpush1.bf16.msra.mxu0 %v4551
    %4706 = vmatprep.subr.bf16.mxu0 0
    %4707 = vmatpush1.bf16.msra.mxu0 %v4552
    %4708 = vmatprep.subr.bf16.mxu0 0
    %4709 = vmatpush1.bf16.msra.mxu0 %v4553
    %4710 = vmatprep.subr.bf16.mxu0 0
    %4711 = vmatpush1.bf16.msra.mxu0 %v4554
    %4712 = vmatprep.subr.bf16.mxu0 0
    %4713 = vmatpush1.bf16.msra.mxu0 %v4555
    %4714 = vmatprep.subr.bf16.mxu0 0
    %4715 = vmatpush1.bf16.msra.mxu0 %v4556
    %4716 = vmatprep.subr.bf16.mxu0 0
    %4717 = vmatpush1.bf16.msra.mxu0 %v4557
    %4718 = vmatprep.subr.bf16.mxu0 0
    %4719 = vmatpush1.bf16.msra.mxu0 %v4558
    %4720 = vmatprep.subr.bf16.mxu0 0
    %4721 = vmatpush1.bf16.msra.mxu0 %v4559
    %4722 = vmatprep.subr.bf16.mxu0 0
    %4723 = vmatpush1.bf16.msra.mxu0 %v4560
    %4724 = vmatprep.subr.bf16.mxu0 0
    %4725 = vmatpush1.bf16.msra.mxu0 %v4561
    %4726 = vmatprep.subr.bf16.mxu0 0
    %4727 = vmatpush1.bf16.msra.mxu0 %v4562
    %4728 = vmatprep.subr.bf16.mxu0 0
    %4729 = vmatpush1.bf16.msra.mxu0 %v4563
    %4730 = vmatprep.subr.bf16.mxu0 0
    %4731 = vmatpush1.bf16.msra.mxu0 %v4564
    %4732 = vmatprep.subr.bf16.mxu0 0
    %4733 = vmatpush1.bf16.msra.mxu0 %v4565
    %4734 = vmatprep.mubr.bf16.mxu0 %v4138
    %4735 = vmatmul.mubr.bf16.gmra.mrb[0].mxu0 %v4137
    %v4736 = vpop.f32.mrb[0].mxu0
    %v4737 = vadd.f32 %v4697, %v4736
    %v4738 = vpop.f32.mrb[0].mxu0
    %v4739 = vpop.f32.mrb[0].mxu0
    %v4740 = vpop.f32.mrb[0].mxu0
    %4741 = vdwg.mxu0
    %4742 = vmatprep.subr.bf16.mxu0 0
    %4743 = vmatpush1.bf16.msra.mxu0 %v4566
    %4744 = vmatprep.subr.bf16.mxu0 0
    %4745 = vmatpush1.bf16.msra.mxu0 %v4567
    %4746 = vmatprep.subr.bf16.mxu0 0
    %4747 = vmatpush1.bf16.msra.mxu0 %v4568
    %4748 = vmatprep.subr.bf16.mxu0 0
    %4749 = vmatpush1.bf16.msra.mxu0 %v4569
    %4750 = vmatprep.subr.bf16.mxu0 0
    %4751 = vmatpush1.bf16.msra.mxu0 %v4570
    %4752 = vmatprep.subr.bf16.mxu0 0
    %4753 = vmatpush1.bf16.msra.mxu0 %v4571
    %4754 = vmatprep.subr.bf16.mxu0 0
    %4755 = vmatpush1.bf16.msra.mxu0 %v4572
    %4756 = vmatprep.subr.bf16.mxu0 0
    %4757 = vmatpush1.bf16.msra.mxu0 %v4573
    %4758 = vmatprep.subr.bf16.mxu0 0
    %4759 = vmatpush1.bf16.msra.mxu0 %v4574
    %4760 = vmatprep.subr.bf16.mxu0 0
    %4761 = vmatpush1.bf16.msra.mxu0 %v4575
    %4762 = vmatprep.subr.bf16.mxu0 0
    %4763 = vmatpush1.bf16.msra.mxu0 %v4576
    %4764 = vmatprep.subr.bf16.mxu0 0
    %4765 = vmatpush1.bf16.msra.mxu0 %v4577
    %4766 = vmatprep.subr.bf16.mxu0 0
    %4767 = vmatpush1.bf16.msra.mxu0 %v4578
    %4768 = vmatprep.subr.bf16.mxu0 0
    %4769 = vmatpush1.bf16.msra.mxu0 %v4579
    %4770 = vmatprep.subr.bf16.mxu0 0
    %4771 = vmatpush1.bf16.msra.mxu0 %v4580
    %4772 = vmatprep.subr.bf16.mxu0 0
    %4773 = vmatpush1.bf16.msra.mxu0 %v4581
    %4774 = vmatprep.mubr.bf16.mxu0 %v4140
    %4775 = vmatmul.mubr.bf16.gmra.mrb[0].mxu0 %v4139
    %v4776 = vpop.f32.mrb[0].mxu0
    %v4777 = vadd.f32 %v4737, %v4776
    %v4778 = vpop.f32.mrb[0].mxu0
    %v4779 = vpop.f32.mrb[0].mxu0
    %v4780 = vpop.f32.mrb[0].mxu0
    %4781 = vdwg.mxu0
    %4782 = vmatprep.subr.bf16.mxu0 0
    %4783 = vmatpush1.bf16.msra.mxu0 %v4582
    %4784 = vmatprep.subr.bf16.mxu0 0
    %4785 = vmatpush1.bf16.msra.mxu0 %v4583
    %4786 = vmatprep.subr.bf16.mxu0 0
    %4787 = vmatpush1.bf16.msra.mxu0 %v4584
    %4788 = vmatprep.subr.bf16.mxu0 0
    %4789 = vmatpush1.bf16.msra.mxu0 %v4585
    %4790 = vmatprep.subr.bf16.mxu0 0
    %4791 = vmatpush1.bf16.msra.mxu0 %v4586
    %4792 = vmatprep.subr.bf16.mxu0 0
    %4793 = vmatpush1.bf16.msra.mxu0 %v4587
    %4794 = vmatprep.subr.bf16.mxu0 0
    %4795 = vmatpush1.bf16.msra.mxu0 %v4588
    %4796 = vmatprep.subr.bf16.mxu0 0
    %4797 = vmatpush1.bf16.msra.mxu0 %v4589
    %4798 = vmatprep.subr.bf16.mxu0 0
    %4799 = vmatpush1.bf16.msra.mxu0 %v4590
    %4800 = vmatprep.subr.bf16.mxu0 0
    %4801 = vmatpush1.bf16.msra.mxu0 %v4591
    %4802 = vmatprep.subr.bf16.mxu0 0
    %4803 = vmatpush1.bf16.msra.mxu0 %v4592
    %4804 = vmatprep.subr.bf16.mxu0 0
    %4805 = vmatpush1.bf16.msra.mxu0 %v4593
    %4806 = vmatprep.subr.bf16.mxu0 0
    %4807 = vmatpush1.bf16.msra.mxu0 %v4594
    %4808 = vmatprep.subr.bf16.mxu0 0
    %4809 = vmatpush1.bf16.msra.mxu0 %v4595
    %4810 = vmatprep.subr.bf16.mxu0 0
    %4811 = vmatpush1.bf16.msra.mxu0 %v4596
    %4812 = vmatprep.subr.bf16.mxu0 0
    %4813 = vmatpush1.bf16.msra.mxu0 %v4597
    %4814 = vmatprep.mubr.bf16.mxu0 %v4142
    %4815 = vmatmul.mubr.bf16.gmra.mrb[0].mxu0 %v4141
    %v4816 = vpop.f32.mrb[0].mxu0
    %v4817 = vadd.f32 %v4777, %v4816
    %v4818 = vpop.f32.mrb[0].mxu0
    %v4819 = vpop.f32.mrb[0].mxu0
    %v4820 = vpop.f32.mrb[0].mxu0
    %4821 = vdwg.mxu0
    %4822 = vmax.xlane.f32.xlu0 %v4817
    %v4823 = vpop.xlane.xlu0 %4822
    %v4824 = vsub.f32 %v4817, %v4823
    %v4825 = vmul.f32 %v4824, 1.442695
    %v4826 = vpow.pop %v4825
    %4827 = vadd.xlane.f32.xlu0 %v4826
    %v4828 = vpop.xlane.xlu0 %4827
    %v4829 = vlog2.pop %v4828
    %v4830 = vmul.f32 %v4829, 0.6931472
    %v4831 = vsub.f32 %v4824, %v4830
    %4832 = vst [vmem:[#allocation14] sm:$0xff] %v4831
    // Predicated region
    $region58: #{tpu_custom_call.1} parent=1 // pred_check
      _
    $region59: #{tpu_custom_call.1} parent=1 // pred_check_branch
      %4834 = sbr.rel (0) target = $region61
    $region60: #{tpu_custom_call.1} parent=1 // pred_region
      %s4836 = ssub.s32 128, 128
      %4837 = vsyncadd [#allocation4], %s4836
      %s4839 = sshll.u32 [#allocation14], 4
      %s4840 = int_to_ptr.vmem [resolvable:$true] %s4839
      %4842 = dma.vmem_to_hbm [thread:$0]  %s4840, 128, %s7, [#allocation4]
    $region61: #{tpu_custom_call.1} parent=1 // pred_fallthru
      _
    // Predicated region
    $region62: #{tpu_custom_call.1} parent=1 // pred_check
      _
    $region63: #{tpu_custom_call.1} parent=1 // pred_check_branch
      %4844 = sbr.rel (0) target = $region65
    $region64: #{tpu_custom_call.1} parent=1 // pred_region
      %4845 = dma.done [#allocation4], 128
    $region65: #{tpu_custom_call.1} parent=1 // pred_fallthru
      _
    %4846 = vsyncpa [#allocation3], 1
    %4847 = vsyncpa [#allocation6], 1
    %4848 = vsyncpa [#allocation9], 1
    %4849 = vsyncpa [#allocation12], 1
    %4850 = vsyncpa [#allocation4], 1

</llo_original>
